<compile_context>
chip_gen: v6e
topology: v6e:2x2x1
jax: 0.10.0
libtpu: 0.0.40
codegen_flags: <defaults>
</compile_context>

<pallas_src>
import jax
import jax.numpy as jnp
from jax import lax
from jax.experimental import pallas as pl
from jax.experimental.pallas import tpu as pltpu

CHANNELS = 3
BOTTLENECK = 256
IN_FEATURES = 32 * 32 * CHANNELS  # 3072
H1, H2, H3, OUT = 1024, 512, BOTTLENECK, 10
OUT_PAD = 128                      # lane-dense final store / full MXU tile
BN_EPS = 1e-5


def _linear_relu_bn(h, w_ref, b_ref, g_ref, beta_ref, mask, inv_n):
    """Fused Linear(bf16 x bf16 -> f32 acc) -> ReLU -> BatchNorm1d (masked batch stats)."""
    # Hoisted single reads of the (1, N) vectors (kept in vregs, f32).
    b = b_ref[...]
    g = g_ref[...]
    beta = beta_ref[...]

    # MXU inputs in bf16, accumulate in f32.
    y = jnp.dot(h.astype(jnp.bfloat16), w_ref[...],
                preferred_element_type=jnp.float32) + b
    y = jnp.maximum(y, 0.0)

    # Masked training-mode batch statistics (biased variance) over the true batch
    # rows only; padded rows are excluded via `mask`.
    mean = jnp.sum(y * mask, axis=0, keepdims=True) * inv_n
    diff = (y - mean) * mask
    var = jnp.sum(diff * diff, axis=0, keepdims=True) * inv_n

    return (y - mean) * lax.rsqrt(var + BN_EPS) * g + beta


def mlp_kernel(nvalid_ref, x_ref,
               w1_ref, b1_ref, g1_ref, be1_ref,
               w2_ref, b2_ref, g2_ref, be2_ref,
               w3_ref, b3_ref, g3_ref, be3_ref,
               w4_ref, b4_ref,
               o_ref):
    n_valid = nvalid_ref[0]                       # true batch size (SMEM scalar)
    b_pad = x_ref.shape[0]

    row_ids = lax.broadcasted_iota(jnp.int32, (b_pad, 1), 0)
    mask = (row_ids < n_valid).astype(jnp.float32)    # (B_pad, 1), computed once
    inv_n = 1.0 / n_valid.astype(jnp.float32)

    h = x_ref[...]
    h = _linear_relu_bn(h, w1_ref, b1_ref, g1_ref, be1_ref, mask, inv_n)
    h = _linear_relu_bn(h, w2_ref, b2_ref, g2_ref, be2_ref, mask, inv_n)
    h = _linear_relu_bn(h, w3_ref, b3_ref, g3_ref, be3_ref, mask, inv_n)

    # Final Linear: (B_pad, 256) @ (256, 128) -> lane-dense unmasked store.
    o_ref[...] = (jnp.dot(h.astype(jnp.bfloat16), w4_ref[...],
                          preferred_element_type=jnp.float32)
                  + b4_ref[...]).astype(o_ref.dtype)


@jax.jit
def simple_mlp_forward(x_nchw, params):
    B = x_nchw.shape[0]
    x = x_nchw.reshape(B, -1).astype(jnp.float32)   # == torch x.view(-1, 32*32*C)

    # Pad batch to a multiple of 8 (sublane); BN stats are masked to the true B
    # inside the kernel, so padding is correctness-free.
    B_pad = max(8, ((B + 7) // 8) * 8)
    if B_pad != B:
        x = jnp.pad(x, ((0, B_pad - B), (0, 0)))
    n_valid = jnp.array([B], jnp.int32)

    # Zero-pad the last layer to 128 output lanes (unmasked vst + full MXU tile);
    # padded columns compute to exactly 0 and are sliced off below (~60 KiB extra
    # DMA, negligible).
    w4 = jnp.pad(params["w4"], ((0, 0), (0, OUT_PAD - OUT)))
    b4 = jnp.pad(params["b4"], ((0, 0), (0, OUT_PAD - OUT)))

    flat_params = [
        params["w1"], params["b1"], params["g1"], params["be1"],
        params["w2"], params["b2"], params["g2"], params["be2"],
        params["w3"], params["b3"], params["g3"], params["be3"],
        w4, b4,
    ]

    vmem = pl.BlockSpec(memory_space=pltpu.MemorySpace.VMEM)
    smem = pl.BlockSpec(memory_space=pltpu.MemorySpace.SMEM)

    out = pl.pallas_call(
        mlp_kernel,
        out_shape=jax.ShapeDtypeStruct((B_pad, OUT_PAD), jnp.float32),
        in_specs=[smem, vmem] + [vmem] * len(flat_params),
        out_specs=vmem,
        # Real footprint ~8 MiB (bf16 weights + tiny activations); 32 MiB leaves
        # compiler headroom and stays under v7x's 64 MiB physical VMEM.
        compiler_params=pltpu.CompilerParams(vmem_limit_bytes=32 * 1024 * 1024),
    )(n_valid, x, *flat_params)
    return out[:B, :OUT]


def init_params(key):
    """Deterministic init mimicking PyTorch defaults (uniform +-1/sqrt(fan_in)).

    Linear weights are stored bf16 (in, out); biases and BN params stay f32.
    """
    def linear(key, fan_in, fan_out):
        kw, kb = jax.random.split(key)
        bound = 1.0 / jnp.sqrt(fan_in)
        w = jax.random.uniform(kw, (fan_in, fan_out), jnp.float32, -bound, bound)
        b = jax.random.uniform(kb, (1, fan_out), jnp.float32, -bound, bound)
        return w.astype(jnp.bfloat16), b

    k1, k2, k3, k4 = jax.random.split(key, 4)
    w1, b1 = linear(k1, IN_FEATURES, H1)
    w2, b2 = linear(k2, H1, H2)
    w3, b3 = linear(k3, H2, H3)
    w4, b4 = linear(k4, H3, OUT)

    def bn(n):  # gamma=1, beta=0 (PyTorch default)
        return jnp.ones((1, n), jnp.float32), jnp.zeros((1, n), jnp.float32)

    g1, be1 = bn(H1)
    g2, be2 = bn(H2)
    g3, be3 = bn(H3)

    return dict(w1=w1, b1=b1, g1=g1, be1=be1,
                w2=w2, b2=b2, g2=g2, be2=be2,
                w3=w3, b3=b3, g3=g3, be3=be3,
                w4=w4, b4=b4)


def reference_forward(x_nchw, params):
    """Pure-JAX reference mirroring the kernel's bf16-weight / f32-math numerics."""
    B = x_nchw.shape[0]
    h = x_nchw.reshape(B, -1).astype(jnp.float32)

    def mm(h, w_bf16):
        return jnp.dot(h.astype(jnp.bfloat16).astype(jnp.float32),
                       w_bf16.astype(jnp.float32))

    def layer(h, w, b, g, be):
        y = mm(h, w) + b
        y = jnp.maximum(y, 0.0)
        m = jnp.mean(y, axis=0, keepdims=True)
        v = jnp.mean((y - m) ** 2, axis=0, keepdims=True)
        return (y - m) / jnp.sqrt(v + BN_EPS) * g + be

    h = layer(h, params["w1"], params["b1"], params["g1"], params["be1"])
    h = layer(h, params["w2"], params["b2"], params["g2"], params["be2"])
    h = layer(h, params["w3"], params["b3"], params["g3"], params["be3"])
    return mm(h, params["w4"]) + params["b4"]


if __name__ == "__main__":
    key = jax.random.PRNGKey(0)
    kx, kp = jax.random.split(key)

    B = 4
    x = jax.random.normal(kx, (B, CHANNELS, 32, 32), jnp.float32)
    params = init_params(kp)

    out = simple_mlp_forward(x, params)
    out = jax.block_until_ready(out)
    assert out.shape == (B, OUT), out.shape

    ref = reference_forward(x, params)
    assert jnp.allclose(out, ref, atol=1e-2, rtol=1e-2), (
        float(jnp.max(jnp.abs(out - ref))))

    print("KERNEL_OK")
</pallas_src>

<mosaic_0001>
module attributes {stable_mosaic.version = 11 : i64} {
  func.func @mlp_kernel(%arg0: memref<1xi32, #tpu.memory_space<smem>>, %arg1: memref<8x3072xf32, #tpu.memory_space<vmem>>, %arg2: memref<3072x1024xbf16, #tpu.memory_space<vmem>>, %arg3: memref<1x1024xf32, #tpu.memory_space<vmem>>, %arg4: memref<1x1024xf32, #tpu.memory_space<vmem>>, %arg5: memref<1x1024xf32, #tpu.memory_space<vmem>>, %arg6: memref<1024x512xbf16, #tpu.memory_space<vmem>>, %arg7: memref<1x512xf32, #tpu.memory_space<vmem>>, %arg8: memref<1x512xf32, #tpu.memory_space<vmem>>, %arg9: memref<1x512xf32, #tpu.memory_space<vmem>>, %arg10: memref<512x256xbf16, #tpu.memory_space<vmem>>, %arg11: memref<1x256xf32, #tpu.memory_space<vmem>>, %arg12: memref<1x256xf32, #tpu.memory_space<vmem>>, %arg13: memref<1x256xf32, #tpu.memory_space<vmem>>, %arg14: memref<256x128xbf16, #tpu.memory_space<vmem>>, %arg15: memref<1x128xf32, #tpu.memory_space<vmem>>, %arg16: memref<8x128xf32, #tpu.memory_space<vmem>>) attributes {dimension_semantics = [], scalar_prefetch = 0 : i64, scratch_operands = 0 : i64, tpu.core_type = #tpu.core_type<tc>} {
    %c0 = arith.constant 0 : index
    %0 = memref.load %arg0[%c0] : memref<1xi32, #tpu.memory_space<smem>>
    %1 = tpu.iota {dimensions = array<i32: 0>} : vector<8x1xi32>
    %2 = vector.broadcast %0 : i32 to vector<8x1xi32>
    %3 = arith.cmpi slt, %1, %2 : vector<8x1xi32>
    %4 = arith.extui %3 : vector<8x1xi1> to vector<8x1xi32>
    %5 = arith.sitofp %4 : vector<8x1xi32> to vector<8x1xf32>
    %6 = arith.sitofp %0 : i32 to f32
    %cst = arith.constant 1.000000e+00 : f32
    %7 = arith.divf %cst, %6 : f32
    %c0_0 = arith.constant 0 : index
    %c0_1 = arith.constant 0 : index
    %8 = vector.load %arg1[%c0_0, %c0_1] : memref<8x3072xf32, #tpu.memory_space<vmem>>, vector<8x3072xf32>
    %c0_2 = arith.constant 0 : index
    %c0_3 = arith.constant 0 : index
    %9 = vector.load %arg3[%c0_2, %c0_3] : memref<1x1024xf32, #tpu.memory_space<vmem>>, vector<1x1024xf32>
    %c0_4 = arith.constant 0 : index
    %c0_5 = arith.constant 0 : index
    %10 = vector.load %arg4[%c0_4, %c0_5] : memref<1x1024xf32, #tpu.memory_space<vmem>>, vector<1x1024xf32>
    %c0_6 = arith.constant 0 : index
    %c0_7 = arith.constant 0 : index
    %11 = vector.load %arg5[%c0_6, %c0_7] : memref<1x1024xf32, #tpu.memory_space<vmem>>, vector<1x1024xf32>
    %12 = arith.truncf %8 : vector<8x3072xf32> to vector<8x3072xbf16>
    %c0_8 = arith.constant 0 : index
    %c0_9 = arith.constant 0 : index
    %13 = vector.load %arg2[%c0_8, %c0_9] : memref<3072x1024xbf16, #tpu.memory_space<vmem>>, vector<3072x1024xbf16>
    %cst_10 = arith.constant dense<0.000000e+00> : vector<8x1024xf32>
    %14 = tpu.matmul %12, %13, %cst_10 {dimension_numbers = #tpu.dot_dimension_numbers<[1], [0], [0], [1], [0, 0, 1, 1], [], []>} : vector<8x3072xbf16>, vector<3072x1024xbf16>, vector<8x1024xf32> -> vector<8x1024xf32>
    %15 = vector.broadcast %9 : vector<1x1024xf32> to vector<8x1024xf32>
    %16 = arith.addf %14, %15 : vector<8x1024xf32>
    %cst_11 = arith.constant 0.000000e+00 : f32
    %17 = vector.broadcast %cst_11 : f32 to vector<8x1024xf32>
    %18 = arith.maximumf %16, %17 : vector<8x1024xf32>
    %19 = vector.broadcast %5 : vector<8x1xf32> to vector<8x1024xf32>
    %20 = arith.mulf %18, %19 : vector<8x1024xf32>
    %cst_12 = arith.constant dense<0.000000e+00> : vector<1024xf32>
    %21 = vector.multi_reduction <add>, %20, %cst_12 [0] : vector<8x1024xf32> to vector<1024xf32>
    %22 = vector.shape_cast %21 : vector<1024xf32> to vector<1x1024xf32>
    %23 = vector.broadcast %7 : f32 to vector<1x1024xf32>
    %24 = arith.mulf %22, %23 : vector<1x1024xf32>
    %25 = vector.broadcast %24 : vector<1x1024xf32> to vector<8x1024xf32>
    %26 = arith.subf %18, %25 : vector<8x1024xf32>
    %27 = vector.broadcast %5 : vector<8x1xf32> to vector<8x1024xf32>
    %28 = arith.mulf %26, %27 : vector<8x1024xf32>
    %29 = arith.mulf %28, %28 : vector<8x1024xf32>
    %cst_13 = arith.constant dense<0.000000e+00> : vector<1024xf32>
    %30 = vector.multi_reduction <add>, %29, %cst_13 [0] : vector<8x1024xf32> to vector<1024xf32>
    %31 = vector.shape_cast %30 : vector<1024xf32> to vector<1x1024xf32>
    %32 = vector.broadcast %7 : f32 to vector<1x1024xf32>
    %33 = arith.mulf %31, %32 : vector<1x1024xf32>
    %34 = vector.broadcast %24 : vector<1x1024xf32> to vector<8x1024xf32>
    %35 = arith.subf %18, %34 : vector<8x1024xf32>
    %cst_14 = arith.constant 9.99999974E-6 : f32
    %36 = vector.broadcast %cst_14 : f32 to vector<1x1024xf32>
    %37 = arith.addf %33, %36 : vector<1x1024xf32>
    %38 = math.rsqrt %37 : vector<1x1024xf32>
    %39 = vector.broadcast %38 : vector<1x1024xf32> to vector<8x1024xf32>
    %40 = arith.mulf %35, %39 : vector<8x1024xf32>
    %41 = vector.broadcast %10 : vector<1x1024xf32> to vector<8x1024xf32>
    %42 = arith.mulf %40, %41 : vector<8x1024xf32>
    %43 = vector.broadcast %11 : vector<1x1024xf32> to vector<8x1024xf32>
    %44 = arith.addf %42, %43 : vector<8x1024xf32>
    %c0_15 = arith.constant 0 : index
    %c0_16 = arith.constant 0 : index
    %45 = vector.load %arg7[%c0_15, %c0_16] : memref<1x512xf32, #tpu.memory_space<vmem>>, vector<1x512xf32>
    %c0_17 = arith.constant 0 : index
    %c0_18 = arith.constant 0 : index
    %46 = vector.load %arg8[%c0_17, %c0_18] : memref<1x512xf32, #tpu.memory_space<vmem>>, vector<1x512xf32>
    %c0_19 = arith.constant 0 : index
    %c0_20 = arith.constant 0 : index
    %47 = vector.load %arg9[%c0_19, %c0_20] : memref<1x512xf32, #tpu.memory_space<vmem>>, vector<1x512xf32>
    %48 = arith.truncf %44 : vector<8x1024xf32> to vector<8x1024xbf16>
    %c0_21 = arith.constant 0 : index
    %c0_22 = arith.constant 0 : index
    %49 = vector.load %arg6[%c0_21, %c0_22] : memref<1024x512xbf16, #tpu.memory_space<vmem>>, vector<1024x512xbf16>
    %cst_23 = arith.constant dense<0.000000e+00> : vector<8x512xf32>
    %50 = tpu.matmul %48, %49, %cst_23 {dimension_numbers = #tpu.dot_dimension_numbers<[1], [0], [0], [1], [0, 0, 1, 1], [], []>} : vector<8x1024xbf16>, vector<1024x512xbf16>, vector<8x512xf32> -> vector<8x512xf32>
    %51 = vector.broadcast %45 : vector<1x512xf32> to vector<8x512xf32>
    %52 = arith.addf %50, %51 : vector<8x512xf32>
    %cst_24 = arith.constant 0.000000e+00 : f32
    %53 = vector.broadcast %cst_24 : f32 to vector<8x512xf32>
    %54 = arith.maximumf %52, %53 : vector<8x512xf32>
    %55 = vector.broadcast %5 : vector<8x1xf32> to vector<8x512xf32>
    %56 = arith.mulf %54, %55 : vector<8x512xf32>
    %cst_25 = arith.constant dense<0.000000e+00> : vector<512xf32>
    %57 = vector.multi_reduction <add>, %56, %cst_25 [0] : vector<8x512xf32> to vector<512xf32>
    %58 = vector.shape_cast %57 : vector<512xf32> to vector<1x512xf32>
    %59 = vector.broadcast %7 : f32 to vector<1x512xf32>
    %60 = arith.mulf %58, %59 : vector<1x512xf32>
    %61 = vector.broadcast %60 : vector<1x512xf32> to vector<8x512xf32>
    %62 = arith.subf %54, %61 : vector<8x512xf32>
    %63 = vector.broadcast %5 : vector<8x1xf32> to vector<8x512xf32>
    %64 = arith.mulf %62, %63 : vector<8x512xf32>
    %65 = arith.mulf %64, %64 : vector<8x512xf32>
    %cst_26 = arith.constant dense<0.000000e+00> : vector<512xf32>
    %66 = vector.multi_reduction <add>, %65, %cst_26 [0] : vector<8x512xf32> to vector<512xf32>
    %67 = vector.shape_cast %66 : vector<512xf32> to vector<1x512xf32>
    %68 = vector.broadcast %7 : f32 to vector<1x512xf32>
    %69 = arith.mulf %67, %68 : vector<1x512xf32>
    %70 = vector.broadcast %60 : vector<1x512xf32> to vector<8x512xf32>
    %71 = arith.subf %54, %70 : vector<8x512xf32>
    %cst_27 = arith.constant 9.99999974E-6 : f32
    %72 = vector.broadcast %cst_27 : f32 to vector<1x512xf32>
    %73 = arith.addf %69, %72 : vector<1x512xf32>
    %74 = math.rsqrt %73 : vector<1x512xf32>
    %75 = vector.broadcast %74 : vector<1x512xf32> to vector<8x512xf32>
    %76 = arith.mulf %71, %75 : vector<8x512xf32>
    %77 = vector.broadcast %46 : vector<1x512xf32> to vector<8x512xf32>
    %78 = arith.mulf %76, %77 : vector<8x512xf32>
    %79 = vector.broadcast %47 : vector<1x512xf32> to vector<8x512xf32>
    %80 = arith.addf %78, %79 : vector<8x512xf32>
    %c0_28 = arith.constant 0 : index
    %c0_29 = arith.constant 0 : index
    %81 = vector.load %arg11[%c0_28, %c0_29] : memref<1x256xf32, #tpu.memory_space<vmem>>, vector<1x256xf32>
    %c0_30 = arith.constant 0 : index
    %c0_31 = arith.constant 0 : index
    %82 = vector.load %arg12[%c0_30, %c0_31] : memref<1x256xf32, #tpu.memory_space<vmem>>, vector<1x256xf32>
    %c0_32 = arith.constant 0 : index
    %c0_33 = arith.constant 0 : index
    %83 = vector.load %arg13[%c0_32, %c0_33] : memref<1x256xf32, #tpu.memory_space<vmem>>, vector<1x256xf32>
    %84 = arith.truncf %80 : vector<8x512xf32> to vector<8x512xbf16>
    %c0_34 = arith.constant 0 : index
    %c0_35 = arith.constant 0 : index
    %85 = vector.load %arg10[%c0_34, %c0_35] : memref<512x256xbf16, #tpu.memory_space<vmem>>, vector<512x256xbf16>
    %cst_36 = arith.constant dense<0.000000e+00> : vector<8x256xf32>
    %86 = tpu.matmul %84, %85, %cst_36 {dimension_numbers = #tpu.dot_dimension_numbers<[1], [0], [0], [1], [0, 0, 1, 1], [], []>} : vector<8x512xbf16>, vector<512x256xbf16>, vector<8x256xf32> -> vector<8x256xf32>
    %87 = vector.broadcast %81 : vector<1x256xf32> to vector<8x256xf32>
    %88 = arith.addf %86, %87 : vector<8x256xf32>
    %cst_37 = arith.constant 0.000000e+00 : f32
    %89 = vector.broadcast %cst_37 : f32 to vector<8x256xf32>
    %90 = arith.maximumf %88, %89 : vector<8x256xf32>
    %91 = vector.broadcast %5 : vector<8x1xf32> to vector<8x256xf32>
    %92 = arith.mulf %90, %91 : vector<8x256xf32>
    %cst_38 = arith.constant dense<0.000000e+00> : vector<256xf32>
    %93 = vector.multi_reduction <add>, %92, %cst_38 [0] : vector<8x256xf32> to vector<256xf32>
    %94 = vector.shape_cast %93 : vector<256xf32> to vector<1x256xf32>
    %95 = vector.broadcast %7 : f32 to vector<1x256xf32>
    %96 = arith.mulf %94, %95 : vector<1x256xf32>
    %97 = vector.broadcast %96 : vector<1x256xf32> to vector<8x256xf32>
    %98 = arith.subf %90, %97 : vector<8x256xf32>
    %99 = vector.broadcast %5 : vector<8x1xf32> to vector<8x256xf32>
    %100 = arith.mulf %98, %99 : vector<8x256xf32>
    %101 = arith.mulf %100, %100 : vector<8x256xf32>
    %cst_39 = arith.constant dense<0.000000e+00> : vector<256xf32>
    %102 = vector.multi_reduction <add>, %101, %cst_39 [0] : vector<8x256xf32> to vector<256xf32>
    %103 = vector.shape_cast %102 : vector<256xf32> to vector<1x256xf32>
    %104 = vector.broadcast %7 : f32 to vector<1x256xf32>
    %105 = arith.mulf %103, %104 : vector<1x256xf32>
    %106 = vector.broadcast %96 : vector<1x256xf32> to vector<8x256xf32>
    %107 = arith.subf %90, %106 : vector<8x256xf32>
    %cst_40 = arith.constant 9.99999974E-6 : f32
    %108 = vector.broadcast %cst_40 : f32 to vector<1x256xf32>
    %109 = arith.addf %105, %108 : vector<1x256xf32>
    %110 = math.rsqrt %109 : vector<1x256xf32>
    %111 = vector.broadcast %110 : vector<1x256xf32> to vector<8x256xf32>
    %112 = arith.mulf %107, %111 : vector<8x256xf32>
    %113 = vector.broadcast %82 : vector<1x256xf32> to vector<8x256xf32>
    %114 = arith.mulf %112, %113 : vector<8x256xf32>
    %115 = vector.broadcast %83 : vector<1x256xf32> to vector<8x256xf32>
    %116 = arith.addf %114, %115 : vector<8x256xf32>
    %117 = arith.truncf %116 : vector<8x256xf32> to vector<8x256xbf16>
    %c0_41 = arith.constant 0 : index
    %c0_42 = arith.constant 0 : index
    %118 = vector.load %arg14[%c0_41, %c0_42] : memref<256x128xbf16, #tpu.memory_space<vmem>>, vector<256x128xbf16>
    %cst_43 = arith.constant dense<0.000000e+00> : vector<8x128xf32>
    %119 = tpu.matmul %117, %118, %cst_43 {dimension_numbers = #tpu.dot_dimension_numbers<[1], [0], [0], [1], [0, 0, 1, 1], [], []>} : vector<8x256xbf16>, vector<256x128xbf16>, vector<8x128xf32> -> vector<8x128xf32>
    %c0_44 = arith.constant 0 : index
    %c0_45 = arith.constant 0 : index
    %120 = vector.load %arg15[%c0_44, %c0_45] : memref<1x128xf32, #tpu.memory_space<vmem>>, vector<1x128xf32>
    %121 = vector.broadcast %120 : vector<1x128xf32> to vector<8x128xf32>
    %122 = arith.addf %119, %121 : vector<8x128xf32>
    %c0_46 = arith.constant 0 : index
    %c0_47 = arith.constant 0 : index
    %123 = vector.load %arg16[%c0_46, %c0_47] : memref<8x128xf32, #tpu.memory_space<vmem>>, vector<8x128xf32>
    tpu.vector_store %arg16[%c0_46, %c0_47], %122 {strides = array<i32>} : memref<8x128xf32, #tpu.memory_space<vmem>>, vector<8x128xf32>,
    return
  }
}

</mosaic_0001>

<llo_original>
// kernel: simple_mlp_forward.1
$region0: #{simple_mlp_forward.1}
  #allocation0 [shape = 'u32[]', space=smem, size = 0x4, offset = 0x4, fixed_abs, tag = 'smem constant byte address 0x4 - core index']
  #allocation1 [shape = 'u32[144,128]{1,0:T(1,128)}', space=vmem, size = 0x12000, scoped, tag = 'internal scratch']
  #allocation2 [shape = 's32[1]{0:T(128)S(6)}', space=smem, size = 0x200, scoped, tag = 'scoped memory for simple_mlp_forward.1']
  %s0 = inlined_call_operand.<no memory space> [shape: s32[1], index: 0, kind: input, shape index: {}]
  %s1 = inlined_call_operand.vmem [shape: f32[8,3072], index: 1, kind: input, shape index: {}]
  %s2 = inlined_call_operand.hbm [shape: bf16[3072,1024], index: 2, kind: input, shape index: {}]
  %s3 = inlined_call_operand.hbm [shape: f32[1,1024], index: 3, kind: input, shape index: {}]
  %s4 = inlined_call_operand.hbm [shape: f32[1,1024], index: 4, kind: input, shape index: {}]
  %s5 = inlined_call_operand.hbm [shape: f32[1,1024], index: 5, kind: input, shape index: {}]
  %s6 = inlined_call_operand.hbm [shape: bf16[1024,512], index: 6, kind: input, shape index: {}]
  %s7 = inlined_call_operand.hbm [shape: f32[1,512], index: 7, kind: input, shape index: {}]
  %s8 = inlined_call_operand.hbm [shape: f32[1,512], index: 8, kind: input, shape index: {}]
  %s9 = inlined_call_operand.hbm [shape: f32[1,512], index: 9, kind: input, shape index: {}]
  %s10 = inlined_call_operand.hbm [shape: bf16[512,256], index: 10, kind: input, shape index: {}]
  %s11 = inlined_call_operand.hbm [shape: f32[1,256], index: 11, kind: input, shape index: {}]
  %s12 = inlined_call_operand.hbm [shape: f32[1,256], index: 12, kind: input, shape index: {}]
  %s13 = inlined_call_operand.hbm [shape: f32[1,256], index: 13, kind: input, shape index: {}]
  %s14 = inlined_call_operand.vmem [shape: bf16[256,128], index: 14, kind: input, shape index: {}]
  %s15 = inlined_call_operand.vmem [shape: f32[1,128], index: 15, kind: input, shape index: {}]
  %s16 = inlined_call_operand.vmem [shape: f32[8,128], index: 16, kind: output, shape index: {}]
  %s17 = sld [smem:[#allocation0]]
  $region122: #{simple_mlp_forward.1} parent=0
    _
  %s19 = ssub.s32 1, %s17
  %s20 = scalar_select 0, %s19, %s17
  %21 = sst [smem:[#allocation2]] %s0
  $region1: #{simple_mlp_forward.1} parent=0
    #allocation3 [shape = 'u8[6291456]{0}', space=vmem, size = 0x600000, scoped, tag = 'input window, operand 2, single buffered']
    #allocation4 [shape = 's32[1]{0}', space=sflag, size = 0x4, scoped, tag = 'scoped memory for simple_mlp_forward.1']
    #allocation5 [shape = 'u8[4096]{0}', space=vmem, size = 0x1000, scoped, tag = 'input window, operand 3, single buffered']
    #allocation6 [shape = 's32[1]{0}', space=sflag, size = 0x4, scoped, tag = 'scoped memory for simple_mlp_forward.1']
    #allocation7 [shape = 'u8[4096]{0}', space=vmem, size = 0x1000, scoped, tag = 'input window, operand 4, single buffered']
    #allocation8 [shape = 'u8[4096]{0}', space=vmem, size = 0x1000, scoped, tag = 'input window, operand 5, single buffered']
    #allocation9 [shape = 's32[1]{0}', space=sflag, size = 0x4, scoped, tag = 'scoped memory for simple_mlp_forward.1']
    #allocation10 [shape = 'u8[1048576]{0}', space=vmem, size = 0x100000, scoped, tag = 'input window, operand 6, single buffered']
    #allocation11 [shape = 'u8[2048]{0}', space=vmem, size = 0x800, scoped, tag = 'input window, operand 7, single buffered']
    #allocation12 [shape = 's32[1]{0}', space=sflag, size = 0x4, scoped, tag = 'scoped memory for simple_mlp_forward.1']
    #allocation13 [shape = 'u8[2048]{0}', space=vmem, size = 0x800, scoped, tag = 'input window, operand 8, single buffered']
    #allocation14 [shape = 'u8[2048]{0}', space=vmem, size = 0x800, scoped, tag = 'input window, operand 9, single buffered']
    #allocation15 [shape = 's32[1]{0}', space=sflag, size = 0x4, scoped, tag = 'scoped memory for simple_mlp_forward.1']
    #allocation16 [shape = 'u8[262144]{0}', space=vmem, size = 0x40000, scoped, tag = 'input window, operand 10, single buffered']
    #allocation17 [shape = 'u8[1024]{0}', space=vmem, size = 0x400, scoped, tag = 'input window, operand 11, single buffered']
    #allocation18 [shape = 's32[1]{0}', space=sflag, size = 0x4, scoped, tag = 'scoped memory for simple_mlp_forward.1']
    #allocation19 [shape = 'u8[1024]{0}', space=vmem, size = 0x400, scoped, tag = 'input window, operand 12, single buffered']
    #allocation20 [shape = 'u8[1024]{0}', space=vmem, size = 0x400, scoped, tag = 'input window, operand 13, single buffered']
    #allocation21 [shape = 's32[1]{0}', space=sflag, size = 0x4, scoped, tag = 'scoped memory for simple_mlp_forward.1']
    %22 = vsyncpa [#allocation4], 0
    %23 = vsyncpa [#allocation6], 0
    %24 = vsyncpa [#allocation9], 0
    %25 = vsyncpa [#allocation12], 0
    %26 = vsyncpa [#allocation15], 0
    %27 = vsyncpa [#allocation18], 0
    %28 = vsyncpa [#allocation21], 0
    // Predicated region
    $region2: #{simple_mlp_forward.1} parent=1 // pred_check
      _
    $region3: #{simple_mlp_forward.1} parent=1 // pred_check_branch
      %30 = sbr.rel (0) target = $region5
    $region4: #{simple_mlp_forward.1} parent=1 // pred_region
      _
    $region5: #{simple_mlp_forward.1} parent=1 // pred_fallthru
      _
    // Predicated region
    $region6: #{simple_mlp_forward.1} parent=1 // pred_check
      _
    $region7: #{simple_mlp_forward.1} parent=1 // pred_check_branch
      %32 = sbr.rel (0) target = $region9
    $region8: #{simple_mlp_forward.1} parent=1 // pred_region
      _
    $region9: #{simple_mlp_forward.1} parent=1 // pred_fallthru
      _
    // Predicated region
    $region10: #{simple_mlp_forward.1} parent=1 // pred_check
      _
    $region11: #{simple_mlp_forward.1} parent=1 // pred_check_branch
      %34 = sbr.rel (0) target = $region13
    $region12: #{simple_mlp_forward.1} parent=1 // pred_region
      %s36 = ssub.s32 196608, 196608
      %37 = vsyncadd [#allocation4], %s36
      %s38 = sshll.u32 [#allocation3], 4
      %s39 = int_to_ptr.vmem [resolvable:$true] %s38
      %44 = dma.hbm_to_vmem [thread:$0]  %s2, 196608, %s39, [#allocation4], 512, 512, 32
    $region13: #{simple_mlp_forward.1} parent=1 // pred_fallthru
      _
    // Predicated region
    $region14: #{simple_mlp_forward.1} parent=1 // pred_check
      _
    $region15: #{simple_mlp_forward.1} parent=1 // pred_check_branch
      %46 = sbr.rel (0) target = $region17
    $region16: #{simple_mlp_forward.1} parent=1 // pred_region
      %s48 = ssub.s32 128, 128
      %49 = vsyncadd [#allocation6], %s48
      %s51 = sshll.u32 [#allocation5], 4
      %s52 = int_to_ptr.vmem [resolvable:$true] %s51
      %54 = dma.hbm_to_vmem [thread:$0]  %s3, 128, %s52, [#allocation6]
    $region17: #{simple_mlp_forward.1} parent=1 // pred_fallthru
      _
    // Predicated region
    $region18: #{simple_mlp_forward.1} parent=1 // pred_check
      _
    $region19: #{simple_mlp_forward.1} parent=1 // pred_check_branch
      %56 = sbr.rel (0) target = $region21
    $region20: #{simple_mlp_forward.1} parent=1 // pred_region
      %s58 = ssub.s32 128, 128
      %59 = vsyncadd [#allocation6], %s58
      %s61 = sshll.u32 [#allocation7], 4
      %s62 = int_to_ptr.vmem [resolvable:$true] %s61
      %64 = dma.hbm_to_vmem [thread:$0]  %s4, 128, %s62, [#allocation6]
    $region21: #{simple_mlp_forward.1} parent=1 // pred_fallthru
      _
    // Predicated region
    $region22: #{simple_mlp_forward.1} parent=1 // pred_check
      _
    $region23: #{simple_mlp_forward.1} parent=1 // pred_check_branch
      %66 = sbr.rel (0) target = $region25
    $region24: #{simple_mlp_forward.1} parent=1 // pred_region
      %s68 = ssub.s32 128, 128
      %69 = vsyncadd [#allocation9], %s68
      %s71 = sshll.u32 [#allocation8], 4
      %s72 = int_to_ptr.vmem [resolvable:$true] %s71
      %74 = dma.hbm_to_vmem [thread:$0]  %s5, 128, %s72, [#allocation9]
    $region25: #{simple_mlp_forward.1} parent=1 // pred_fallthru
      _
    // Predicated region
    $region26: #{simple_mlp_forward.1} parent=1 // pred_check
      _
    $region27: #{simple_mlp_forward.1} parent=1 // pred_check_branch
      %76 = sbr.rel (0) target = $region29
    $region28: #{simple_mlp_forward.1} parent=1 // pred_region
      %s78 = ssub.s32 32768, 32768
      %79 = vsyncadd [#allocation9], %s78
      %s80 = sshll.u32 [#allocation10], 4
      %s81 = int_to_ptr.vmem [resolvable:$true] %s80
      %86 = dma.hbm_to_vmem [thread:$0]  %s6, 32768, %s81, [#allocation9], 256, 256, 16
    $region29: #{simple_mlp_forward.1} parent=1 // pred_fallthru
      _
    // Predicated region
    $region30: #{simple_mlp_forward.1} parent=1 // pred_check
      _
    $region31: #{simple_mlp_forward.1} parent=1 // pred_check_branch
      %88 = sbr.rel (0) target = $region33
    $region32: #{simple_mlp_forward.1} parent=1 // pred_region
      %s90 = ssub.s32 64, 64
      %91 = vsyncadd [#allocation12], %s90
      %s93 = sshll.u32 [#allocation11], 4
      %s94 = int_to_ptr.vmem [resolvable:$true] %s93
      %96 = dma.hbm_to_vmem [thread:$0]  %s7, 64, %s94, [#allocation12]
    $region33: #{simple_mlp_forward.1} parent=1 // pred_fallthru
      _
    // Predicated region
    $region34: #{simple_mlp_forward.1} parent=1 // pred_check
      _
    $region35: #{simple_mlp_forward.1} parent=1 // pred_check_branch
      %98 = sbr.rel (0) target = $region37
    $region36: #{simple_mlp_forward.1} parent=1 // pred_region
      %s100 = ssub.s32 64, 64
      %101 = vsyncadd [#allocation12], %s100
      %s103 = sshll.u32 [#allocation13], 4
      %s104 = int_to_ptr.vmem [resolvable:$true] %s103
      %106 = dma.hbm_to_vmem [thread:$0]  %s8, 64, %s104, [#allocation12]
    $region37: #{simple_mlp_forward.1} parent=1 // pred_fallthru
      _
    // Predicated region
    $region38: #{simple_mlp_forward.1} parent=1 // pred_check
      _
    $region39: #{simple_mlp_forward.1} parent=1 // pred_check_branch
      %108 = sbr.rel (0) target = $region41
    $region40: #{simple_mlp_forward.1} parent=1 // pred_region
      %s110 = ssub.s32 64, 64
      %111 = vsyncadd [#allocation15], %s110
      %s113 = sshll.u32 [#allocation14], 4
      %s114 = int_to_ptr.vmem [resolvable:$true] %s113
      %116 = dma.hbm_to_vmem [thread:$0]  %s9, 64, %s114, [#allocation15]
    $region41: #{simple_mlp_forward.1} parent=1 // pred_fallthru
      _
    // Predicated region
    $region42: #{simple_mlp_forward.1} parent=1 // pred_check
      _
    $region43: #{simple_mlp_forward.1} parent=1 // pred_check_branch
      %118 = sbr.rel (0) target = $region45
    $region44: #{simple_mlp_forward.1} parent=1 // pred_region
      %s120 = ssub.s32 8192, 8192
      %121 = vsyncadd [#allocation15], %s120
      %s122 = sshll.u32 [#allocation16], 4
      %s123 = int_to_ptr.vmem [resolvable:$true] %s122
      %128 = dma.hbm_to_vmem [thread:$0]  %s10, 8192, %s123, [#allocation15], 128, 128, 8
    $region45: #{simple_mlp_forward.1} parent=1 // pred_fallthru
      _
    // Predicated region
    $region46: #{simple_mlp_forward.1} parent=1 // pred_check
      _
    $region47: #{simple_mlp_forward.1} parent=1 // pred_check_branch
      %130 = sbr.rel (0) target = $region49
    $region48: #{simple_mlp_forward.1} parent=1 // pred_region
      %s132 = ssub.s32 32, 32
      %133 = vsyncadd [#allocation18], %s132
      %s135 = sshll.u32 [#allocation17], 4
      %s136 = int_to_ptr.vmem [resolvable:$true] %s135
      %138 = dma.hbm_to_vmem [thread:$0]  %s11, 32, %s136, [#allocation18]
    $region49: #{simple_mlp_forward.1} parent=1 // pred_fallthru
      _
    // Predicated region
    $region50: #{simple_mlp_forward.1} parent=1 // pred_check
      _
    $region51: #{simple_mlp_forward.1} parent=1 // pred_check_branch
      %140 = sbr.rel (0) target = $region53
    $region52: #{simple_mlp_forward.1} parent=1 // pred_region
      %s142 = ssub.s32 32, 32
      %143 = vsyncadd [#allocation18], %s142
      %s145 = sshll.u32 [#allocation19], 4
      %s146 = int_to_ptr.vmem [resolvable:$true] %s145
      %148 = dma.hbm_to_vmem [thread:$0]  %s12, 32, %s146, [#allocation18]
    $region53: #{simple_mlp_forward.1} parent=1 // pred_fallthru
      _
    // Predicated region
    $region54: #{simple_mlp_forward.1} parent=1 // pred_check
      _
    $region55: #{simple_mlp_forward.1} parent=1 // pred_check_branch
      %150 = sbr.rel (0) target = $region57
    $region56: #{simple_mlp_forward.1} parent=1 // pred_region
      %s152 = ssub.s32 32, 32
      %153 = vsyncadd [#allocation21], %s152
      %s155 = sshll.u32 [#allocation20], 4
      %s156 = int_to_ptr.vmem [resolvable:$true] %s155
      %158 = dma.hbm_to_vmem [thread:$0]  %s13, 32, %s156, [#allocation21]
    $region57: #{simple_mlp_forward.1} parent=1 // pred_fallthru
      _
    // Predicated region
    $region58: #{simple_mlp_forward.1} parent=1 // pred_check
      _
    $region59: #{simple_mlp_forward.1} parent=1 // pred_check_branch
      %160 = sbr.rel (0) target = $region61
    $region60: #{simple_mlp_forward.1} parent=1 // pred_region
      _
    $region61: #{simple_mlp_forward.1} parent=1 // pred_fallthru
      _
    // Predicated region
    $region62: #{simple_mlp_forward.1} parent=1 // pred_check
      _
    $region63: #{simple_mlp_forward.1} parent=1 // pred_check_branch
      %162 = sbr.rel (0) target = $region65
    $region64: #{simple_mlp_forward.1} parent=1 // pred_region
      _
    $region65: #{simple_mlp_forward.1} parent=1 // pred_fallthru
      _
    // Predicated region
    $region66: #{simple_mlp_forward.1} parent=1 // pred_check
      _
    $region67: #{simple_mlp_forward.1} parent=1 // pred_check_branch
      %164 = sbr.rel (0) target = $region69
    $region68: #{simple_mlp_forward.1} parent=1 // pred_region
      %165 = dma.done [#allocation4], 196608
    $region69: #{simple_mlp_forward.1} parent=1 // pred_fallthru
      _
    // Predicated region
    $region70: #{simple_mlp_forward.1} parent=1 // pred_check
      _
    $region71: #{simple_mlp_forward.1} parent=1 // pred_check_branch
      %167 = sbr.rel (0) target = $region73
    $region72: #{simple_mlp_forward.1} parent=1 // pred_region
      %168 = dma.done [#allocation6], 128
    $region73: #{simple_mlp_forward.1} parent=1 // pred_fallthru
      _
    // Predicated region
    $region74: #{simple_mlp_forward.1} parent=1 // pred_check
      _
    $region75: #{simple_mlp_forward.1} parent=1 // pred_check_branch
      %170 = sbr.rel (0) target = $region77
    $region76: #{simple_mlp_forward.1} parent=1 // pred_region
      %171 = dma.done [#allocation6], 128
    $region77: #{simple_mlp_forward.1} parent=1 // pred_fallthru
      _
    // Predicated region
    $region78: #{simple_mlp_forward.1} parent=1 // pred_check
      _
    $region79: #{simple_mlp_forward.1} parent=1 // pred_check_branch
      %173 = sbr.rel (0) target = $region81
    $region80: #{simple_mlp_forward.1} parent=1 // pred_region
      %174 = dma.done [#allocation9], 128
    $region81: #{simple_mlp_forward.1} parent=1 // pred_fallthru
      _
    // Predicated region
    $region82: #{simple_mlp_forward.1} parent=1 // pred_check
      _
    $region83: #{simple_mlp_forward.1} parent=1 // pred_check_branch
      %176 = sbr.rel (0) target = $region85
    $region84: #{simple_mlp_forward.1} parent=1 // pred_region
      %177 = dma.done [#allocation9], 32768
    $region85: #{simple_mlp_forward.1} parent=1 // pred_fallthru
      _
    // Predicated region
    $region86: #{simple_mlp_forward.1} parent=1 // pred_check
      _
    $region87: #{simple_mlp_forward.1} parent=1 // pred_check_branch
      %179 = sbr.rel (0) target = $region89
    $region88: #{simple_mlp_forward.1} parent=1 // pred_region
      %180 = dma.done [#allocation12], 64
    $region89: #{simple_mlp_forward.1} parent=1 // pred_fallthru
      _
    // Predicated region
    $region90: #{simple_mlp_forward.1} parent=1 // pred_check
      _
    $region91: #{simple_mlp_forward.1} parent=1 // pred_check_branch
      %182 = sbr.rel (0) target = $region93
    $region92: #{simple_mlp_forward.1} parent=1 // pred_region
      %183 = dma.done [#allocation12], 64
    $region93: #{simple_mlp_forward.1} parent=1 // pred_fallthru
      _
    // Predicated region
    $region94: #{simple_mlp_forward.1} parent=1 // pred_check
      _
    $region95: #{simple_mlp_forward.1} parent=1 // pred_check_branch
      %185 = sbr.rel (0) target = $region97
    $region96: #{simple_mlp_forward.1} parent=1 // pred_region
      %186 = dma.done [#allocation15], 64
    $region97: #{simple_mlp_forward.1} parent=1 // pred_fallthru
      _
    // Predicated region
    $region98: #{simple_mlp_forward.1} parent=1 // pred_check
      _
    $region99: #{simple_mlp_forward.1} parent=1 // pred_check_branch
      %188 = sbr.rel (0) target = $region101
    $region100: #{simple_mlp_forward.1} parent=1 // pred_region
      %189 = dma.done [#allocation15], 8192
    $region101: #{simple_mlp_forward.1} parent=1 // pred_fallthru
      _
    // Predicated region
    $region102: #{simple_mlp_forward.1} parent=1 // pred_check
      _
    $region103: #{simple_mlp_forward.1} parent=1 // pred_check_branch
      %191 = sbr.rel (0) target = $region105
    $region104: #{simple_mlp_forward.1} parent=1 // pred_region
      %192 = dma.done [#allocation18], 32
    $region105: #{simple_mlp_forward.1} parent=1 // pred_fallthru
      _
    // Predicated region
    $region106: #{simple_mlp_forward.1} parent=1 // pred_check
      _
    $region107: #{simple_mlp_forward.1} parent=1 // pred_check_branch
      %194 = sbr.rel (0) target = $region109
    $region108: #{simple_mlp_forward.1} parent=1 // pred_region
      %195 = dma.done [#allocation18], 32
    $region109: #{simple_mlp_forward.1} parent=1 // pred_fallthru
      _
    // Predicated region
    $region110: #{simple_mlp_forward.1} parent=1 // pred_check
      _
    $region111: #{simple_mlp_forward.1} parent=1 // pred_check_branch
      %197 = sbr.rel (0) target = $region113
    $region112: #{simple_mlp_forward.1} parent=1 // pred_region
      %198 = dma.done [#allocation21], 32
    $region113: #{simple_mlp_forward.1} parent=1 // pred_fallthru
      _
    %s200 = sld [smem:[#allocation2]]
    %v201 = vlaneseq
    %v202 = vshrl.u32 %v201, 7
    %v203 = vstv %s200
    %vm204 = vcmp.lt.s32.totalorder %v202, %v203
    %v205 = vsel %vm204, 1, 0
    %v206 = vcvt.s32.f32 %v205
    %s207 = scvt.s32.f32 %s200
    %v208 = vstv %s207
    %v209 = vrcp.pop %v208
    %s210 = vtos %v209
    %v211 = vld [vmem:[%s1] sm:$0xff]
    %v212 = vld [vmem:[%s1 + $0x8] sm:$0xff]
    %v213 = vld [vmem:[%s1 + $0x10] sm:$0xff]
    %v214 = vld [vmem:[%s1 + $0x18] sm:$0xff]
    %v215 = vld [vmem:[%s1 + $0x20] sm:$0xff]
    %v216 = vld [vmem:[%s1 + $0x28] sm:$0xff]
    %v217 = vld [vmem:[%s1 + $0x30] sm:$0xff]
    %v218 = vld [vmem:[%s1 + $0x38] sm:$0xff]
    %v219 = vld [vmem:[%s1 + $0x40] sm:$0xff]
    %v220 = vld [vmem:[%s1 + $0x48] sm:$0xff]
    %v221 = vld [vmem:[%s1 + $0x50] sm:$0xff]
    %v222 = vld [vmem:[%s1 + $0x58] sm:$0xff]
    %v223 = vld [vmem:[%s1 + $0x60] sm:$0xff]
    %v224 = vld [vmem:[%s1 + $0x68] sm:$0xff]
    %v225 = vld [vmem:[%s1 + $0x70] sm:$0xff]
    %v226 = vld [vmem:[%s1 + $0x78] sm:$0xff]
    %v227 = vld [vmem:[%s1 + $0x80] sm:$0xff]
    %v228 = vld [vmem:[%s1 + $0x88] sm:$0xff]
    %v229 = vld [vmem:[%s1 + $0x90] sm:$0xff]
    %v230 = vld [vmem:[%s1 + $0x98] sm:$0xff]
    %v231 = vld [vmem:[%s1 + $0xa0] sm:$0xff]
    %v232 = vld [vmem:[%s1 + $0xa8] sm:$0xff]
    %v233 = vld [vmem:[%s1 + $0xb0] sm:$0xff]
    %v234 = vld [vmem:[%s1 + $0xb8] sm:$0xff]
    %v235 = vld [vmem:[#allocation5] sm:$0xff]
    %v236 = vld [vmem:[#allocation7] sm:$0xff]
    %v237 = vld [vmem:[#allocation8] sm:$0xff]
    %v238 = vpack.c.bf16 %v211, %v211
    %v239 = vpack.c.bf16 %v212, %v212
    %v240 = vpack.c.bf16 %v213, %v213
    %v241 = vpack.c.bf16 %v214, %v214
    %v242 = vpack.c.bf16 %v215, %v215
    %v243 = vpack.c.bf16 %v216, %v216
    %v244 = vpack.c.bf16 %v217, %v217
    %v245 = vpack.c.bf16 %v218, %v218
    %v246 = vpack.c.bf16 %v219, %v219
    %v247 = vpack.c.bf16 %v220, %v220
    %v248 = vpack.c.bf16 %v221, %v221
    %v249 = vpack.c.bf16 %v222, %v222
    %v250 = vpack.c.bf16 %v223, %v223
    %v251 = vpack.c.bf16 %v224, %v224
    %v252 = vpack.c.bf16 %v225, %v225
    %v253 = vpack.c.bf16 %v226, %v226
    %v254 = vpack.c.bf16 %v227, %v227
    %v255 = vpack.c.bf16 %v228, %v228
    %v256 = vpack.c.bf16 %v229, %v229
    %v257 = vpack.c.bf16 %v230, %v230
    %v258 = vpack.c.bf16 %v231, %v231
    %v259 = vpack.c.bf16 %v232, %v232
    %v260 = vpack.c.bf16 %v233, %v233
    %v261 = vpack.c.bf16 %v234, %v234
    %v262 = vld [vmem:[#allocation3] sm:$0xff]
    %v263 = vld [vmem:[#allocation3 + $0x8] sm:$0xff]
    %v264 = vld [vmem:[#allocation3 + $0x10] sm:$0xff]
    %v265 = vld [vmem:[#allocation3 + $0x18] sm:$0xff]
    %v266 = vld [vmem:[#allocation3 + $0x20] sm:$0xff]
    %v267 = vld [vmem:[#allocation3 + $0x28] sm:$0xff]
    %v268 = vld [vmem:[#allocation3 + $0x30] sm:$0xff]
    %v269 = vld [vmem:[#allocation3 + $0x38] sm:$0xff]
    %v270 = vld [vmem:[#allocation3 + $0x40] sm:$0xff]
    %v271 = vld [vmem:[#allocation3 + $0x48] sm:$0xff]
    %v272 = vld [vmem:[#allocation3 + $0x50] sm:$0xff]
    %v273 = vld [vmem:[#allocation3 + $0x58] sm:$0xff]
    %v274 = vld [vmem:[#allocation3 + $0x60] sm:$0xff]
    %v275 = vld [vmem:[#allocation3 + $0x68] sm:$0xff]
    %v276 = vld [vmem:[#allocation3 + $0x70] sm:$0xff]
    %v277 = vld [vmem:[#allocation3 + $0x78] sm:$0xff]
    %v278 = vld [vmem:[#allocation3 + $0x80] sm:$0xff]
    %v279 = vld [vmem:[#allocation3 + $0x88] sm:$0xff]
    %v280 = vld [vmem:[#allocation3 + $0x90] sm:$0xff]
    %v281 = vld [vmem:[#allocation3 + $0x98] sm:$0xff]
    %v282 = vld [vmem:[#allocation3 + $0xa0] sm:$0xff]
    %v283 = vld [vmem:[#allocation3 + $0xa8] sm:$0xff]
    %v284 = vld [vmem:[#allocation3 + $0xb0] sm:$0xff]
    %v285 = vld [vmem:[#allocation3 + $0xb8] sm:$0xff]
    %v286 = vld [vmem:[#allocation3 + $0xc0] sm:$0xff]
    %v287 = vld [vmem:[#allocation3 + $0xc8] sm:$0xff]
    %v288 = vld [vmem:[#allocation3 + $0xd0] sm:$0xff]
    %v289 = vld [vmem:[#allocation3 + $0xd8] sm:$0xff]
    %v290 = vld [vmem:[#allocation3 + $0xe0] sm:$0xff]
    %v291 = vld [vmem:[#allocation3 + $0xe8] sm:$0xff]
    %v292 = vld [vmem:[#allocation3 + $0xf0] sm:$0xff]
    %v293 = vld [vmem:[#allocation3 + $0xf8] sm:$0xff]
    %v294 = vld [vmem:[#allocation3 + $0x100] sm:$0xff]
    %v295 = vld [vmem:[#allocation3 + $0x108] sm:$0xff]
    %v296 = vld [vmem:[#allocation3 + $0x110] sm:$0xff]
    %v297 = vld [vmem:[#allocation3 + $0x118] sm:$0xff]
    %v298 = vld [vmem:[#allocation3 + $0x120] sm:$0xff]
    %v299 = vld [vmem:[#allocation3 + $0x128] sm:$0xff]
    %v300 = vld [vmem:[#allocation3 + $0x130] sm:$0xff]
    %v301 = vld [vmem:[#allocation3 + $0x138] sm:$0xff]
    %v302 = vld [vmem:[#allocation3 + $0x140] sm:$0xff]
    %v303 = vld [vmem:[#allocation3 + $0x148] sm:$0xff]
    %v304 = vld [vmem:[#allocation3 + $0x150] sm:$0xff]
    %v305 = vld [vmem:[#allocation3 + $0x158] sm:$0xff]
    %v306 = vld [vmem:[#allocation3 + $0x160] sm:$0xff]
    %v307 = vld [vmem:[#allocation3 + $0x168] sm:$0xff]
    %v308 = vld [vmem:[#allocation3 + $0x170] sm:$0xff]
    %v309 = vld [vmem:[#allocation3 + $0x178] sm:$0xff]
    %v310 = vld [vmem:[#allocation3 + $0x180] sm:$0xff]
    %v311 = vld [vmem:[#allocation3 + $0x188] sm:$0xff]
    %v312 = vld [vmem:[#allocation3 + $0x190] sm:$0xff]
    %v313 = vld [vmem:[#allocation3 + $0x198] sm:$0xff]
    %v314 = vld [vmem:[#allocation3 + $0x1a0] sm:$0xff]
    %v315 = vld [vmem:[#allocation3 + $0x1a8] sm:$0xff]
    %v316 = vld [vmem:[#allocation3 + $0x1b0] sm:$0xff]
    %v317 = vld [vmem:[#allocation3 + $0x1b8] sm:$0xff]
    %v318 = vld [vmem:[#allocation3 + $0x1c0] sm:$0xff]
    %v319 = vld [vmem:[#allocation3 + $0x1c8] sm:$0xff]
    %v320 = vld [vmem:[#allocation3 + $0x1d0] sm:$0xff]
    %v321 = vld [vmem:[#allocation3 + $0x1d8] sm:$0xff]
    %v322 = vld [vmem:[#allocation3 + $0x1e0] sm:$0xff]
    %v323 = vld [vmem:[#allocation3 + $0x1e8] sm:$0xff]
    %v324 = vld [vmem:[#allocation3 + $0x1f0] sm:$0xff]
    %v325 = vld [vmem:[#allocation3 + $0x1f8] sm:$0xff]
    %v326 = vld [vmem:[#allocation3 + $0x200] sm:$0xff]
    %v327 = vld [vmem:[#allocation3 + $0x208] sm:$0xff]
    %v328 = vld [vmem:[#allocation3 + $0x210] sm:$0xff]
    %v329 = vld [vmem:[#allocation3 + $0x218] sm:$0xff]
    %v330 = vld [vmem:[#allocation3 + $0x220] sm:$0xff]
    %v331 = vld [vmem:[#allocation3 + $0x228] sm:$0xff]
    %v332 = vld [vmem:[#allocation3 + $0x230] sm:$0xff]
    %v333 = vld [vmem:[#allocation3 + $0x238] sm:$0xff]
    %v334 = vld [vmem:[#allocation3 + $0x240] sm:$0xff]
    %v335 = vld [vmem:[#allocation3 + $0x248] sm:$0xff]
    %v336 = vld [vmem:[#allocation3 + $0x250] sm:$0xff]
    %v337 = vld [vmem:[#allocation3 + $0x258] sm:$0xff]
    %v338 = vld [vmem:[#allocation3 + $0x260] sm:$0xff]
    %v339 = vld [vmem:[#allocation3 + $0x268] sm:$0xff]
    %v340 = vld [vmem:[#allocation3 + $0x270] sm:$0xff]
    %v341 = vld [vmem:[#allocation3 + $0x278] sm:$0xff]
    %v342 = vld [vmem:[#allocation3 + $0x280] sm:$0xff]
    %v343 = vld [vmem:[#allocation3 + $0x288] sm:$0xff]
    %v344 = vld [vmem:[#allocation3 + $0x290] sm:$0xff]
    %v345 = vld [vmem:[#allocation3 + $0x298] sm:$0xff]
    %v346 = vld [vmem:[#allocation3 + $0x2a0] sm:$0xff]
    %v347 = vld [vmem:[#allocation3 + $0x2a8] sm:$0xff]
    %v348 = vld [vmem:[#allocation3 + $0x2b0] sm:$0xff]
    %v349 = vld [vmem:[#allocation3 + $0x2b8] sm:$0xff]
    %v350 = vld [vmem:[#allocation3 + $0x2c0] sm:$0xff]
    %v351 = vld [vmem:[#allocation3 + $0x2c8] sm:$0xff]
    %v352 = vld [vmem:[#allocation3 + $0x2d0] sm:$0xff]
    %v353 = vld [vmem:[#allocation3 + $0x2d8] sm:$0xff]
    %v354 = vld [vmem:[#allocation3 + $0x2e0] sm:$0xff]
    %v355 = vld [vmem:[#allocation3 + $0x2e8] sm:$0xff]
    %v356 = vld [vmem:[#allocation3 + $0x2f0] sm:$0xff]
    %v357 = vld [vmem:[#allocation3 + $0x2f8] sm:$0xff]
    %v358 = vld [vmem:[#allocation3 + $0x300] sm:$0xff]
    %v359 = vld [vmem:[#allocation3 + $0x308] sm:$0xff]
    %v360 = vld [vmem:[#allocation3 + $0x310] sm:$0xff]
    %v361 = vld [vmem:[#allocation3 + $0x318] sm:$0xff]
    %v362 = vld [vmem:[#allocation3 + $0x320] sm:$0xff]
    %v363 = vld [vmem:[#allocation3 + $0x328] sm:$0xff]
    %v364 = vld [vmem:[#allocation3 + $0x330] sm:$0xff]
    %v365 = vld [vmem:[#allocation3 + $0x338] sm:$0xff]
    %v366 = vld [vmem:[#allocation3 + $0x340] sm:$0xff]
    %v367 = vld [vmem:[#allocation3 + $0x348] sm:$0xff]
    %v368 = vld [vmem:[#allocation3 + $0x350] sm:$0xff]
    %v369 = vld [vmem:[#allocation3 + $0x358] sm:$0xff]
    %v370 = vld [vmem:[#allocation3 + $0x360] sm:$0xff]
    %v371 = vld [vmem:[#allocation3 + $0x368] sm:$0xff]
    %v372 = vld [vmem:[#allocation3 + $0x370] sm:$0xff]
    %v373 = vld [vmem:[#allocation3 + $0x378] sm:$0xff]
    %v374 = vld [vmem:[#allocation3 + $0x380] sm:$0xff]
    %v375 = vld [vmem:[#allocation3 + $0x388] sm:$0xff]
    %v376 = vld [vmem:[#allocation3 + $0x390] sm:$0xff]
    %v377 = vld [vmem:[#allocation3 + $0x398] sm:$0xff]
    %v378 = vld [vmem:[#allocation3 + $0x3a0] sm:$0xff]
    %v379 = vld [vmem:[#allocation3 + $0x3a8] sm:$0xff]
    %v380 = vld [vmem:[#allocation3 + $0x3b0] sm:$0xff]
    %v381 = vld [vmem:[#allocation3 + $0x3b8] sm:$0xff]
    %v382 = vld [vmem:[#allocation3 + $0x3c0] sm:$0xff]
    %v383 = vld [vmem:[#allocation3 + $0x3c8] sm:$0xff]
    %v384 = vld [vmem:[#allocation3 + $0x3d0] sm:$0xff]
    %v385 = vld [vmem:[#allocation3 + $0x3d8] sm:$0xff]
    %v386 = vld [vmem:[#allocation3 + $0x3e0] sm:$0xff]
    %v387 = vld [vmem:[#allocation3 + $0x3e8] sm:$0xff]
    %v388 = vld [vmem:[#allocation3 + $0x3f0] sm:$0xff]
    %v389 = vld [vmem:[#allocation3 + $0x3f8] sm:$0xff]
    %v390 = vld [vmem:[#allocation3 + $0x400] sm:$0xff]
    %v391 = vld [vmem:[#allocation3 + $0x408] sm:$0xff]
    %v392 = vld [vmem:[#allocation3 + $0x410] sm:$0xff]
    %v393 = vld [vmem:[#allocation3 + $0x418] sm:$0xff]
    %v394 = vld [vmem:[#allocation3 + $0x420] sm:$0xff]
    %v395 = vld [vmem:[#allocation3 + $0x428] sm:$0xff]
    %v396 = vld [vmem:[#allocation3 + $0x430] sm:$0xff]
    %v397 = vld [vmem:[#allocation3 + $0x438] sm:$0xff]
    %v398 = vld [vmem:[#allocation3 + $0x440] sm:$0xff]
    %v399 = vld [vmem:[#allocation3 + $0x448] sm:$0xff]
    %v400 = vld [vmem:[#allocation3 + $0x450] sm:$0xff]
    %v401 = vld [vmem:[#allocation3 + $0x458] sm:$0xff]
    %v402 = vld [vmem:[#allocation3 + $0x460] sm:$0xff]
    %v403 = vld [vmem:[#allocation3 + $0x468] sm:$0xff]
    %v404 = vld [vmem:[#allocation3 + $0x470] sm:$0xff]
    %v405 = vld [vmem:[#allocation3 + $0x478] sm:$0xff]
    %v406 = vld [vmem:[#allocation3 + $0x480] sm:$0xff]
    %v407 = vld [vmem:[#allocation3 + $0x488] sm:$0xff]
    %v408 = vld [vmem:[#allocation3 + $0x490] sm:$0xff]
    %v409 = vld [vmem:[#allocation3 + $0x498] sm:$0xff]
    %v410 = vld [vmem:[#allocation3 + $0x4a0] sm:$0xff]
    %v411 = vld [vmem:[#allocation3 + $0x4a8] sm:$0xff]
    %v412 = vld [vmem:[#allocation3 + $0x4b0] sm:$0xff]
    %v413 = vld [vmem:[#allocation3 + $0x4b8] sm:$0xff]
    %v414 = vld [vmem:[#allocation3 + $0x4c0] sm:$0xff]
    %v415 = vld [vmem:[#allocation3 + $0x4c8] sm:$0xff]
    %v416 = vld [vmem:[#allocation3 + $0x4d0] sm:$0xff]
    %v417 = vld [vmem:[#allocation3 + $0x4d8] sm:$0xff]
    %v418 = vld [vmem:[#allocation3 + $0x4e0] sm:$0xff]
    %v419 = vld [vmem:[#allocation3 + $0x4e8] sm:$0xff]
    %v420 = vld [vmem:[#allocation3 + $0x4f0] sm:$0xff]
    %v421 = vld [vmem:[#allocation3 + $0x4f8] sm:$0xff]
    %v422 = vld [vmem:[#allocation3 + $0x500] sm:$0xff]
    %v423 = vld [vmem:[#allocation3 + $0x508] sm:$0xff]
    %v424 = vld [vmem:[#allocation3 + $0x510] sm:$0xff]
    %v425 = vld [vmem:[#allocation3 + $0x518] sm:$0xff]
    %v426 = vld [vmem:[#allocation3 + $0x520] sm:$0xff]
    %v427 = vld [vmem:[#allocation3 + $0x528] sm:$0xff]
    %v428 = vld [vmem:[#allocation3 + $0x530] sm:$0xff]
    %v429 = vld [vmem:[#allocation3 + $0x538] sm:$0xff]
    %v430 = vld [vmem:[#allocation3 + $0x540] sm:$0xff]
    %v431 = vld [vmem:[#allocation3 + $0x548] sm:$0xff]
    %v432 = vld [vmem:[#allocation3 + $0x550] sm:$0xff]
    %v433 = vld [vmem:[#allocation3 + $0x558] sm:$0xff]
    %v434 = vld [vmem:[#allocation3 + $0x560] sm:$0xff]
    %v435 = vld [vmem:[#allocation3 + $0x568] sm:$0xff]
    %v436 = vld [vmem:[#allocation3 + $0x570] sm:$0xff]
    %v437 = vld [vmem:[#allocation3 + $0x578] sm:$0xff]
    %v438 = vld [vmem:[#allocation3 + $0x580] sm:$0xff]
    %v439 = vld [vmem:[#allocation3 + $0x588] sm:$0xff]
    %v440 = vld [vmem:[#allocation3 + $0x590] sm:$0xff]
    %v441 = vld [vmem:[#allocation3 + $0x598] sm:$0xff]
    %v442 = vld [vmem:[#allocation3 + $0x5a0] sm:$0xff]
    %v443 = vld [vmem:[#allocation3 + $0x5a8] sm:$0xff]
    %v444 = vld [vmem:[#allocation3 + $0x5b0] sm:$0xff]
    %v445 = vld [vmem:[#allocation3 + $0x5b8] sm:$0xff]
    %v446 = vld [vmem:[#allocation3 + $0x5c0] sm:$0xff]
    %v447 = vld [vmem:[#allocation3 + $0x5c8] sm:$0xff]
    %v448 = vld [vmem:[#allocation3 + $0x5d0] sm:$0xff]
    %v449 = vld [vmem:[#allocation3 + $0x5d8] sm:$0xff]
    %v450 = vld [vmem:[#allocation3 + $0x5e0] sm:$0xff]
    %v451 = vld [vmem:[#allocation3 + $0x5e8] sm:$0xff]
    %v452 = vld [vmem:[#allocation3 + $0x5f0] sm:$0xff]
    %v453 = vld [vmem:[#allocation3 + $0x5f8] sm:$0xff]
    %v454 = vld [vmem:[#allocation3 + $0x600] sm:$0xff]
    %v455 = vld [vmem:[#allocation3 + $0x608] sm:$0xff]
    %v456 = vld [vmem:[#allocation3 + $0x610] sm:$0xff]
    %v457 = vld [vmem:[#allocation3 + $0x618] sm:$0xff]
    %v458 = vld [vmem:[#allocation3 + $0x620] sm:$0xff]
    %v459 = vld [vmem:[#allocation3 + $0x628] sm:$0xff]
    %v460 = vld [vmem:[#allocation3 + $0x630] sm:$0xff]
    %v461 = vld [vmem:[#allocation3 + $0x638] sm:$0xff]
    %v462 = vld [vmem:[#allocation3 + $0x640] sm:$0xff]
    %v463 = vld [vmem:[#allocation3 + $0x648] sm:$0xff]
    %v464 = vld [vmem:[#allocation3 + $0x650] sm:$0xff]
    %v465 = vld [vmem:[#allocation3 + $0x658] sm:$0xff]
    %v466 = vld [vmem:[#allocation3 + $0x660] sm:$0xff]
    %v467 = vld [vmem:[#allocation3 + $0x668] sm:$0xff]
    %v468 = vld [vmem:[#allocation3 + $0x670] sm:$0xff]
    %v469 = vld [vmem:[#allocation3 + $0x678] sm:$0xff]
    %v470 = vld [vmem:[#allocation3 + $0x680] sm:$0xff]
    %v471 = vld [vmem:[#allocation3 + $0x688] sm:$0xff]
    %v472 = vld [vmem:[#allocation3 + $0x690] sm:$0xff]
    %v473 = vld [vmem:[#allocation3 + $0x698] sm:$0xff]
    %v474 = vld [vmem:[#allocation3 + $0x6a0] sm:$0xff]
    %v475 = vld [vmem:[#allocation3 + $0x6a8] sm:$0xff]
    %v476 = vld [vmem:[#allocation3 + $0x6b0] sm:$0xff]
    %v477 = vld [vmem:[#allocation3 + $0x6b8] sm:$0xff]
    %v478 = vld [vmem:[#allocation3 + $0x6c0] sm:$0xff]
    %v479 = vld [vmem:[#allocation3 + $0x6c8] sm:$0xff]
    %v480 = vld [vmem:[#allocation3 + $0x6d0] sm:$0xff]
    %v481 = vld [vmem:[#allocation3 + $0x6d8] sm:$0xff]
    %v482 = vld [vmem:[#allocation3 + $0x6e0] sm:$0xff]
    %v483 = vld [vmem:[#allocation3 + $0x6e8] sm:$0xff]
    %v484 = vld [vmem:[#allocation3 + $0x6f0] sm:$0xff]
    %v485 = vld [vmem:[#allocation3 + $0x6f8] sm:$0xff]
    %v486 = vld [vmem:[#allocation3 + $0x700] sm:$0xff]
    %v487 = vld [vmem:[#allocation3 + $0x708] sm:$0xff]
    %v488 = vld [vmem:[#allocation3 + $0x710] sm:$0xff]
    %v489 = vld [vmem:[#allocation3 + $0x718] sm:$0xff]
    %v490 = vld [vmem:[#allocation3 + $0x720] sm:$0xff]
    %v491 = vld [vmem:[#allocation3 + $0x728] sm:$0xff]
    %v492 = vld [vmem:[#allocation3 + $0x730] sm:$0xff]
    %v493 = vld [vmem:[#allocation3 + $0x738] sm:$0xff]
    %v494 = vld [vmem:[#allocation3 + $0x740] sm:$0xff]
    %v495 = vld [vmem:[#allocation3 + $0x748] sm:$0xff]
    %v496 = vld [vmem:[#allocation3 + $0x750] sm:$0xff]
    %v497 = vld [vmem:[#allocation3 + $0x758] sm:$0xff]
    %v498 = vld [vmem:[#allocation3 + $0x760] sm:$0xff]
    %v499 = vld [vmem:[#allocation3 + $0x768] sm:$0xff]
    %v500 = vld [vmem:[#allocation3 + $0x770] sm:$0xff]
    %v501 = vld [vmem:[#allocation3 + $0x778] sm:$0xff]
    %v502 = vld [vmem:[#allocation3 + $0x780] sm:$0xff]
    %v503 = vld [vmem:[#allocation3 + $0x788] sm:$0xff]
    %v504 = vld [vmem:[#allocation3 + $0x790] sm:$0xff]
    %v505 = vld [vmem:[#allocation3 + $0x798] sm:$0xff]
    %v506 = vld [vmem:[#allocation3 + $0x7a0] sm:$0xff]
    %v507 = vld [vmem:[#allocation3 + $0x7a8] sm:$0xff]
    %v508 = vld [vmem:[#allocation3 + $0x7b0] sm:$0xff]
    %v509 = vld [vmem:[#allocation3 + $0x7b8] sm:$0xff]
    %v510 = vld [vmem:[#allocation3 + $0x7c0] sm:$0xff]
    %v511 = vld [vmem:[#allocation3 + $0x7c8] sm:$0xff]
    %v512 = vld [vmem:[#allocation3 + $0x7d0] sm:$0xff]
    %v513 = vld [vmem:[#allocation3 + $0x7d8] sm:$0xff]
    %v514 = vld [vmem:[#allocation3 + $0x7e0] sm:$0xff]
    %v515 = vld [vmem:[#allocation3 + $0x7e8] sm:$0xff]
    %v516 = vld [vmem:[#allocation3 + $0x7f0] sm:$0xff]
    %v517 = vld [vmem:[#allocation3 + $0x7f8] sm:$0xff]
    %v518 = vld [vmem:[#allocation3 + $0x800] sm:$0xff]
    %v519 = vld [vmem:[#allocation3 + $0x808] sm:$0xff]
    %v520 = vld [vmem:[#allocation3 + $0x810] sm:$0xff]
    %v521 = vld [vmem:[#allocation3 + $0x818] sm:$0xff]
    %v522 = vld [vmem:[#allocation3 + $0x820] sm:$0xff]
    %v523 = vld [vmem:[#allocation3 + $0x828] sm:$0xff]
    %v524 = vld [vmem:[#allocation3 + $0x830] sm:$0xff]
    %v525 = vld [vmem:[#allocation3 + $0x838] sm:$0xff]
    %v526 = vld [vmem:[#allocation3 + $0x840] sm:$0xff]
    %v527 = vld [vmem:[#allocation3 + $0x848] sm:$0xff]
    %v528 = vld [vmem:[#allocation3 + $0x850] sm:$0xff]
    %v529 = vld [vmem:[#allocation3 + $0x858] sm:$0xff]
    %v530 = vld [vmem:[#allocation3 + $0x860] sm:$0xff]
    %v531 = vld [vmem:[#allocation3 + $0x868] sm:$0xff]
    %v532 = vld [vmem:[#allocation3 + $0x870] sm:$0xff]
    %v533 = vld [vmem:[#allocation3 + $0x878] sm:$0xff]
    %v534 = vld [vmem:[#allocation3 + $0x880] sm:$0xff]
    %v535 = vld [vmem:[#allocation3 + $0x888] sm:$0xff]
    %v536 = vld [vmem:[#allocation3 + $0x890] sm:$0xff]
    %v537 = vld [vmem:[#allocation3 + $0x898] sm:$0xff]
    %v538 = vld [vmem:[#allocation3 + $0x8a0] sm:$0xff]
    %v539 = vld [vmem:[#allocation3 + $0x8a8] sm:$0xff]
    %v540 = vld [vmem:[#allocation3 + $0x8b0] sm:$0xff]
    %v541 = vld [vmem:[#allocation3 + $0x8b8] sm:$0xff]
    %v542 = vld [vmem:[#allocation3 + $0x8c0] sm:$0xff]
    %v543 = vld [vmem:[#allocation3 + $0x8c8] sm:$0xff]
    %v544 = vld [vmem:[#allocation3 + $0x8d0] sm:$0xff]
    %v545 = vld [vmem:[#allocation3 + $0x8d8] sm:$0xff]
    %v546 = vld [vmem:[#allocation3 + $0x8e0] sm:$0xff]
    %v547 = vld [vmem:[#allocation3 + $0x8e8] sm:$0xff]
    %v548 = vld [vmem:[#allocation3 + $0x8f0] sm:$0xff]
    %v549 = vld [vmem:[#allocation3 + $0x8f8] sm:$0xff]
    %v550 = vld [vmem:[#allocation3 + $0x900] sm:$0xff]
    %v551 = vld [vmem:[#allocation3 + $0x908] sm:$0xff]
    %v552 = vld [vmem:[#allocation3 + $0x910] sm:$0xff]
    %v553 = vld [vmem:[#allocation3 + $0x918] sm:$0xff]
    %v554 = vld [vmem:[#allocation3 + $0x920] sm:$0xff]
    %v555 = vld [vmem:[#allocation3 + $0x928] sm:$0xff]
    %v556 = vld [vmem:[#allocation3 + $0x930] sm:$0xff]
    %v557 = vld [vmem:[#allocation3 + $0x938] sm:$0xff]
    %v558 = vld [vmem:[#allocation3 + $0x940] sm:$0xff]
    %v559 = vld [vmem:[#allocation3 + $0x948] sm:$0xff]
    %v560 = vld [vmem:[#allocation3 + $0x950] sm:$0xff]
    %v561 = vld [vmem:[#allocation3 + $0x958] sm:$0xff]
    %v562 = vld [vmem:[#allocation3 + $0x960] sm:$0xff]
    %v563 = vld [vmem:[#allocation3 + $0x968] sm:$0xff]
    %v564 = vld [vmem:[#allocation3 + $0x970] sm:$0xff]
    %v565 = vld [vmem:[#allocation3 + $0x978] sm:$0xff]
    %v566 = vld [vmem:[#allocation3 + $0x980] sm:$0xff]
    %v567 = vld [vmem:[#allocation3 + $0x988] sm:$0xff]
    %v568 = vld [vmem:[#allocation3 + $0x990] sm:$0xff]
    %v569 = vld [vmem:[#allocation3 + $0x998] sm:$0xff]
    %v570 = vld [vmem:[#allocation3 + $0x9a0] sm:$0xff]
    %v571 = vld [vmem:[#allocation3 + $0x9a8] sm:$0xff]
    %v572 = vld [vmem:[#allocation3 + $0x9b0] sm:$0xff]
    %v573 = vld [vmem:[#allocation3 + $0x9b8] sm:$0xff]
    %v574 = vld [vmem:[#allocation3 + $0x9c0] sm:$0xff]
    %v575 = vld [vmem:[#allocation3 + $0x9c8] sm:$0xff]
    %v576 = vld [vmem:[#allocation3 + $0x9d0] sm:$0xff]
    %v577 = vld [vmem:[#allocation3 + $0x9d8] sm:$0xff]
    %v578 = vld [vmem:[#allocation3 + $0x9e0] sm:$0xff]
    %v579 = vld [vmem:[#allocation3 + $0x9e8] sm:$0xff]
    %v580 = vld [vmem:[#allocation3 + $0x9f0] sm:$0xff]
    %v581 = vld [vmem:[#allocation3 + $0x9f8] sm:$0xff]
    %v582 = vld [vmem:[#allocation3 + $0xa00] sm:$0xff]
    %v583 = vld [vmem:[#allocation3 + $0xa08] sm:$0xff]
    %v584 = vld [vmem:[#allocation3 + $0xa10] sm:$0xff]
    %v585 = vld [vmem:[#allocation3 + $0xa18] sm:$0xff]
    %v586 = vld [vmem:[#allocation3 + $0xa20] sm:$0xff]
    %v587 = vld [vmem:[#allocation3 + $0xa28] sm:$0xff]
    %v588 = vld [vmem:[#allocation3 + $0xa30] sm:$0xff]
    %v589 = vld [vmem:[#allocation3 + $0xa38] sm:$0xff]
    %v590 = vld [vmem:[#allocation3 + $0xa40] sm:$0xff]
    %v591 = vld [vmem:[#allocation3 + $0xa48] sm:$0xff]
    %v592 = vld [vmem:[#allocation3 + $0xa50] sm:$0xff]
    %v593 = vld [vmem:[#allocation3 + $0xa58] sm:$0xff]
    %v594 = vld [vmem:[#allocation3 + $0xa60] sm:$0xff]
    %v595 = vld [vmem:[#allocation3 + $0xa68] sm:$0xff]
    %v596 = vld [vmem:[#allocation3 + $0xa70] sm:$0xff]
    %v597 = vld [vmem:[#allocation3 + $0xa78] sm:$0xff]
    %v598 = vld [vmem:[#allocation3 + $0xa80] sm:$0xff]
    %v599 = vld [vmem:[#allocation3 + $0xa88] sm:$0xff]
    %v600 = vld [vmem:[#allocation3 + $0xa90] sm:$0xff]
    %v601 = vld [vmem:[#allocation3 + $0xa98] sm:$0xff]
    %v602 = vld [vmem:[#allocation3 + $0xaa0] sm:$0xff]
    %v603 = vld [vmem:[#allocation3 + $0xaa8] sm:$0xff]
    %v604 = vld [vmem:[#allocation3 + $0xab0] sm:$0xff]
    %v605 = vld [vmem:[#allocation3 + $0xab8] sm:$0xff]
    %v606 = vld [vmem:[#allocation3 + $0xac0] sm:$0xff]
    %v607 = vld [vmem:[#allocation3 + $0xac8] sm:$0xff]
    %v608 = vld [vmem:[#allocation3 + $0xad0] sm:$0xff]
    %v609 = vld [vmem:[#allocation3 + $0xad8] sm:$0xff]
    %v610 = vld [vmem:[#allocation3 + $0xae0] sm:$0xff]
    %v611 = vld [vmem:[#allocation3 + $0xae8] sm:$0xff]
    %v612 = vld [vmem:[#allocation3 + $0xaf0] sm:$0xff]
    %v613 = vld [vmem:[#allocation3 + $0xaf8] sm:$0xff]
    %v614 = vld [vmem:[#allocation3 + $0xb00] sm:$0xff]
    %v615 = vld [vmem:[#allocation3 + $0xb08] sm:$0xff]
    %v616 = vld [vmem:[#allocation3 + $0xb10] sm:$0xff]
    %v617 = vld [vmem:[#allocation3 + $0xb18] sm:$0xff]
    %v618 = vld [vmem:[#allocation3 + $0xb20] sm:$0xff]
    %v619 = vld [vmem:[#allocation3 + $0xb28] sm:$0xff]
    %v620 = vld [vmem:[#allocation3 + $0xb30] sm:$0xff]
    %v621 = vld [vmem:[#allocation3 + $0xb38] sm:$0xff]
    %v622 = vld [vmem:[#allocation3 + $0xb40] sm:$0xff]
    %v623 = vld [vmem:[#allocation3 + $0xb48] sm:$0xff]
    %v624 = vld [vmem:[#allocation3 + $0xb50] sm:$0xff]
    %v625 = vld [vmem:[#allocation3 + $0xb58] sm:$0xff]
    %v626 = vld [vmem:[#allocation3 + $0xb60] sm:$0xff]
    %v627 = vld [vmem:[#allocation3 + $0xb68] sm:$0xff]
    %v628 = vld [vmem:[#allocation3 + $0xb70] sm:$0xff]
    %v629 = vld [vmem:[#allocation3 + $0xb78] sm:$0xff]
    %v630 = vld [vmem:[#allocation3 + $0xb80] sm:$0xff]
    %v631 = vld [vmem:[#allocation3 + $0xb88] sm:$0xff]
    %v632 = vld [vmem:[#allocation3 + $0xb90] sm:$0xff]
    %v633 = vld [vmem:[#allocation3 + $0xb98] sm:$0xff]
    %v634 = vld [vmem:[#allocation3 + $0xba0] sm:$0xff]
    %v635 = vld [vmem:[#allocation3 + $0xba8] sm:$0xff]
    %v636 = vld [vmem:[#allocation3 + $0xbb0] sm:$0xff]
    %v637 = vld [vmem:[#allocation3 + $0xbb8] sm:$0xff]
    %v638 = vld [vmem:[#allocation3 + $0xbc0] sm:$0xff]
    %v639 = vld [vmem:[#allocation3 + $0xbc8] sm:$0xff]
    %v640 = vld [vmem:[#allocation3 + $0xbd0] sm:$0xff]
    %v641 = vld [vmem:[#allocation3 + $0xbd8] sm:$0xff]
    %v642 = vld [vmem:[#allocation3 + $0xbe0] sm:$0xff]
    %v643 = vld [vmem:[#allocation3 + $0xbe8] sm:$0xff]
    %v644 = vld [vmem:[#allocation3 + $0xbf0] sm:$0xff]
    %v645 = vld [vmem:[#allocation3 + $0xbf8] sm:$0xff]
    %v646 = vld [vmem:[#allocation3 + $0xc00] sm:$0xff]
    %v647 = vld [vmem:[#allocation3 + $0xc08] sm:$0xff]
    %v648 = vld [vmem:[#allocation3 + $0xc10] sm:$0xff]
    %v649 = vld [vmem:[#allocation3 + $0xc18] sm:$0xff]
    %v650 = vld [vmem:[#allocation3 + $0xc20] sm:$0xff]
    %v651 = vld [vmem:[#allocation3 + $0xc28] sm:$0xff]
    %v652 = vld [vmem:[#allocation3 + $0xc30] sm:$0xff]
    %v653 = vld [vmem:[#allocation3 + $0xc38] sm:$0xff]
    %v654 = vld [vmem:[#allocation3 + $0xc40] sm:$0xff]
    %v655 = vld [vmem:[#allocation3 + $0xc48] sm:$0xff]
    %v656 = vld [vmem:[#allocation3 + $0xc50] sm:$0xff]
    %v657 = vld [vmem:[#allocation3 + $0xc58] sm:$0xff]
    %v658 = vld [vmem:[#allocation3 + $0xc60] sm:$0xff]
    %v659 = vld [vmem:[#allocation3 + $0xc68] sm:$0xff]
    %v660 = vld [vmem:[#allocation3 + $0xc70] sm:$0xff]
    %v661 = vld [vmem:[#allocation3 + $0xc78] sm:$0xff]
    %v662 = vld [vmem:[#allocation3 + $0xc80] sm:$0xff]
    %v663 = vld [vmem:[#allocation3 + $0xc88] sm:$0xff]
    %v664 = vld [vmem:[#allocation3 + $0xc90] sm:$0xff]
    %v665 = vld [vmem:[#allocation3 + $0xc98] sm:$0xff]
    %v666 = vld [vmem:[#allocation3 + $0xca0] sm:$0xff]
    %v667 = vld [vmem:[#allocation3 + $0xca8] sm:$0xff]
    %v668 = vld [vmem:[#allocation3 + $0xcb0] sm:$0xff]
    %v669 = vld [vmem:[#allocation3 + $0xcb8] sm:$0xff]
    %v670 = vld [vmem:[#allocation3 + $0xcc0] sm:$0xff]
    %v671 = vld [vmem:[#allocation3 + $0xcc8] sm:$0xff]
    %v672 = vld [vmem:[#allocation3 + $0xcd0] sm:$0xff]
    %v673 = vld [vmem:[#allocation3 + $0xcd8] sm:$0xff]
    %v674 = vld [vmem:[#allocation3 + $0xce0] sm:$0xff]
    %v675 = vld [vmem:[#allocation3 + $0xce8] sm:$0xff]
    %v676 = vld [vmem:[#allocation3 + $0xcf0] sm:$0xff]
    %v677 = vld [vmem:[#allocation3 + $0xcf8] sm:$0xff]
    %v678 = vld [vmem:[#allocation3 + $0xd00] sm:$0xff]
    %v679 = vld [vmem:[#allocation3 + $0xd08] sm:$0xff]
    %v680 = vld [vmem:[#allocation3 + $0xd10] sm:$0xff]
    %v681 = vld [vmem:[#allocation3 + $0xd18] sm:$0xff]
    %v682 = vld [vmem:[#allocation3 + $0xd20] sm:$0xff]
    %v683 = vld [vmem:[#allocation3 + $0xd28] sm:$0xff]
    %v684 = vld [vmem:[#allocation3 + $0xd30] sm:$0xff]
    %v685 = vld [vmem:[#allocation3 + $0xd38] sm:$0xff]
    %v686 = vld [vmem:[#allocation3 + $0xd40] sm:$0xff]
    %v687 = vld [vmem:[#allocation3 + $0xd48] sm:$0xff]
    %v688 = vld [vmem:[#allocation3 + $0xd50] sm:$0xff]
    %v689 = vld [vmem:[#allocation3 + $0xd58] sm:$0xff]
    %v690 = vld [vmem:[#allocation3 + $0xd60] sm:$0xff]
    %v691 = vld [vmem:[#allocation3 + $0xd68] sm:$0xff]
    %v692 = vld [vmem:[#allocation3 + $0xd70] sm:$0xff]
    %v693 = vld [vmem:[#allocation3 + $0xd78] sm:$0xff]
    %v694 = vld [vmem:[#allocation3 + $0xd80] sm:$0xff]
    %v695 = vld [vmem:[#allocation3 + $0xd88] sm:$0xff]
    %v696 = vld [vmem:[#allocation3 + $0xd90] sm:$0xff]
    %v697 = vld [vmem:[#allocation3 + $0xd98] sm:$0xff]
    %v698 = vld [vmem:[#allocation3 + $0xda0] sm:$0xff]
    %v699 = vld [vmem:[#allocation3 + $0xda8] sm:$0xff]
    %v700 = vld [vmem:[#allocation3 + $0xdb0] sm:$0xff]
    %v701 = vld [vmem:[#allocation3 + $0xdb8] sm:$0xff]
    %v702 = vld [vmem:[#allocation3 + $0xdc0] sm:$0xff]
    %v703 = vld [vmem:[#allocation3 + $0xdc8] sm:$0xff]
    %v704 = vld [vmem:[#allocation3 + $0xdd0] sm:$0xff]
    %v705 = vld [vmem:[#allocation3 + $0xdd8] sm:$0xff]
    %v706 = vld [vmem:[#allocation3 + $0xde0] sm:$0xff]
    %v707 = vld [vmem:[#allocation3 + $0xde8] sm:$0xff]
    %v708 = vld [vmem:[#allocation3 + $0xdf0] sm:$0xff]
    %v709 = vld [vmem:[#allocation3 + $0xdf8] sm:$0xff]
    %v710 = vld [vmem:[#allocation3 + $0xe00] sm:$0xff]
    %v711 = vld [vmem:[#allocation3 + $0xe08] sm:$0xff]
    %v712 = vld [vmem:[#allocation3 + $0xe10] sm:$0xff]
    %v713 = vld [vmem:[#allocation3 + $0xe18] sm:$0xff]
    %v714 = vld [vmem:[#allocation3 + $0xe20] sm:$0xff]
    %v715 = vld [vmem:[#allocation3 + $0xe28] sm:$0xff]
    %v716 = vld [vmem:[#allocation3 + $0xe30] sm:$0xff]
    %v717 = vld [vmem:[#allocation3 + $0xe38] sm:$0xff]
    %v718 = vld [vmem:[#allocation3 + $0xe40] sm:$0xff]
    %v719 = vld [vmem:[#allocation3 + $0xe48] sm:$0xff]
    %v720 = vld [vmem:[#allocation3 + $0xe50] sm:$0xff]
    %v721 = vld [vmem:[#allocation3 + $0xe58] sm:$0xff]
    %v722 = vld [vmem:[#allocation3 + $0xe60] sm:$0xff]
    %v723 = vld [vmem:[#allocation3 + $0xe68] sm:$0xff]
    %v724 = vld [vmem:[#allocation3 + $0xe70] sm:$0xff]
    %v725 = vld [vmem:[#allocation3 + $0xe78] sm:$0xff]
    %v726 = vld [vmem:[#allocation3 + $0xe80] sm:$0xff]
    %v727 = vld [vmem:[#allocation3 + $0xe88] sm:$0xff]
    %v728 = vld [vmem:[#allocation3 + $0xe90] sm:$0xff]
    %v729 = vld [vmem:[#allocation3 + $0xe98] sm:$0xff]
    %v730 = vld [vmem:[#allocation3 + $0xea0] sm:$0xff]
    %v731 = vld [vmem:[#allocation3 + $0xea8] sm:$0xff]
    %v732 = vld [vmem:[#allocation3 + $0xeb0] sm:$0xff]
    %v733 = vld [vmem:[#allocation3 + $0xeb8] sm:$0xff]
    %v734 = vld [vmem:[#allocation3 + $0xec0] sm:$0xff]
    %v735 = vld [vmem:[#allocation3 + $0xec8] sm:$0xff]
    %v736 = vld [vmem:[#allocation3 + $0xed0] sm:$0xff]
    %v737 = vld [vmem:[#allocation3 + $0xed8] sm:$0xff]
    %v738 = vld [vmem:[#allocation3 + $0xee0] sm:$0xff]
    %v739 = vld [vmem:[#allocation3 + $0xee8] sm:$0xff]
    %v740 = vld [vmem:[#allocation3 + $0xef0] sm:$0xff]
    %v741 = vld [vmem:[#allocation3 + $0xef8] sm:$0xff]
    %v742 = vld [vmem:[#allocation3 + $0xf00] sm:$0xff]
    %v743 = vld [vmem:[#allocation3 + $0xf08] sm:$0xff]
    %v744 = vld [vmem:[#allocation3 + $0xf10] sm:$0xff]
    %v745 = vld [vmem:[#allocation3 + $0xf18] sm:$0xff]
    %v746 = vld [vmem:[#allocation3 + $0xf20] sm:$0xff]
    %v747 = vld [vmem:[#allocation3 + $0xf28] sm:$0xff]
    %v748 = vld [vmem:[#allocation3 + $0xf30] sm:$0xff]
    %v749 = vld [vmem:[#allocation3 + $0xf38] sm:$0xff]
    %v750 = vld [vmem:[#allocation3 + $0xf40] sm:$0xff]
    %v751 = vld [vmem:[#allocation3 + $0xf48] sm:$0xff]
    %v752 = vld [vmem:[#allocation3 + $0xf50] sm:$0xff]
    %v753 = vld [vmem:[#allocation3 + $0xf58] sm:$0xff]
    %v754 = vld [vmem:[#allocation3 + $0xf60] sm:$0xff]
    %v755 = vld [vmem:[#allocation3 + $0xf68] sm:$0xff]
    %v756 = vld [vmem:[#allocation3 + $0xf70] sm:$0xff]
    %v757 = vld [vmem:[#allocation3 + $0xf78] sm:$0xff]
    %v758 = vld [vmem:[#allocation3 + $0xf80] sm:$0xff]
    %v759 = vld [vmem:[#allocation3 + $0xf88] sm:$0xff]
    %v760 = vld [vmem:[#allocation3 + $0xf90] sm:$0xff]
    %v761 = vld [vmem:[#allocation3 + $0xf98] sm:$0xff]
    %v762 = vld [vmem:[#allocation3 + $0xfa0] sm:$0xff]
    %v763 = vld [vmem:[#allocation3 + $0xfa8] sm:$0xff]
    %v764 = vld [vmem:[#allocation3 + $0xfb0] sm:$0xff]
    %v765 = vld [vmem:[#allocation3 + $0xfb8] sm:$0xff]
    %v766 = vld [vmem:[#allocation3 + $0xfc0] sm:$0xff]
    %v767 = vld [vmem:[#allocation3 + $0xfc8] sm:$0xff]
    %v768 = vld [vmem:[#allocation3 + $0xfd0] sm:$0xff]
    %v769 = vld [vmem:[#allocation3 + $0xfd8] sm:$0xff]
    %v770 = vld [vmem:[#allocation3 + $0xfe0] sm:$0xff]
    %v771 = vld [vmem:[#allocation3 + $0xfe8] sm:$0xff]
    %v772 = vld [vmem:[#allocation3 + $0xff0] sm:$0xff]
    %v773 = vld [vmem:[#allocation3 + $0xff8] sm:$0xff]
    %v774 = vld [vmem:[#allocation3 + $0x1000] sm:$0xff]
    %v775 = vld [vmem:[#allocation3 + $0x1008] sm:$0xff]
    %v776 = vld [vmem:[#allocation3 + $0x1010] sm:$0xff]
    %v777 = vld [vmem:[#allocation3 + $0x1018] sm:$0xff]
    %v778 = vld [vmem:[#allocation3 + $0x1020] sm:$0xff]
    %v779 = vld [vmem:[#allocation3 + $0x1028] sm:$0xff]
    %v780 = vld [vmem:[#allocation3 + $0x1030] sm:$0xff]
    %v781 = vld [vmem:[#allocation3 + $0x1038] sm:$0xff]
    %v782 = vld [vmem:[#allocation3 + $0x1040] sm:$0xff]
    %v783 = vld [vmem:[#allocation3 + $0x1048] sm:$0xff]
    %v784 = vld [vmem:[#allocation3 + $0x1050] sm:$0xff]
    %v785 = vld [vmem:[#allocation3 + $0x1058] sm:$0xff]
    %v786 = vld [vmem:[#allocation3 + $0x1060] sm:$0xff]
    %v787 = vld [vmem:[#allocation3 + $0x1068] sm:$0xff]
    %v788 = vld [vmem:[#allocation3 + $0x1070] sm:$0xff]
    %v789 = vld [vmem:[#allocation3 + $0x1078] sm:$0xff]
    %v790 = vld [vmem:[#allocation3 + $0x1080] sm:$0xff]
    %v791 = vld [vmem:[#allocation3 + $0x1088] sm:$0xff]
    %v792 = vld [vmem:[#allocation3 + $0x1090] sm:$0xff]
    %v793 = vld [vmem:[#allocation3 + $0x1098] sm:$0xff]
    %v794 = vld [vmem:[#allocation3 + $0x10a0] sm:$0xff]
    %v795 = vld [vmem:[#allocation3 + $0x10a8] sm:$0xff]
    %v796 = vld [vmem:[#allocation3 + $0x10b0] sm:$0xff]
    %v797 = vld [vmem:[#allocation3 + $0x10b8] sm:$0xff]
    %v798 = vld [vmem:[#allocation3 + $0x10c0] sm:$0xff]
    %v799 = vld [vmem:[#allocation3 + $0x10c8] sm:$0xff]
    %v800 = vld [vmem:[#allocation3 + $0x10d0] sm:$0xff]
    %v801 = vld [vmem:[#allocation3 + $0x10d8] sm:$0xff]
    %v802 = vld [vmem:[#allocation3 + $0x10e0] sm:$0xff]
    %v803 = vld [vmem:[#allocation3 + $0x10e8] sm:$0xff]
    %v804 = vld [vmem:[#allocation3 + $0x10f0] sm:$0xff]
    %v805 = vld [vmem:[#allocation3 + $0x10f8] sm:$0xff]
    %v806 = vld [vmem:[#allocation3 + $0x1100] sm:$0xff]
    %v807 = vld [vmem:[#allocation3 + $0x1108] sm:$0xff]
    %v808 = vld [vmem:[#allocation3 + $0x1110] sm:$0xff]
    %v809 = vld [vmem:[#allocation3 + $0x1118] sm:$0xff]
    %v810 = vld [vmem:[#allocation3 + $0x1120] sm:$0xff]
    %v811 = vld [vmem:[#allocation3 + $0x1128] sm:$0xff]
    %v812 = vld [vmem:[#allocation3 + $0x1130] sm:$0xff]
    %v813 = vld [vmem:[#allocation3 + $0x1138] sm:$0xff]
    %v814 = vld [vmem:[#allocation3 + $0x1140] sm:$0xff]
    %v815 = vld [vmem:[#allocation3 + $0x1148] sm:$0xff]
    %v816 = vld [vmem:[#allocation3 + $0x1150] sm:$0xff]
    %v817 = vld [vmem:[#allocation3 + $0x1158] sm:$0xff]
    %v818 = vld [vmem:[#allocation3 + $0x1160] sm:$0xff]
    %v819 = vld [vmem:[#allocation3 + $0x1168] sm:$0xff]
    %v820 = vld [vmem:[#allocation3 + $0x1170] sm:$0xff]
    %v821 = vld [vmem:[#allocation3 + $0x1178] sm:$0xff]
    %v822 = vld [vmem:[#allocation3 + $0x1180] sm:$0xff]
    %v823 = vld [vmem:[#allocation3 + $0x1188] sm:$0xff]
    %v824 = vld [vmem:[#allocation3 + $0x1190] sm:$0xff]
    %v825 = vld [vmem:[#allocation3 + $0x1198] sm:$0xff]
    %v826 = vld [vmem:[#allocation3 + $0x11a0] sm:$0xff]
    %v827 = vld [vmem:[#allocation3 + $0x11a8] sm:$0xff]
    %v828 = vld [vmem:[#allocation3 + $0x11b0] sm:$0xff]
    %v829 = vld [vmem:[#allocation3 + $0x11b8] sm:$0xff]
    %v830 = vld [vmem:[#allocation3 + $0x11c0] sm:$0xff]
    %v831 = vld [vmem:[#allocation3 + $0x11c8] sm:$0xff]
    %v832 = vld [vmem:[#allocation3 + $0x11d0] sm:$0xff]
    %v833 = vld [vmem:[#allocation3 + $0x11d8] sm:$0xff]
    %v834 = vld [vmem:[#allocation3 + $0x11e0] sm:$0xff]
    %v835 = vld [vmem:[#allocation3 + $0x11e8] sm:$0xff]
    %v836 = vld [vmem:[#allocation3 + $0x11f0] sm:$0xff]
    %v837 = vld [vmem:[#allocation3 + $0x11f8] sm:$0xff]
    %v838 = vld [vmem:[#allocation3 + $0x1200] sm:$0xff]
    %v839 = vld [vmem:[#allocation3 + $0x1208] sm:$0xff]
    %v840 = vld [vmem:[#allocation3 + $0x1210] sm:$0xff]
    %v841 = vld [vmem:[#allocation3 + $0x1218] sm:$0xff]
    %v842 = vld [vmem:[#allocation3 + $0x1220] sm:$0xff]
    %v843 = vld [vmem:[#allocation3 + $0x1228] sm:$0xff]
    %v844 = vld [vmem:[#allocation3 + $0x1230] sm:$0xff]
    %v845 = vld [vmem:[#allocation3 + $0x1238] sm:$0xff]
    %v846 = vld [vmem:[#allocation3 + $0x1240] sm:$0xff]
    %v847 = vld [vmem:[#allocation3 + $0x1248] sm:$0xff]
    %v848 = vld [vmem:[#allocation3 + $0x1250] sm:$0xff]
    %v849 = vld [vmem:[#allocation3 + $0x1258] sm:$0xff]
    %v850 = vld [vmem:[#allocation3 + $0x1260] sm:$0xff]
    %v851 = vld [vmem:[#allocation3 + $0x1268] sm:$0xff]
    %v852 = vld [vmem:[#allocation3 + $0x1270] sm:$0xff]
    %v853 = vld [vmem:[#allocation3 + $0x1278] sm:$0xff]
    %v854 = vld [vmem:[#allocation3 + $0x1280] sm:$0xff]
    %v855 = vld [vmem:[#allocation3 + $0x1288] sm:$0xff]
    %v856 = vld [vmem:[#allocation3 + $0x1290] sm:$0xff]
    %v857 = vld [vmem:[#allocation3 + $0x1298] sm:$0xff]
    %v858 = vld [vmem:[#allocation3 + $0x12a0] sm:$0xff]
    %v859 = vld [vmem:[#allocation3 + $0x12a8] sm:$0xff]
    %v860 = vld [vmem:[#allocation3 + $0x12b0] sm:$0xff]
    %v861 = vld [vmem:[#allocation3 + $0x12b8] sm:$0xff]
    %v862 = vld [vmem:[#allocation3 + $0x12c0] sm:$0xff]
    %v863 = vld [vmem:[#allocation3 + $0x12c8] sm:$0xff]
    %v864 = vld [vmem:[#allocation3 + $0x12d0] sm:$0xff]
    %v865 = vld [vmem:[#allocation3 + $0x12d8] sm:$0xff]
    %v866 = vld [vmem:[#allocation3 + $0x12e0] sm:$0xff]
    %v867 = vld [vmem:[#allocation3 + $0x12e8] sm:$0xff]
    %v868 = vld [vmem:[#allocation3 + $0x12f0] sm:$0xff]
    %v869 = vld [vmem:[#allocation3 + $0x12f8] sm:$0xff]
    %v870 = vld [vmem:[#allocation3 + $0x1300] sm:$0xff]
    %v871 = vld [vmem:[#allocation3 + $0x1308] sm:$0xff]
    %v872 = vld [vmem:[#allocation3 + $0x1310] sm:$0xff]
    %v873 = vld [vmem:[#allocation3 + $0x1318] sm:$0xff]
    %v874 = vld [vmem:[#allocation3 + $0x1320] sm:$0xff]
    %v875 = vld [vmem:[#allocation3 + $0x1328] sm:$0xff]
    %v876 = vld [vmem:[#allocation3 + $0x1330] sm:$0xff]
    %v877 = vld [vmem:[#allocation3 + $0x1338] sm:$0xff]
    %v878 = vld [vmem:[#allocation3 + $0x1340] sm:$0xff]
    %v879 = vld [vmem:[#allocation3 + $0x1348] sm:$0xff]
    %v880 = vld [vmem:[#allocation3 + $0x1350] sm:$0xff]
    %v881 = vld [vmem:[#allocation3 + $0x1358] sm:$0xff]
    %v882 = vld [vmem:[#allocation3 + $0x1360] sm:$0xff]
    %v883 = vld [vmem:[#allocation3 + $0x1368] sm:$0xff]
    %v884 = vld [vmem:[#allocation3 + $0x1370] sm:$0xff]
    %v885 = vld [vmem:[#allocation3 + $0x1378] sm:$0xff]
    %v886 = vld [vmem:[#allocation3 + $0x1380] sm:$0xff]
    %v887 = vld [vmem:[#allocation3 + $0x1388] sm:$0xff]
    %v888 = vld [vmem:[#allocation3 + $0x1390] sm:$0xff]
    %v889 = vld [vmem:[#allocation3 + $0x1398] sm:$0xff]
    %v890 = vld [vmem:[#allocation3 + $0x13a0] sm:$0xff]
    %v891 = vld [vmem:[#allocation3 + $0x13a8] sm:$0xff]
    %v892 = vld [vmem:[#allocation3 + $0x13b0] sm:$0xff]
    %v893 = vld [vmem:[#allocation3 + $0x13b8] sm:$0xff]
    %v894 = vld [vmem:[#allocation3 + $0x13c0] sm:$0xff]
    %v895 = vld [vmem:[#allocation3 + $0x13c8] sm:$0xff]
    %v896 = vld [vmem:[#allocation3 + $0x13d0] sm:$0xff]
    %v897 = vld [vmem:[#allocation3 + $0x13d8] sm:$0xff]
    %v898 = vld [vmem:[#allocation3 + $0x13e0] sm:$0xff]
    %v899 = vld [vmem:[#allocation3 + $0x13e8] sm:$0xff]
    %v900 = vld [vmem:[#allocation3 + $0x13f0] sm:$0xff]
    %v901 = vld [vmem:[#allocation3 + $0x13f8] sm:$0xff]
    %v902 = vld [vmem:[#allocation3 + $0x1400] sm:$0xff]
    %v903 = vld [vmem:[#allocation3 + $0x1408] sm:$0xff]
    %v904 = vld [vmem:[#allocation3 + $0x1410] sm:$0xff]
    %v905 = vld [vmem:[#allocation3 + $0x1418] sm:$0xff]
    %v906 = vld [vmem:[#allocation3 + $0x1420] sm:$0xff]
    %v907 = vld [vmem:[#allocation3 + $0x1428] sm:$0xff]
    %v908 = vld [vmem:[#allocation3 + $0x1430] sm:$0xff]
    %v909 = vld [vmem:[#allocation3 + $0x1438] sm:$0xff]
    %v910 = vld [vmem:[#allocation3 + $0x1440] sm:$0xff]
    %v911 = vld [vmem:[#allocation3 + $0x1448] sm:$0xff]
    %v912 = vld [vmem:[#allocation3 + $0x1450] sm:$0xff]
    %v913 = vld [vmem:[#allocation3 + $0x1458] sm:$0xff]
    %v914 = vld [vmem:[#allocation3 + $0x1460] sm:$0xff]
    %v915 = vld [vmem:[#allocation3 + $0x1468] sm:$0xff]
    %v916 = vld [vmem:[#allocation3 + $0x1470] sm:$0xff]
    %v917 = vld [vmem:[#allocation3 + $0x1478] sm:$0xff]
    %v918 = vld [vmem:[#allocation3 + $0x1480] sm:$0xff]
    %v919 = vld [vmem:[#allocation3 + $0x1488] sm:$0xff]
    %v920 = vld [vmem:[#allocation3 + $0x1490] sm:$0xff]
    %v921 = vld [vmem:[#allocation3 + $0x1498] sm:$0xff]
    %v922 = vld [vmem:[#allocation3 + $0x14a0] sm:$0xff]
    %v923 = vld [vmem:[#allocation3 + $0x14a8] sm:$0xff]
    %v924 = vld [vmem:[#allocation3 + $0x14b0] sm:$0xff]
    %v925 = vld [vmem:[#allocation3 + $0x14b8] sm:$0xff]
    %v926 = vld [vmem:[#allocation3 + $0x14c0] sm:$0xff]
    %v927 = vld [vmem:[#allocation3 + $0x14c8] sm:$0xff]
    %v928 = vld [vmem:[#allocation3 + $0x14d0] sm:$0xff]
    %v929 = vld [vmem:[#allocation3 + $0x14d8] sm:$0xff]
    %v930 = vld [vmem:[#allocation3 + $0x14e0] sm:$0xff]
    %v931 = vld [vmem:[#allocation3 + $0x14e8] sm:$0xff]
    %v932 = vld [vmem:[#allocation3 + $0x14f0] sm:$0xff]
    %v933 = vld [vmem:[#allocation3 + $0x14f8] sm:$0xff]
    %v934 = vld [vmem:[#allocation3 + $0x1500] sm:$0xff]
    %v935 = vld [vmem:[#allocation3 + $0x1508] sm:$0xff]
    %v936 = vld [vmem:[#allocation3 + $0x1510] sm:$0xff]
    %v937 = vld [vmem:[#allocation3 + $0x1518] sm:$0xff]
    %v938 = vld [vmem:[#allocation3 + $0x1520] sm:$0xff]
    %v939 = vld [vmem:[#allocation3 + $0x1528] sm:$0xff]
    %v940 = vld [vmem:[#allocation3 + $0x1530] sm:$0xff]
    %v941 = vld [vmem:[#allocation3 + $0x1538] sm:$0xff]
    %v942 = vld [vmem:[#allocation3 + $0x1540] sm:$0xff]
    %v943 = vld [vmem:[#allocation3 + $0x1548] sm:$0xff]
    %v944 = vld [vmem:[#allocation3 + $0x1550] sm:$0xff]
    %v945 = vld [vmem:[#allocation3 + $0x1558] sm:$0xff]
    %v946 = vld [vmem:[#allocation3 + $0x1560] sm:$0xff]
    %v947 = vld [vmem:[#allocation3 + $0x1568] sm:$0xff]
    %v948 = vld [vmem:[#allocation3 + $0x1570] sm:$0xff]
    %v949 = vld [vmem:[#allocation3 + $0x1578] sm:$0xff]
    %v950 = vld [vmem:[#allocation3 + $0x1580] sm:$0xff]
    %v951 = vld [vmem:[#allocation3 + $0x1588] sm:$0xff]
    %v952 = vld [vmem:[#allocation3 + $0x1590] sm:$0xff]
    %v953 = vld [vmem:[#allocation3 + $0x1598] sm:$0xff]
    %v954 = vld [vmem:[#allocation3 + $0x15a0] sm:$0xff]
    %v955 = vld [vmem:[#allocation3 + $0x15a8] sm:$0xff]
    %v956 = vld [vmem:[#allocation3 + $0x15b0] sm:$0xff]
    %v957 = vld [vmem:[#allocation3 + $0x15b8] sm:$0xff]
    %v958 = vld [vmem:[#allocation3 + $0x15c0] sm:$0xff]
    %v959 = vld [vmem:[#allocation3 + $0x15c8] sm:$0xff]
    %v960 = vld [vmem:[#allocation3 + $0x15d0] sm:$0xff]
    %v961 = vld [vmem:[#allocation3 + $0x15d8] sm:$0xff]
    %v962 = vld [vmem:[#allocation3 + $0x15e0] sm:$0xff]
    %v963 = vld [vmem:[#allocation3 + $0x15e8] sm:$0xff]
    %v964 = vld [vmem:[#allocation3 + $0x15f0] sm:$0xff]
    %v965 = vld [vmem:[#allocation3 + $0x15f8] sm:$0xff]
    %v966 = vld [vmem:[#allocation3 + $0x1600] sm:$0xff]
    %v967 = vld [vmem:[#allocation3 + $0x1608] sm:$0xff]
    %v968 = vld [vmem:[#allocation3 + $0x1610] sm:$0xff]
    %v969 = vld [vmem:[#allocation3 + $0x1618] sm:$0xff]
    %v970 = vld [vmem:[#allocation3 + $0x1620] sm:$0xff]
    %v971 = vld [vmem:[#allocation3 + $0x1628] sm:$0xff]
    %v972 = vld [vmem:[#allocation3 + $0x1630] sm:$0xff]
    %v973 = vld [vmem:[#allocation3 + $0x1638] sm:$0xff]
    %v974 = vld [vmem:[#allocation3 + $0x1640] sm:$0xff]
    %v975 = vld [vmem:[#allocation3 + $0x1648] sm:$0xff]
    %v976 = vld [vmem:[#allocation3 + $0x1650] sm:$0xff]
    %v977 = vld [vmem:[#allocation3 + $0x1658] sm:$0xff]
    %v978 = vld [vmem:[#allocation3 + $0x1660] sm:$0xff]
    %v979 = vld [vmem:[#allocation3 + $0x1668] sm:$0xff]
    %v980 = vld [vmem:[#allocation3 + $0x1670] sm:$0xff]
    %v981 = vld [vmem:[#allocation3 + $0x1678] sm:$0xff]
    %v982 = vld [vmem:[#allocation3 + $0x1680] sm:$0xff]
    %v983 = vld [vmem:[#allocation3 + $0x1688] sm:$0xff]
    %v984 = vld [vmem:[#allocation3 + $0x1690] sm:$0xff]
    %v985 = vld [vmem:[#allocation3 + $0x1698] sm:$0xff]
    %v986 = vld [vmem:[#allocation3 + $0x16a0] sm:$0xff]
    %v987 = vld [vmem:[#allocation3 + $0x16a8] sm:$0xff]
    %v988 = vld [vmem:[#allocation3 + $0x16b0] sm:$0xff]
    %v989 = vld [vmem:[#allocation3 + $0x16b8] sm:$0xff]
    %v990 = vld [vmem:[#allocation3 + $0x16c0] sm:$0xff]
    %v991 = vld [vmem:[#allocation3 + $0x16c8] sm:$0xff]
    %v992 = vld [vmem:[#allocation3 + $0x16d0] sm:$0xff]
    %v993 = vld [vmem:[#allocation3 + $0x16d8] sm:$0xff]
    %v994 = vld [vmem:[#allocation3 + $0x16e0] sm:$0xff]
    %v995 = vld [vmem:[#allocation3 + $0x16e8] sm:$0xff]
    %v996 = vld [vmem:[#allocation3 + $0x16f0] sm:$0xff]
    %v997 = vld [vmem:[#allocation3 + $0x16f8] sm:$0xff]
    %v998 = vld [vmem:[#allocation3 + $0x1700] sm:$0xff]
    %v999 = vld [vmem:[#allocation3 + $0x1708] sm:$0xff]
    %v1000 = vld [vmem:[#allocation3 + $0x1710] sm:$0xff]
    %v1001 = vld [vmem:[#allocation3 + $0x1718] sm:$0xff]
    %v1002 = vld [vmem:[#allocation3 + $0x1720] sm:$0xff]
    %v1003 = vld [vmem:[#allocation3 + $0x1728] sm:$0xff]
    %v1004 = vld [vmem:[#allocation3 + $0x1730] sm:$0xff]
    %v1005 = vld [vmem:[#allocation3 + $0x1738] sm:$0xff]
    %v1006 = vld [vmem:[#allocation3 + $0x1740] sm:$0xff]
    %v1007 = vld [vmem:[#allocation3 + $0x1748] sm:$0xff]
    %v1008 = vld [vmem:[#allocation3 + $0x1750] sm:$0xff]
    %v1009 = vld [vmem:[#allocation3 + $0x1758] sm:$0xff]
    %v1010 = vld [vmem:[#allocation3 + $0x1760] sm:$0xff]
    %v1011 = vld [vmem:[#allocation3 + $0x1768] sm:$0xff]
    %v1012 = vld [vmem:[#allocation3 + $0x1770] sm:$0xff]
    %v1013 = vld [vmem:[#allocation3 + $0x1778] sm:$0xff]
    %v1014 = vld [vmem:[#allocation3 + $0x1780] sm:$0xff]
    %v1015 = vld [vmem:[#allocation3 + $0x1788] sm:$0xff]
    %v1016 = vld [vmem:[#allocation3 + $0x1790] sm:$0xff]
    %v1017 = vld [vmem:[#allocation3 + $0x1798] sm:$0xff]
    %v1018 = vld [vmem:[#allocation3 + $0x17a0] sm:$0xff]
    %v1019 = vld [vmem:[#allocation3 + $0x17a8] sm:$0xff]
    %v1020 = vld [vmem:[#allocation3 + $0x17b0] sm:$0xff]
    %v1021 = vld [vmem:[#allocation3 + $0x17b8] sm:$0xff]
    %v1022 = vld [vmem:[#allocation3 + $0x17c0] sm:$0xff]
    %v1023 = vld [vmem:[#allocation3 + $0x17c8] sm:$0xff]
    %v1024 = vld [vmem:[#allocation3 + $0x17d0] sm:$0xff]
    %v1025 = vld [vmem:[#allocation3 + $0x17d8] sm:$0xff]
    %v1026 = vld [vmem:[#allocation3 + $0x17e0] sm:$0xff]
    %v1027 = vld [vmem:[#allocation3 + $0x17e8] sm:$0xff]
    %v1028 = vld [vmem:[#allocation3 + $0x17f0] sm:$0xff]
    %v1029 = vld [vmem:[#allocation3 + $0x17f8] sm:$0xff]
    %v1030 = vld [vmem:[#allocation3 + $0x1800] sm:$0xff]
    %v1031 = vld [vmem:[#allocation3 + $0x1808] sm:$0xff]
    %v1032 = vld [vmem:[#allocation3 + $0x1810] sm:$0xff]
    %v1033 = vld [vmem:[#allocation3 + $0x1818] sm:$0xff]
    %v1034 = vld [vmem:[#allocation3 + $0x1820] sm:$0xff]
    %v1035 = vld [vmem:[#allocation3 + $0x1828] sm:$0xff]
    %v1036 = vld [vmem:[#allocation3 + $0x1830] sm:$0xff]
    %v1037 = vld [vmem:[#allocation3 + $0x1838] sm:$0xff]
    %v1038 = vld [vmem:[#allocation3 + $0x1840] sm:$0xff]
    %v1039 = vld [vmem:[#allocation3 + $0x1848] sm:$0xff]
    %v1040 = vld [vmem:[#allocation3 + $0x1850] sm:$0xff]
    %v1041 = vld [vmem:[#allocation3 + $0x1858] sm:$0xff]
    %v1042 = vld [vmem:[#allocation3 + $0x1860] sm:$0xff]
    %v1043 = vld [vmem:[#allocation3 + $0x1868] sm:$0xff]
    %v1044 = vld [vmem:[#allocation3 + $0x1870] sm:$0xff]
    %v1045 = vld [vmem:[#allocation3 + $0x1878] sm:$0xff]
    %v1046 = vld [vmem:[#allocation3 + $0x1880] sm:$0xff]
    %v1047 = vld [vmem:[#allocation3 + $0x1888] sm:$0xff]
    %v1048 = vld [vmem:[#allocation3 + $0x1890] sm:$0xff]
    %v1049 = vld [vmem:[#allocation3 + $0x1898] sm:$0xff]
    %v1050 = vld [vmem:[#allocation3 + $0x18a0] sm:$0xff]
    %v1051 = vld [vmem:[#allocation3 + $0x18a8] sm:$0xff]
    %v1052 = vld [vmem:[#allocation3 + $0x18b0] sm:$0xff]
    %v1053 = vld [vmem:[#allocation3 + $0x18b8] sm:$0xff]
    %v1054 = vld [vmem:[#allocation3 + $0x18c0] sm:$0xff]
    %v1055 = vld [vmem:[#allocation3 + $0x18c8] sm:$0xff]
    %v1056 = vld [vmem:[#allocation3 + $0x18d0] sm:$0xff]
    %v1057 = vld [vmem:[#allocation3 + $0x18d8] sm:$0xff]
    %v1058 = vld [vmem:[#allocation3 + $0x18e0] sm:$0xff]
    %v1059 = vld [vmem:[#allocation3 + $0x18e8] sm:$0xff]
    %v1060 = vld [vmem:[#allocation3 + $0x18f0] sm:$0xff]
    %v1061 = vld [vmem:[#allocation3 + $0x18f8] sm:$0xff]
    %v1062 = vld [vmem:[#allocation3 + $0x1900] sm:$0xff]
    %v1063 = vld [vmem:[#allocation3 + $0x1908] sm:$0xff]
    %v1064 = vld [vmem:[#allocation3 + $0x1910] sm:$0xff]
    %v1065 = vld [vmem:[#allocation3 + $0x1918] sm:$0xff]
    %v1066 = vld [vmem:[#allocation3 + $0x1920] sm:$0xff]
    %v1067 = vld [vmem:[#allocation3 + $0x1928] sm:$0xff]
    %v1068 = vld [vmem:[#allocation3 + $0x1930] sm:$0xff]
    %v1069 = vld [vmem:[#allocation3 + $0x1938] sm:$0xff]
    %v1070 = vld [vmem:[#allocation3 + $0x1940] sm:$0xff]
    %v1071 = vld [vmem:[#allocation3 + $0x1948] sm:$0xff]
    %v1072 = vld [vmem:[#allocation3 + $0x1950] sm:$0xff]
    %v1073 = vld [vmem:[#allocation3 + $0x1958] sm:$0xff]
    %v1074 = vld [vmem:[#allocation3 + $0x1960] sm:$0xff]
    %v1075 = vld [vmem:[#allocation3 + $0x1968] sm:$0xff]
    %v1076 = vld [vmem:[#allocation3 + $0x1970] sm:$0xff]
    %v1077 = vld [vmem:[#allocation3 + $0x1978] sm:$0xff]
    %v1078 = vld [vmem:[#allocation3 + $0x1980] sm:$0xff]
    %v1079 = vld [vmem:[#allocation3 + $0x1988] sm:$0xff]
    %v1080 = vld [vmem:[#allocation3 + $0x1990] sm:$0xff]
    %v1081 = vld [vmem:[#allocation3 + $0x1998] sm:$0xff]
    %v1082 = vld [vmem:[#allocation3 + $0x19a0] sm:$0xff]
    %v1083 = vld [vmem:[#allocation3 + $0x19a8] sm:$0xff]
    %v1084 = vld [vmem:[#allocation3 + $0x19b0] sm:$0xff]
    %v1085 = vld [vmem:[#allocation3 + $0x19b8] sm:$0xff]
    %v1086 = vld [vmem:[#allocation3 + $0x19c0] sm:$0xff]
    %v1087 = vld [vmem:[#allocation3 + $0x19c8] sm:$0xff]
    %v1088 = vld [vmem:[#allocation3 + $0x19d0] sm:$0xff]
    %v1089 = vld [vmem:[#allocation3 + $0x19d8] sm:$0xff]
    %v1090 = vld [vmem:[#allocation3 + $0x19e0] sm:$0xff]
    %v1091 = vld [vmem:[#allocation3 + $0x19e8] sm:$0xff]
    %v1092 = vld [vmem:[#allocation3 + $0x19f0] sm:$0xff]
    %v1093 = vld [vmem:[#allocation3 + $0x19f8] sm:$0xff]
    %v1094 = vld [vmem:[#allocation3 + $0x1a00] sm:$0xff]
    %v1095 = vld [vmem:[#allocation3 + $0x1a08] sm:$0xff]
    %v1096 = vld [vmem:[#allocation3 + $0x1a10] sm:$0xff]
    %v1097 = vld [vmem:[#allocation3 + $0x1a18] sm:$0xff]
    %v1098 = vld [vmem:[#allocation3 + $0x1a20] sm:$0xff]
    %v1099 = vld [vmem:[#allocation3 + $0x1a28] sm:$0xff]
    %v1100 = vld [vmem:[#allocation3 + $0x1a30] sm:$0xff]
    %v1101 = vld [vmem:[#allocation3 + $0x1a38] sm:$0xff]
    %v1102 = vld [vmem:[#allocation3 + $0x1a40] sm:$0xff]
    %v1103 = vld [vmem:[#allocation3 + $0x1a48] sm:$0xff]
    %v1104 = vld [vmem:[#allocation3 + $0x1a50] sm:$0xff]
    %v1105 = vld [vmem:[#allocation3 + $0x1a58] sm:$0xff]
    %v1106 = vld [vmem:[#allocation3 + $0x1a60] sm:$0xff]
    %v1107 = vld [vmem:[#allocation3 + $0x1a68] sm:$0xff]
    %v1108 = vld [vmem:[#allocation3 + $0x1a70] sm:$0xff]
    %v1109 = vld [vmem:[#allocation3 + $0x1a78] sm:$0xff]
    %v1110 = vld [vmem:[#allocation3 + $0x1a80] sm:$0xff]
    %v1111 = vld [vmem:[#allocation3 + $0x1a88] sm:$0xff]
    %v1112 = vld [vmem:[#allocation3 + $0x1a90] sm:$0xff]
    %v1113 = vld [vmem:[#allocation3 + $0x1a98] sm:$0xff]
    %v1114 = vld [vmem:[#allocation3 + $0x1aa0] sm:$0xff]
    %v1115 = vld [vmem:[#allocation3 + $0x1aa8] sm:$0xff]
    %v1116 = vld [vmem:[#allocation3 + $0x1ab0] sm:$0xff]
    %v1117 = vld [vmem:[#allocation3 + $0x1ab8] sm:$0xff]
    %v1118 = vld [vmem:[#allocation3 + $0x1ac0] sm:$0xff]
    %v1119 = vld [vmem:[#allocation3 + $0x1ac8] sm:$0xff]
    %v1120 = vld [vmem:[#allocation3 + $0x1ad0] sm:$0xff]
    %v1121 = vld [vmem:[#allocation3 + $0x1ad8] sm:$0xff]
    %v1122 = vld [vmem:[#allocation3 + $0x1ae0] sm:$0xff]
    %v1123 = vld [vmem:[#allocation3 + $0x1ae8] sm:$0xff]
    %v1124 = vld [vmem:[#allocation3 + $0x1af0] sm:$0xff]
    %v1125 = vld [vmem:[#allocation3 + $0x1af8] sm:$0xff]
    %v1126 = vld [vmem:[#allocation3 + $0x1b00] sm:$0xff]
    %v1127 = vld [vmem:[#allocation3 + $0x1b08] sm:$0xff]
    %v1128 = vld [vmem:[#allocation3 + $0x1b10] sm:$0xff]
    %v1129 = vld [vmem:[#allocation3 + $0x1b18] sm:$0xff]
    %v1130 = vld [vmem:[#allocation3 + $0x1b20] sm:$0xff]
    %v1131 = vld [vmem:[#allocation3 + $0x1b28] sm:$0xff]
    %v1132 = vld [vmem:[#allocation3 + $0x1b30] sm:$0xff]
    %v1133 = vld [vmem:[#allocation3 + $0x1b38] sm:$0xff]
    %v1134 = vld [vmem:[#allocation3 + $0x1b40] sm:$0xff]
    %v1135 = vld [vmem:[#allocation3 + $0x1b48] sm:$0xff]
    %v1136 = vld [vmem:[#allocation3 + $0x1b50] sm:$0xff]
    %v1137 = vld [vmem:[#allocation3 + $0x1b58] sm:$0xff]
    %v1138 = vld [vmem:[#allocation3 + $0x1b60] sm:$0xff]
    %v1139 = vld [vmem:[#allocation3 + $0x1b68] sm:$0xff]
    %v1140 = vld [vmem:[#allocation3 + $0x1b70] sm:$0xff]
    %v1141 = vld [vmem:[#allocation3 + $0x1b78] sm:$0xff]
    %v1142 = vld [vmem:[#allocation3 + $0x1b80] sm:$0xff]
    %v1143 = vld [vmem:[#allocation3 + $0x1b88] sm:$0xff]
    %v1144 = vld [vmem:[#allocation3 + $0x1b90] sm:$0xff]
    %v1145 = vld [vmem:[#allocation3 + $0x1b98] sm:$0xff]
    %v1146 = vld [vmem:[#allocation3 + $0x1ba0] sm:$0xff]
    %v1147 = vld [vmem:[#allocation3 + $0x1ba8] sm:$0xff]
    %v1148 = vld [vmem:[#allocation3 + $0x1bb0] sm:$0xff]
    %v1149 = vld [vmem:[#allocation3 + $0x1bb8] sm:$0xff]
    %v1150 = vld [vmem:[#allocation3 + $0x1bc0] sm:$0xff]
    %v1151 = vld [vmem:[#allocation3 + $0x1bc8] sm:$0xff]
    %v1152 = vld [vmem:[#allocation3 + $0x1bd0] sm:$0xff]
    %v1153 = vld [vmem:[#allocation3 + $0x1bd8] sm:$0xff]
    %v1154 = vld [vmem:[#allocation3 + $0x1be0] sm:$0xff]
    %v1155 = vld [vmem:[#allocation3 + $0x1be8] sm:$0xff]
    %v1156 = vld [vmem:[#allocation3 + $0x1bf0] sm:$0xff]
    %v1157 = vld [vmem:[#allocation3 + $0x1bf8] sm:$0xff]
    %v1158 = vld [vmem:[#allocation3 + $0x1c00] sm:$0xff]
    %v1159 = vld [vmem:[#allocation3 + $0x1c08] sm:$0xff]
    %v1160 = vld [vmem:[#allocation3 + $0x1c10] sm:$0xff]
    %v1161 = vld [vmem:[#allocation3 + $0x1c18] sm:$0xff]
    %v1162 = vld [vmem:[#allocation3 + $0x1c20] sm:$0xff]
    %v1163 = vld [vmem:[#allocation3 + $0x1c28] sm:$0xff]
    %v1164 = vld [vmem:[#allocation3 + $0x1c30] sm:$0xff]
    %v1165 = vld [vmem:[#allocation3 + $0x1c38] sm:$0xff]
    %v1166 = vld [vmem:[#allocation3 + $0x1c40] sm:$0xff]
    %v1167 = vld [vmem:[#allocation3 + $0x1c48] sm:$0xff]
    %v1168 = vld [vmem:[#allocation3 + $0x1c50] sm:$0xff]
    %v1169 = vld [vmem:[#allocation3 + $0x1c58] sm:$0xff]
    %v1170 = vld [vmem:[#allocation3 + $0x1c60] sm:$0xff]
    %v1171 = vld [vmem:[#allocation3 + $0x1c68] sm:$0xff]
    %v1172 = vld [vmem:[#allocation3 + $0x1c70] sm:$0xff]
    %v1173 = vld [vmem:[#allocation3 + $0x1c78] sm:$0xff]
    %v1174 = vld [vmem:[#allocation3 + $0x1c80] sm:$0xff]
    %v1175 = vld [vmem:[#allocation3 + $0x1c88] sm:$0xff]
    %v1176 = vld [vmem:[#allocation3 + $0x1c90] sm:$0xff]
    %v1177 = vld [vmem:[#allocation3 + $0x1c98] sm:$0xff]
    %v1178 = vld [vmem:[#allocation3 + $0x1ca0] sm:$0xff]
    %v1179 = vld [vmem:[#allocation3 + $0x1ca8] sm:$0xff]
    %v1180 = vld [vmem:[#allocation3 + $0x1cb0] sm:$0xff]
    %v1181 = vld [vmem:[#allocation3 + $0x1cb8] sm:$0xff]
    %v1182 = vld [vmem:[#allocation3 + $0x1cc0] sm:$0xff]
    %v1183 = vld [vmem:[#allocation3 + $0x1cc8] sm:$0xff]
    %v1184 = vld [vmem:[#allocation3 + $0x1cd0] sm:$0xff]
    %v1185 = vld [vmem:[#allocation3 + $0x1cd8] sm:$0xff]
    %v1186 = vld [vmem:[#allocation3 + $0x1ce0] sm:$0xff]
    %v1187 = vld [vmem:[#allocation3 + $0x1ce8] sm:$0xff]
    %v1188 = vld [vmem:[#allocation3 + $0x1cf0] sm:$0xff]
    %v1189 = vld [vmem:[#allocation3 + $0x1cf8] sm:$0xff]
    %v1190 = vld [vmem:[#allocation3 + $0x1d00] sm:$0xff]
    %v1191 = vld [vmem:[#allocation3 + $0x1d08] sm:$0xff]
    %v1192 = vld [vmem:[#allocation3 + $0x1d10] sm:$0xff]
    %v1193 = vld [vmem:[#allocation3 + $0x1d18] sm:$0xff]
    %v1194 = vld [vmem:[#allocation3 + $0x1d20] sm:$0xff]
    %v1195 = vld [vmem:[#allocation3 + $0x1d28] sm:$0xff]
    %v1196 = vld [vmem:[#allocation3 + $0x1d30] sm:$0xff]
    %v1197 = vld [vmem:[#allocation3 + $0x1d38] sm:$0xff]
    %v1198 = vld [vmem:[#allocation3 + $0x1d40] sm:$0xff]
    %v1199 = vld [vmem:[#allocation3 + $0x1d48] sm:$0xff]
    %v1200 = vld [vmem:[#allocation3 + $0x1d50] sm:$0xff]
    %v1201 = vld [vmem:[#allocation3 + $0x1d58] sm:$0xff]
    %v1202 = vld [vmem:[#allocation3 + $0x1d60] sm:$0xff]
    %v1203 = vld [vmem:[#allocation3 + $0x1d68] sm:$0xff]
    %v1204 = vld [vmem:[#allocation3 + $0x1d70] sm:$0xff]
    %v1205 = vld [vmem:[#allocation3 + $0x1d78] sm:$0xff]
    %v1206 = vld [vmem:[#allocation3 + $0x1d80] sm:$0xff]
    %v1207 = vld [vmem:[#allocation3 + $0x1d88] sm:$0xff]
    %v1208 = vld [vmem:[#allocation3 + $0x1d90] sm:$0xff]
    %v1209 = vld [vmem:[#allocation3 + $0x1d98] sm:$0xff]
    %v1210 = vld [vmem:[#allocation3 + $0x1da0] sm:$0xff]
    %v1211 = vld [vmem:[#allocation3 + $0x1da8] sm:$0xff]
    %v1212 = vld [vmem:[#allocation3 + $0x1db0] sm:$0xff]
    %v1213 = vld [vmem:[#allocation3 + $0x1db8] sm:$0xff]
    %v1214 = vld [vmem:[#allocation3 + $0x1dc0] sm:$0xff]
    %v1215 = vld [vmem:[#allocation3 + $0x1dc8] sm:$0xff]
    %v1216 = vld [vmem:[#allocation3 + $0x1dd0] sm:$0xff]
    %v1217 = vld [vmem:[#allocation3 + $0x1dd8] sm:$0xff]
    %v1218 = vld [vmem:[#allocation3 + $0x1de0] sm:$0xff]
    %v1219 = vld [vmem:[#allocation3 + $0x1de8] sm:$0xff]
    %v1220 = vld [vmem:[#allocation3 + $0x1df0] sm:$0xff]
    %v1221 = vld [vmem:[#allocation3 + $0x1df8] sm:$0xff]
    %v1222 = vld [vmem:[#allocation3 + $0x1e00] sm:$0xff]
    %v1223 = vld [vmem:[#allocation3 + $0x1e08] sm:$0xff]
    %v1224 = vld [vmem:[#allocation3 + $0x1e10] sm:$0xff]
    %v1225 = vld [vmem:[#allocation3 + $0x1e18] sm:$0xff]
    %v1226 = vld [vmem:[#allocation3 + $0x1e20] sm:$0xff]
    %v1227 = vld [vmem:[#allocation3 + $0x1e28] sm:$0xff]
    %v1228 = vld [vmem:[#allocation3 + $0x1e30] sm:$0xff]
    %v1229 = vld [vmem:[#allocation3 + $0x1e38] sm:$0xff]
    %v1230 = vld [vmem:[#allocation3 + $0x1e40] sm:$0xff]
    %v1231 = vld [vmem:[#allocation3 + $0x1e48] sm:$0xff]
    %v1232 = vld [vmem:[#allocation3 + $0x1e50] sm:$0xff]
    %v1233 = vld [vmem:[#allocation3 + $0x1e58] sm:$0xff]
    %v1234 = vld [vmem:[#allocation3 + $0x1e60] sm:$0xff]
    %v1235 = vld [vmem:[#allocation3 + $0x1e68] sm:$0xff]
    %v1236 = vld [vmem:[#allocation3 + $0x1e70] sm:$0xff]
    %v1237 = vld [vmem:[#allocation3 + $0x1e78] sm:$0xff]
    %v1238 = vld [vmem:[#allocation3 + $0x1e80] sm:$0xff]
    %v1239 = vld [vmem:[#allocation3 + $0x1e88] sm:$0xff]
    %v1240 = vld [vmem:[#allocation3 + $0x1e90] sm:$0xff]
    %v1241 = vld [vmem:[#allocation3 + $0x1e98] sm:$0xff]
    %v1242 = vld [vmem:[#allocation3 + $0x1ea0] sm:$0xff]
    %v1243 = vld [vmem:[#allocation3 + $0x1ea8] sm:$0xff]
    %v1244 = vld [vmem:[#allocation3 + $0x1eb0] sm:$0xff]
    %v1245 = vld [vmem:[#allocation3 + $0x1eb8] sm:$0xff]
    %v1246 = vld [vmem:[#allocation3 + $0x1ec0] sm:$0xff]
    %v1247 = vld [vmem:[#allocation3 + $0x1ec8] sm:$0xff]
    %v1248 = vld [vmem:[#allocation3 + $0x1ed0] sm:$0xff]
    %v1249 = vld [vmem:[#allocation3 + $0x1ed8] sm:$0xff]
    %v1250 = vld [vmem:[#allocation3 + $0x1ee0] sm:$0xff]
    %v1251 = vld [vmem:[#allocation3 + $0x1ee8] sm:$0xff]
    %v1252 = vld [vmem:[#allocation3 + $0x1ef0] sm:$0xff]
    %v1253 = vld [vmem:[#allocation3 + $0x1ef8] sm:$0xff]
    %v1254 = vld [vmem:[#allocation3 + $0x1f00] sm:$0xff]
    %v1255 = vld [vmem:[#allocation3 + $0x1f08] sm:$0xff]
    %v1256 = vld [vmem:[#allocation3 + $0x1f10] sm:$0xff]
    %v1257 = vld [vmem:[#allocation3 + $0x1f18] sm:$0xff]
    %v1258 = vld [vmem:[#allocation3 + $0x1f20] sm:$0xff]
    %v1259 = vld [vmem:[#allocation3 + $0x1f28] sm:$0xff]
    %v1260 = vld [vmem:[#allocation3 + $0x1f30] sm:$0xff]
    %v1261 = vld [vmem:[#allocation3 + $0x1f38] sm:$0xff]
    %v1262 = vld [vmem:[#allocation3 + $0x1f40] sm:$0xff]
    %v1263 = vld [vmem:[#allocation3 + $0x1f48] sm:$0xff]
    %v1264 = vld [vmem:[#allocation3 + $0x1f50] sm:$0xff]
    %v1265 = vld [vmem:[#allocation3 + $0x1f58] sm:$0xff]
    %v1266 = vld [vmem:[#allocation3 + $0x1f60] sm:$0xff]
    %v1267 = vld [vmem:[#allocation3 + $0x1f68] sm:$0xff]
    %v1268 = vld [vmem:[#allocation3 + $0x1f70] sm:$0xff]
    %v1269 = vld [vmem:[#allocation3 + $0x1f78] sm:$0xff]
    %v1270 = vld [vmem:[#allocation3 + $0x1f80] sm:$0xff]
    %v1271 = vld [vmem:[#allocation3 + $0x1f88] sm:$0xff]
    %v1272 = vld [vmem:[#allocation3 + $0x1f90] sm:$0xff]
    %v1273 = vld [vmem:[#allocation3 + $0x1f98] sm:$0xff]
    %v1274 = vld [vmem:[#allocation3 + $0x1fa0] sm:$0xff]
    %v1275 = vld [vmem:[#allocation3 + $0x1fa8] sm:$0xff]
    %v1276 = vld [vmem:[#allocation3 + $0x1fb0] sm:$0xff]
    %v1277 = vld [vmem:[#allocation3 + $0x1fb8] sm:$0xff]
    %v1278 = vld [vmem:[#allocation3 + $0x1fc0] sm:$0xff]
    %v1279 = vld [vmem:[#allocation3 + $0x1fc8] sm:$0xff]
    %v1280 = vld [vmem:[#allocation3 + $0x1fd0] sm:$0xff]
    %v1281 = vld [vmem:[#allocation3 + $0x1fd8] sm:$0xff]
    %v1282 = vld [vmem:[#allocation3 + $0x1fe0] sm:$0xff]
    %v1283 = vld [vmem:[#allocation3 + $0x1fe8] sm:$0xff]
    %v1284 = vld [vmem:[#allocation3 + $0x1ff0] sm:$0xff]
    %v1285 = vld [vmem:[#allocation3 + $0x1ff8] sm:$0xff]
    %v1286 = vld [vmem:[#allocation3 + $0x2000] sm:$0xff]
    %v1287 = vld [vmem:[#allocation3 + $0x2008] sm:$0xff]
    %v1288 = vld [vmem:[#allocation3 + $0x2010] sm:$0xff]
    %v1289 = vld [vmem:[#allocation3 + $0x2018] sm:$0xff]
    %v1290 = vld [vmem:[#allocation3 + $0x2020] sm:$0xff]
    %v1291 = vld [vmem:[#allocation3 + $0x2028] sm:$0xff]
    %v1292 = vld [vmem:[#allocation3 + $0x2030] sm:$0xff]
    %v1293 = vld [vmem:[#allocation3 + $0x2038] sm:$0xff]
    %v1294 = vld [vmem:[#allocation3 + $0x2040] sm:$0xff]
    %v1295 = vld [vmem:[#allocation3 + $0x2048] sm:$0xff]
    %v1296 = vld [vmem:[#allocation3 + $0x2050] sm:$0xff]
    %v1297 = vld [vmem:[#allocation3 + $0x2058] sm:$0xff]
    %v1298 = vld [vmem:[#allocation3 + $0x2060] sm:$0xff]
    %v1299 = vld [vmem:[#allocation3 + $0x2068] sm:$0xff]
    %v1300 = vld [vmem:[#allocation3 + $0x2070] sm:$0xff]
    %v1301 = vld [vmem:[#allocation3 + $0x2078] sm:$0xff]
    %v1302 = vld [vmem:[#allocation3 + $0x2080] sm:$0xff]
    %v1303 = vld [vmem:[#allocation3 + $0x2088] sm:$0xff]
    %v1304 = vld [vmem:[#allocation3 + $0x2090] sm:$0xff]
    %v1305 = vld [vmem:[#allocation3 + $0x2098] sm:$0xff]
    %v1306 = vld [vmem:[#allocation3 + $0x20a0] sm:$0xff]
    %v1307 = vld [vmem:[#allocation3 + $0x20a8] sm:$0xff]
    %v1308 = vld [vmem:[#allocation3 + $0x20b0] sm:$0xff]
    %v1309 = vld [vmem:[#allocation3 + $0x20b8] sm:$0xff]
    %v1310 = vld [vmem:[#allocation3 + $0x20c0] sm:$0xff]
    %v1311 = vld [vmem:[#allocation3 + $0x20c8] sm:$0xff]
    %v1312 = vld [vmem:[#allocation3 + $0x20d0] sm:$0xff]
    %v1313 = vld [vmem:[#allocation3 + $0x20d8] sm:$0xff]
    %v1314 = vld [vmem:[#allocation3 + $0x20e0] sm:$0xff]
    %v1315 = vld [vmem:[#allocation3 + $0x20e8] sm:$0xff]
    %v1316 = vld [vmem:[#allocation3 + $0x20f0] sm:$0xff]
    %v1317 = vld [vmem:[#allocation3 + $0x20f8] sm:$0xff]
    %v1318 = vld [vmem:[#allocation3 + $0x2100] sm:$0xff]
    %v1319 = vld [vmem:[#allocation3 + $0x2108] sm:$0xff]
    %v1320 = vld [vmem:[#allocation3 + $0x2110] sm:$0xff]
    %v1321 = vld [vmem:[#allocation3 + $0x2118] sm:$0xff]
    %v1322 = vld [vmem:[#allocation3 + $0x2120] sm:$0xff]
    %v1323 = vld [vmem:[#allocation3 + $0x2128] sm:$0xff]
    %v1324 = vld [vmem:[#allocation3 + $0x2130] sm:$0xff]
    %v1325 = vld [vmem:[#allocation3 + $0x2138] sm:$0xff]
    %v1326 = vld [vmem:[#allocation3 + $0x2140] sm:$0xff]
    %v1327 = vld [vmem:[#allocation3 + $0x2148] sm:$0xff]
    %v1328 = vld [vmem:[#allocation3 + $0x2150] sm:$0xff]
    %v1329 = vld [vmem:[#allocation3 + $0x2158] sm:$0xff]
    %v1330 = vld [vmem:[#allocation3 + $0x2160] sm:$0xff]
    %v1331 = vld [vmem:[#allocation3 + $0x2168] sm:$0xff]
    %v1332 = vld [vmem:[#allocation3 + $0x2170] sm:$0xff]
    %v1333 = vld [vmem:[#allocation3 + $0x2178] sm:$0xff]
    %v1334 = vld [vmem:[#allocation3 + $0x2180] sm:$0xff]
    %v1335 = vld [vmem:[#allocation3 + $0x2188] sm:$0xff]
    %v1336 = vld [vmem:[#allocation3 + $0x2190] sm:$0xff]
    %v1337 = vld [vmem:[#allocation3 + $0x2198] sm:$0xff]
    %v1338 = vld [vmem:[#allocation3 + $0x21a0] sm:$0xff]
    %v1339 = vld [vmem:[#allocation3 + $0x21a8] sm:$0xff]
    %v1340 = vld [vmem:[#allocation3 + $0x21b0] sm:$0xff]
    %v1341 = vld [vmem:[#allocation3 + $0x21b8] sm:$0xff]
    %v1342 = vld [vmem:[#allocation3 + $0x21c0] sm:$0xff]
    %v1343 = vld [vmem:[#allocation3 + $0x21c8] sm:$0xff]
    %v1344 = vld [vmem:[#allocation3 + $0x21d0] sm:$0xff]
    %v1345 = vld [vmem:[#allocation3 + $0x21d8] sm:$0xff]
    %v1346 = vld [vmem:[#allocation3 + $0x21e0] sm:$0xff]
    %v1347 = vld [vmem:[#allocation3 + $0x21e8] sm:$0xff]
    %v1348 = vld [vmem:[#allocation3 + $0x21f0] sm:$0xff]
    %v1349 = vld [vmem:[#allocation3 + $0x21f8] sm:$0xff]
    %v1350 = vld [vmem:[#allocation3 + $0x2200] sm:$0xff]
    %v1351 = vld [vmem:[#allocation3 + $0x2208] sm:$0xff]
    %v1352 = vld [vmem:[#allocation3 + $0x2210] sm:$0xff]
    %v1353 = vld [vmem:[#allocation3 + $0x2218] sm:$0xff]
    %v1354 = vld [vmem:[#allocation3 + $0x2220] sm:$0xff]
    %v1355 = vld [vmem:[#allocation3 + $0x2228] sm:$0xff]
    %v1356 = vld [vmem:[#allocation3 + $0x2230] sm:$0xff]
    %v1357 = vld [vmem:[#allocation3 + $0x2238] sm:$0xff]
    %v1358 = vld [vmem:[#allocation3 + $0x2240] sm:$0xff]
    %v1359 = vld [vmem:[#allocation3 + $0x2248] sm:$0xff]
    %v1360 = vld [vmem:[#allocation3 + $0x2250] sm:$0xff]
    %v1361 = vld [vmem:[#allocation3 + $0x2258] sm:$0xff]
    %v1362 = vld [vmem:[#allocation3 + $0x2260] sm:$0xff]
    %v1363 = vld [vmem:[#allocation3 + $0x2268] sm:$0xff]
    %v1364 = vld [vmem:[#allocation3 + $0x2270] sm:$0xff]
    %v1365 = vld [vmem:[#allocation3 + $0x2278] sm:$0xff]
    %v1366 = vld [vmem:[#allocation3 + $0x2280] sm:$0xff]
    %v1367 = vld [vmem:[#allocation3 + $0x2288] sm:$0xff]
    %v1368 = vld [vmem:[#allocation3 + $0x2290] sm:$0xff]
    %v1369 = vld [vmem:[#allocation3 + $0x2298] sm:$0xff]
    %v1370 = vld [vmem:[#allocation3 + $0x22a0] sm:$0xff]
    %v1371 = vld [vmem:[#allocation3 + $0x22a8] sm:$0xff]
    %v1372 = vld [vmem:[#allocation3 + $0x22b0] sm:$0xff]
    %v1373 = vld [vmem:[#allocation3 + $0x22b8] sm:$0xff]
    %v1374 = vld [vmem:[#allocation3 + $0x22c0] sm:$0xff]
    %v1375 = vld [vmem:[#allocation3 + $0x22c8] sm:$0xff]
    %v1376 = vld [vmem:[#allocation3 + $0x22d0] sm:$0xff]
    %v1377 = vld [vmem:[#allocation3 + $0x22d8] sm:$0xff]
    %v1378 = vld [vmem:[#allocation3 + $0x22e0] sm:$0xff]
    %v1379 = vld [vmem:[#allocation3 + $0x22e8] sm:$0xff]
    %v1380 = vld [vmem:[#allocation3 + $0x22f0] sm:$0xff]
    %v1381 = vld [vmem:[#allocation3 + $0x22f8] sm:$0xff]
    %v1382 = vld [vmem:[#allocation3 + $0x2300] sm:$0xff]
    %v1383 = vld [vmem:[#allocation3 + $0x2308] sm:$0xff]
    %v1384 = vld [vmem:[#allocation3 + $0x2310] sm:$0xff]
    %v1385 = vld [vmem:[#allocation3 + $0x2318] sm:$0xff]
    %v1386 = vld [vmem:[#allocation3 + $0x2320] sm:$0xff]
    %v1387 = vld [vmem:[#allocation3 + $0x2328] sm:$0xff]
    %v1388 = vld [vmem:[#allocation3 + $0x2330] sm:$0xff]
    %v1389 = vld [vmem:[#allocation3 + $0x2338] sm:$0xff]
    %v1390 = vld [vmem:[#allocation3 + $0x2340] sm:$0xff]
    %v1391 = vld [vmem:[#allocation3 + $0x2348] sm:$0xff]
    %v1392 = vld [vmem:[#allocation3 + $0x2350] sm:$0xff]
    %v1393 = vld [vmem:[#allocation3 + $0x2358] sm:$0xff]
    %v1394 = vld [vmem:[#allocation3 + $0x2360] sm:$0xff]
    %v1395 = vld [vmem:[#allocation3 + $0x2368] sm:$0xff]
    %v1396 = vld [vmem:[#allocation3 + $0x2370] sm:$0xff]
    %v1397 = vld [vmem:[#allocation3 + $0x2378] sm:$0xff]
    %v1398 = vld [vmem:[#allocation3 + $0x2380] sm:$0xff]
    %v1399 = vld [vmem:[#allocation3 + $0x2388] sm:$0xff]
    %v1400 = vld [vmem:[#allocation3 + $0x2390] sm:$0xff]
    %v1401 = vld [vmem:[#allocation3 + $0x2398] sm:$0xff]
    %v1402 = vld [vmem:[#allocation3 + $0x23a0] sm:$0xff]
    %v1403 = vld [vmem:[#allocation3 + $0x23a8] sm:$0xff]
    %v1404 = vld [vmem:[#allocation3 + $0x23b0] sm:$0xff]
    %v1405 = vld [vmem:[#allocation3 + $0x23b8] sm:$0xff]
    %v1406 = vld [vmem:[#allocation3 + $0x23c0] sm:$0xff]
    %v1407 = vld [vmem:[#allocation3 + $0x23c8] sm:$0xff]
    %v1408 = vld [vmem:[#allocation3 + $0x23d0] sm:$0xff]
    %v1409 = vld [vmem:[#allocation3 + $0x23d8] sm:$0xff]
    %v1410 = vld [vmem:[#allocation3 + $0x23e0] sm:$0xff]
    %v1411 = vld [vmem:[#allocation3 + $0x23e8] sm:$0xff]
    %v1412 = vld [vmem:[#allocation3 + $0x23f0] sm:$0xff]
    %v1413 = vld [vmem:[#allocation3 + $0x23f8] sm:$0xff]
    %v1414 = vld [vmem:[#allocation3 + $0x2400] sm:$0xff]
    %v1415 = vld [vmem:[#allocation3 + $0x2408] sm:$0xff]
    %v1416 = vld [vmem:[#allocation3 + $0x2410] sm:$0xff]
    %v1417 = vld [vmem:[#allocation3 + $0x2418] sm:$0xff]
    %v1418 = vld [vmem:[#allocation3 + $0x2420] sm:$0xff]
    %v1419 = vld [vmem:[#allocation3 + $0x2428] sm:$0xff]
    %v1420 = vld [vmem:[#allocation3 + $0x2430] sm:$0xff]
    %v1421 = vld [vmem:[#allocation3 + $0x2438] sm:$0xff]
    %v1422 = vld [vmem:[#allocation3 + $0x2440] sm:$0xff]
    %v1423 = vld [vmem:[#allocation3 + $0x2448] sm:$0xff]
    %v1424 = vld [vmem:[#allocation3 + $0x2450] sm:$0xff]
    %v1425 = vld [vmem:[#allocation3 + $0x2458] sm:$0xff]
    %v1426 = vld [vmem:[#allocation3 + $0x2460] sm:$0xff]
    %v1427 = vld [vmem:[#allocation3 + $0x2468] sm:$0xff]
    %v1428 = vld [vmem:[#allocation3 + $0x2470] sm:$0xff]
    %v1429 = vld [vmem:[#allocation3 + $0x2478] sm:$0xff]
    %v1430 = vld [vmem:[#allocation3 + $0x2480] sm:$0xff]
    %v1431 = vld [vmem:[#allocation3 + $0x2488] sm:$0xff]
    %v1432 = vld [vmem:[#allocation3 + $0x2490] sm:$0xff]
    %v1433 = vld [vmem:[#allocation3 + $0x2498] sm:$0xff]
    %v1434 = vld [vmem:[#allocation3 + $0x24a0] sm:$0xff]
    %v1435 = vld [vmem:[#allocation3 + $0x24a8] sm:$0xff]
    %v1436 = vld [vmem:[#allocation3 + $0x24b0] sm:$0xff]
    %v1437 = vld [vmem:[#allocation3 + $0x24b8] sm:$0xff]
    %v1438 = vld [vmem:[#allocation3 + $0x24c0] sm:$0xff]
    %v1439 = vld [vmem:[#allocation3 + $0x24c8] sm:$0xff]
    %v1440 = vld [vmem:[#allocation3 + $0x24d0] sm:$0xff]
    %v1441 = vld [vmem:[#allocation3 + $0x24d8] sm:$0xff]
    %v1442 = vld [vmem:[#allocation3 + $0x24e0] sm:$0xff]
    %v1443 = vld [vmem:[#allocation3 + $0x24e8] sm:$0xff]
    %v1444 = vld [vmem:[#allocation3 + $0x24f0] sm:$0xff]
    %v1445 = vld [vmem:[#allocation3 + $0x24f8] sm:$0xff]
    %v1446 = vld [vmem:[#allocation3 + $0x2500] sm:$0xff]
    %v1447 = vld [vmem:[#allocation3 + $0x2508] sm:$0xff]
    %v1448 = vld [vmem:[#allocation3 + $0x2510] sm:$0xff]
    %v1449 = vld [vmem:[#allocation3 + $0x2518] sm:$0xff]
    %v1450 = vld [vmem:[#allocation3 + $0x2520] sm:$0xff]
    %v1451 = vld [vmem:[#allocation3 + $0x2528] sm:$0xff]
    %v1452 = vld [vmem:[#allocation3 + $0x2530] sm:$0xff]
    %v1453 = vld [vmem:[#allocation3 + $0x2538] sm:$0xff]
    %v1454 = vld [vmem:[#allocation3 + $0x2540] sm:$0xff]
    %v1455 = vld [vmem:[#allocation3 + $0x2548] sm:$0xff]
    %v1456 = vld [vmem:[#allocation3 + $0x2550] sm:$0xff]
    %v1457 = vld [vmem:[#allocation3 + $0x2558] sm:$0xff]
    %v1458 = vld [vmem:[#allocation3 + $0x2560] sm:$0xff]
    %v1459 = vld [vmem:[#allocation3 + $0x2568] sm:$0xff]
    %v1460 = vld [vmem:[#allocation3 + $0x2570] sm:$0xff]
    %v1461 = vld [vmem:[#allocation3 + $0x2578] sm:$0xff]
    %v1462 = vld [vmem:[#allocation3 + $0x2580] sm:$0xff]
    %v1463 = vld [vmem:[#allocation3 + $0x2588] sm:$0xff]
    %v1464 = vld [vmem:[#allocation3 + $0x2590] sm:$0xff]
    %v1465 = vld [vmem:[#allocation3 + $0x2598] sm:$0xff]
    %v1466 = vld [vmem:[#allocation3 + $0x25a0] sm:$0xff]
    %v1467 = vld [vmem:[#allocation3 + $0x25a8] sm:$0xff]
    %v1468 = vld [vmem:[#allocation3 + $0x25b0] sm:$0xff]
    %v1469 = vld [vmem:[#allocation3 + $0x25b8] sm:$0xff]
    %v1470 = vld [vmem:[#allocation3 + $0x25c0] sm:$0xff]
    %v1471 = vld [vmem:[#allocation3 + $0x25c8] sm:$0xff]
    %v1472 = vld [vmem:[#allocation3 + $0x25d0] sm:$0xff]
    %v1473 = vld [vmem:[#allocation3 + $0x25d8] sm:$0xff]
    %v1474 = vld [vmem:[#allocation3 + $0x25e0] sm:$0xff]
    %v1475 = vld [vmem:[#allocation3 + $0x25e8] sm:$0xff]
    %v1476 = vld [vmem:[#allocation3 + $0x25f0] sm:$0xff]
    %v1477 = vld [vmem:[#allocation3 + $0x25f8] sm:$0xff]
    %v1478 = vld [vmem:[#allocation3 + $0x2600] sm:$0xff]
    %v1479 = vld [vmem:[#allocation3 + $0x2608] sm:$0xff]
    %v1480 = vld [vmem:[#allocation3 + $0x2610] sm:$0xff]
    %v1481 = vld [vmem:[#allocation3 + $0x2618] sm:$0xff]
    %v1482 = vld [vmem:[#allocation3 + $0x2620] sm:$0xff]
    %v1483 = vld [vmem:[#allocation3 + $0x2628] sm:$0xff]
    %v1484 = vld [vmem:[#allocation3 + $0x2630] sm:$0xff]
    %v1485 = vld [vmem:[#allocation3 + $0x2638] sm:$0xff]
    %v1486 = vld [vmem:[#allocation3 + $0x2640] sm:$0xff]
    %v1487 = vld [vmem:[#allocation3 + $0x2648] sm:$0xff]
    %v1488 = vld [vmem:[#allocation3 + $0x2650] sm:$0xff]
    %v1489 = vld [vmem:[#allocation3 + $0x2658] sm:$0xff]
    %v1490 = vld [vmem:[#allocation3 + $0x2660] sm:$0xff]
    %v1491 = vld [vmem:[#allocation3 + $0x2668] sm:$0xff]
    %v1492 = vld [vmem:[#allocation3 + $0x2670] sm:$0xff]
    %v1493 = vld [vmem:[#allocation3 + $0x2678] sm:$0xff]
    %v1494 = vld [vmem:[#allocation3 + $0x2680] sm:$0xff]
    %v1495 = vld [vmem:[#allocation3 + $0x2688] sm:$0xff]
    %v1496 = vld [vmem:[#allocation3 + $0x2690] sm:$0xff]
    %v1497 = vld [vmem:[#allocation3 + $0x2698] sm:$0xff]
    %v1498 = vld [vmem:[#allocation3 + $0x26a0] sm:$0xff]
    %v1499 = vld [vmem:[#allocation3 + $0x26a8] sm:$0xff]
    %v1500 = vld [vmem:[#allocation3 + $0x26b0] sm:$0xff]
    %v1501 = vld [vmem:[#allocation3 + $0x26b8] sm:$0xff]
    %v1502 = vld [vmem:[#allocation3 + $0x26c0] sm:$0xff]
    %v1503 = vld [vmem:[#allocation3 + $0x26c8] sm:$0xff]
    %v1504 = vld [vmem:[#allocation3 + $0x26d0] sm:$0xff]
    %v1505 = vld [vmem:[#allocation3 + $0x26d8] sm:$0xff]
    %v1506 = vld [vmem:[#allocation3 + $0x26e0] sm:$0xff]
    %v1507 = vld [vmem:[#allocation3 + $0x26e8] sm:$0xff]
    %v1508 = vld [vmem:[#allocation3 + $0x26f0] sm:$0xff]
    %v1509 = vld [vmem:[#allocation3 + $0x26f8] sm:$0xff]
    %v1510 = vld [vmem:[#allocation3 + $0x2700] sm:$0xff]
    %v1511 = vld [vmem:[#allocation3 + $0x2708] sm:$0xff]
    %v1512 = vld [vmem:[#allocation3 + $0x2710] sm:$0xff]
    %v1513 = vld [vmem:[#allocation3 + $0x2718] sm:$0xff]
    %v1514 = vld [vmem:[#allocation3 + $0x2720] sm:$0xff]
    %v1515 = vld [vmem:[#allocation3 + $0x2728] sm:$0xff]
    %v1516 = vld [vmem:[#allocation3 + $0x2730] sm:$0xff]
    %v1517 = vld [vmem:[#allocation3 + $0x2738] sm:$0xff]
    %v1518 = vld [vmem:[#allocation3 + $0x2740] sm:$0xff]
    %v1519 = vld [vmem:[#allocation3 + $0x2748] sm:$0xff]
    %v1520 = vld [vmem:[#allocation3 + $0x2750] sm:$0xff]
    %v1521 = vld [vmem:[#allocation3 + $0x2758] sm:$0xff]
    %v1522 = vld [vmem:[#allocation3 + $0x2760] sm:$0xff]
    %v1523 = vld [vmem:[#allocation3 + $0x2768] sm:$0xff]
    %v1524 = vld [vmem:[#allocation3 + $0x2770] sm:$0xff]
    %v1525 = vld [vmem:[#allocation3 + $0x2778] sm:$0xff]
    %v1526 = vld [vmem:[#allocation3 + $0x2780] sm:$0xff]
    %v1527 = vld [vmem:[#allocation3 + $0x2788] sm:$0xff]
    %v1528 = vld [vmem:[#allocation3 + $0x2790] sm:$0xff]
    %v1529 = vld [vmem:[#allocation3 + $0x2798] sm:$0xff]
    %v1530 = vld [vmem:[#allocation3 + $0x27a0] sm:$0xff]
    %v1531 = vld [vmem:[#allocation3 + $0x27a8] sm:$0xff]
    %v1532 = vld [vmem:[#allocation3 + $0x27b0] sm:$0xff]
    %v1533 = vld [vmem:[#allocation3 + $0x27b8] sm:$0xff]
    %v1534 = vld [vmem:[#allocation3 + $0x27c0] sm:$0xff]
    %v1535 = vld [vmem:[#allocation3 + $0x27c8] sm:$0xff]
    %v1536 = vld [vmem:[#allocation3 + $0x27d0] sm:$0xff]
    %v1537 = vld [vmem:[#allocation3 + $0x27d8] sm:$0xff]
    %v1538 = vld [vmem:[#allocation3 + $0x27e0] sm:$0xff]
    %v1539 = vld [vmem:[#allocation3 + $0x27e8] sm:$0xff]
    %v1540 = vld [vmem:[#allocation3 + $0x27f0] sm:$0xff]
    %v1541 = vld [vmem:[#allocation3 + $0x27f8] sm:$0xff]
    %v1542 = vld [vmem:[#allocation3 + $0x2800] sm:$0xff]
    %v1543 = vld [vmem:[#allocation3 + $0x2808] sm:$0xff]
    %v1544 = vld [vmem:[#allocation3 + $0x2810] sm:$0xff]
    %v1545 = vld [vmem:[#allocation3 + $0x2818] sm:$0xff]
    %v1546 = vld [vmem:[#allocation3 + $0x2820] sm:$0xff]
    %v1547 = vld [vmem:[#allocation3 + $0x2828] sm:$0xff]
    %v1548 = vld [vmem:[#allocation3 + $0x2830] sm:$0xff]
    %v1549 = vld [vmem:[#allocation3 + $0x2838] sm:$0xff]
    %v1550 = vld [vmem:[#allocation3 + $0x2840] sm:$0xff]
    %v1551 = vld [vmem:[#allocation3 + $0x2848] sm:$0xff]
    %v1552 = vld [vmem:[#allocation3 + $0x2850] sm:$0xff]
    %v1553 = vld [vmem:[#allocation3 + $0x2858] sm:$0xff]
    %v1554 = vld [vmem:[#allocation3 + $0x2860] sm:$0xff]
    %v1555 = vld [vmem:[#allocation3 + $0x2868] sm:$0xff]
    %v1556 = vld [vmem:[#allocation3 + $0x2870] sm:$0xff]
    %v1557 = vld [vmem:[#allocation3 + $0x2878] sm:$0xff]
    %v1558 = vld [vmem:[#allocation3 + $0x2880] sm:$0xff]
    %v1559 = vld [vmem:[#allocation3 + $0x2888] sm:$0xff]
    %v1560 = vld [vmem:[#allocation3 + $0x2890] sm:$0xff]
    %v1561 = vld [vmem:[#allocation3 + $0x2898] sm:$0xff]
    %v1562 = vld [vmem:[#allocation3 + $0x28a0] sm:$0xff]
    %v1563 = vld [vmem:[#allocation3 + $0x28a8] sm:$0xff]
    %v1564 = vld [vmem:[#allocation3 + $0x28b0] sm:$0xff]
    %v1565 = vld [vmem:[#allocation3 + $0x28b8] sm:$0xff]
    %v1566 = vld [vmem:[#allocation3 + $0x28c0] sm:$0xff]
    %v1567 = vld [vmem:[#allocation3 + $0x28c8] sm:$0xff]
    %v1568 = vld [vmem:[#allocation3 + $0x28d0] sm:$0xff]
    %v1569 = vld [vmem:[#allocation3 + $0x28d8] sm:$0xff]
    %v1570 = vld [vmem:[#allocation3 + $0x28e0] sm:$0xff]
    %v1571 = vld [vmem:[#allocation3 + $0x28e8] sm:$0xff]
    %v1572 = vld [vmem:[#allocation3 + $0x28f0] sm:$0xff]
    %v1573 = vld [vmem:[#allocation3 + $0x28f8] sm:$0xff]
    %v1574 = vld [vmem:[#allocation3 + $0x2900] sm:$0xff]
    %v1575 = vld [vmem:[#allocation3 + $0x2908] sm:$0xff]
    %v1576 = vld [vmem:[#allocation3 + $0x2910] sm:$0xff]
    %v1577 = vld [vmem:[#allocation3 + $0x2918] sm:$0xff]
    %v1578 = vld [vmem:[#allocation3 + $0x2920] sm:$0xff]
    %v1579 = vld [vmem:[#allocation3 + $0x2928] sm:$0xff]
    %v1580 = vld [vmem:[#allocation3 + $0x2930] sm:$0xff]
    %v1581 = vld [vmem:[#allocation3 + $0x2938] sm:$0xff]
    %v1582 = vld [vmem:[#allocation3 + $0x2940] sm:$0xff]
    %v1583 = vld [vmem:[#allocation3 + $0x2948] sm:$0xff]
    %v1584 = vld [vmem:[#allocation3 + $0x2950] sm:$0xff]
    %v1585 = vld [vmem:[#allocation3 + $0x2958] sm:$0xff]
    %v1586 = vld [vmem:[#allocation3 + $0x2960] sm:$0xff]
    %v1587 = vld [vmem:[#allocation3 + $0x2968] sm:$0xff]
    %v1588 = vld [vmem:[#allocation3 + $0x2970] sm:$0xff]
    %v1589 = vld [vmem:[#allocation3 + $0x2978] sm:$0xff]
    %v1590 = vld [vmem:[#allocation3 + $0x2980] sm:$0xff]
    %v1591 = vld [vmem:[#allocation3 + $0x2988] sm:$0xff]
    %v1592 = vld [vmem:[#allocation3 + $0x2990] sm:$0xff]
    %v1593 = vld [vmem:[#allocation3 + $0x2998] sm:$0xff]
    %v1594 = vld [vmem:[#allocation3 + $0x29a0] sm:$0xff]
    %v1595 = vld [vmem:[#allocation3 + $0x29a8] sm:$0xff]
    %v1596 = vld [vmem:[#allocation3 + $0x29b0] sm:$0xff]
    %v1597 = vld [vmem:[#allocation3 + $0x29b8] sm:$0xff]
    %v1598 = vld [vmem:[#allocation3 + $0x29c0] sm:$0xff]
    %v1599 = vld [vmem:[#allocation3 + $0x29c8] sm:$0xff]
    %v1600 = vld [vmem:[#allocation3 + $0x29d0] sm:$0xff]
    %v1601 = vld [vmem:[#allocation3 + $0x29d8] sm:$0xff]
    %v1602 = vld [vmem:[#allocation3 + $0x29e0] sm:$0xff]
    %v1603 = vld [vmem:[#allocation3 + $0x29e8] sm:$0xff]
    %v1604 = vld [vmem:[#allocation3 + $0x29f0] sm:$0xff]
    %v1605 = vld [vmem:[#allocation3 + $0x29f8] sm:$0xff]
    %v1606 = vld [vmem:[#allocation3 + $0x2a00] sm:$0xff]
    %v1607 = vld [vmem:[#allocation3 + $0x2a08] sm:$0xff]
    %v1608 = vld [vmem:[#allocation3 + $0x2a10] sm:$0xff]
    %v1609 = vld [vmem:[#allocation3 + $0x2a18] sm:$0xff]
    %v1610 = vld [vmem:[#allocation3 + $0x2a20] sm:$0xff]
    %v1611 = vld [vmem:[#allocation3 + $0x2a28] sm:$0xff]
    %v1612 = vld [vmem:[#allocation3 + $0x2a30] sm:$0xff]
    %v1613 = vld [vmem:[#allocation3 + $0x2a38] sm:$0xff]
    %v1614 = vld [vmem:[#allocation3 + $0x2a40] sm:$0xff]
    %v1615 = vld [vmem:[#allocation3 + $0x2a48] sm:$0xff]
    %v1616 = vld [vmem:[#allocation3 + $0x2a50] sm:$0xff]
    %v1617 = vld [vmem:[#allocation3 + $0x2a58] sm:$0xff]
    %v1618 = vld [vmem:[#allocation3 + $0x2a60] sm:$0xff]
    %v1619 = vld [vmem:[#allocation3 + $0x2a68] sm:$0xff]
    %v1620 = vld [vmem:[#allocation3 + $0x2a70] sm:$0xff]
    %v1621 = vld [vmem:[#allocation3 + $0x2a78] sm:$0xff]
    %v1622 = vld [vmem:[#allocation3 + $0x2a80] sm:$0xff]
    %v1623 = vld [vmem:[#allocation3 + $0x2a88] sm:$0xff]
    %v1624 = vld [vmem:[#allocation3 + $0x2a90] sm:$0xff]
    %v1625 = vld [vmem:[#allocation3 + $0x2a98] sm:$0xff]
    %v1626 = vld [vmem:[#allocation3 + $0x2aa0] sm:$0xff]
    %v1627 = vld [vmem:[#allocation3 + $0x2aa8] sm:$0xff]
    %v1628 = vld [vmem:[#allocation3 + $0x2ab0] sm:$0xff]
    %v1629 = vld [vmem:[#allocation3 + $0x2ab8] sm:$0xff]
    %v1630 = vld [vmem:[#allocation3 + $0x2ac0] sm:$0xff]
    %v1631 = vld [vmem:[#allocation3 + $0x2ac8] sm:$0xff]
    %v1632 = vld [vmem:[#allocation3 + $0x2ad0] sm:$0xff]
    %v1633 = vld [vmem:[#allocation3 + $0x2ad8] sm:$0xff]
    %v1634 = vld [vmem:[#allocation3 + $0x2ae0] sm:$0xff]
    %v1635 = vld [vmem:[#allocation3 + $0x2ae8] sm:$0xff]
    %v1636 = vld [vmem:[#allocation3 + $0x2af0] sm:$0xff]
    %v1637 = vld [vmem:[#allocation3 + $0x2af8] sm:$0xff]
    %v1638 = vld [vmem:[#allocation3 + $0x2b00] sm:$0xff]
    %v1639 = vld [vmem:[#allocation3 + $0x2b08] sm:$0xff]
    %v1640 = vld [vmem:[#allocation3 + $0x2b10] sm:$0xff]
    %v1641 = vld [vmem:[#allocation3 + $0x2b18] sm:$0xff]
    %v1642 = vld [vmem:[#allocation3 + $0x2b20] sm:$0xff]
    %v1643 = vld [vmem:[#allocation3 + $0x2b28] sm:$0xff]
    %v1644 = vld [vmem:[#allocation3 + $0x2b30] sm:$0xff]
    %v1645 = vld [vmem:[#allocation3 + $0x2b38] sm:$0xff]
    %v1646 = vld [vmem:[#allocation3 + $0x2b40] sm:$0xff]
    %v1647 = vld [vmem:[#allocation3 + $0x2b48] sm:$0xff]
    %v1648 = vld [vmem:[#allocation3 + $0x2b50] sm:$0xff]
    %v1649 = vld [vmem:[#allocation3 + $0x2b58] sm:$0xff]
    %v1650 = vld [vmem:[#allocation3 + $0x2b60] sm:$0xff]
    %v1651 = vld [vmem:[#allocation3 + $0x2b68] sm:$0xff]
    %v1652 = vld [vmem:[#allocation3 + $0x2b70] sm:$0xff]
    %v1653 = vld [vmem:[#allocation3 + $0x2b78] sm:$0xff]
    %v1654 = vld [vmem:[#allocation3 + $0x2b80] sm:$0xff]
    %v1655 = vld [vmem:[#allocation3 + $0x2b88] sm:$0xff]
    %v1656 = vld [vmem:[#allocation3 + $0x2b90] sm:$0xff]
    %v1657 = vld [vmem:[#allocation3 + $0x2b98] sm:$0xff]
    %v1658 = vld [vmem:[#allocation3 + $0x2ba0] sm:$0xff]
    %v1659 = vld [vmem:[#allocation3 + $0x2ba8] sm:$0xff]
    %v1660 = vld [vmem:[#allocation3 + $0x2bb0] sm:$0xff]
    %v1661 = vld [vmem:[#allocation3 + $0x2bb8] sm:$0xff]
    %v1662 = vld [vmem:[#allocation3 + $0x2bc0] sm:$0xff]
    %v1663 = vld [vmem:[#allocation3 + $0x2bc8] sm:$0xff]
    %v1664 = vld [vmem:[#allocation3 + $0x2bd0] sm:$0xff]
    %v1665 = vld [vmem:[#allocation3 + $0x2bd8] sm:$0xff]
    %v1666 = vld [vmem:[#allocation3 + $0x2be0] sm:$0xff]
    %v1667 = vld [vmem:[#allocation3 + $0x2be8] sm:$0xff]
    %v1668 = vld [vmem:[#allocation3 + $0x2bf0] sm:$0xff]
    %v1669 = vld [vmem:[#allocation3 + $0x2bf8] sm:$0xff]
    %v1670 = vld [vmem:[#allocation3 + $0x2c00] sm:$0xff]
    %v1671 = vld [vmem:[#allocation3 + $0x2c08] sm:$0xff]
    %v1672 = vld [vmem:[#allocation3 + $0x2c10] sm:$0xff]
    %v1673 = vld [vmem:[#allocation3 + $0x2c18] sm:$0xff]
    %v1674 = vld [vmem:[#allocation3 + $0x2c20] sm:$0xff]
    %v1675 = vld [vmem:[#allocation3 + $0x2c28] sm:$0xff]
    %v1676 = vld [vmem:[#allocation3 + $0x2c30] sm:$0xff]
    %v1677 = vld [vmem:[#allocation3 + $0x2c38] sm:$0xff]
    %v1678 = vld [vmem:[#allocation3 + $0x2c40] sm:$0xff]
    %v1679 = vld [vmem:[#allocation3 + $0x2c48] sm:$0xff]
    %v1680 = vld [vmem:[#allocation3 + $0x2c50] sm:$0xff]
    %v1681 = vld [vmem:[#allocation3 + $0x2c58] sm:$0xff]
    %v1682 = vld [vmem:[#allocation3 + $0x2c60] sm:$0xff]
    %v1683 = vld [vmem:[#allocation3 + $0x2c68] sm:$0xff]
    %v1684 = vld [vmem:[#allocation3 + $0x2c70] sm:$0xff]
    %v1685 = vld [vmem:[#allocation3 + $0x2c78] sm:$0xff]
    %v1686 = vld [vmem:[#allocation3 + $0x2c80] sm:$0xff]
    %v1687 = vld [vmem:[#allocation3 + $0x2c88] sm:$0xff]
    %v1688 = vld [vmem:[#allocation3 + $0x2c90] sm:$0xff]
    %v1689 = vld [vmem:[#allocation3 + $0x2c98] sm:$0xff]
    %v1690 = vld [vmem:[#allocation3 + $0x2ca0] sm:$0xff]
    %v1691 = vld [vmem:[#allocation3 + $0x2ca8] sm:$0xff]
    %v1692 = vld [vmem:[#allocation3 + $0x2cb0] sm:$0xff]
    %v1693 = vld [vmem:[#allocation3 + $0x2cb8] sm:$0xff]
    %v1694 = vld [vmem:[#allocation3 + $0x2cc0] sm:$0xff]
    %v1695 = vld [vmem:[#allocation3 + $0x2cc8] sm:$0xff]
    %v1696 = vld [vmem:[#allocation3 + $0x2cd0] sm:$0xff]
    %v1697 = vld [vmem:[#allocation3 + $0x2cd8] sm:$0xff]
    %v1698 = vld [vmem:[#allocation3 + $0x2ce0] sm:$0xff]
    %v1699 = vld [vmem:[#allocation3 + $0x2ce8] sm:$0xff]
    %v1700 = vld [vmem:[#allocation3 + $0x2cf0] sm:$0xff]
    %v1701 = vld [vmem:[#allocation3 + $0x2cf8] sm:$0xff]
    %v1702 = vld [vmem:[#allocation3 + $0x2d00] sm:$0xff]
    %v1703 = vld [vmem:[#allocation3 + $0x2d08] sm:$0xff]
    %v1704 = vld [vmem:[#allocation3 + $0x2d10] sm:$0xff]
    %v1705 = vld [vmem:[#allocation3 + $0x2d18] sm:$0xff]
    %v1706 = vld [vmem:[#allocation3 + $0x2d20] sm:$0xff]
    %v1707 = vld [vmem:[#allocation3 + $0x2d28] sm:$0xff]
    %v1708 = vld [vmem:[#allocation3 + $0x2d30] sm:$0xff]
    %v1709 = vld [vmem:[#allocation3 + $0x2d38] sm:$0xff]
    %v1710 = vld [vmem:[#allocation3 + $0x2d40] sm:$0xff]
    %v1711 = vld [vmem:[#allocation3 + $0x2d48] sm:$0xff]
    %v1712 = vld [vmem:[#allocation3 + $0x2d50] sm:$0xff]
    %v1713 = vld [vmem:[#allocation3 + $0x2d58] sm:$0xff]
    %v1714 = vld [vmem:[#allocation3 + $0x2d60] sm:$0xff]
    %v1715 = vld [vmem:[#allocation3 + $0x2d68] sm:$0xff]
    %v1716 = vld [vmem:[#allocation3 + $0x2d70] sm:$0xff]
    %v1717 = vld [vmem:[#allocation3 + $0x2d78] sm:$0xff]
    %v1718 = vld [vmem:[#allocation3 + $0x2d80] sm:$0xff]
    %v1719 = vld [vmem:[#allocation3 + $0x2d88] sm:$0xff]
    %v1720 = vld [vmem:[#allocation3 + $0x2d90] sm:$0xff]
    %v1721 = vld [vmem:[#allocation3 + $0x2d98] sm:$0xff]
    %v1722 = vld [vmem:[#allocation3 + $0x2da0] sm:$0xff]
    %v1723 = vld [vmem:[#allocation3 + $0x2da8] sm:$0xff]
    %v1724 = vld [vmem:[#allocation3 + $0x2db0] sm:$0xff]
    %v1725 = vld [vmem:[#allocation3 + $0x2db8] sm:$0xff]
    %v1726 = vld [vmem:[#allocation3 + $0x2dc0] sm:$0xff]
    %v1727 = vld [vmem:[#allocation3 + $0x2dc8] sm:$0xff]
    %v1728 = vld [vmem:[#allocation3 + $0x2dd0] sm:$0xff]
    %v1729 = vld [vmem:[#allocation3 + $0x2dd8] sm:$0xff]
    %v1730 = vld [vmem:[#allocation3 + $0x2de0] sm:$0xff]
    %v1731 = vld [vmem:[#allocation3 + $0x2de8] sm:$0xff]
    %v1732 = vld [vmem:[#allocation3 + $0x2df0] sm:$0xff]
    %v1733 = vld [vmem:[#allocation3 + $0x2df8] sm:$0xff]
    %v1734 = vld [vmem:[#allocation3 + $0x2e00] sm:$0xff]
    %v1735 = vld [vmem:[#allocation3 + $0x2e08] sm:$0xff]
    %v1736 = vld [vmem:[#allocation3 + $0x2e10] sm:$0xff]
    %v1737 = vld [vmem:[#allocation3 + $0x2e18] sm:$0xff]
    %v1738 = vld [vmem:[#allocation3 + $0x2e20] sm:$0xff]
    %v1739 = vld [vmem:[#allocation3 + $0x2e28] sm:$0xff]
    %v1740 = vld [vmem:[#allocation3 + $0x2e30] sm:$0xff]
    %v1741 = vld [vmem:[#allocation3 + $0x2e38] sm:$0xff]
    %v1742 = vld [vmem:[#allocation3 + $0x2e40] sm:$0xff]
    %v1743 = vld [vmem:[#allocation3 + $0x2e48] sm:$0xff]
    %v1744 = vld [vmem:[#allocation3 + $0x2e50] sm:$0xff]
    %v1745 = vld [vmem:[#allocation3 + $0x2e58] sm:$0xff]
    %v1746 = vld [vmem:[#allocation3 + $0x2e60] sm:$0xff]
    %v1747 = vld [vmem:[#allocation3 + $0x2e68] sm:$0xff]
    %v1748 = vld [vmem:[#allocation3 + $0x2e70] sm:$0xff]
    %v1749 = vld [vmem:[#allocation3 + $0x2e78] sm:$0xff]
    %v1750 = vld [vmem:[#allocation3 + $0x2e80] sm:$0xff]
    %v1751 = vld [vmem:[#allocation3 + $0x2e88] sm:$0xff]
    %v1752 = vld [vmem:[#allocation3 + $0x2e90] sm:$0xff]
    %v1753 = vld [vmem:[#allocation3 + $0x2e98] sm:$0xff]
    %v1754 = vld [vmem:[#allocation3 + $0x2ea0] sm:$0xff]
    %v1755 = vld [vmem:[#allocation3 + $0x2ea8] sm:$0xff]
    %v1756 = vld [vmem:[#allocation3 + $0x2eb0] sm:$0xff]
    %v1757 = vld [vmem:[#allocation3 + $0x2eb8] sm:$0xff]
    %v1758 = vld [vmem:[#allocation3 + $0x2ec0] sm:$0xff]
    %v1759 = vld [vmem:[#allocation3 + $0x2ec8] sm:$0xff]
    %v1760 = vld [vmem:[#allocation3 + $0x2ed0] sm:$0xff]
    %v1761 = vld [vmem:[#allocation3 + $0x2ed8] sm:$0xff]
    %v1762 = vld [vmem:[#allocation3 + $0x2ee0] sm:$0xff]
    %v1763 = vld [vmem:[#allocation3 + $0x2ee8] sm:$0xff]
    %v1764 = vld [vmem:[#allocation3 + $0x2ef0] sm:$0xff]
    %v1765 = vld [vmem:[#allocation3 + $0x2ef8] sm:$0xff]
    %v1766 = vld [vmem:[#allocation3 + $0x2f00] sm:$0xff]
    %v1767 = vld [vmem:[#allocation3 + $0x2f08] sm:$0xff]
    %v1768 = vld [vmem:[#allocation3 + $0x2f10] sm:$0xff]
    %v1769 = vld [vmem:[#allocation3 + $0x2f18] sm:$0xff]
    %v1770 = vld [vmem:[#allocation3 + $0x2f20] sm:$0xff]
    %v1771 = vld [vmem:[#allocation3 + $0x2f28] sm:$0xff]
    %v1772 = vld [vmem:[#allocation3 + $0x2f30] sm:$0xff]
    %v1773 = vld [vmem:[#allocation3 + $0x2f38] sm:$0xff]
    %v1774 = vld [vmem:[#allocation3 + $0x2f40] sm:$0xff]
    %v1775 = vld [vmem:[#allocation3 + $0x2f48] sm:$0xff]
    %v1776 = vld [vmem:[#allocation3 + $0x2f50] sm:$0xff]
    %v1777 = vld [vmem:[#allocation3 + $0x2f58] sm:$0xff]
    %v1778 = vld [vmem:[#allocation3 + $0x2f60] sm:$0xff]
    %v1779 = vld [vmem:[#allocation3 + $0x2f68] sm:$0xff]
    %v1780 = vld [vmem:[#allocation3 + $0x2f70] sm:$0xff]
    %v1781 = vld [vmem:[#allocation3 + $0x2f78] sm:$0xff]
    %v1782 = vld [vmem:[#allocation3 + $0x2f80] sm:$0xff]
    %v1783 = vld [vmem:[#allocation3 + $0x2f88] sm:$0xff]
    %v1784 = vld [vmem:[#allocation3 + $0x2f90] sm:$0xff]
    %v1785 = vld [vmem:[#allocation3 + $0x2f98] sm:$0xff]
    %v1786 = vld [vmem:[#allocation3 + $0x2fa0] sm:$0xff]
    %v1787 = vld [vmem:[#allocation3 + $0x2fa8] sm:$0xff]
    %v1788 = vld [vmem:[#allocation3 + $0x2fb0] sm:$0xff]
    %v1789 = vld [vmem:[#allocation3 + $0x2fb8] sm:$0xff]
    %v1790 = vld [vmem:[#allocation3 + $0x2fc0] sm:$0xff]
    %v1791 = vld [vmem:[#allocation3 + $0x2fc8] sm:$0xff]
    %v1792 = vld [vmem:[#allocation3 + $0x2fd0] sm:$0xff]
    %v1793 = vld [vmem:[#allocation3 + $0x2fd8] sm:$0xff]
    %v1794 = vld [vmem:[#allocation3 + $0x2fe0] sm:$0xff]
    %v1795 = vld [vmem:[#allocation3 + $0x2fe8] sm:$0xff]
    %v1796 = vld [vmem:[#allocation3 + $0x2ff0] sm:$0xff]
    %v1797 = vld [vmem:[#allocation3 + $0x2ff8] sm:$0xff]
    %v1799 = vlaneseq
    %v1800 = vshrl.u32 %v1799, 7
    %v1801 = vsub.s32 0, %v1800
    %v1802 = vrot.slane %v235, %v1801
    %v1803 = vlaneseq
    %v1804 = vshrl.u32 %v1803, 7
    %v1805 = vsub.s32 1, %v1804
    %v1806 = vrot.slane %v235, %v1805
    %v1807 = vlaneseq
    %v1808 = vshrl.u32 %v1807, 7
    %v1809 = vsub.s32 2, %v1808
    %v1810 = vrot.slane %v235, %v1809
    %v1811 = vlaneseq
    %v1812 = vshrl.u32 %v1811, 7
    %v1813 = vsub.s32 3, %v1812
    %v1814 = vrot.slane %v235, %v1813
    %v1815 = vlaneseq
    %v1816 = vshrl.u32 %v1815, 7
    %v1817 = vsub.s32 4, %v1816
    %v1818 = vrot.slane %v235, %v1817
    %v1819 = vlaneseq
    %v1820 = vshrl.u32 %v1819, 7
    %v1821 = vsub.s32 5, %v1820
    %v1822 = vrot.slane %v235, %v1821
    %v1823 = vlaneseq
    %v1824 = vshrl.u32 %v1823, 7
    %v1825 = vsub.s32 6, %v1824
    %v1826 = vrot.slane %v235, %v1825
    %v1827 = vlaneseq
    %v1828 = vshrl.u32 %v1827, 7
    %v1829 = vsub.s32 7, %v1828
    %v1830 = vrot.slane %v235, %v1829
    %v3375 = vunpack.c.l.b16 %v262
    %v3376 = vunpack.c.h.b16 %v262
    %v3377 = vunpack.c.l.b16 %v263
    %v3378 = vunpack.c.h.b16 %v263
    %v3379 = vunpack.c.l.b16 %v264
    %v3380 = vunpack.c.h.b16 %v264
    %v3381 = vunpack.c.l.b16 %v265
    %v3382 = vunpack.c.h.b16 %v265
    %v3383 = vunpack.c.l.b16 %v266
    %v3384 = vunpack.c.h.b16 %v266
    %v3385 = vunpack.c.l.b16 %v267
    %v3386 = vunpack.c.h.b16 %v267
    %v3387 = vunpack.c.l.b16 %v268
    %v3388 = vunpack.c.h.b16 %v268
    %v3389 = vunpack.c.l.b16 %v269
    %v3390 = vunpack.c.h.b16 %v269
    %v3391 = vunpack.c.l.b16 %v270
    %v3392 = vunpack.c.h.b16 %v270
    %v3393 = vunpack.c.l.b16 %v271
    %v3394 = vunpack.c.h.b16 %v271
    %v3395 = vunpack.c.l.b16 %v272
    %v3396 = vunpack.c.h.b16 %v272
    %v3397 = vunpack.c.l.b16 %v273
    %v3398 = vunpack.c.h.b16 %v273
    %v3399 = vunpack.c.l.b16 %v274
    %v3400 = vunpack.c.h.b16 %v274
    %v3401 = vunpack.c.l.b16 %v275
    %v3402 = vunpack.c.h.b16 %v275
    %v3403 = vunpack.c.l.b16 %v276
    %v3404 = vunpack.c.h.b16 %v276
    %v3405 = vunpack.c.l.b16 %v277
    %v3406 = vunpack.c.h.b16 %v277
    %v3407 = vunpack.c.l.b16 %v278
    %v3408 = vunpack.c.h.b16 %v278
    %v3409 = vunpack.c.l.b16 %v279
    %v3410 = vunpack.c.h.b16 %v279
    %v3411 = vunpack.c.l.b16 %v280
    %v3412 = vunpack.c.h.b16 %v280
    %v3413 = vunpack.c.l.b16 %v281
    %v3414 = vunpack.c.h.b16 %v281
    %v3415 = vunpack.c.l.b16 %v282
    %v3416 = vunpack.c.h.b16 %v282
    %v3417 = vunpack.c.l.b16 %v283
    %v3418 = vunpack.c.h.b16 %v283
    %v3419 = vunpack.c.l.b16 %v284
    %v3420 = vunpack.c.h.b16 %v284
    %v3421 = vunpack.c.l.b16 %v285
    %v3422 = vunpack.c.h.b16 %v285
    %v3423 = vunpack.c.l.b16 %v286
    %v3424 = vunpack.c.h.b16 %v286
    %v3425 = vunpack.c.l.b16 %v287
    %v3426 = vunpack.c.h.b16 %v287
    %v3427 = vunpack.c.l.b16 %v288
    %v3428 = vunpack.c.h.b16 %v288
    %v3429 = vunpack.c.l.b16 %v289
    %v3430 = vunpack.c.h.b16 %v289
    %v3431 = vunpack.c.l.b16 %v290
    %v3432 = vunpack.c.h.b16 %v290
    %v3433 = vunpack.c.l.b16 %v291
    %v3434 = vunpack.c.h.b16 %v291
    %v3435 = vunpack.c.l.b16 %v292
    %v3436 = vunpack.c.h.b16 %v292
    %v3437 = vunpack.c.l.b16 %v293
    %v3438 = vunpack.c.h.b16 %v293
    %v3439 = vunpack.c.l.b16 %v294
    %v3440 = vunpack.c.h.b16 %v294
    %v3441 = vunpack.c.l.b16 %v295
    %v3442 = vunpack.c.h.b16 %v295
    %v3443 = vunpack.c.l.b16 %v296
    %v3444 = vunpack.c.h.b16 %v296
    %v3445 = vunpack.c.l.b16 %v297
    %v3446 = vunpack.c.h.b16 %v297
    %v3447 = vunpack.c.l.b16 %v298
    %v3448 = vunpack.c.h.b16 %v298
    %v3449 = vunpack.c.l.b16 %v299
    %v3450 = vunpack.c.h.b16 %v299
    %v3451 = vunpack.c.l.b16 %v300
    %v3452 = vunpack.c.h.b16 %v300
    %v3453 = vunpack.c.l.b16 %v301
    %v3454 = vunpack.c.h.b16 %v301
    %v3455 = vunpack.c.l.b16 %v302
    %v3456 = vunpack.c.h.b16 %v302
    %v3457 = vunpack.c.l.b16 %v303
    %v3458 = vunpack.c.h.b16 %v303
    %v3459 = vunpack.c.l.b16 %v304
    %v3460 = vunpack.c.h.b16 %v304
    %v3461 = vunpack.c.l.b16 %v305
    %v3462 = vunpack.c.h.b16 %v305
    %v3463 = vunpack.c.l.b16 %v306
    %v3464 = vunpack.c.h.b16 %v306
    %v3465 = vunpack.c.l.b16 %v307
    %v3466 = vunpack.c.h.b16 %v307
    %v3467 = vunpack.c.l.b16 %v308
    %v3468 = vunpack.c.h.b16 %v308
    %v3469 = vunpack.c.l.b16 %v309
    %v3470 = vunpack.c.h.b16 %v309
    %v3471 = vunpack.c.l.b16 %v310
    %v3472 = vunpack.c.h.b16 %v310
    %v3473 = vunpack.c.l.b16 %v311
    %v3474 = vunpack.c.h.b16 %v311
    %v3475 = vunpack.c.l.b16 %v312
    %v3476 = vunpack.c.h.b16 %v312
    %v3477 = vunpack.c.l.b16 %v313
    %v3478 = vunpack.c.h.b16 %v313
    %v3479 = vunpack.c.l.b16 %v314
    %v3480 = vunpack.c.h.b16 %v314
    %v3481 = vunpack.c.l.b16 %v315
    %v3482 = vunpack.c.h.b16 %v315
    %v3483 = vunpack.c.l.b16 %v316
    %v3484 = vunpack.c.h.b16 %v316
    %v3485 = vunpack.c.l.b16 %v317
    %v3486 = vunpack.c.h.b16 %v317
    %v3487 = vunpack.c.l.b16 %v318
    %v3488 = vunpack.c.h.b16 %v318
    %v3489 = vunpack.c.l.b16 %v319
    %v3490 = vunpack.c.h.b16 %v319
    %v3491 = vunpack.c.l.b16 %v320
    %v3492 = vunpack.c.h.b16 %v320
    %v3493 = vunpack.c.l.b16 %v321
    %v3494 = vunpack.c.h.b16 %v321
    %v3495 = vunpack.c.l.b16 %v322
    %v3496 = vunpack.c.h.b16 %v322
    %v3497 = vunpack.c.l.b16 %v323
    %v3498 = vunpack.c.h.b16 %v323
    %v3499 = vunpack.c.l.b16 %v324
    %v3500 = vunpack.c.h.b16 %v324
    %v3501 = vunpack.c.l.b16 %v325
    %v3502 = vunpack.c.h.b16 %v325
    %v3503 = vunpack.c.l.b16 %v326
    %v3504 = vunpack.c.h.b16 %v326
    %v3505 = vunpack.c.l.b16 %v327
    %v3506 = vunpack.c.h.b16 %v327
    %v3507 = vunpack.c.l.b16 %v328
    %v3508 = vunpack.c.h.b16 %v328
    %v3509 = vunpack.c.l.b16 %v329
    %v3510 = vunpack.c.h.b16 %v329
    %v3511 = vunpack.c.l.b16 %v330
    %v3512 = vunpack.c.h.b16 %v330
    %v3513 = vunpack.c.l.b16 %v331
    %v3514 = vunpack.c.h.b16 %v331
    %v3515 = vunpack.c.l.b16 %v332
    %v3516 = vunpack.c.h.b16 %v332
    %v3517 = vunpack.c.l.b16 %v333
    %v3518 = vunpack.c.h.b16 %v333
    %v3519 = vunpack.c.l.b16 %v334
    %v3520 = vunpack.c.h.b16 %v334
    %v3521 = vunpack.c.l.b16 %v335
    %v3522 = vunpack.c.h.b16 %v335
    %v3523 = vunpack.c.l.b16 %v336
    %v3524 = vunpack.c.h.b16 %v336
    %v3525 = vunpack.c.l.b16 %v337
    %v3526 = vunpack.c.h.b16 %v337
    %v3527 = vunpack.c.l.b16 %v338
    %v3528 = vunpack.c.h.b16 %v338
    %v3529 = vunpack.c.l.b16 %v339
    %v3530 = vunpack.c.h.b16 %v339
    %v3531 = vunpack.c.l.b16 %v340
    %v3532 = vunpack.c.h.b16 %v340
    %v3533 = vunpack.c.l.b16 %v341
    %v3534 = vunpack.c.h.b16 %v341
    %v3535 = vunpack.c.l.b16 %v342
    %v3536 = vunpack.c.h.b16 %v342
    %v3537 = vunpack.c.l.b16 %v343
    %v3538 = vunpack.c.h.b16 %v343
    %v3539 = vunpack.c.l.b16 %v344
    %v3540 = vunpack.c.h.b16 %v344
    %v3541 = vunpack.c.l.b16 %v345
    %v3542 = vunpack.c.h.b16 %v345
    %v3543 = vunpack.c.l.b16 %v346
    %v3544 = vunpack.c.h.b16 %v346
    %v3545 = vunpack.c.l.b16 %v347
    %v3546 = vunpack.c.h.b16 %v347
    %v3547 = vunpack.c.l.b16 %v348
    %v3548 = vunpack.c.h.b16 %v348
    %v3549 = vunpack.c.l.b16 %v349
    %v3550 = vunpack.c.h.b16 %v349
    %v3551 = vunpack.c.l.b16 %v350
    %v3552 = vunpack.c.h.b16 %v350
    %v3553 = vunpack.c.l.b16 %v351
    %v3554 = vunpack.c.h.b16 %v351
    %v3555 = vunpack.c.l.b16 %v352
    %v3556 = vunpack.c.h.b16 %v352
    %v3557 = vunpack.c.l.b16 %v353
    %v3558 = vunpack.c.h.b16 %v353
    %v3559 = vunpack.c.l.b16 %v354
    %v3560 = vunpack.c.h.b16 %v354
    %v3561 = vunpack.c.l.b16 %v355
    %v3562 = vunpack.c.h.b16 %v355
    %v3563 = vunpack.c.l.b16 %v356
    %v3564 = vunpack.c.h.b16 %v356
    %v3565 = vunpack.c.l.b16 %v357
    %v3566 = vunpack.c.h.b16 %v357
    %v3567 = vunpack.c.l.b16 %v358
    %v3568 = vunpack.c.h.b16 %v358
    %v3569 = vunpack.c.l.b16 %v359
    %v3570 = vunpack.c.h.b16 %v359
    %v3571 = vunpack.c.l.b16 %v360
    %v3572 = vunpack.c.h.b16 %v360
    %v3573 = vunpack.c.l.b16 %v361
    %v3574 = vunpack.c.h.b16 %v361
    %v3575 = vunpack.c.l.b16 %v362
    %v3576 = vunpack.c.h.b16 %v362
    %v3577 = vunpack.c.l.b16 %v363
    %v3578 = vunpack.c.h.b16 %v363
    %v3579 = vunpack.c.l.b16 %v364
    %v3580 = vunpack.c.h.b16 %v364
    %v3581 = vunpack.c.l.b16 %v365
    %v3582 = vunpack.c.h.b16 %v365
    %v3583 = vunpack.c.l.b16 %v366
    %v3584 = vunpack.c.h.b16 %v366
    %v3585 = vunpack.c.l.b16 %v367
    %v3586 = vunpack.c.h.b16 %v367
    %v3587 = vunpack.c.l.b16 %v368
    %v3588 = vunpack.c.h.b16 %v368
    %v3589 = vunpack.c.l.b16 %v369
    %v3590 = vunpack.c.h.b16 %v369
    %v3591 = vunpack.c.l.b16 %v370
    %v3592 = vunpack.c.h.b16 %v370
    %v3593 = vunpack.c.l.b16 %v371
    %v3594 = vunpack.c.h.b16 %v371
    %v3595 = vunpack.c.l.b16 %v372
    %v3596 = vunpack.c.h.b16 %v372
    %v3597 = vunpack.c.l.b16 %v373
    %v3598 = vunpack.c.h.b16 %v373
    %v3599 = vunpack.c.l.b16 %v374
    %v3600 = vunpack.c.h.b16 %v374
    %v3601 = vunpack.c.l.b16 %v375
    %v3602 = vunpack.c.h.b16 %v375
    %v3603 = vunpack.c.l.b16 %v376
    %v3604 = vunpack.c.h.b16 %v376
    %v3605 = vunpack.c.l.b16 %v377
    %v3606 = vunpack.c.h.b16 %v377
    %v3607 = vunpack.c.l.b16 %v378
    %v3608 = vunpack.c.h.b16 %v378
    %v3609 = vunpack.c.l.b16 %v379
    %v3610 = vunpack.c.h.b16 %v379
    %v3611 = vunpack.c.l.b16 %v380
    %v3612 = vunpack.c.h.b16 %v380
    %v3613 = vunpack.c.l.b16 %v381
    %v3614 = vunpack.c.h.b16 %v381
    %v3615 = vunpack.c.l.b16 %v382
    %v3616 = vunpack.c.h.b16 %v382
    %v3617 = vunpack.c.l.b16 %v383
    %v3618 = vunpack.c.h.b16 %v383
    %v3619 = vunpack.c.l.b16 %v384
    %v3620 = vunpack.c.h.b16 %v384
    %v3621 = vunpack.c.l.b16 %v385
    %v3622 = vunpack.c.h.b16 %v385
    %v3623 = vunpack.c.l.b16 %v386
    %v3624 = vunpack.c.h.b16 %v386
    %v3625 = vunpack.c.l.b16 %v387
    %v3626 = vunpack.c.h.b16 %v387
    %v3627 = vunpack.c.l.b16 %v388
    %v3628 = vunpack.c.h.b16 %v388
    %v3629 = vunpack.c.l.b16 %v389
    %v3630 = vunpack.c.h.b16 %v389
    %v3631 = vunpack.c.l.b16 %v390
    %v3632 = vunpack.c.h.b16 %v390
    %v3633 = vunpack.c.l.b16 %v391
    %v3634 = vunpack.c.h.b16 %v391
    %v3635 = vunpack.c.l.b16 %v392
    %v3636 = vunpack.c.h.b16 %v392
    %v3637 = vunpack.c.l.b16 %v393
    %v3638 = vunpack.c.h.b16 %v393
    %v3639 = vunpack.c.l.b16 %v394
    %v3640 = vunpack.c.h.b16 %v394
    %v3641 = vunpack.c.l.b16 %v395
    %v3642 = vunpack.c.h.b16 %v395
    %v3643 = vunpack.c.l.b16 %v396
    %v3644 = vunpack.c.h.b16 %v396
    %v3645 = vunpack.c.l.b16 %v397
    %v3646 = vunpack.c.h.b16 %v397
    %v3647 = vunpack.c.l.b16 %v398
    %v3648 = vunpack.c.h.b16 %v398
    %v3649 = vunpack.c.l.b16 %v399
    %v3650 = vunpack.c.h.b16 %v399
    %v3651 = vunpack.c.l.b16 %v400
    %v3652 = vunpack.c.h.b16 %v400
    %v3653 = vunpack.c.l.b16 %v401
    %v3654 = vunpack.c.h.b16 %v401
    %v3655 = vunpack.c.l.b16 %v402
    %v3656 = vunpack.c.h.b16 %v402
    %v3657 = vunpack.c.l.b16 %v403
    %v3658 = vunpack.c.h.b16 %v403
    %v3659 = vunpack.c.l.b16 %v404
    %v3660 = vunpack.c.h.b16 %v404
    %v3661 = vunpack.c.l.b16 %v405
    %v3662 = vunpack.c.h.b16 %v405
    %v3663 = vunpack.c.l.b16 %v406
    %v3664 = vunpack.c.h.b16 %v406
    %v3665 = vunpack.c.l.b16 %v407
    %v3666 = vunpack.c.h.b16 %v407
    %v3667 = vunpack.c.l.b16 %v408
    %v3668 = vunpack.c.h.b16 %v408
    %v3669 = vunpack.c.l.b16 %v409
    %v3670 = vunpack.c.h.b16 %v409
    %v3671 = vunpack.c.l.b16 %v410
    %v3672 = vunpack.c.h.b16 %v410
    %v3673 = vunpack.c.l.b16 %v411
    %v3674 = vunpack.c.h.b16 %v411
    %v3675 = vunpack.c.l.b16 %v412
    %v3676 = vunpack.c.h.b16 %v412
    %v3677 = vunpack.c.l.b16 %v413
    %v3678 = vunpack.c.h.b16 %v413
    %v3679 = vunpack.c.l.b16 %v414
    %v3680 = vunpack.c.h.b16 %v414
    %v3681 = vunpack.c.l.b16 %v415
    %v3682 = vunpack.c.h.b16 %v415
    %v3683 = vunpack.c.l.b16 %v416
    %v3684 = vunpack.c.h.b16 %v416
    %v3685 = vunpack.c.l.b16 %v417
    %v3686 = vunpack.c.h.b16 %v417
    %v3687 = vunpack.c.l.b16 %v418
    %v3688 = vunpack.c.h.b16 %v418
    %v3689 = vunpack.c.l.b16 %v419
    %v3690 = vunpack.c.h.b16 %v419
    %v3691 = vunpack.c.l.b16 %v420
    %v3692 = vunpack.c.h.b16 %v420
    %v3693 = vunpack.c.l.b16 %v421
    %v3694 = vunpack.c.h.b16 %v421
    %v3695 = vunpack.c.l.b16 %v422
    %v3696 = vunpack.c.h.b16 %v422
    %v3697 = vunpack.c.l.b16 %v423
    %v3698 = vunpack.c.h.b16 %v423
    %v3699 = vunpack.c.l.b16 %v424
    %v3700 = vunpack.c.h.b16 %v424
    %v3701 = vunpack.c.l.b16 %v425
    %v3702 = vunpack.c.h.b16 %v425
    %v3703 = vunpack.c.l.b16 %v426
    %v3704 = vunpack.c.h.b16 %v426
    %v3705 = vunpack.c.l.b16 %v427
    %v3706 = vunpack.c.h.b16 %v427
    %v3707 = vunpack.c.l.b16 %v428
    %v3708 = vunpack.c.h.b16 %v428
    %v3709 = vunpack.c.l.b16 %v429
    %v3710 = vunpack.c.h.b16 %v429
    %v3711 = vunpack.c.l.b16 %v430
    %v3712 = vunpack.c.h.b16 %v430
    %v3713 = vunpack.c.l.b16 %v431
    %v3714 = vunpack.c.h.b16 %v431
    %v3715 = vunpack.c.l.b16 %v432
    %v3716 = vunpack.c.h.b16 %v432
    %v3717 = vunpack.c.l.b16 %v433
    %v3718 = vunpack.c.h.b16 %v433
    %v3719 = vunpack.c.l.b16 %v434
    %v3720 = vunpack.c.h.b16 %v434
    %v3721 = vunpack.c.l.b16 %v435
    %v3722 = vunpack.c.h.b16 %v435
    %v3723 = vunpack.c.l.b16 %v436
    %v3724 = vunpack.c.h.b16 %v436
    %v3725 = vunpack.c.l.b16 %v437
    %v3726 = vunpack.c.h.b16 %v437
    %v3727 = vunpack.c.l.b16 %v438
    %v3728 = vunpack.c.h.b16 %v438
    %v3729 = vunpack.c.l.b16 %v439
    %v3730 = vunpack.c.h.b16 %v439
    %v3731 = vunpack.c.l.b16 %v440
    %v3732 = vunpack.c.h.b16 %v440
    %v3733 = vunpack.c.l.b16 %v441
    %v3734 = vunpack.c.h.b16 %v441
    %v3735 = vunpack.c.l.b16 %v442
    %v3736 = vunpack.c.h.b16 %v442
    %v3737 = vunpack.c.l.b16 %v443
    %v3738 = vunpack.c.h.b16 %v443
    %v3739 = vunpack.c.l.b16 %v444
    %v3740 = vunpack.c.h.b16 %v444
    %v3741 = vunpack.c.l.b16 %v445
    %v3742 = vunpack.c.h.b16 %v445
    %v3743 = vunpack.c.l.b16 %v446
    %v3744 = vunpack.c.h.b16 %v446
    %v3745 = vunpack.c.l.b16 %v447
    %v3746 = vunpack.c.h.b16 %v447
    %v3747 = vunpack.c.l.b16 %v448
    %v3748 = vunpack.c.h.b16 %v448
    %v3749 = vunpack.c.l.b16 %v449
    %v3750 = vunpack.c.h.b16 %v449
    %v3751 = vunpack.c.l.b16 %v450
    %v3752 = vunpack.c.h.b16 %v450
    %v3753 = vunpack.c.l.b16 %v451
    %v3754 = vunpack.c.h.b16 %v451
    %v3755 = vunpack.c.l.b16 %v452
    %v3756 = vunpack.c.h.b16 %v452
    %v3757 = vunpack.c.l.b16 %v453
    %v3758 = vunpack.c.h.b16 %v453
    %v3759 = vunpack.c.l.b16 %v454
    %v3760 = vunpack.c.h.b16 %v454
    %v3761 = vunpack.c.l.b16 %v455
    %v3762 = vunpack.c.h.b16 %v455
    %v3763 = vunpack.c.l.b16 %v456
    %v3764 = vunpack.c.h.b16 %v456
    %v3765 = vunpack.c.l.b16 %v457
    %v3766 = vunpack.c.h.b16 %v457
    %v3767 = vunpack.c.l.b16 %v458
    %v3768 = vunpack.c.h.b16 %v458
    %v3769 = vunpack.c.l.b16 %v459
    %v3770 = vunpack.c.h.b16 %v459
    %v3771 = vunpack.c.l.b16 %v460
    %v3772 = vunpack.c.h.b16 %v460
    %v3773 = vunpack.c.l.b16 %v461
    %v3774 = vunpack.c.h.b16 %v461
    %v3775 = vunpack.c.l.b16 %v462
    %v3776 = vunpack.c.h.b16 %v462
    %v3777 = vunpack.c.l.b16 %v463
    %v3778 = vunpack.c.h.b16 %v463
    %v3779 = vunpack.c.l.b16 %v464
    %v3780 = vunpack.c.h.b16 %v464
    %v3781 = vunpack.c.l.b16 %v465
    %v3782 = vunpack.c.h.b16 %v465
    %v3783 = vunpack.c.l.b16 %v466
    %v3784 = vunpack.c.h.b16 %v466
    %v3785 = vunpack.c.l.b16 %v467
    %v3786 = vunpack.c.h.b16 %v467
    %v3787 = vunpack.c.l.b16 %v468
    %v3788 = vunpack.c.h.b16 %v468
    %v3789 = vunpack.c.l.b16 %v469
    %v3790 = vunpack.c.h.b16 %v469
    %v3791 = vunpack.c.l.b16 %v470
    %v3792 = vunpack.c.h.b16 %v470
    %v3793 = vunpack.c.l.b16 %v471
    %v3794 = vunpack.c.h.b16 %v471
    %v3795 = vunpack.c.l.b16 %v472
    %v3796 = vunpack.c.h.b16 %v472
    %v3797 = vunpack.c.l.b16 %v473
    %v3798 = vunpack.c.h.b16 %v473
    %v3799 = vunpack.c.l.b16 %v474
    %v3800 = vunpack.c.h.b16 %v474
    %v3801 = vunpack.c.l.b16 %v475
    %v3802 = vunpack.c.h.b16 %v475
    %v3803 = vunpack.c.l.b16 %v476
    %v3804 = vunpack.c.h.b16 %v476
    %v3805 = vunpack.c.l.b16 %v477
    %v3806 = vunpack.c.h.b16 %v477
    %v3807 = vunpack.c.l.b16 %v478
    %v3808 = vunpack.c.h.b16 %v478
    %v3809 = vunpack.c.l.b16 %v479
    %v3810 = vunpack.c.h.b16 %v479
    %v3811 = vunpack.c.l.b16 %v480
    %v3812 = vunpack.c.h.b16 %v480
    %v3813 = vunpack.c.l.b16 %v481
    %v3814 = vunpack.c.h.b16 %v481
    %v3815 = vunpack.c.l.b16 %v482
    %v3816 = vunpack.c.h.b16 %v482
    %v3817 = vunpack.c.l.b16 %v483
    %v3818 = vunpack.c.h.b16 %v483
    %v3819 = vunpack.c.l.b16 %v484
    %v3820 = vunpack.c.h.b16 %v484
    %v3821 = vunpack.c.l.b16 %v485
    %v3822 = vunpack.c.h.b16 %v485
    %v3823 = vunpack.c.l.b16 %v486
    %v3824 = vunpack.c.h.b16 %v486
    %v3825 = vunpack.c.l.b16 %v487
    %v3826 = vunpack.c.h.b16 %v487
    %v3827 = vunpack.c.l.b16 %v488
    %v3828 = vunpack.c.h.b16 %v488
    %v3829 = vunpack.c.l.b16 %v489
    %v3830 = vunpack.c.h.b16 %v489
    %v3831 = vunpack.c.l.b16 %v490
    %v3832 = vunpack.c.h.b16 %v490
    %v3833 = vunpack.c.l.b16 %v491
    %v3834 = vunpack.c.h.b16 %v491
    %v3835 = vunpack.c.l.b16 %v492
    %v3836 = vunpack.c.h.b16 %v492
    %v3837 = vunpack.c.l.b16 %v493
    %v3838 = vunpack.c.h.b16 %v493
    %v3839 = vunpack.c.l.b16 %v494
    %v3840 = vunpack.c.h.b16 %v494
    %v3841 = vunpack.c.l.b16 %v495
    %v3842 = vunpack.c.h.b16 %v495
    %v3843 = vunpack.c.l.b16 %v496
    %v3844 = vunpack.c.h.b16 %v496
    %v3845 = vunpack.c.l.b16 %v497
    %v3846 = vunpack.c.h.b16 %v497
    %v3847 = vunpack.c.l.b16 %v498
    %v3848 = vunpack.c.h.b16 %v498
    %v3849 = vunpack.c.l.b16 %v499
    %v3850 = vunpack.c.h.b16 %v499
    %v3851 = vunpack.c.l.b16 %v500
    %v3852 = vunpack.c.h.b16 %v500
    %v3853 = vunpack.c.l.b16 %v501
    %v3854 = vunpack.c.h.b16 %v501
    %v3855 = vunpack.c.l.b16 %v502
    %v3856 = vunpack.c.h.b16 %v502
    %v3857 = vunpack.c.l.b16 %v503
    %v3858 = vunpack.c.h.b16 %v503
    %v3859 = vunpack.c.l.b16 %v504
    %v3860 = vunpack.c.h.b16 %v504
    %v3861 = vunpack.c.l.b16 %v505
    %v3862 = vunpack.c.h.b16 %v505
    %v3863 = vunpack.c.l.b16 %v506
    %v3864 = vunpack.c.h.b16 %v506
    %v3865 = vunpack.c.l.b16 %v507
    %v3866 = vunpack.c.h.b16 %v507
    %v3867 = vunpack.c.l.b16 %v508
    %v3868 = vunpack.c.h.b16 %v508
    %v3869 = vunpack.c.l.b16 %v509
    %v3870 = vunpack.c.h.b16 %v509
    %v3871 = vunpack.c.l.b16 %v510
    %v3872 = vunpack.c.h.b16 %v510
    %v3873 = vunpack.c.l.b16 %v511
    %v3874 = vunpack.c.h.b16 %v511
    %v3875 = vunpack.c.l.b16 %v512
    %v3876 = vunpack.c.h.b16 %v512
    %v3877 = vunpack.c.l.b16 %v513
    %v3878 = vunpack.c.h.b16 %v513
    %v3879 = vunpack.c.l.b16 %v514
    %v3880 = vunpack.c.h.b16 %v514
    %v3881 = vunpack.c.l.b16 %v515
    %v3882 = vunpack.c.h.b16 %v515
    %v3883 = vunpack.c.l.b16 %v516
    %v3884 = vunpack.c.h.b16 %v516
    %v3885 = vunpack.c.l.b16 %v517
    %v3886 = vunpack.c.h.b16 %v517
    %v3887 = vunpack.c.l.b16 %v518
    %v3888 = vunpack.c.h.b16 %v518
    %v3889 = vunpack.c.l.b16 %v519
    %v3890 = vunpack.c.h.b16 %v519
    %v3891 = vunpack.c.l.b16 %v520
    %v3892 = vunpack.c.h.b16 %v520
    %v3893 = vunpack.c.l.b16 %v521
    %v3894 = vunpack.c.h.b16 %v521
    %v3895 = vunpack.c.l.b16 %v522
    %v3896 = vunpack.c.h.b16 %v522
    %v3897 = vunpack.c.l.b16 %v523
    %v3898 = vunpack.c.h.b16 %v523
    %v3899 = vunpack.c.l.b16 %v524
    %v3900 = vunpack.c.h.b16 %v524
    %v3901 = vunpack.c.l.b16 %v525
    %v3902 = vunpack.c.h.b16 %v525
    %v3903 = vunpack.c.l.b16 %v526
    %v3904 = vunpack.c.h.b16 %v526
    %v3905 = vunpack.c.l.b16 %v527
    %v3906 = vunpack.c.h.b16 %v527
    %v3907 = vunpack.c.l.b16 %v528
    %v3908 = vunpack.c.h.b16 %v528
    %v3909 = vunpack.c.l.b16 %v529
    %v3910 = vunpack.c.h.b16 %v529
    %v3911 = vunpack.c.l.b16 %v530
    %v3912 = vunpack.c.h.b16 %v530
    %v3913 = vunpack.c.l.b16 %v531
    %v3914 = vunpack.c.h.b16 %v531
    %v3915 = vunpack.c.l.b16 %v532
    %v3916 = vunpack.c.h.b16 %v532
    %v3917 = vunpack.c.l.b16 %v533
    %v3918 = vunpack.c.h.b16 %v533
    %v3919 = vunpack.c.l.b16 %v534
    %v3920 = vunpack.c.h.b16 %v534
    %v3921 = vunpack.c.l.b16 %v535
    %v3922 = vunpack.c.h.b16 %v535
    %v3923 = vunpack.c.l.b16 %v536
    %v3924 = vunpack.c.h.b16 %v536
    %v3925 = vunpack.c.l.b16 %v537
    %v3926 = vunpack.c.h.b16 %v537
    %v3927 = vunpack.c.l.b16 %v538
    %v3928 = vunpack.c.h.b16 %v538
    %v3929 = vunpack.c.l.b16 %v539
    %v3930 = vunpack.c.h.b16 %v539
    %v3931 = vunpack.c.l.b16 %v540
    %v3932 = vunpack.c.h.b16 %v540
    %v3933 = vunpack.c.l.b16 %v541
    %v3934 = vunpack.c.h.b16 %v541
    %v3935 = vunpack.c.l.b16 %v542
    %v3936 = vunpack.c.h.b16 %v542
    %v3937 = vunpack.c.l.b16 %v543
    %v3938 = vunpack.c.h.b16 %v543
    %v3939 = vunpack.c.l.b16 %v544
    %v3940 = vunpack.c.h.b16 %v544
    %v3941 = vunpack.c.l.b16 %v545
    %v3942 = vunpack.c.h.b16 %v545
    %v3943 = vunpack.c.l.b16 %v546
    %v3944 = vunpack.c.h.b16 %v546
    %v3945 = vunpack.c.l.b16 %v547
    %v3946 = vunpack.c.h.b16 %v547
    %v3947 = vunpack.c.l.b16 %v548
    %v3948 = vunpack.c.h.b16 %v548
    %v3949 = vunpack.c.l.b16 %v549
    %v3950 = vunpack.c.h.b16 %v549
    %v3951 = vunpack.c.l.b16 %v550
    %v3952 = vunpack.c.h.b16 %v550
    %v3953 = vunpack.c.l.b16 %v551
    %v3954 = vunpack.c.h.b16 %v551
    %v3955 = vunpack.c.l.b16 %v552
    %v3956 = vunpack.c.h.b16 %v552
    %v3957 = vunpack.c.l.b16 %v553
    %v3958 = vunpack.c.h.b16 %v553
    %v3959 = vunpack.c.l.b16 %v554
    %v3960 = vunpack.c.h.b16 %v554
    %v3961 = vunpack.c.l.b16 %v555
    %v3962 = vunpack.c.h.b16 %v555
    %v3963 = vunpack.c.l.b16 %v556
    %v3964 = vunpack.c.h.b16 %v556
    %v3965 = vunpack.c.l.b16 %v557
    %v3966 = vunpack.c.h.b16 %v557
    %v3967 = vunpack.c.l.b16 %v558
    %v3968 = vunpack.c.h.b16 %v558
    %v3969 = vunpack.c.l.b16 %v559
    %v3970 = vunpack.c.h.b16 %v559
    %v3971 = vunpack.c.l.b16 %v560
    %v3972 = vunpack.c.h.b16 %v560
    %v3973 = vunpack.c.l.b16 %v561
    %v3974 = vunpack.c.h.b16 %v561
    %v3975 = vunpack.c.l.b16 %v562
    %v3976 = vunpack.c.h.b16 %v562
    %v3977 = vunpack.c.l.b16 %v563
    %v3978 = vunpack.c.h.b16 %v563
    %v3979 = vunpack.c.l.b16 %v564
    %v3980 = vunpack.c.h.b16 %v564
    %v3981 = vunpack.c.l.b16 %v565
    %v3982 = vunpack.c.h.b16 %v565
    %v3983 = vunpack.c.l.b16 %v566
    %v3984 = vunpack.c.h.b16 %v566
    %v3985 = vunpack.c.l.b16 %v567
    %v3986 = vunpack.c.h.b16 %v567
    %v3987 = vunpack.c.l.b16 %v568
    %v3988 = vunpack.c.h.b16 %v568
    %v3989 = vunpack.c.l.b16 %v569
    %v3990 = vunpack.c.h.b16 %v569
    %v3991 = vunpack.c.l.b16 %v570
    %v3992 = vunpack.c.h.b16 %v570
    %v3993 = vunpack.c.l.b16 %v571
    %v3994 = vunpack.c.h.b16 %v571
    %v3995 = vunpack.c.l.b16 %v572
    %v3996 = vunpack.c.h.b16 %v572
    %v3997 = vunpack.c.l.b16 %v573
    %v3998 = vunpack.c.h.b16 %v573
    %v3999 = vunpack.c.l.b16 %v574
    %v4000 = vunpack.c.h.b16 %v574
    %v4001 = vunpack.c.l.b16 %v575
    %v4002 = vunpack.c.h.b16 %v575
    %v4003 = vunpack.c.l.b16 %v576
    %v4004 = vunpack.c.h.b16 %v576
    %v4005 = vunpack.c.l.b16 %v577
    %v4006 = vunpack.c.h.b16 %v577
    %v4007 = vunpack.c.l.b16 %v578
    %v4008 = vunpack.c.h.b16 %v578
    %v4009 = vunpack.c.l.b16 %v579
    %v4010 = vunpack.c.h.b16 %v579
    %v4011 = vunpack.c.l.b16 %v580
    %v4012 = vunpack.c.h.b16 %v580
    %v4013 = vunpack.c.l.b16 %v581
    %v4014 = vunpack.c.h.b16 %v581
    %v4015 = vunpack.c.l.b16 %v582
    %v4016 = vunpack.c.h.b16 %v582
    %v4017 = vunpack.c.l.b16 %v583
    %v4018 = vunpack.c.h.b16 %v583
    %v4019 = vunpack.c.l.b16 %v584
    %v4020 = vunpack.c.h.b16 %v584
    %v4021 = vunpack.c.l.b16 %v585
    %v4022 = vunpack.c.h.b16 %v585
    %v4023 = vunpack.c.l.b16 %v586
    %v4024 = vunpack.c.h.b16 %v586
    %v4025 = vunpack.c.l.b16 %v587
    %v4026 = vunpack.c.h.b16 %v587
    %v4027 = vunpack.c.l.b16 %v588
    %v4028 = vunpack.c.h.b16 %v588
    %v4029 = vunpack.c.l.b16 %v589
    %v4030 = vunpack.c.h.b16 %v589
    %v4031 = vunpack.c.l.b16 %v590
    %v4032 = vunpack.c.h.b16 %v590
    %v4033 = vunpack.c.l.b16 %v591
    %v4034 = vunpack.c.h.b16 %v591
    %v4035 = vunpack.c.l.b16 %v592
    %v4036 = vunpack.c.h.b16 %v592
    %v4037 = vunpack.c.l.b16 %v593
    %v4038 = vunpack.c.h.b16 %v593
    %v4039 = vunpack.c.l.b16 %v594
    %v4040 = vunpack.c.h.b16 %v594
    %v4041 = vunpack.c.l.b16 %v595
    %v4042 = vunpack.c.h.b16 %v595
    %v4043 = vunpack.c.l.b16 %v596
    %v4044 = vunpack.c.h.b16 %v596
    %v4045 = vunpack.c.l.b16 %v597
    %v4046 = vunpack.c.h.b16 %v597
    %v4047 = vunpack.c.l.b16 %v598
    %v4048 = vunpack.c.h.b16 %v598
    %v4049 = vunpack.c.l.b16 %v599
    %v4050 = vunpack.c.h.b16 %v599
    %v4051 = vunpack.c.l.b16 %v600
    %v4052 = vunpack.c.h.b16 %v600
    %v4053 = vunpack.c.l.b16 %v601
    %v4054 = vunpack.c.h.b16 %v601
    %v4055 = vunpack.c.l.b16 %v602
    %v4056 = vunpack.c.h.b16 %v602
    %v4057 = vunpack.c.l.b16 %v603
    %v4058 = vunpack.c.h.b16 %v603
    %v4059 = vunpack.c.l.b16 %v604
    %v4060 = vunpack.c.h.b16 %v604
    %v4061 = vunpack.c.l.b16 %v605
    %v4062 = vunpack.c.h.b16 %v605
    %v4063 = vunpack.c.l.b16 %v606
    %v4064 = vunpack.c.h.b16 %v606
    %v4065 = vunpack.c.l.b16 %v607
    %v4066 = vunpack.c.h.b16 %v607
    %v4067 = vunpack.c.l.b16 %v608
    %v4068 = vunpack.c.h.b16 %v608
    %v4069 = vunpack.c.l.b16 %v609
    %v4070 = vunpack.c.h.b16 %v609
    %v4071 = vunpack.c.l.b16 %v610
    %v4072 = vunpack.c.h.b16 %v610
    %v4073 = vunpack.c.l.b16 %v611
    %v4074 = vunpack.c.h.b16 %v611
    %v4075 = vunpack.c.l.b16 %v612
    %v4076 = vunpack.c.h.b16 %v612
    %v4077 = vunpack.c.l.b16 %v613
    %v4078 = vunpack.c.h.b16 %v613
    %v4079 = vunpack.c.l.b16 %v614
    %v4080 = vunpack.c.h.b16 %v614
    %v4081 = vunpack.c.l.b16 %v615
    %v4082 = vunpack.c.h.b16 %v615
    %v4083 = vunpack.c.l.b16 %v616
    %v4084 = vunpack.c.h.b16 %v616
    %v4085 = vunpack.c.l.b16 %v617
    %v4086 = vunpack.c.h.b16 %v617
    %v4087 = vunpack.c.l.b16 %v618
    %v4088 = vunpack.c.h.b16 %v618
    %v4089 = vunpack.c.l.b16 %v619
    %v4090 = vunpack.c.h.b16 %v619
    %v4091 = vunpack.c.l.b16 %v620
    %v4092 = vunpack.c.h.b16 %v620
    %v4093 = vunpack.c.l.b16 %v621
    %v4094 = vunpack.c.h.b16 %v621
    %v4095 = vunpack.c.l.b16 %v622
    %v4096 = vunpack.c.h.b16 %v622
    %v4097 = vunpack.c.l.b16 %v623
    %v4098 = vunpack.c.h.b16 %v623
    %v4099 = vunpack.c.l.b16 %v624
    %v4100 = vunpack.c.h.b16 %v624
    %v4101 = vunpack.c.l.b16 %v625
    %v4102 = vunpack.c.h.b16 %v625
    %v4103 = vunpack.c.l.b16 %v626
    %v4104 = vunpack.c.h.b16 %v626
    %v4105 = vunpack.c.l.b16 %v627
    %v4106 = vunpack.c.h.b16 %v627
    %v4107 = vunpack.c.l.b16 %v628
    %v4108 = vunpack.c.h.b16 %v628
    %v4109 = vunpack.c.l.b16 %v629
    %v4110 = vunpack.c.h.b16 %v629
    %v4111 = vunpack.c.l.b16 %v630
    %v4112 = vunpack.c.h.b16 %v630
    %v4113 = vunpack.c.l.b16 %v631
    %v4114 = vunpack.c.h.b16 %v631
    %v4115 = vunpack.c.l.b16 %v632
    %v4116 = vunpack.c.h.b16 %v632
    %v4117 = vunpack.c.l.b16 %v633
    %v4118 = vunpack.c.h.b16 %v633
    %v4119 = vunpack.c.l.b16 %v634
    %v4120 = vunpack.c.h.b16 %v634
    %v4121 = vunpack.c.l.b16 %v635
    %v4122 = vunpack.c.h.b16 %v635
    %v4123 = vunpack.c.l.b16 %v636
    %v4124 = vunpack.c.h.b16 %v636
    %v4125 = vunpack.c.l.b16 %v637
    %v4126 = vunpack.c.h.b16 %v637
    %v4127 = vunpack.c.l.b16 %v638
    %v4128 = vunpack.c.h.b16 %v638
    %v4129 = vunpack.c.l.b16 %v639
    %v4130 = vunpack.c.h.b16 %v639
    %v4131 = vunpack.c.l.b16 %v640
    %v4132 = vunpack.c.h.b16 %v640
    %v4133 = vunpack.c.l.b16 %v641
    %v4134 = vunpack.c.h.b16 %v641
    %v4135 = vunpack.c.l.b16 %v642
    %v4136 = vunpack.c.h.b16 %v642
    %v4137 = vunpack.c.l.b16 %v643
    %v4138 = vunpack.c.h.b16 %v643
    %v4139 = vunpack.c.l.b16 %v644
    %v4140 = vunpack.c.h.b16 %v644
    %v4141 = vunpack.c.l.b16 %v645
    %v4142 = vunpack.c.h.b16 %v645
    %v4143 = vunpack.c.l.b16 %v646
    %v4144 = vunpack.c.h.b16 %v646
    %v4145 = vunpack.c.l.b16 %v647
    %v4146 = vunpack.c.h.b16 %v647
    %v4147 = vunpack.c.l.b16 %v648
    %v4148 = vunpack.c.h.b16 %v648
    %v4149 = vunpack.c.l.b16 %v649
    %v4150 = vunpack.c.h.b16 %v649
    %v4151 = vunpack.c.l.b16 %v650
    %v4152 = vunpack.c.h.b16 %v650
    %v4153 = vunpack.c.l.b16 %v651
    %v4154 = vunpack.c.h.b16 %v651
    %v4155 = vunpack.c.l.b16 %v652
    %v4156 = vunpack.c.h.b16 %v652
    %v4157 = vunpack.c.l.b16 %v653
    %v4158 = vunpack.c.h.b16 %v653
    %v4159 = vunpack.c.l.b16 %v654
    %v4160 = vunpack.c.h.b16 %v654
    %v4161 = vunpack.c.l.b16 %v655
    %v4162 = vunpack.c.h.b16 %v655
    %v4163 = vunpack.c.l.b16 %v656
    %v4164 = vunpack.c.h.b16 %v656
    %v4165 = vunpack.c.l.b16 %v657
    %v4166 = vunpack.c.h.b16 %v657
    %v4167 = vunpack.c.l.b16 %v658
    %v4168 = vunpack.c.h.b16 %v658
    %v4169 = vunpack.c.l.b16 %v659
    %v4170 = vunpack.c.h.b16 %v659
    %v4171 = vunpack.c.l.b16 %v660
    %v4172 = vunpack.c.h.b16 %v660
    %v4173 = vunpack.c.l.b16 %v661
    %v4174 = vunpack.c.h.b16 %v661
    %v4175 = vunpack.c.l.b16 %v662
    %v4176 = vunpack.c.h.b16 %v662
    %v4177 = vunpack.c.l.b16 %v663
    %v4178 = vunpack.c.h.b16 %v663
    %v4179 = vunpack.c.l.b16 %v664
    %v4180 = vunpack.c.h.b16 %v664
    %v4181 = vunpack.c.l.b16 %v665
    %v4182 = vunpack.c.h.b16 %v665
    %v4183 = vunpack.c.l.b16 %v666
    %v4184 = vunpack.c.h.b16 %v666
    %v4185 = vunpack.c.l.b16 %v667
    %v4186 = vunpack.c.h.b16 %v667
    %v4187 = vunpack.c.l.b16 %v668
    %v4188 = vunpack.c.h.b16 %v668
    %v4189 = vunpack.c.l.b16 %v669
    %v4190 = vunpack.c.h.b16 %v669
    %v4191 = vunpack.c.l.b16 %v670
    %v4192 = vunpack.c.h.b16 %v670
    %v4193 = vunpack.c.l.b16 %v671
    %v4194 = vunpack.c.h.b16 %v671
    %v4195 = vunpack.c.l.b16 %v672
    %v4196 = vunpack.c.h.b16 %v672
    %v4197 = vunpack.c.l.b16 %v673
    %v4198 = vunpack.c.h.b16 %v673
    %v4199 = vunpack.c.l.b16 %v674
    %v4200 = vunpack.c.h.b16 %v674
    %v4201 = vunpack.c.l.b16 %v675
    %v4202 = vunpack.c.h.b16 %v675
    %v4203 = vunpack.c.l.b16 %v676
    %v4204 = vunpack.c.h.b16 %v676
    %v4205 = vunpack.c.l.b16 %v677
    %v4206 = vunpack.c.h.b16 %v677
    %v4207 = vunpack.c.l.b16 %v678
    %v4208 = vunpack.c.h.b16 %v678
    %v4209 = vunpack.c.l.b16 %v679
    %v4210 = vunpack.c.h.b16 %v679
    %v4211 = vunpack.c.l.b16 %v680
    %v4212 = vunpack.c.h.b16 %v680
    %v4213 = vunpack.c.l.b16 %v681
    %v4214 = vunpack.c.h.b16 %v681
    %v4215 = vunpack.c.l.b16 %v682
    %v4216 = vunpack.c.h.b16 %v682
    %v4217 = vunpack.c.l.b16 %v683
    %v4218 = vunpack.c.h.b16 %v683
    %v4219 = vunpack.c.l.b16 %v684
    %v4220 = vunpack.c.h.b16 %v684
    %v4221 = vunpack.c.l.b16 %v685
    %v4222 = vunpack.c.h.b16 %v685
    %v4223 = vunpack.c.l.b16 %v686
    %v4224 = vunpack.c.h.b16 %v686
    %v4225 = vunpack.c.l.b16 %v687
    %v4226 = vunpack.c.h.b16 %v687
    %v4227 = vunpack.c.l.b16 %v688
    %v4228 = vunpack.c.h.b16 %v688
    %v4229 = vunpack.c.l.b16 %v689
    %v4230 = vunpack.c.h.b16 %v689
    %v4231 = vunpack.c.l.b16 %v690
    %v4232 = vunpack.c.h.b16 %v690
    %v4233 = vunpack.c.l.b16 %v691
    %v4234 = vunpack.c.h.b16 %v691
    %v4235 = vunpack.c.l.b16 %v692
    %v4236 = vunpack.c.h.b16 %v692
    %v4237 = vunpack.c.l.b16 %v693
    %v4238 = vunpack.c.h.b16 %v693
    %v4239 = vunpack.c.l.b16 %v694
    %v4240 = vunpack.c.h.b16 %v694
    %v4241 = vunpack.c.l.b16 %v695
    %v4242 = vunpack.c.h.b16 %v695
    %v4243 = vunpack.c.l.b16 %v696
    %v4244 = vunpack.c.h.b16 %v696
    %v4245 = vunpack.c.l.b16 %v697
    %v4246 = vunpack.c.h.b16 %v697
    %v4247 = vunpack.c.l.b16 %v698
    %v4248 = vunpack.c.h.b16 %v698
    %v4249 = vunpack.c.l.b16 %v699
    %v4250 = vunpack.c.h.b16 %v699
    %v4251 = vunpack.c.l.b16 %v700
    %v4252 = vunpack.c.h.b16 %v700
    %v4253 = vunpack.c.l.b16 %v701
    %v4254 = vunpack.c.h.b16 %v701
    %v4255 = vunpack.c.l.b16 %v702
    %v4256 = vunpack.c.h.b16 %v702
    %v4257 = vunpack.c.l.b16 %v703
    %v4258 = vunpack.c.h.b16 %v703
    %v4259 = vunpack.c.l.b16 %v704
    %v4260 = vunpack.c.h.b16 %v704
    %v4261 = vunpack.c.l.b16 %v705
    %v4262 = vunpack.c.h.b16 %v705
    %v4263 = vunpack.c.l.b16 %v706
    %v4264 = vunpack.c.h.b16 %v706
    %v4265 = vunpack.c.l.b16 %v707
    %v4266 = vunpack.c.h.b16 %v707
    %v4267 = vunpack.c.l.b16 %v708
    %v4268 = vunpack.c.h.b16 %v708
    %v4269 = vunpack.c.l.b16 %v709
    %v4270 = vunpack.c.h.b16 %v709
    %v4271 = vunpack.c.l.b16 %v710
    %v4272 = vunpack.c.h.b16 %v710
    %v4273 = vunpack.c.l.b16 %v711
    %v4274 = vunpack.c.h.b16 %v711
    %v4275 = vunpack.c.l.b16 %v712
    %v4276 = vunpack.c.h.b16 %v712
    %v4277 = vunpack.c.l.b16 %v713
    %v4278 = vunpack.c.h.b16 %v713
    %v4279 = vunpack.c.l.b16 %v714
    %v4280 = vunpack.c.h.b16 %v714
    %v4281 = vunpack.c.l.b16 %v715
    %v4282 = vunpack.c.h.b16 %v715
    %v4283 = vunpack.c.l.b16 %v716
    %v4284 = vunpack.c.h.b16 %v716
    %v4285 = vunpack.c.l.b16 %v717
    %v4286 = vunpack.c.h.b16 %v717
    %v4287 = vunpack.c.l.b16 %v718
    %v4288 = vunpack.c.h.b16 %v718
    %v4289 = vunpack.c.l.b16 %v719
    %v4290 = vunpack.c.h.b16 %v719
    %v4291 = vunpack.c.l.b16 %v720
    %v4292 = vunpack.c.h.b16 %v720
    %v4293 = vunpack.c.l.b16 %v721
    %v4294 = vunpack.c.h.b16 %v721
    %v4295 = vunpack.c.l.b16 %v722
    %v4296 = vunpack.c.h.b16 %v722
    %v4297 = vunpack.c.l.b16 %v723
    %v4298 = vunpack.c.h.b16 %v723
    %v4299 = vunpack.c.l.b16 %v724
    %v4300 = vunpack.c.h.b16 %v724
    %v4301 = vunpack.c.l.b16 %v725
    %v4302 = vunpack.c.h.b16 %v725
    %v4303 = vunpack.c.l.b16 %v726
    %v4304 = vunpack.c.h.b16 %v726
    %v4305 = vunpack.c.l.b16 %v727
    %v4306 = vunpack.c.h.b16 %v727
    %v4307 = vunpack.c.l.b16 %v728
    %v4308 = vunpack.c.h.b16 %v728
    %v4309 = vunpack.c.l.b16 %v729
    %v4310 = vunpack.c.h.b16 %v729
    %v4311 = vunpack.c.l.b16 %v730
    %v4312 = vunpack.c.h.b16 %v730
    %v4313 = vunpack.c.l.b16 %v731
    %v4314 = vunpack.c.h.b16 %v731
    %v4315 = vunpack.c.l.b16 %v732
    %v4316 = vunpack.c.h.b16 %v732
    %v4317 = vunpack.c.l.b16 %v733
    %v4318 = vunpack.c.h.b16 %v733
    %v4319 = vunpack.c.l.b16 %v734
    %v4320 = vunpack.c.h.b16 %v734
    %v4321 = vunpack.c.l.b16 %v735
    %v4322 = vunpack.c.h.b16 %v735
    %v4323 = vunpack.c.l.b16 %v736
    %v4324 = vunpack.c.h.b16 %v736
    %v4325 = vunpack.c.l.b16 %v737
    %v4326 = vunpack.c.h.b16 %v737
    %v4327 = vunpack.c.l.b16 %v738
    %v4328 = vunpack.c.h.b16 %v738
    %v4329 = vunpack.c.l.b16 %v739
    %v4330 = vunpack.c.h.b16 %v739
    %v4331 = vunpack.c.l.b16 %v740
    %v4332 = vunpack.c.h.b16 %v740
    %v4333 = vunpack.c.l.b16 %v741
    %v4334 = vunpack.c.h.b16 %v741
    %v4335 = vunpack.c.l.b16 %v742
    %v4336 = vunpack.c.h.b16 %v742
    %v4337 = vunpack.c.l.b16 %v743
    %v4338 = vunpack.c.h.b16 %v743
    %v4339 = vunpack.c.l.b16 %v744
    %v4340 = vunpack.c.h.b16 %v744
    %v4341 = vunpack.c.l.b16 %v745
    %v4342 = vunpack.c.h.b16 %v745
    %v4343 = vunpack.c.l.b16 %v746
    %v4344 = vunpack.c.h.b16 %v746
    %v4345 = vunpack.c.l.b16 %v747
    %v4346 = vunpack.c.h.b16 %v747
    %v4347 = vunpack.c.l.b16 %v748
    %v4348 = vunpack.c.h.b16 %v748
    %v4349 = vunpack.c.l.b16 %v749
    %v4350 = vunpack.c.h.b16 %v749
    %v4351 = vunpack.c.l.b16 %v750
    %v4352 = vunpack.c.h.b16 %v750
    %v4353 = vunpack.c.l.b16 %v751
    %v4354 = vunpack.c.h.b16 %v751
    %v4355 = vunpack.c.l.b16 %v752
    %v4356 = vunpack.c.h.b16 %v752
    %v4357 = vunpack.c.l.b16 %v753
    %v4358 = vunpack.c.h.b16 %v753
    %v4359 = vunpack.c.l.b16 %v754
    %v4360 = vunpack.c.h.b16 %v754
    %v4361 = vunpack.c.l.b16 %v755
    %v4362 = vunpack.c.h.b16 %v755
    %v4363 = vunpack.c.l.b16 %v756
    %v4364 = vunpack.c.h.b16 %v756
    %v4365 = vunpack.c.l.b16 %v757
    %v4366 = vunpack.c.h.b16 %v757
    %v4367 = vunpack.c.l.b16 %v758
    %v4368 = vunpack.c.h.b16 %v758
    %v4369 = vunpack.c.l.b16 %v759
    %v4370 = vunpack.c.h.b16 %v759
    %v4371 = vunpack.c.l.b16 %v760
    %v4372 = vunpack.c.h.b16 %v760
    %v4373 = vunpack.c.l.b16 %v761
    %v4374 = vunpack.c.h.b16 %v761
    %v4375 = vunpack.c.l.b16 %v762
    %v4376 = vunpack.c.h.b16 %v762
    %v4377 = vunpack.c.l.b16 %v763
    %v4378 = vunpack.c.h.b16 %v763
    %v4379 = vunpack.c.l.b16 %v764
    %v4380 = vunpack.c.h.b16 %v764
    %v4381 = vunpack.c.l.b16 %v765
    %v4382 = vunpack.c.h.b16 %v765
    %v4383 = vunpack.c.l.b16 %v766
    %v4384 = vunpack.c.h.b16 %v766
    %v4385 = vunpack.c.l.b16 %v767
    %v4386 = vunpack.c.h.b16 %v767
    %v4387 = vunpack.c.l.b16 %v768
    %v4388 = vunpack.c.h.b16 %v768
    %v4389 = vunpack.c.l.b16 %v769
    %v4390 = vunpack.c.h.b16 %v769
    %v4391 = vunpack.c.l.b16 %v770
    %v4392 = vunpack.c.h.b16 %v770
    %v4393 = vunpack.c.l.b16 %v771
    %v4394 = vunpack.c.h.b16 %v771
    %v4395 = vunpack.c.l.b16 %v772
    %v4396 = vunpack.c.h.b16 %v772
    %v4397 = vunpack.c.l.b16 %v773
    %v4398 = vunpack.c.h.b16 %v773
    %v4399 = vunpack.c.l.b16 %v774
    %v4400 = vunpack.c.h.b16 %v774
    %v4401 = vunpack.c.l.b16 %v775
    %v4402 = vunpack.c.h.b16 %v775
    %v4403 = vunpack.c.l.b16 %v776
    %v4404 = vunpack.c.h.b16 %v776
    %v4405 = vunpack.c.l.b16 %v777
    %v4406 = vunpack.c.h.b16 %v777
    %v4407 = vunpack.c.l.b16 %v778
    %v4408 = vunpack.c.h.b16 %v778
    %v4409 = vunpack.c.l.b16 %v779
    %v4410 = vunpack.c.h.b16 %v779
    %v4411 = vunpack.c.l.b16 %v780
    %v4412 = vunpack.c.h.b16 %v780
    %v4413 = vunpack.c.l.b16 %v781
    %v4414 = vunpack.c.h.b16 %v781
    %v4415 = vunpack.c.l.b16 %v782
    %v4416 = vunpack.c.h.b16 %v782
    %v4417 = vunpack.c.l.b16 %v783
    %v4418 = vunpack.c.h.b16 %v783
    %v4419 = vunpack.c.l.b16 %v784
    %v4420 = vunpack.c.h.b16 %v784
    %v4421 = vunpack.c.l.b16 %v785
    %v4422 = vunpack.c.h.b16 %v785
    %v4423 = vunpack.c.l.b16 %v786
    %v4424 = vunpack.c.h.b16 %v786
    %v4425 = vunpack.c.l.b16 %v787
    %v4426 = vunpack.c.h.b16 %v787
    %v4427 = vunpack.c.l.b16 %v788
    %v4428 = vunpack.c.h.b16 %v788
    %v4429 = vunpack.c.l.b16 %v789
    %v4430 = vunpack.c.h.b16 %v789
    %v4431 = vunpack.c.l.b16 %v790
    %v4432 = vunpack.c.h.b16 %v790
    %v4433 = vunpack.c.l.b16 %v791
    %v4434 = vunpack.c.h.b16 %v791
    %v4435 = vunpack.c.l.b16 %v792
    %v4436 = vunpack.c.h.b16 %v792
    %v4437 = vunpack.c.l.b16 %v793
    %v4438 = vunpack.c.h.b16 %v793
    %v4439 = vunpack.c.l.b16 %v794
    %v4440 = vunpack.c.h.b16 %v794
    %v4441 = vunpack.c.l.b16 %v795
    %v4442 = vunpack.c.h.b16 %v795
    %v4443 = vunpack.c.l.b16 %v796
    %v4444 = vunpack.c.h.b16 %v796
    %v4445 = vunpack.c.l.b16 %v797
    %v4446 = vunpack.c.h.b16 %v797
    %v4447 = vunpack.c.l.b16 %v798
    %v4448 = vunpack.c.h.b16 %v798
    %v4449 = vunpack.c.l.b16 %v799
    %v4450 = vunpack.c.h.b16 %v799
    %v4451 = vunpack.c.l.b16 %v800
    %v4452 = vunpack.c.h.b16 %v800
    %v4453 = vunpack.c.l.b16 %v801
    %v4454 = vunpack.c.h.b16 %v801
    %v4455 = vunpack.c.l.b16 %v802
    %v4456 = vunpack.c.h.b16 %v802
    %v4457 = vunpack.c.l.b16 %v803
    %v4458 = vunpack.c.h.b16 %v803
    %v4459 = vunpack.c.l.b16 %v804
    %v4460 = vunpack.c.h.b16 %v804
    %v4461 = vunpack.c.l.b16 %v805
    %v4462 = vunpack.c.h.b16 %v805
    %v4463 = vunpack.c.l.b16 %v806
    %v4464 = vunpack.c.h.b16 %v806
    %v4465 = vunpack.c.l.b16 %v807
    %v4466 = vunpack.c.h.b16 %v807
    %v4467 = vunpack.c.l.b16 %v808
    %v4468 = vunpack.c.h.b16 %v808
    %v4469 = vunpack.c.l.b16 %v809
    %v4470 = vunpack.c.h.b16 %v809
    %v4471 = vunpack.c.l.b16 %v810
    %v4472 = vunpack.c.h.b16 %v810
    %v4473 = vunpack.c.l.b16 %v811
    %v4474 = vunpack.c.h.b16 %v811
    %v4475 = vunpack.c.l.b16 %v812
    %v4476 = vunpack.c.h.b16 %v812
    %v4477 = vunpack.c.l.b16 %v813
    %v4478 = vunpack.c.h.b16 %v813
    %v4479 = vunpack.c.l.b16 %v814
    %v4480 = vunpack.c.h.b16 %v814
    %v4481 = vunpack.c.l.b16 %v815
    %v4482 = vunpack.c.h.b16 %v815
    %v4483 = vunpack.c.l.b16 %v816
    %v4484 = vunpack.c.h.b16 %v816
    %v4485 = vunpack.c.l.b16 %v817
    %v4486 = vunpack.c.h.b16 %v817
    %v4487 = vunpack.c.l.b16 %v818
    %v4488 = vunpack.c.h.b16 %v818
    %v4489 = vunpack.c.l.b16 %v819
    %v4490 = vunpack.c.h.b16 %v819
    %v4491 = vunpack.c.l.b16 %v820
    %v4492 = vunpack.c.h.b16 %v820
    %v4493 = vunpack.c.l.b16 %v821
    %v4494 = vunpack.c.h.b16 %v821
    %v4495 = vunpack.c.l.b16 %v822
    %v4496 = vunpack.c.h.b16 %v822
    %v4497 = vunpack.c.l.b16 %v823
    %v4498 = vunpack.c.h.b16 %v823
    %v4499 = vunpack.c.l.b16 %v824
    %v4500 = vunpack.c.h.b16 %v824
    %v4501 = vunpack.c.l.b16 %v825
    %v4502 = vunpack.c.h.b16 %v825
    %v4503 = vunpack.c.l.b16 %v826
    %v4504 = vunpack.c.h.b16 %v826
    %v4505 = vunpack.c.l.b16 %v827
    %v4506 = vunpack.c.h.b16 %v827
    %v4507 = vunpack.c.l.b16 %v828
    %v4508 = vunpack.c.h.b16 %v828
    %v4509 = vunpack.c.l.b16 %v829
    %v4510 = vunpack.c.h.b16 %v829
    %v4511 = vunpack.c.l.b16 %v830
    %v4512 = vunpack.c.h.b16 %v830
    %v4513 = vunpack.c.l.b16 %v831
    %v4514 = vunpack.c.h.b16 %v831
    %v4515 = vunpack.c.l.b16 %v832
    %v4516 = vunpack.c.h.b16 %v832
    %v4517 = vunpack.c.l.b16 %v833
    %v4518 = vunpack.c.h.b16 %v833
    %v4519 = vunpack.c.l.b16 %v834
    %v4520 = vunpack.c.h.b16 %v834
    %v4521 = vunpack.c.l.b16 %v835
    %v4522 = vunpack.c.h.b16 %v835
    %v4523 = vunpack.c.l.b16 %v836
    %v4524 = vunpack.c.h.b16 %v836
    %v4525 = vunpack.c.l.b16 %v837
    %v4526 = vunpack.c.h.b16 %v837
    %v4527 = vunpack.c.l.b16 %v838
    %v4528 = vunpack.c.h.b16 %v838
    %v4529 = vunpack.c.l.b16 %v839
    %v4530 = vunpack.c.h.b16 %v839
    %v4531 = vunpack.c.l.b16 %v840
    %v4532 = vunpack.c.h.b16 %v840
    %v4533 = vunpack.c.l.b16 %v841
    %v4534 = vunpack.c.h.b16 %v841
    %v4535 = vunpack.c.l.b16 %v842
    %v4536 = vunpack.c.h.b16 %v842
    %v4537 = vunpack.c.l.b16 %v843
    %v4538 = vunpack.c.h.b16 %v843
    %v4539 = vunpack.c.l.b16 %v844
    %v4540 = vunpack.c.h.b16 %v844
    %v4541 = vunpack.c.l.b16 %v845
    %v4542 = vunpack.c.h.b16 %v845
    %v4543 = vunpack.c.l.b16 %v846
    %v4544 = vunpack.c.h.b16 %v846
    %v4545 = vunpack.c.l.b16 %v847
    %v4546 = vunpack.c.h.b16 %v847
    %v4547 = vunpack.c.l.b16 %v848
    %v4548 = vunpack.c.h.b16 %v848
    %v4549 = vunpack.c.l.b16 %v849
    %v4550 = vunpack.c.h.b16 %v849
    %v4551 = vunpack.c.l.b16 %v850
    %v4552 = vunpack.c.h.b16 %v850
    %v4553 = vunpack.c.l.b16 %v851
    %v4554 = vunpack.c.h.b16 %v851
    %v4555 = vunpack.c.l.b16 %v852
    %v4556 = vunpack.c.h.b16 %v852
    %v4557 = vunpack.c.l.b16 %v853
    %v4558 = vunpack.c.h.b16 %v853
    %v4559 = vunpack.c.l.b16 %v854
    %v4560 = vunpack.c.h.b16 %v854
    %v4561 = vunpack.c.l.b16 %v855
    %v4562 = vunpack.c.h.b16 %v855
    %v4563 = vunpack.c.l.b16 %v856
    %v4564 = vunpack.c.h.b16 %v856
    %v4565 = vunpack.c.l.b16 %v857
    %v4566 = vunpack.c.h.b16 %v857
    %v4567 = vunpack.c.l.b16 %v858
    %v4568 = vunpack.c.h.b16 %v858
    %v4569 = vunpack.c.l.b16 %v859
    %v4570 = vunpack.c.h.b16 %v859
    %v4571 = vunpack.c.l.b16 %v860
    %v4572 = vunpack.c.h.b16 %v860
    %v4573 = vunpack.c.l.b16 %v861
    %v4574 = vunpack.c.h.b16 %v861
    %v4575 = vunpack.c.l.b16 %v862
    %v4576 = vunpack.c.h.b16 %v862
    %v4577 = vunpack.c.l.b16 %v863
    %v4578 = vunpack.c.h.b16 %v863
    %v4579 = vunpack.c.l.b16 %v864
    %v4580 = vunpack.c.h.b16 %v864
    %v4581 = vunpack.c.l.b16 %v865
    %v4582 = vunpack.c.h.b16 %v865
    %v4583 = vunpack.c.l.b16 %v866
    %v4584 = vunpack.c.h.b16 %v866
    %v4585 = vunpack.c.l.b16 %v867
    %v4586 = vunpack.c.h.b16 %v867
    %v4587 = vunpack.c.l.b16 %v868
    %v4588 = vunpack.c.h.b16 %v868
    %v4589 = vunpack.c.l.b16 %v869
    %v4590 = vunpack.c.h.b16 %v869
    %v4591 = vunpack.c.l.b16 %v870
    %v4592 = vunpack.c.h.b16 %v870
    %v4593 = vunpack.c.l.b16 %v871
    %v4594 = vunpack.c.h.b16 %v871
    %v4595 = vunpack.c.l.b16 %v872
    %v4596 = vunpack.c.h.b16 %v872
    %v4597 = vunpack.c.l.b16 %v873
    %v4598 = vunpack.c.h.b16 %v873
    %v4599 = vunpack.c.l.b16 %v874
    %v4600 = vunpack.c.h.b16 %v874
    %v4601 = vunpack.c.l.b16 %v875
    %v4602 = vunpack.c.h.b16 %v875
    %v4603 = vunpack.c.l.b16 %v876
    %v4604 = vunpack.c.h.b16 %v876
    %v4605 = vunpack.c.l.b16 %v877
    %v4606 = vunpack.c.h.b16 %v877
    %v4607 = vunpack.c.l.b16 %v878
    %v4608 = vunpack.c.h.b16 %v878
    %v4609 = vunpack.c.l.b16 %v879
    %v4610 = vunpack.c.h.b16 %v879
    %v4611 = vunpack.c.l.b16 %v880
    %v4612 = vunpack.c.h.b16 %v880
    %v4613 = vunpack.c.l.b16 %v881
    %v4614 = vunpack.c.h.b16 %v881
    %v4615 = vunpack.c.l.b16 %v882
    %v4616 = vunpack.c.h.b16 %v882
    %v4617 = vunpack.c.l.b16 %v883
    %v4618 = vunpack.c.h.b16 %v883
    %v4619 = vunpack.c.l.b16 %v884
    %v4620 = vunpack.c.h.b16 %v884
    %v4621 = vunpack.c.l.b16 %v885
    %v4622 = vunpack.c.h.b16 %v885
    %v4623 = vunpack.c.l.b16 %v886
    %v4624 = vunpack.c.h.b16 %v886
    %v4625 = vunpack.c.l.b16 %v887
    %v4626 = vunpack.c.h.b16 %v887
    %v4627 = vunpack.c.l.b16 %v888
    %v4628 = vunpack.c.h.b16 %v888
    %v4629 = vunpack.c.l.b16 %v889
    %v4630 = vunpack.c.h.b16 %v889
    %v4631 = vunpack.c.l.b16 %v890
    %v4632 = vunpack.c.h.b16 %v890
    %v4633 = vunpack.c.l.b16 %v891
    %v4634 = vunpack.c.h.b16 %v891
    %v4635 = vunpack.c.l.b16 %v892
    %v4636 = vunpack.c.h.b16 %v892
    %v4637 = vunpack.c.l.b16 %v893
    %v4638 = vunpack.c.h.b16 %v893
    %v4639 = vunpack.c.l.b16 %v894
    %v4640 = vunpack.c.h.b16 %v894
    %v4641 = vunpack.c.l.b16 %v895
    %v4642 = vunpack.c.h.b16 %v895
    %v4643 = vunpack.c.l.b16 %v896
    %v4644 = vunpack.c.h.b16 %v896
    %v4645 = vunpack.c.l.b16 %v897
    %v4646 = vunpack.c.h.b16 %v897
    %v4647 = vunpack.c.l.b16 %v898
    %v4648 = vunpack.c.h.b16 %v898
    %v4649 = vunpack.c.l.b16 %v899
    %v4650 = vunpack.c.h.b16 %v899
    %v4651 = vunpack.c.l.b16 %v900
    %v4652 = vunpack.c.h.b16 %v900
    %v4653 = vunpack.c.l.b16 %v901
    %v4654 = vunpack.c.h.b16 %v901
    %v4655 = vunpack.c.l.b16 %v902
    %v4656 = vunpack.c.h.b16 %v902
    %v4657 = vunpack.c.l.b16 %v903
    %v4658 = vunpack.c.h.b16 %v903
    %v4659 = vunpack.c.l.b16 %v904
    %v4660 = vunpack.c.h.b16 %v904
    %v4661 = vunpack.c.l.b16 %v905
    %v4662 = vunpack.c.h.b16 %v905
    %v4663 = vunpack.c.l.b16 %v906
    %v4664 = vunpack.c.h.b16 %v906
    %v4665 = vunpack.c.l.b16 %v907
    %v4666 = vunpack.c.h.b16 %v907
    %v4667 = vunpack.c.l.b16 %v908
    %v4668 = vunpack.c.h.b16 %v908
    %v4669 = vunpack.c.l.b16 %v909
    %v4670 = vunpack.c.h.b16 %v909
    %v4671 = vunpack.c.l.b16 %v910
    %v4672 = vunpack.c.h.b16 %v910
    %v4673 = vunpack.c.l.b16 %v911
    %v4674 = vunpack.c.h.b16 %v911
    %v4675 = vunpack.c.l.b16 %v912
    %v4676 = vunpack.c.h.b16 %v912
    %v4677 = vunpack.c.l.b16 %v913
    %v4678 = vunpack.c.h.b16 %v913
    %v4679 = vunpack.c.l.b16 %v914
    %v4680 = vunpack.c.h.b16 %v914
    %v4681 = vunpack.c.l.b16 %v915
    %v4682 = vunpack.c.h.b16 %v915
    %v4683 = vunpack.c.l.b16 %v916
    %v4684 = vunpack.c.h.b16 %v916
    %v4685 = vunpack.c.l.b16 %v917
    %v4686 = vunpack.c.h.b16 %v917
    %v4687 = vunpack.c.l.b16 %v918
    %v4688 = vunpack.c.h.b16 %v918
    %v4689 = vunpack.c.l.b16 %v919
    %v4690 = vunpack.c.h.b16 %v919
    %v4691 = vunpack.c.l.b16 %v920
    %v4692 = vunpack.c.h.b16 %v920
    %v4693 = vunpack.c.l.b16 %v921
    %v4694 = vunpack.c.h.b16 %v921
    %v4695 = vunpack.c.l.b16 %v922
    %v4696 = vunpack.c.h.b16 %v922
    %v4697 = vunpack.c.l.b16 %v923
    %v4698 = vunpack.c.h.b16 %v923
    %v4699 = vunpack.c.l.b16 %v924
    %v4700 = vunpack.c.h.b16 %v924
    %v4701 = vunpack.c.l.b16 %v925
    %v4702 = vunpack.c.h.b16 %v925
    %v4703 = vunpack.c.l.b16 %v926
    %v4704 = vunpack.c.h.b16 %v926
    %v4705 = vunpack.c.l.b16 %v927
    %v4706 = vunpack.c.h.b16 %v927
    %v4707 = vunpack.c.l.b16 %v928
    %v4708 = vunpack.c.h.b16 %v928
    %v4709 = vunpack.c.l.b16 %v929
    %v4710 = vunpack.c.h.b16 %v929
    %v4711 = vunpack.c.l.b16 %v930
    %v4712 = vunpack.c.h.b16 %v930
    %v4713 = vunpack.c.l.b16 %v931
    %v4714 = vunpack.c.h.b16 %v931
    %v4715 = vunpack.c.l.b16 %v932
    %v4716 = vunpack.c.h.b16 %v932
    %v4717 = vunpack.c.l.b16 %v933
    %v4718 = vunpack.c.h.b16 %v933
    %v4719 = vunpack.c.l.b16 %v934
    %v4720 = vunpack.c.h.b16 %v934
    %v4721 = vunpack.c.l.b16 %v935
    %v4722 = vunpack.c.h.b16 %v935
    %v4723 = vunpack.c.l.b16 %v936
    %v4724 = vunpack.c.h.b16 %v936
    %v4725 = vunpack.c.l.b16 %v937
    %v4726 = vunpack.c.h.b16 %v937
    %v4727 = vunpack.c.l.b16 %v938
    %v4728 = vunpack.c.h.b16 %v938
    %v4729 = vunpack.c.l.b16 %v939
    %v4730 = vunpack.c.h.b16 %v939
    %v4731 = vunpack.c.l.b16 %v940
    %v4732 = vunpack.c.h.b16 %v940
    %v4733 = vunpack.c.l.b16 %v941
    %v4734 = vunpack.c.h.b16 %v941
    %v4735 = vunpack.c.l.b16 %v942
    %v4736 = vunpack.c.h.b16 %v942
    %v4737 = vunpack.c.l.b16 %v943
    %v4738 = vunpack.c.h.b16 %v943
    %v4739 = vunpack.c.l.b16 %v944
    %v4740 = vunpack.c.h.b16 %v944
    %v4741 = vunpack.c.l.b16 %v945
    %v4742 = vunpack.c.h.b16 %v945
    %v4743 = vunpack.c.l.b16 %v946
    %v4744 = vunpack.c.h.b16 %v946
    %v4745 = vunpack.c.l.b16 %v947
    %v4746 = vunpack.c.h.b16 %v947
    %v4747 = vunpack.c.l.b16 %v948
    %v4748 = vunpack.c.h.b16 %v948
    %v4749 = vunpack.c.l.b16 %v949
    %v4750 = vunpack.c.h.b16 %v949
    %v4751 = vunpack.c.l.b16 %v950
    %v4752 = vunpack.c.h.b16 %v950
    %v4753 = vunpack.c.l.b16 %v951
    %v4754 = vunpack.c.h.b16 %v951
    %v4755 = vunpack.c.l.b16 %v952
    %v4756 = vunpack.c.h.b16 %v952
    %v4757 = vunpack.c.l.b16 %v953
    %v4758 = vunpack.c.h.b16 %v953
    %v4759 = vunpack.c.l.b16 %v954
    %v4760 = vunpack.c.h.b16 %v954
    %v4761 = vunpack.c.l.b16 %v955
    %v4762 = vunpack.c.h.b16 %v955
    %v4763 = vunpack.c.l.b16 %v956
    %v4764 = vunpack.c.h.b16 %v956
    %v4765 = vunpack.c.l.b16 %v957
    %v4766 = vunpack.c.h.b16 %v957
    %v4767 = vunpack.c.l.b16 %v958
    %v4768 = vunpack.c.h.b16 %v958
    %v4769 = vunpack.c.l.b16 %v959
    %v4770 = vunpack.c.h.b16 %v959
    %v4771 = vunpack.c.l.b16 %v960
    %v4772 = vunpack.c.h.b16 %v960
    %v4773 = vunpack.c.l.b16 %v961
    %v4774 = vunpack.c.h.b16 %v961
    %v4775 = vunpack.c.l.b16 %v962
    %v4776 = vunpack.c.h.b16 %v962
    %v4777 = vunpack.c.l.b16 %v963
    %v4778 = vunpack.c.h.b16 %v963
    %v4779 = vunpack.c.l.b16 %v964
    %v4780 = vunpack.c.h.b16 %v964
    %v4781 = vunpack.c.l.b16 %v965
    %v4782 = vunpack.c.h.b16 %v965
    %v4783 = vunpack.c.l.b16 %v966
    %v4784 = vunpack.c.h.b16 %v966
    %v4785 = vunpack.c.l.b16 %v967
    %v4786 = vunpack.c.h.b16 %v967
    %v4787 = vunpack.c.l.b16 %v968
    %v4788 = vunpack.c.h.b16 %v968
    %v4789 = vunpack.c.l.b16 %v969
    %v4790 = vunpack.c.h.b16 %v969
    %v4791 = vunpack.c.l.b16 %v970
    %v4792 = vunpack.c.h.b16 %v970
    %v4793 = vunpack.c.l.b16 %v971
    %v4794 = vunpack.c.h.b16 %v971
    %v4795 = vunpack.c.l.b16 %v972
    %v4796 = vunpack.c.h.b16 %v972
    %v4797 = vunpack.c.l.b16 %v973
    %v4798 = vunpack.c.h.b16 %v973
    %v4799 = vunpack.c.l.b16 %v974
    %v4800 = vunpack.c.h.b16 %v974
    %v4801 = vunpack.c.l.b16 %v975
    %v4802 = vunpack.c.h.b16 %v975
    %v4803 = vunpack.c.l.b16 %v976
    %v4804 = vunpack.c.h.b16 %v976
    %v4805 = vunpack.c.l.b16 %v977
    %v4806 = vunpack.c.h.b16 %v977
    %v4807 = vunpack.c.l.b16 %v978
    %v4808 = vunpack.c.h.b16 %v978
    %v4809 = vunpack.c.l.b16 %v979
    %v4810 = vunpack.c.h.b16 %v979
    %v4811 = vunpack.c.l.b16 %v980
    %v4812 = vunpack.c.h.b16 %v980
    %v4813 = vunpack.c.l.b16 %v981
    %v4814 = vunpack.c.h.b16 %v981
    %v4815 = vunpack.c.l.b16 %v982
    %v4816 = vunpack.c.h.b16 %v982
    %v4817 = vunpack.c.l.b16 %v983
    %v4818 = vunpack.c.h.b16 %v983
    %v4819 = vunpack.c.l.b16 %v984
    %v4820 = vunpack.c.h.b16 %v984
    %v4821 = vunpack.c.l.b16 %v985
    %v4822 = vunpack.c.h.b16 %v985
    %v4823 = vunpack.c.l.b16 %v986
    %v4824 = vunpack.c.h.b16 %v986
    %v4825 = vunpack.c.l.b16 %v987
    %v4826 = vunpack.c.h.b16 %v987
    %v4827 = vunpack.c.l.b16 %v988
    %v4828 = vunpack.c.h.b16 %v988
    %v4829 = vunpack.c.l.b16 %v989
    %v4830 = vunpack.c.h.b16 %v989
    %v4831 = vunpack.c.l.b16 %v990
    %v4832 = vunpack.c.h.b16 %v990
    %v4833 = vunpack.c.l.b16 %v991
    %v4834 = vunpack.c.h.b16 %v991
    %v4835 = vunpack.c.l.b16 %v992
    %v4836 = vunpack.c.h.b16 %v992
    %v4837 = vunpack.c.l.b16 %v993
    %v4838 = vunpack.c.h.b16 %v993
    %v4839 = vunpack.c.l.b16 %v994
    %v4840 = vunpack.c.h.b16 %v994
    %v4841 = vunpack.c.l.b16 %v995
    %v4842 = vunpack.c.h.b16 %v995
    %v4843 = vunpack.c.l.b16 %v996
    %v4844 = vunpack.c.h.b16 %v996
    %v4845 = vunpack.c.l.b16 %v997
    %v4846 = vunpack.c.h.b16 %v997
    %v4847 = vunpack.c.l.b16 %v998
    %v4848 = vunpack.c.h.b16 %v998
    %v4849 = vunpack.c.l.b16 %v999
    %v4850 = vunpack.c.h.b16 %v999
    %v4851 = vunpack.c.l.b16 %v1000
    %v4852 = vunpack.c.h.b16 %v1000
    %v4853 = vunpack.c.l.b16 %v1001
    %v4854 = vunpack.c.h.b16 %v1001
    %v4855 = vunpack.c.l.b16 %v1002
    %v4856 = vunpack.c.h.b16 %v1002
    %v4857 = vunpack.c.l.b16 %v1003
    %v4858 = vunpack.c.h.b16 %v1003
    %v4859 = vunpack.c.l.b16 %v1004
    %v4860 = vunpack.c.h.b16 %v1004
    %v4861 = vunpack.c.l.b16 %v1005
    %v4862 = vunpack.c.h.b16 %v1005
    %v4863 = vunpack.c.l.b16 %v1006
    %v4864 = vunpack.c.h.b16 %v1006
    %v4865 = vunpack.c.l.b16 %v1007
    %v4866 = vunpack.c.h.b16 %v1007
    %v4867 = vunpack.c.l.b16 %v1008
    %v4868 = vunpack.c.h.b16 %v1008
    %v4869 = vunpack.c.l.b16 %v1009
    %v4870 = vunpack.c.h.b16 %v1009
    %v4871 = vunpack.c.l.b16 %v1010
    %v4872 = vunpack.c.h.b16 %v1010
    %v4873 = vunpack.c.l.b16 %v1011
    %v4874 = vunpack.c.h.b16 %v1011
    %v4875 = vunpack.c.l.b16 %v1012
    %v4876 = vunpack.c.h.b16 %v1012
    %v4877 = vunpack.c.l.b16 %v1013
    %v4878 = vunpack.c.h.b16 %v1013
    %v4879 = vunpack.c.l.b16 %v1014
    %v4880 = vunpack.c.h.b16 %v1014
    %v4881 = vunpack.c.l.b16 %v1015
    %v4882 = vunpack.c.h.b16 %v1015
    %v4883 = vunpack.c.l.b16 %v1016
    %v4884 = vunpack.c.h.b16 %v1016
    %v4885 = vunpack.c.l.b16 %v1017
    %v4886 = vunpack.c.h.b16 %v1017
    %v4887 = vunpack.c.l.b16 %v1018
    %v4888 = vunpack.c.h.b16 %v1018
    %v4889 = vunpack.c.l.b16 %v1019
    %v4890 = vunpack.c.h.b16 %v1019
    %v4891 = vunpack.c.l.b16 %v1020
    %v4892 = vunpack.c.h.b16 %v1020
    %v4893 = vunpack.c.l.b16 %v1021
    %v4894 = vunpack.c.h.b16 %v1021
    %v4895 = vunpack.c.l.b16 %v1022
    %v4896 = vunpack.c.h.b16 %v1022
    %v4897 = vunpack.c.l.b16 %v1023
    %v4898 = vunpack.c.h.b16 %v1023
    %v4899 = vunpack.c.l.b16 %v1024
    %v4900 = vunpack.c.h.b16 %v1024
    %v4901 = vunpack.c.l.b16 %v1025
    %v4902 = vunpack.c.h.b16 %v1025
    %v4903 = vunpack.c.l.b16 %v1026
    %v4904 = vunpack.c.h.b16 %v1026
    %v4905 = vunpack.c.l.b16 %v1027
    %v4906 = vunpack.c.h.b16 %v1027
    %v4907 = vunpack.c.l.b16 %v1028
    %v4908 = vunpack.c.h.b16 %v1028
    %v4909 = vunpack.c.l.b16 %v1029
    %v4910 = vunpack.c.h.b16 %v1029
    %v4911 = vunpack.c.l.b16 %v1030
    %v4912 = vunpack.c.h.b16 %v1030
    %v4913 = vunpack.c.l.b16 %v1031
    %v4914 = vunpack.c.h.b16 %v1031
    %v4915 = vunpack.c.l.b16 %v1032
    %v4916 = vunpack.c.h.b16 %v1032
    %v4917 = vunpack.c.l.b16 %v1033
    %v4918 = vunpack.c.h.b16 %v1033
    %v4919 = vunpack.c.l.b16 %v1034
    %v4920 = vunpack.c.h.b16 %v1034
    %v4921 = vunpack.c.l.b16 %v1035
    %v4922 = vunpack.c.h.b16 %v1035
    %v4923 = vunpack.c.l.b16 %v1036
    %v4924 = vunpack.c.h.b16 %v1036
    %v4925 = vunpack.c.l.b16 %v1037
    %v4926 = vunpack.c.h.b16 %v1037
    %v4927 = vunpack.c.l.b16 %v1038
    %v4928 = vunpack.c.h.b16 %v1038
    %v4929 = vunpack.c.l.b16 %v1039
    %v4930 = vunpack.c.h.b16 %v1039
    %v4931 = vunpack.c.l.b16 %v1040
    %v4932 = vunpack.c.h.b16 %v1040
    %v4933 = vunpack.c.l.b16 %v1041
    %v4934 = vunpack.c.h.b16 %v1041
    %v4935 = vunpack.c.l.b16 %v1042
    %v4936 = vunpack.c.h.b16 %v1042
    %v4937 = vunpack.c.l.b16 %v1043
    %v4938 = vunpack.c.h.b16 %v1043
    %v4939 = vunpack.c.l.b16 %v1044
    %v4940 = vunpack.c.h.b16 %v1044
    %v4941 = vunpack.c.l.b16 %v1045
    %v4942 = vunpack.c.h.b16 %v1045
    %v4943 = vunpack.c.l.b16 %v1046
    %v4944 = vunpack.c.h.b16 %v1046
    %v4945 = vunpack.c.l.b16 %v1047
    %v4946 = vunpack.c.h.b16 %v1047
    %v4947 = vunpack.c.l.b16 %v1048
    %v4948 = vunpack.c.h.b16 %v1048
    %v4949 = vunpack.c.l.b16 %v1049
    %v4950 = vunpack.c.h.b16 %v1049
    %v4951 = vunpack.c.l.b16 %v1050
    %v4952 = vunpack.c.h.b16 %v1050
    %v4953 = vunpack.c.l.b16 %v1051
    %v4954 = vunpack.c.h.b16 %v1051
    %v4955 = vunpack.c.l.b16 %v1052
    %v4956 = vunpack.c.h.b16 %v1052
    %v4957 = vunpack.c.l.b16 %v1053
    %v4958 = vunpack.c.h.b16 %v1053
    %v4959 = vunpack.c.l.b16 %v1054
    %v4960 = vunpack.c.h.b16 %v1054
    %v4961 = vunpack.c.l.b16 %v1055
    %v4962 = vunpack.c.h.b16 %v1055
    %v4963 = vunpack.c.l.b16 %v1056
    %v4964 = vunpack.c.h.b16 %v1056
    %v4965 = vunpack.c.l.b16 %v1057
    %v4966 = vunpack.c.h.b16 %v1057
    %v4967 = vunpack.c.l.b16 %v1058
    %v4968 = vunpack.c.h.b16 %v1058
    %v4969 = vunpack.c.l.b16 %v1059
    %v4970 = vunpack.c.h.b16 %v1059
    %v4971 = vunpack.c.l.b16 %v1060
    %v4972 = vunpack.c.h.b16 %v1060
    %v4973 = vunpack.c.l.b16 %v1061
    %v4974 = vunpack.c.h.b16 %v1061
    %v4975 = vunpack.c.l.b16 %v1062
    %v4976 = vunpack.c.h.b16 %v1062
    %v4977 = vunpack.c.l.b16 %v1063
    %v4978 = vunpack.c.h.b16 %v1063
    %v4979 = vunpack.c.l.b16 %v1064
    %v4980 = vunpack.c.h.b16 %v1064
    %v4981 = vunpack.c.l.b16 %v1065
    %v4982 = vunpack.c.h.b16 %v1065
    %v4983 = vunpack.c.l.b16 %v1066
    %v4984 = vunpack.c.h.b16 %v1066
    %v4985 = vunpack.c.l.b16 %v1067
    %v4986 = vunpack.c.h.b16 %v1067
    %v4987 = vunpack.c.l.b16 %v1068
    %v4988 = vunpack.c.h.b16 %v1068
    %v4989 = vunpack.c.l.b16 %v1069
    %v4990 = vunpack.c.h.b16 %v1069
    %v4991 = vunpack.c.l.b16 %v1070
    %v4992 = vunpack.c.h.b16 %v1070
    %v4993 = vunpack.c.l.b16 %v1071
    %v4994 = vunpack.c.h.b16 %v1071
    %v4995 = vunpack.c.l.b16 %v1072
    %v4996 = vunpack.c.h.b16 %v1072
    %v4997 = vunpack.c.l.b16 %v1073
    %v4998 = vunpack.c.h.b16 %v1073
    %v4999 = vunpack.c.l.b16 %v1074
    %v5000 = vunpack.c.h.b16 %v1074
    %v5001 = vunpack.c.l.b16 %v1075
    %v5002 = vunpack.c.h.b16 %v1075
    %v5003 = vunpack.c.l.b16 %v1076
    %v5004 = vunpack.c.h.b16 %v1076
    %v5005 = vunpack.c.l.b16 %v1077
    %v5006 = vunpack.c.h.b16 %v1077
    %v5007 = vunpack.c.l.b16 %v1078
    %v5008 = vunpack.c.h.b16 %v1078
    %v5009 = vunpack.c.l.b16 %v1079
    %v5010 = vunpack.c.h.b16 %v1079
    %v5011 = vunpack.c.l.b16 %v1080
    %v5012 = vunpack.c.h.b16 %v1080
    %v5013 = vunpack.c.l.b16 %v1081
    %v5014 = vunpack.c.h.b16 %v1081
    %v5015 = vunpack.c.l.b16 %v1082
    %v5016 = vunpack.c.h.b16 %v1082
    %v5017 = vunpack.c.l.b16 %v1083
    %v5018 = vunpack.c.h.b16 %v1083
    %v5019 = vunpack.c.l.b16 %v1084
    %v5020 = vunpack.c.h.b16 %v1084
    %v5021 = vunpack.c.l.b16 %v1085
    %v5022 = vunpack.c.h.b16 %v1085
    %v5023 = vunpack.c.l.b16 %v1086
    %v5024 = vunpack.c.h.b16 %v1086
    %v5025 = vunpack.c.l.b16 %v1087
    %v5026 = vunpack.c.h.b16 %v1087
    %v5027 = vunpack.c.l.b16 %v1088
    %v5028 = vunpack.c.h.b16 %v1088
    %v5029 = vunpack.c.l.b16 %v1089
    %v5030 = vunpack.c.h.b16 %v1089
    %v5031 = vunpack.c.l.b16 %v1090
    %v5032 = vunpack.c.h.b16 %v1090
    %v5033 = vunpack.c.l.b16 %v1091
    %v5034 = vunpack.c.h.b16 %v1091
    %v5035 = vunpack.c.l.b16 %v1092
    %v5036 = vunpack.c.h.b16 %v1092
    %v5037 = vunpack.c.l.b16 %v1093
    %v5038 = vunpack.c.h.b16 %v1093
    %v5039 = vunpack.c.l.b16 %v1094
    %v5040 = vunpack.c.h.b16 %v1094
    %v5041 = vunpack.c.l.b16 %v1095
    %v5042 = vunpack.c.h.b16 %v1095
    %v5043 = vunpack.c.l.b16 %v1096
    %v5044 = vunpack.c.h.b16 %v1096
    %v5045 = vunpack.c.l.b16 %v1097
    %v5046 = vunpack.c.h.b16 %v1097
    %v5047 = vunpack.c.l.b16 %v1098
    %v5048 = vunpack.c.h.b16 %v1098
    %v5049 = vunpack.c.l.b16 %v1099
    %v5050 = vunpack.c.h.b16 %v1099
    %v5051 = vunpack.c.l.b16 %v1100
    %v5052 = vunpack.c.h.b16 %v1100
    %v5053 = vunpack.c.l.b16 %v1101
    %v5054 = vunpack.c.h.b16 %v1101
    %v5055 = vunpack.c.l.b16 %v1102
    %v5056 = vunpack.c.h.b16 %v1102
    %v5057 = vunpack.c.l.b16 %v1103
    %v5058 = vunpack.c.h.b16 %v1103
    %v5059 = vunpack.c.l.b16 %v1104
    %v5060 = vunpack.c.h.b16 %v1104
    %v5061 = vunpack.c.l.b16 %v1105
    %v5062 = vunpack.c.h.b16 %v1105
    %v5063 = vunpack.c.l.b16 %v1106
    %v5064 = vunpack.c.h.b16 %v1106
    %v5065 = vunpack.c.l.b16 %v1107
    %v5066 = vunpack.c.h.b16 %v1107
    %v5067 = vunpack.c.l.b16 %v1108
    %v5068 = vunpack.c.h.b16 %v1108
    %v5069 = vunpack.c.l.b16 %v1109
    %v5070 = vunpack.c.h.b16 %v1109
    %v5071 = vunpack.c.l.b16 %v1110
    %v5072 = vunpack.c.h.b16 %v1110
    %v5073 = vunpack.c.l.b16 %v1111
    %v5074 = vunpack.c.h.b16 %v1111
    %v5075 = vunpack.c.l.b16 %v1112
    %v5076 = vunpack.c.h.b16 %v1112
    %v5077 = vunpack.c.l.b16 %v1113
    %v5078 = vunpack.c.h.b16 %v1113
    %v5079 = vunpack.c.l.b16 %v1114
    %v5080 = vunpack.c.h.b16 %v1114
    %v5081 = vunpack.c.l.b16 %v1115
    %v5082 = vunpack.c.h.b16 %v1115
    %v5083 = vunpack.c.l.b16 %v1116
    %v5084 = vunpack.c.h.b16 %v1116
    %v5085 = vunpack.c.l.b16 %v1117
    %v5086 = vunpack.c.h.b16 %v1117
    %v5087 = vunpack.c.l.b16 %v1118
    %v5088 = vunpack.c.h.b16 %v1118
    %v5089 = vunpack.c.l.b16 %v1119
    %v5090 = vunpack.c.h.b16 %v1119
    %v5091 = vunpack.c.l.b16 %v1120
    %v5092 = vunpack.c.h.b16 %v1120
    %v5093 = vunpack.c.l.b16 %v1121
    %v5094 = vunpack.c.h.b16 %v1121
    %v5095 = vunpack.c.l.b16 %v1122
    %v5096 = vunpack.c.h.b16 %v1122
    %v5097 = vunpack.c.l.b16 %v1123
    %v5098 = vunpack.c.h.b16 %v1123
    %v5099 = vunpack.c.l.b16 %v1124
    %v5100 = vunpack.c.h.b16 %v1124
    %v5101 = vunpack.c.l.b16 %v1125
    %v5102 = vunpack.c.h.b16 %v1125
    %v5103 = vunpack.c.l.b16 %v1126
    %v5104 = vunpack.c.h.b16 %v1126
    %v5105 = vunpack.c.l.b16 %v1127
    %v5106 = vunpack.c.h.b16 %v1127
    %v5107 = vunpack.c.l.b16 %v1128
    %v5108 = vunpack.c.h.b16 %v1128
    %v5109 = vunpack.c.l.b16 %v1129
    %v5110 = vunpack.c.h.b16 %v1129
    %v5111 = vunpack.c.l.b16 %v1130
    %v5112 = vunpack.c.h.b16 %v1130
    %v5113 = vunpack.c.l.b16 %v1131
    %v5114 = vunpack.c.h.b16 %v1131
    %v5115 = vunpack.c.l.b16 %v1132
    %v5116 = vunpack.c.h.b16 %v1132
    %v5117 = vunpack.c.l.b16 %v1133
    %v5118 = vunpack.c.h.b16 %v1133
    %v5119 = vunpack.c.l.b16 %v1134
    %v5120 = vunpack.c.h.b16 %v1134
    %v5121 = vunpack.c.l.b16 %v1135
    %v5122 = vunpack.c.h.b16 %v1135
    %v5123 = vunpack.c.l.b16 %v1136
    %v5124 = vunpack.c.h.b16 %v1136
    %v5125 = vunpack.c.l.b16 %v1137
    %v5126 = vunpack.c.h.b16 %v1137
    %v5127 = vunpack.c.l.b16 %v1138
    %v5128 = vunpack.c.h.b16 %v1138
    %v5129 = vunpack.c.l.b16 %v1139
    %v5130 = vunpack.c.h.b16 %v1139
    %v5131 = vunpack.c.l.b16 %v1140
    %v5132 = vunpack.c.h.b16 %v1140
    %v5133 = vunpack.c.l.b16 %v1141
    %v5134 = vunpack.c.h.b16 %v1141
    %v5135 = vunpack.c.l.b16 %v1142
    %v5136 = vunpack.c.h.b16 %v1142
    %v5137 = vunpack.c.l.b16 %v1143
    %v5138 = vunpack.c.h.b16 %v1143
    %v5139 = vunpack.c.l.b16 %v1144
    %v5140 = vunpack.c.h.b16 %v1144
    %v5141 = vunpack.c.l.b16 %v1145
    %v5142 = vunpack.c.h.b16 %v1145
    %v5143 = vunpack.c.l.b16 %v1146
    %v5144 = vunpack.c.h.b16 %v1146
    %v5145 = vunpack.c.l.b16 %v1147
    %v5146 = vunpack.c.h.b16 %v1147
    %v5147 = vunpack.c.l.b16 %v1148
    %v5148 = vunpack.c.h.b16 %v1148
    %v5149 = vunpack.c.l.b16 %v1149
    %v5150 = vunpack.c.h.b16 %v1149
    %v5151 = vunpack.c.l.b16 %v1150
    %v5152 = vunpack.c.h.b16 %v1150
    %v5153 = vunpack.c.l.b16 %v1151
    %v5154 = vunpack.c.h.b16 %v1151
    %v5155 = vunpack.c.l.b16 %v1152
    %v5156 = vunpack.c.h.b16 %v1152
    %v5157 = vunpack.c.l.b16 %v1153
    %v5158 = vunpack.c.h.b16 %v1153
    %v5159 = vunpack.c.l.b16 %v1154
    %v5160 = vunpack.c.h.b16 %v1154
    %v5161 = vunpack.c.l.b16 %v1155
    %v5162 = vunpack.c.h.b16 %v1155
    %v5163 = vunpack.c.l.b16 %v1156
    %v5164 = vunpack.c.h.b16 %v1156
    %v5165 = vunpack.c.l.b16 %v1157
    %v5166 = vunpack.c.h.b16 %v1157
    %v5167 = vunpack.c.l.b16 %v1158
    %v5168 = vunpack.c.h.b16 %v1158
    %v5169 = vunpack.c.l.b16 %v1159
    %v5170 = vunpack.c.h.b16 %v1159
    %v5171 = vunpack.c.l.b16 %v1160
    %v5172 = vunpack.c.h.b16 %v1160
    %v5173 = vunpack.c.l.b16 %v1161
    %v5174 = vunpack.c.h.b16 %v1161
    %v5175 = vunpack.c.l.b16 %v1162
    %v5176 = vunpack.c.h.b16 %v1162
    %v5177 = vunpack.c.l.b16 %v1163
    %v5178 = vunpack.c.h.b16 %v1163
    %v5179 = vunpack.c.l.b16 %v1164
    %v5180 = vunpack.c.h.b16 %v1164
    %v5181 = vunpack.c.l.b16 %v1165
    %v5182 = vunpack.c.h.b16 %v1165
    %v5183 = vunpack.c.l.b16 %v1166
    %v5184 = vunpack.c.h.b16 %v1166
    %v5185 = vunpack.c.l.b16 %v1167
    %v5186 = vunpack.c.h.b16 %v1167
    %v5187 = vunpack.c.l.b16 %v1168
    %v5188 = vunpack.c.h.b16 %v1168
    %v5189 = vunpack.c.l.b16 %v1169
    %v5190 = vunpack.c.h.b16 %v1169
    %v5191 = vunpack.c.l.b16 %v1170
    %v5192 = vunpack.c.h.b16 %v1170
    %v5193 = vunpack.c.l.b16 %v1171
    %v5194 = vunpack.c.h.b16 %v1171
    %v5195 = vunpack.c.l.b16 %v1172
    %v5196 = vunpack.c.h.b16 %v1172
    %v5197 = vunpack.c.l.b16 %v1173
    %v5198 = vunpack.c.h.b16 %v1173
    %v5199 = vunpack.c.l.b16 %v1174
    %v5200 = vunpack.c.h.b16 %v1174
    %v5201 = vunpack.c.l.b16 %v1175
    %v5202 = vunpack.c.h.b16 %v1175
    %v5203 = vunpack.c.l.b16 %v1176
    %v5204 = vunpack.c.h.b16 %v1176
    %v5205 = vunpack.c.l.b16 %v1177
    %v5206 = vunpack.c.h.b16 %v1177
    %v5207 = vunpack.c.l.b16 %v1178
    %v5208 = vunpack.c.h.b16 %v1178
    %v5209 = vunpack.c.l.b16 %v1179
    %v5210 = vunpack.c.h.b16 %v1179
    %v5211 = vunpack.c.l.b16 %v1180
    %v5212 = vunpack.c.h.b16 %v1180
    %v5213 = vunpack.c.l.b16 %v1181
    %v5214 = vunpack.c.h.b16 %v1181
    %v5215 = vunpack.c.l.b16 %v1182
    %v5216 = vunpack.c.h.b16 %v1182
    %v5217 = vunpack.c.l.b16 %v1183
    %v5218 = vunpack.c.h.b16 %v1183
    %v5219 = vunpack.c.l.b16 %v1184
    %v5220 = vunpack.c.h.b16 %v1184
    %v5221 = vunpack.c.l.b16 %v1185
    %v5222 = vunpack.c.h.b16 %v1185
    %v5223 = vunpack.c.l.b16 %v1186
    %v5224 = vunpack.c.h.b16 %v1186
    %v5225 = vunpack.c.l.b16 %v1187
    %v5226 = vunpack.c.h.b16 %v1187
    %v5227 = vunpack.c.l.b16 %v1188
    %v5228 = vunpack.c.h.b16 %v1188
    %v5229 = vunpack.c.l.b16 %v1189
    %v5230 = vunpack.c.h.b16 %v1189
    %v5231 = vunpack.c.l.b16 %v1190
    %v5232 = vunpack.c.h.b16 %v1190
    %v5233 = vunpack.c.l.b16 %v1191
    %v5234 = vunpack.c.h.b16 %v1191
    %v5235 = vunpack.c.l.b16 %v1192
    %v5236 = vunpack.c.h.b16 %v1192
    %v5237 = vunpack.c.l.b16 %v1193
    %v5238 = vunpack.c.h.b16 %v1193
    %v5239 = vunpack.c.l.b16 %v1194
    %v5240 = vunpack.c.h.b16 %v1194
    %v5241 = vunpack.c.l.b16 %v1195
    %v5242 = vunpack.c.h.b16 %v1195
    %v5243 = vunpack.c.l.b16 %v1196
    %v5244 = vunpack.c.h.b16 %v1196
    %v5245 = vunpack.c.l.b16 %v1197
    %v5246 = vunpack.c.h.b16 %v1197
    %v5247 = vunpack.c.l.b16 %v1198
    %v5248 = vunpack.c.h.b16 %v1198
    %v5249 = vunpack.c.l.b16 %v1199
    %v5250 = vunpack.c.h.b16 %v1199
    %v5251 = vunpack.c.l.b16 %v1200
    %v5252 = vunpack.c.h.b16 %v1200
    %v5253 = vunpack.c.l.b16 %v1201
    %v5254 = vunpack.c.h.b16 %v1201
    %v5255 = vunpack.c.l.b16 %v1202
    %v5256 = vunpack.c.h.b16 %v1202
    %v5257 = vunpack.c.l.b16 %v1203
    %v5258 = vunpack.c.h.b16 %v1203
    %v5259 = vunpack.c.l.b16 %v1204
    %v5260 = vunpack.c.h.b16 %v1204
    %v5261 = vunpack.c.l.b16 %v1205
    %v5262 = vunpack.c.h.b16 %v1205
    %v5263 = vunpack.c.l.b16 %v1206
    %v5264 = vunpack.c.h.b16 %v1206
    %v5265 = vunpack.c.l.b16 %v1207
    %v5266 = vunpack.c.h.b16 %v1207
    %v5267 = vunpack.c.l.b16 %v1208
    %v5268 = vunpack.c.h.b16 %v1208
    %v5269 = vunpack.c.l.b16 %v1209
    %v5270 = vunpack.c.h.b16 %v1209
    %v5271 = vunpack.c.l.b16 %v1210
    %v5272 = vunpack.c.h.b16 %v1210
    %v5273 = vunpack.c.l.b16 %v1211
    %v5274 = vunpack.c.h.b16 %v1211
    %v5275 = vunpack.c.l.b16 %v1212
    %v5276 = vunpack.c.h.b16 %v1212
    %v5277 = vunpack.c.l.b16 %v1213
    %v5278 = vunpack.c.h.b16 %v1213
    %v5279 = vunpack.c.l.b16 %v1214
    %v5280 = vunpack.c.h.b16 %v1214
    %v5281 = vunpack.c.l.b16 %v1215
    %v5282 = vunpack.c.h.b16 %v1215
    %v5283 = vunpack.c.l.b16 %v1216
    %v5284 = vunpack.c.h.b16 %v1216
    %v5285 = vunpack.c.l.b16 %v1217
    %v5286 = vunpack.c.h.b16 %v1217
    %v5287 = vunpack.c.l.b16 %v1218
    %v5288 = vunpack.c.h.b16 %v1218
    %v5289 = vunpack.c.l.b16 %v1219
    %v5290 = vunpack.c.h.b16 %v1219
    %v5291 = vunpack.c.l.b16 %v1220
    %v5292 = vunpack.c.h.b16 %v1220
    %v5293 = vunpack.c.l.b16 %v1221
    %v5294 = vunpack.c.h.b16 %v1221
    %v5295 = vunpack.c.l.b16 %v1222
    %v5296 = vunpack.c.h.b16 %v1222
    %v5297 = vunpack.c.l.b16 %v1223
    %v5298 = vunpack.c.h.b16 %v1223
    %v5299 = vunpack.c.l.b16 %v1224
    %v5300 = vunpack.c.h.b16 %v1224
    %v5301 = vunpack.c.l.b16 %v1225
    %v5302 = vunpack.c.h.b16 %v1225
    %v5303 = vunpack.c.l.b16 %v1226
    %v5304 = vunpack.c.h.b16 %v1226
    %v5305 = vunpack.c.l.b16 %v1227
    %v5306 = vunpack.c.h.b16 %v1227
    %v5307 = vunpack.c.l.b16 %v1228
    %v5308 = vunpack.c.h.b16 %v1228
    %v5309 = vunpack.c.l.b16 %v1229
    %v5310 = vunpack.c.h.b16 %v1229
    %v5311 = vunpack.c.l.b16 %v1230
    %v5312 = vunpack.c.h.b16 %v1230
    %v5313 = vunpack.c.l.b16 %v1231
    %v5314 = vunpack.c.h.b16 %v1231
    %v5315 = vunpack.c.l.b16 %v1232
    %v5316 = vunpack.c.h.b16 %v1232
    %v5317 = vunpack.c.l.b16 %v1233
    %v5318 = vunpack.c.h.b16 %v1233
    %v5319 = vunpack.c.l.b16 %v1234
    %v5320 = vunpack.c.h.b16 %v1234
    %v5321 = vunpack.c.l.b16 %v1235
    %v5322 = vunpack.c.h.b16 %v1235
    %v5323 = vunpack.c.l.b16 %v1236
    %v5324 = vunpack.c.h.b16 %v1236
    %v5325 = vunpack.c.l.b16 %v1237
    %v5326 = vunpack.c.h.b16 %v1237
    %v5327 = vunpack.c.l.b16 %v1238
    %v5328 = vunpack.c.h.b16 %v1238
    %v5329 = vunpack.c.l.b16 %v1239
    %v5330 = vunpack.c.h.b16 %v1239
    %v5331 = vunpack.c.l.b16 %v1240
    %v5332 = vunpack.c.h.b16 %v1240
    %v5333 = vunpack.c.l.b16 %v1241
    %v5334 = vunpack.c.h.b16 %v1241
    %v5335 = vunpack.c.l.b16 %v1242
    %v5336 = vunpack.c.h.b16 %v1242
    %v5337 = vunpack.c.l.b16 %v1243
    %v5338 = vunpack.c.h.b16 %v1243
    %v5339 = vunpack.c.l.b16 %v1244
    %v5340 = vunpack.c.h.b16 %v1244
    %v5341 = vunpack.c.l.b16 %v1245
    %v5342 = vunpack.c.h.b16 %v1245
    %v5343 = vunpack.c.l.b16 %v1246
    %v5344 = vunpack.c.h.b16 %v1246
    %v5345 = vunpack.c.l.b16 %v1247
    %v5346 = vunpack.c.h.b16 %v1247
    %v5347 = vunpack.c.l.b16 %v1248
    %v5348 = vunpack.c.h.b16 %v1248
    %v5349 = vunpack.c.l.b16 %v1249
    %v5350 = vunpack.c.h.b16 %v1249
    %v5351 = vunpack.c.l.b16 %v1250
    %v5352 = vunpack.c.h.b16 %v1250
    %v5353 = vunpack.c.l.b16 %v1251
    %v5354 = vunpack.c.h.b16 %v1251
    %v5355 = vunpack.c.l.b16 %v1252
    %v5356 = vunpack.c.h.b16 %v1252
    %v5357 = vunpack.c.l.b16 %v1253
    %v5358 = vunpack.c.h.b16 %v1253
    %v5359 = vunpack.c.l.b16 %v1254
    %v5360 = vunpack.c.h.b16 %v1254
    %v5361 = vunpack.c.l.b16 %v1255
    %v5362 = vunpack.c.h.b16 %v1255
    %v5363 = vunpack.c.l.b16 %v1256
    %v5364 = vunpack.c.h.b16 %v1256
    %v5365 = vunpack.c.l.b16 %v1257
    %v5366 = vunpack.c.h.b16 %v1257
    %v5367 = vunpack.c.l.b16 %v1258
    %v5368 = vunpack.c.h.b16 %v1258
    %v5369 = vunpack.c.l.b16 %v1259
    %v5370 = vunpack.c.h.b16 %v1259
    %v5371 = vunpack.c.l.b16 %v1260
    %v5372 = vunpack.c.h.b16 %v1260
    %v5373 = vunpack.c.l.b16 %v1261
    %v5374 = vunpack.c.h.b16 %v1261
    %v5375 = vunpack.c.l.b16 %v1262
    %v5376 = vunpack.c.h.b16 %v1262
    %v5377 = vunpack.c.l.b16 %v1263
    %v5378 = vunpack.c.h.b16 %v1263
    %v5379 = vunpack.c.l.b16 %v1264
    %v5380 = vunpack.c.h.b16 %v1264
    %v5381 = vunpack.c.l.b16 %v1265
    %v5382 = vunpack.c.h.b16 %v1265
    %v5383 = vunpack.c.l.b16 %v1266
    %v5384 = vunpack.c.h.b16 %v1266
    %v5385 = vunpack.c.l.b16 %v1267
    %v5386 = vunpack.c.h.b16 %v1267
    %v5387 = vunpack.c.l.b16 %v1268
    %v5388 = vunpack.c.h.b16 %v1268
    %v5389 = vunpack.c.l.b16 %v1269
    %v5390 = vunpack.c.h.b16 %v1269
    %v5391 = vunpack.c.l.b16 %v1270
    %v5392 = vunpack.c.h.b16 %v1270
    %v5393 = vunpack.c.l.b16 %v1271
    %v5394 = vunpack.c.h.b16 %v1271
    %v5395 = vunpack.c.l.b16 %v1272
    %v5396 = vunpack.c.h.b16 %v1272
    %v5397 = vunpack.c.l.b16 %v1273
    %v5398 = vunpack.c.h.b16 %v1273
    %v5399 = vunpack.c.l.b16 %v1274
    %v5400 = vunpack.c.h.b16 %v1274
    %v5401 = vunpack.c.l.b16 %v1275
    %v5402 = vunpack.c.h.b16 %v1275
    %v5403 = vunpack.c.l.b16 %v1276
    %v5404 = vunpack.c.h.b16 %v1276
    %v5405 = vunpack.c.l.b16 %v1277
    %v5406 = vunpack.c.h.b16 %v1277
    %v5407 = vunpack.c.l.b16 %v1278
    %v5408 = vunpack.c.h.b16 %v1278
    %v5409 = vunpack.c.l.b16 %v1279
    %v5410 = vunpack.c.h.b16 %v1279
    %v5411 = vunpack.c.l.b16 %v1280
    %v5412 = vunpack.c.h.b16 %v1280
    %v5413 = vunpack.c.l.b16 %v1281
    %v5414 = vunpack.c.h.b16 %v1281
    %v5415 = vunpack.c.l.b16 %v1282
    %v5416 = vunpack.c.h.b16 %v1282
    %v5417 = vunpack.c.l.b16 %v1283
    %v5418 = vunpack.c.h.b16 %v1283
    %v5419 = vunpack.c.l.b16 %v1284
    %v5420 = vunpack.c.h.b16 %v1284
    %v5421 = vunpack.c.l.b16 %v1285
    %v5422 = vunpack.c.h.b16 %v1285
    %v5423 = vunpack.c.l.b16 %v1286
    %v5424 = vunpack.c.h.b16 %v1286
    %v5425 = vunpack.c.l.b16 %v1287
    %v5426 = vunpack.c.h.b16 %v1287
    %v5427 = vunpack.c.l.b16 %v1288
    %v5428 = vunpack.c.h.b16 %v1288
    %v5429 = vunpack.c.l.b16 %v1289
    %v5430 = vunpack.c.h.b16 %v1289
    %v5431 = vunpack.c.l.b16 %v1290
    %v5432 = vunpack.c.h.b16 %v1290
    %v5433 = vunpack.c.l.b16 %v1291
    %v5434 = vunpack.c.h.b16 %v1291
    %v5435 = vunpack.c.l.b16 %v1292
    %v5436 = vunpack.c.h.b16 %v1292
    %v5437 = vunpack.c.l.b16 %v1293
    %v5438 = vunpack.c.h.b16 %v1293
    %v5439 = vunpack.c.l.b16 %v1294
    %v5440 = vunpack.c.h.b16 %v1294
    %v5441 = vunpack.c.l.b16 %v1295
    %v5442 = vunpack.c.h.b16 %v1295
    %v5443 = vunpack.c.l.b16 %v1296
    %v5444 = vunpack.c.h.b16 %v1296
    %v5445 = vunpack.c.l.b16 %v1297
    %v5446 = vunpack.c.h.b16 %v1297
    %v5447 = vunpack.c.l.b16 %v1298
    %v5448 = vunpack.c.h.b16 %v1298
    %v5449 = vunpack.c.l.b16 %v1299
    %v5450 = vunpack.c.h.b16 %v1299
    %v5451 = vunpack.c.l.b16 %v1300
    %v5452 = vunpack.c.h.b16 %v1300
    %v5453 = vunpack.c.l.b16 %v1301
    %v5454 = vunpack.c.h.b16 %v1301
    %v5455 = vunpack.c.l.b16 %v1302
    %v5456 = vunpack.c.h.b16 %v1302
    %v5457 = vunpack.c.l.b16 %v1303
    %v5458 = vunpack.c.h.b16 %v1303
    %v5459 = vunpack.c.l.b16 %v1304
    %v5460 = vunpack.c.h.b16 %v1304
    %v5461 = vunpack.c.l.b16 %v1305
    %v5462 = vunpack.c.h.b16 %v1305
    %v5463 = vunpack.c.l.b16 %v1306
    %v5464 = vunpack.c.h.b16 %v1306
    %v5465 = vunpack.c.l.b16 %v1307
    %v5466 = vunpack.c.h.b16 %v1307
    %v5467 = vunpack.c.l.b16 %v1308
    %v5468 = vunpack.c.h.b16 %v1308
    %v5469 = vunpack.c.l.b16 %v1309
    %v5470 = vunpack.c.h.b16 %v1309
    %v5471 = vunpack.c.l.b16 %v1310
    %v5472 = vunpack.c.h.b16 %v1310
    %v5473 = vunpack.c.l.b16 %v1311
    %v5474 = vunpack.c.h.b16 %v1311
    %v5475 = vunpack.c.l.b16 %v1312
    %v5476 = vunpack.c.h.b16 %v1312
    %v5477 = vunpack.c.l.b16 %v1313
    %v5478 = vunpack.c.h.b16 %v1313
    %v5479 = vunpack.c.l.b16 %v1314
    %v5480 = vunpack.c.h.b16 %v1314
    %v5481 = vunpack.c.l.b16 %v1315
    %v5482 = vunpack.c.h.b16 %v1315
    %v5483 = vunpack.c.l.b16 %v1316
    %v5484 = vunpack.c.h.b16 %v1316
    %v5485 = vunpack.c.l.b16 %v1317
    %v5486 = vunpack.c.h.b16 %v1317
    %v5487 = vunpack.c.l.b16 %v1318
    %v5488 = vunpack.c.h.b16 %v1318
    %v5489 = vunpack.c.l.b16 %v1319
    %v5490 = vunpack.c.h.b16 %v1319
    %v5491 = vunpack.c.l.b16 %v1320
    %v5492 = vunpack.c.h.b16 %v1320
    %v5493 = vunpack.c.l.b16 %v1321
    %v5494 = vunpack.c.h.b16 %v1321
    %v5495 = vunpack.c.l.b16 %v1322
    %v5496 = vunpack.c.h.b16 %v1322
    %v5497 = vunpack.c.l.b16 %v1323
    %v5498 = vunpack.c.h.b16 %v1323
    %v5499 = vunpack.c.l.b16 %v1324
    %v5500 = vunpack.c.h.b16 %v1324
    %v5501 = vunpack.c.l.b16 %v1325
    %v5502 = vunpack.c.h.b16 %v1325
    %v5503 = vunpack.c.l.b16 %v1326
    %v5504 = vunpack.c.h.b16 %v1326
    %v5505 = vunpack.c.l.b16 %v1327
    %v5506 = vunpack.c.h.b16 %v1327
    %v5507 = vunpack.c.l.b16 %v1328
    %v5508 = vunpack.c.h.b16 %v1328
    %v5509 = vunpack.c.l.b16 %v1329
    %v5510 = vunpack.c.h.b16 %v1329
    %v5511 = vunpack.c.l.b16 %v1330
    %v5512 = vunpack.c.h.b16 %v1330
    %v5513 = vunpack.c.l.b16 %v1331
    %v5514 = vunpack.c.h.b16 %v1331
    %v5515 = vunpack.c.l.b16 %v1332
    %v5516 = vunpack.c.h.b16 %v1332
    %v5517 = vunpack.c.l.b16 %v1333
    %v5518 = vunpack.c.h.b16 %v1333
    %v5519 = vunpack.c.l.b16 %v1334
    %v5520 = vunpack.c.h.b16 %v1334
    %v5521 = vunpack.c.l.b16 %v1335
    %v5522 = vunpack.c.h.b16 %v1335
    %v5523 = vunpack.c.l.b16 %v1336
    %v5524 = vunpack.c.h.b16 %v1336
    %v5525 = vunpack.c.l.b16 %v1337
    %v5526 = vunpack.c.h.b16 %v1337
    %v5527 = vunpack.c.l.b16 %v1338
    %v5528 = vunpack.c.h.b16 %v1338
    %v5529 = vunpack.c.l.b16 %v1339
    %v5530 = vunpack.c.h.b16 %v1339
    %v5531 = vunpack.c.l.b16 %v1340
    %v5532 = vunpack.c.h.b16 %v1340
    %v5533 = vunpack.c.l.b16 %v1341
    %v5534 = vunpack.c.h.b16 %v1341
    %v5535 = vunpack.c.l.b16 %v1342
    %v5536 = vunpack.c.h.b16 %v1342
    %v5537 = vunpack.c.l.b16 %v1343
    %v5538 = vunpack.c.h.b16 %v1343
    %v5539 = vunpack.c.l.b16 %v1344
    %v5540 = vunpack.c.h.b16 %v1344
    %v5541 = vunpack.c.l.b16 %v1345
    %v5542 = vunpack.c.h.b16 %v1345
    %v5543 = vunpack.c.l.b16 %v1346
    %v5544 = vunpack.c.h.b16 %v1346
    %v5545 = vunpack.c.l.b16 %v1347
    %v5546 = vunpack.c.h.b16 %v1347
    %v5547 = vunpack.c.l.b16 %v1348
    %v5548 = vunpack.c.h.b16 %v1348
    %v5549 = vunpack.c.l.b16 %v1349
    %v5550 = vunpack.c.h.b16 %v1349
    %v5551 = vunpack.c.l.b16 %v1350
    %v5552 = vunpack.c.h.b16 %v1350
    %v5553 = vunpack.c.l.b16 %v1351
    %v5554 = vunpack.c.h.b16 %v1351
    %v5555 = vunpack.c.l.b16 %v1352
    %v5556 = vunpack.c.h.b16 %v1352
    %v5557 = vunpack.c.l.b16 %v1353
    %v5558 = vunpack.c.h.b16 %v1353
    %v5559 = vunpack.c.l.b16 %v1354
    %v5560 = vunpack.c.h.b16 %v1354
    %v5561 = vunpack.c.l.b16 %v1355
    %v5562 = vunpack.c.h.b16 %v1355
    %v5563 = vunpack.c.l.b16 %v1356
    %v5564 = vunpack.c.h.b16 %v1356
    %v5565 = vunpack.c.l.b16 %v1357
    %v5566 = vunpack.c.h.b16 %v1357
    %v5567 = vunpack.c.l.b16 %v1358
    %v5568 = vunpack.c.h.b16 %v1358
    %v5569 = vunpack.c.l.b16 %v1359
    %v5570 = vunpack.c.h.b16 %v1359
    %v5571 = vunpack.c.l.b16 %v1360
    %v5572 = vunpack.c.h.b16 %v1360
    %v5573 = vunpack.c.l.b16 %v1361
    %v5574 = vunpack.c.h.b16 %v1361
    %v5575 = vunpack.c.l.b16 %v1362
    %v5576 = vunpack.c.h.b16 %v1362
    %v5577 = vunpack.c.l.b16 %v1363
    %v5578 = vunpack.c.h.b16 %v1363
    %v5579 = vunpack.c.l.b16 %v1364
    %v5580 = vunpack.c.h.b16 %v1364
    %v5581 = vunpack.c.l.b16 %v1365
    %v5582 = vunpack.c.h.b16 %v1365
    %v5583 = vunpack.c.l.b16 %v1366
    %v5584 = vunpack.c.h.b16 %v1366
    %v5585 = vunpack.c.l.b16 %v1367
    %v5586 = vunpack.c.h.b16 %v1367
    %v5587 = vunpack.c.l.b16 %v1368
    %v5588 = vunpack.c.h.b16 %v1368
    %v5589 = vunpack.c.l.b16 %v1369
    %v5590 = vunpack.c.h.b16 %v1369
    %v5591 = vunpack.c.l.b16 %v1370
    %v5592 = vunpack.c.h.b16 %v1370
    %v5593 = vunpack.c.l.b16 %v1371
    %v5594 = vunpack.c.h.b16 %v1371
    %v5595 = vunpack.c.l.b16 %v1372
    %v5596 = vunpack.c.h.b16 %v1372
    %v5597 = vunpack.c.l.b16 %v1373
    %v5598 = vunpack.c.h.b16 %v1373
    %v5599 = vunpack.c.l.b16 %v1374
    %v5600 = vunpack.c.h.b16 %v1374
    %v5601 = vunpack.c.l.b16 %v1375
    %v5602 = vunpack.c.h.b16 %v1375
    %v5603 = vunpack.c.l.b16 %v1376
    %v5604 = vunpack.c.h.b16 %v1376
    %v5605 = vunpack.c.l.b16 %v1377
    %v5606 = vunpack.c.h.b16 %v1377
    %v5607 = vunpack.c.l.b16 %v1378
    %v5608 = vunpack.c.h.b16 %v1378
    %v5609 = vunpack.c.l.b16 %v1379
    %v5610 = vunpack.c.h.b16 %v1379
    %v5611 = vunpack.c.l.b16 %v1380
    %v5612 = vunpack.c.h.b16 %v1380
    %v5613 = vunpack.c.l.b16 %v1381
    %v5614 = vunpack.c.h.b16 %v1381
    %v5615 = vunpack.c.l.b16 %v1382
    %v5616 = vunpack.c.h.b16 %v1382
    %v5617 = vunpack.c.l.b16 %v1383
    %v5618 = vunpack.c.h.b16 %v1383
    %v5619 = vunpack.c.l.b16 %v1384
    %v5620 = vunpack.c.h.b16 %v1384
    %v5621 = vunpack.c.l.b16 %v1385
    %v5622 = vunpack.c.h.b16 %v1385
    %v5623 = vunpack.c.l.b16 %v1386
    %v5624 = vunpack.c.h.b16 %v1386
    %v5625 = vunpack.c.l.b16 %v1387
    %v5626 = vunpack.c.h.b16 %v1387
    %v5627 = vunpack.c.l.b16 %v1388
    %v5628 = vunpack.c.h.b16 %v1388
    %v5629 = vunpack.c.l.b16 %v1389
    %v5630 = vunpack.c.h.b16 %v1389
    %v5631 = vunpack.c.l.b16 %v1390
    %v5632 = vunpack.c.h.b16 %v1390
    %v5633 = vunpack.c.l.b16 %v1391
    %v5634 = vunpack.c.h.b16 %v1391
    %v5635 = vunpack.c.l.b16 %v1392
    %v5636 = vunpack.c.h.b16 %v1392
    %v5637 = vunpack.c.l.b16 %v1393
    %v5638 = vunpack.c.h.b16 %v1393
    %v5639 = vunpack.c.l.b16 %v1394
    %v5640 = vunpack.c.h.b16 %v1394
    %v5641 = vunpack.c.l.b16 %v1395
    %v5642 = vunpack.c.h.b16 %v1395
    %v5643 = vunpack.c.l.b16 %v1396
    %v5644 = vunpack.c.h.b16 %v1396
    %v5645 = vunpack.c.l.b16 %v1397
    %v5646 = vunpack.c.h.b16 %v1397
    %v5647 = vunpack.c.l.b16 %v1398
    %v5648 = vunpack.c.h.b16 %v1398
    %v5649 = vunpack.c.l.b16 %v1399
    %v5650 = vunpack.c.h.b16 %v1399
    %v5651 = vunpack.c.l.b16 %v1400
    %v5652 = vunpack.c.h.b16 %v1400
    %v5653 = vunpack.c.l.b16 %v1401
    %v5654 = vunpack.c.h.b16 %v1401
    %v5655 = vunpack.c.l.b16 %v1402
    %v5656 = vunpack.c.h.b16 %v1402
    %v5657 = vunpack.c.l.b16 %v1403
    %v5658 = vunpack.c.h.b16 %v1403
    %v5659 = vunpack.c.l.b16 %v1404
    %v5660 = vunpack.c.h.b16 %v1404
    %v5661 = vunpack.c.l.b16 %v1405
    %v5662 = vunpack.c.h.b16 %v1405
    %v5663 = vunpack.c.l.b16 %v1406
    %v5664 = vunpack.c.h.b16 %v1406
    %v5665 = vunpack.c.l.b16 %v1407
    %v5666 = vunpack.c.h.b16 %v1407
    %v5667 = vunpack.c.l.b16 %v1408
    %v5668 = vunpack.c.h.b16 %v1408
    %v5669 = vunpack.c.l.b16 %v1409
    %v5670 = vunpack.c.h.b16 %v1409
    %v5671 = vunpack.c.l.b16 %v1410
    %v5672 = vunpack.c.h.b16 %v1410
    %v5673 = vunpack.c.l.b16 %v1411
    %v5674 = vunpack.c.h.b16 %v1411
    %v5675 = vunpack.c.l.b16 %v1412
    %v5676 = vunpack.c.h.b16 %v1412
    %v5677 = vunpack.c.l.b16 %v1413
    %v5678 = vunpack.c.h.b16 %v1413
    %v5679 = vunpack.c.l.b16 %v1414
    %v5680 = vunpack.c.h.b16 %v1414
    %v5681 = vunpack.c.l.b16 %v1415
    %v5682 = vunpack.c.h.b16 %v1415
    %v5683 = vunpack.c.l.b16 %v1416
    %v5684 = vunpack.c.h.b16 %v1416
    %v5685 = vunpack.c.l.b16 %v1417
    %v5686 = vunpack.c.h.b16 %v1417
    %v5687 = vunpack.c.l.b16 %v1418
    %v5688 = vunpack.c.h.b16 %v1418
    %v5689 = vunpack.c.l.b16 %v1419
    %v5690 = vunpack.c.h.b16 %v1419
    %v5691 = vunpack.c.l.b16 %v1420
    %v5692 = vunpack.c.h.b16 %v1420
    %v5693 = vunpack.c.l.b16 %v1421
    %v5694 = vunpack.c.h.b16 %v1421
    %v5695 = vunpack.c.l.b16 %v1422
    %v5696 = vunpack.c.h.b16 %v1422
    %v5697 = vunpack.c.l.b16 %v1423
    %v5698 = vunpack.c.h.b16 %v1423
    %v5699 = vunpack.c.l.b16 %v1424
    %v5700 = vunpack.c.h.b16 %v1424
    %v5701 = vunpack.c.l.b16 %v1425
    %v5702 = vunpack.c.h.b16 %v1425
    %v5703 = vunpack.c.l.b16 %v1426
    %v5704 = vunpack.c.h.b16 %v1426
    %v5705 = vunpack.c.l.b16 %v1427
    %v5706 = vunpack.c.h.b16 %v1427
    %v5707 = vunpack.c.l.b16 %v1428
    %v5708 = vunpack.c.h.b16 %v1428
    %v5709 = vunpack.c.l.b16 %v1429
    %v5710 = vunpack.c.h.b16 %v1429
    %v5711 = vunpack.c.l.b16 %v1430
    %v5712 = vunpack.c.h.b16 %v1430
    %v5713 = vunpack.c.l.b16 %v1431
    %v5714 = vunpack.c.h.b16 %v1431
    %v5715 = vunpack.c.l.b16 %v1432
    %v5716 = vunpack.c.h.b16 %v1432
    %v5717 = vunpack.c.l.b16 %v1433
    %v5718 = vunpack.c.h.b16 %v1433
    %v5719 = vunpack.c.l.b16 %v1434
    %v5720 = vunpack.c.h.b16 %v1434
    %v5721 = vunpack.c.l.b16 %v1435
    %v5722 = vunpack.c.h.b16 %v1435
    %v5723 = vunpack.c.l.b16 %v1436
    %v5724 = vunpack.c.h.b16 %v1436
    %v5725 = vunpack.c.l.b16 %v1437
    %v5726 = vunpack.c.h.b16 %v1437
    %v5727 = vunpack.c.l.b16 %v1438
    %v5728 = vunpack.c.h.b16 %v1438
    %v5729 = vunpack.c.l.b16 %v1439
    %v5730 = vunpack.c.h.b16 %v1439
    %v5731 = vunpack.c.l.b16 %v1440
    %v5732 = vunpack.c.h.b16 %v1440
    %v5733 = vunpack.c.l.b16 %v1441
    %v5734 = vunpack.c.h.b16 %v1441
    %v5735 = vunpack.c.l.b16 %v1442
    %v5736 = vunpack.c.h.b16 %v1442
    %v5737 = vunpack.c.l.b16 %v1443
    %v5738 = vunpack.c.h.b16 %v1443
    %v5739 = vunpack.c.l.b16 %v1444
    %v5740 = vunpack.c.h.b16 %v1444
    %v5741 = vunpack.c.l.b16 %v1445
    %v5742 = vunpack.c.h.b16 %v1445
    %v5743 = vunpack.c.l.b16 %v1446
    %v5744 = vunpack.c.h.b16 %v1446
    %v5745 = vunpack.c.l.b16 %v1447
    %v5746 = vunpack.c.h.b16 %v1447
    %v5747 = vunpack.c.l.b16 %v1448
    %v5748 = vunpack.c.h.b16 %v1448
    %v5749 = vunpack.c.l.b16 %v1449
    %v5750 = vunpack.c.h.b16 %v1449
    %v5751 = vunpack.c.l.b16 %v1450
    %v5752 = vunpack.c.h.b16 %v1450
    %v5753 = vunpack.c.l.b16 %v1451
    %v5754 = vunpack.c.h.b16 %v1451
    %v5755 = vunpack.c.l.b16 %v1452
    %v5756 = vunpack.c.h.b16 %v1452
    %v5757 = vunpack.c.l.b16 %v1453
    %v5758 = vunpack.c.h.b16 %v1453
    %v5759 = vunpack.c.l.b16 %v1454
    %v5760 = vunpack.c.h.b16 %v1454
    %v5761 = vunpack.c.l.b16 %v1455
    %v5762 = vunpack.c.h.b16 %v1455
    %v5763 = vunpack.c.l.b16 %v1456
    %v5764 = vunpack.c.h.b16 %v1456
    %v5765 = vunpack.c.l.b16 %v1457
    %v5766 = vunpack.c.h.b16 %v1457
    %v5767 = vunpack.c.l.b16 %v1458
    %v5768 = vunpack.c.h.b16 %v1458
    %v5769 = vunpack.c.l.b16 %v1459
    %v5770 = vunpack.c.h.b16 %v1459
    %v5771 = vunpack.c.l.b16 %v1460
    %v5772 = vunpack.c.h.b16 %v1460
    %v5773 = vunpack.c.l.b16 %v1461
    %v5774 = vunpack.c.h.b16 %v1461
    %v5775 = vunpack.c.l.b16 %v1462
    %v5776 = vunpack.c.h.b16 %v1462
    %v5777 = vunpack.c.l.b16 %v1463
    %v5778 = vunpack.c.h.b16 %v1463
    %v5779 = vunpack.c.l.b16 %v1464
    %v5780 = vunpack.c.h.b16 %v1464
    %v5781 = vunpack.c.l.b16 %v1465
    %v5782 = vunpack.c.h.b16 %v1465
    %v5783 = vunpack.c.l.b16 %v1466
    %v5784 = vunpack.c.h.b16 %v1466
    %v5785 = vunpack.c.l.b16 %v1467
    %v5786 = vunpack.c.h.b16 %v1467
    %v5787 = vunpack.c.l.b16 %v1468
    %v5788 = vunpack.c.h.b16 %v1468
    %v5789 = vunpack.c.l.b16 %v1469
    %v5790 = vunpack.c.h.b16 %v1469
    %v5791 = vunpack.c.l.b16 %v1470
    %v5792 = vunpack.c.h.b16 %v1470
    %v5793 = vunpack.c.l.b16 %v1471
    %v5794 = vunpack.c.h.b16 %v1471
    %v5795 = vunpack.c.l.b16 %v1472
    %v5796 = vunpack.c.h.b16 %v1472
    %v5797 = vunpack.c.l.b16 %v1473
    %v5798 = vunpack.c.h.b16 %v1473
    %v5799 = vunpack.c.l.b16 %v1474
    %v5800 = vunpack.c.h.b16 %v1474
    %v5801 = vunpack.c.l.b16 %v1475
    %v5802 = vunpack.c.h.b16 %v1475
    %v5803 = vunpack.c.l.b16 %v1476
    %v5804 = vunpack.c.h.b16 %v1476
    %v5805 = vunpack.c.l.b16 %v1477
    %v5806 = vunpack.c.h.b16 %v1477
    %v5807 = vunpack.c.l.b16 %v1478
    %v5808 = vunpack.c.h.b16 %v1478
    %v5809 = vunpack.c.l.b16 %v1479
    %v5810 = vunpack.c.h.b16 %v1479
    %v5811 = vunpack.c.l.b16 %v1480
    %v5812 = vunpack.c.h.b16 %v1480
    %v5813 = vunpack.c.l.b16 %v1481
    %v5814 = vunpack.c.h.b16 %v1481
    %v5815 = vunpack.c.l.b16 %v1482
    %v5816 = vunpack.c.h.b16 %v1482
    %v5817 = vunpack.c.l.b16 %v1483
    %v5818 = vunpack.c.h.b16 %v1483
    %v5819 = vunpack.c.l.b16 %v1484
    %v5820 = vunpack.c.h.b16 %v1484
    %v5821 = vunpack.c.l.b16 %v1485
    %v5822 = vunpack.c.h.b16 %v1485
    %v5823 = vunpack.c.l.b16 %v1486
    %v5824 = vunpack.c.h.b16 %v1486
    %v5825 = vunpack.c.l.b16 %v1487
    %v5826 = vunpack.c.h.b16 %v1487
    %v5827 = vunpack.c.l.b16 %v1488
    %v5828 = vunpack.c.h.b16 %v1488
    %v5829 = vunpack.c.l.b16 %v1489
    %v5830 = vunpack.c.h.b16 %v1489
    %v5831 = vunpack.c.l.b16 %v1490
    %v5832 = vunpack.c.h.b16 %v1490
    %v5833 = vunpack.c.l.b16 %v1491
    %v5834 = vunpack.c.h.b16 %v1491
    %v5835 = vunpack.c.l.b16 %v1492
    %v5836 = vunpack.c.h.b16 %v1492
    %v5837 = vunpack.c.l.b16 %v1493
    %v5838 = vunpack.c.h.b16 %v1493
    %v5839 = vunpack.c.l.b16 %v1494
    %v5840 = vunpack.c.h.b16 %v1494
    %v5841 = vunpack.c.l.b16 %v1495
    %v5842 = vunpack.c.h.b16 %v1495
    %v5843 = vunpack.c.l.b16 %v1496
    %v5844 = vunpack.c.h.b16 %v1496
    %v5845 = vunpack.c.l.b16 %v1497
    %v5846 = vunpack.c.h.b16 %v1497
    %v5847 = vunpack.c.l.b16 %v1498
    %v5848 = vunpack.c.h.b16 %v1498
    %v5849 = vunpack.c.l.b16 %v1499
    %v5850 = vunpack.c.h.b16 %v1499
    %v5851 = vunpack.c.l.b16 %v1500
    %v5852 = vunpack.c.h.b16 %v1500
    %v5853 = vunpack.c.l.b16 %v1501
    %v5854 = vunpack.c.h.b16 %v1501
    %v5855 = vunpack.c.l.b16 %v1502
    %v5856 = vunpack.c.h.b16 %v1502
    %v5857 = vunpack.c.l.b16 %v1503
    %v5858 = vunpack.c.h.b16 %v1503
    %v5859 = vunpack.c.l.b16 %v1504
    %v5860 = vunpack.c.h.b16 %v1504
    %v5861 = vunpack.c.l.b16 %v1505
    %v5862 = vunpack.c.h.b16 %v1505
    %v5863 = vunpack.c.l.b16 %v1506
    %v5864 = vunpack.c.h.b16 %v1506
    %v5865 = vunpack.c.l.b16 %v1507
    %v5866 = vunpack.c.h.b16 %v1507
    %v5867 = vunpack.c.l.b16 %v1508
    %v5868 = vunpack.c.h.b16 %v1508
    %v5869 = vunpack.c.l.b16 %v1509
    %v5870 = vunpack.c.h.b16 %v1509
    %v5871 = vunpack.c.l.b16 %v1510
    %v5872 = vunpack.c.h.b16 %v1510
    %v5873 = vunpack.c.l.b16 %v1511
    %v5874 = vunpack.c.h.b16 %v1511
    %v5875 = vunpack.c.l.b16 %v1512
    %v5876 = vunpack.c.h.b16 %v1512
    %v5877 = vunpack.c.l.b16 %v1513
    %v5878 = vunpack.c.h.b16 %v1513
    %v5879 = vunpack.c.l.b16 %v1514
    %v5880 = vunpack.c.h.b16 %v1514
    %v5881 = vunpack.c.l.b16 %v1515
    %v5882 = vunpack.c.h.b16 %v1515
    %v5883 = vunpack.c.l.b16 %v1516
    %v5884 = vunpack.c.h.b16 %v1516
    %v5885 = vunpack.c.l.b16 %v1517
    %v5886 = vunpack.c.h.b16 %v1517
    %v5887 = vunpack.c.l.b16 %v1518
    %v5888 = vunpack.c.h.b16 %v1518
    %v5889 = vunpack.c.l.b16 %v1519
    %v5890 = vunpack.c.h.b16 %v1519
    %v5891 = vunpack.c.l.b16 %v1520
    %v5892 = vunpack.c.h.b16 %v1520
    %v5893 = vunpack.c.l.b16 %v1521
    %v5894 = vunpack.c.h.b16 %v1521
    %v5895 = vunpack.c.l.b16 %v1522
    %v5896 = vunpack.c.h.b16 %v1522
    %v5897 = vunpack.c.l.b16 %v1523
    %v5898 = vunpack.c.h.b16 %v1523
    %v5899 = vunpack.c.l.b16 %v1524
    %v5900 = vunpack.c.h.b16 %v1524
    %v5901 = vunpack.c.l.b16 %v1525
    %v5902 = vunpack.c.h.b16 %v1525
    %v5903 = vunpack.c.l.b16 %v1526
    %v5904 = vunpack.c.h.b16 %v1526
    %v5905 = vunpack.c.l.b16 %v1527
    %v5906 = vunpack.c.h.b16 %v1527
    %v5907 = vunpack.c.l.b16 %v1528
    %v5908 = vunpack.c.h.b16 %v1528
    %v5909 = vunpack.c.l.b16 %v1529
    %v5910 = vunpack.c.h.b16 %v1529
    %v5911 = vunpack.c.l.b16 %v1530
    %v5912 = vunpack.c.h.b16 %v1530
    %v5913 = vunpack.c.l.b16 %v1531
    %v5914 = vunpack.c.h.b16 %v1531
    %v5915 = vunpack.c.l.b16 %v1532
    %v5916 = vunpack.c.h.b16 %v1532
    %v5917 = vunpack.c.l.b16 %v1533
    %v5918 = vunpack.c.h.b16 %v1533
    %v5919 = vunpack.c.l.b16 %v1534
    %v5920 = vunpack.c.h.b16 %v1534
    %v5921 = vunpack.c.l.b16 %v1535
    %v5922 = vunpack.c.h.b16 %v1535
    %v5923 = vunpack.c.l.b16 %v1536
    %v5924 = vunpack.c.h.b16 %v1536
    %v5925 = vunpack.c.l.b16 %v1537
    %v5926 = vunpack.c.h.b16 %v1537
    %v5927 = vunpack.c.l.b16 %v1538
    %v5928 = vunpack.c.h.b16 %v1538
    %v5929 = vunpack.c.l.b16 %v1539
    %v5930 = vunpack.c.h.b16 %v1539
    %v5931 = vunpack.c.l.b16 %v1540
    %v5932 = vunpack.c.h.b16 %v1540
    %v5933 = vunpack.c.l.b16 %v1541
    %v5934 = vunpack.c.h.b16 %v1541
    %v5935 = vunpack.c.l.b16 %v1542
    %v5936 = vunpack.c.h.b16 %v1542
    %v5937 = vunpack.c.l.b16 %v1543
    %v5938 = vunpack.c.h.b16 %v1543
    %v5939 = vunpack.c.l.b16 %v1544
    %v5940 = vunpack.c.h.b16 %v1544
    %v5941 = vunpack.c.l.b16 %v1545
    %v5942 = vunpack.c.h.b16 %v1545
    %v5943 = vunpack.c.l.b16 %v1546
    %v5944 = vunpack.c.h.b16 %v1546
    %v5945 = vunpack.c.l.b16 %v1547
    %v5946 = vunpack.c.h.b16 %v1547
    %v5947 = vunpack.c.l.b16 %v1548
    %v5948 = vunpack.c.h.b16 %v1548
    %v5949 = vunpack.c.l.b16 %v1549
    %v5950 = vunpack.c.h.b16 %v1549
    %v5951 = vunpack.c.l.b16 %v1550
    %v5952 = vunpack.c.h.b16 %v1550
    %v5953 = vunpack.c.l.b16 %v1551
    %v5954 = vunpack.c.h.b16 %v1551
    %v5955 = vunpack.c.l.b16 %v1552
    %v5956 = vunpack.c.h.b16 %v1552
    %v5957 = vunpack.c.l.b16 %v1553
    %v5958 = vunpack.c.h.b16 %v1553
    %v5959 = vunpack.c.l.b16 %v1554
    %v5960 = vunpack.c.h.b16 %v1554
    %v5961 = vunpack.c.l.b16 %v1555
    %v5962 = vunpack.c.h.b16 %v1555
    %v5963 = vunpack.c.l.b16 %v1556
    %v5964 = vunpack.c.h.b16 %v1556
    %v5965 = vunpack.c.l.b16 %v1557
    %v5966 = vunpack.c.h.b16 %v1557
    %v5967 = vunpack.c.l.b16 %v1558
    %v5968 = vunpack.c.h.b16 %v1558
    %v5969 = vunpack.c.l.b16 %v1559
    %v5970 = vunpack.c.h.b16 %v1559
    %v5971 = vunpack.c.l.b16 %v1560
    %v5972 = vunpack.c.h.b16 %v1560
    %v5973 = vunpack.c.l.b16 %v1561
    %v5974 = vunpack.c.h.b16 %v1561
    %v5975 = vunpack.c.l.b16 %v1562
    %v5976 = vunpack.c.h.b16 %v1562
    %v5977 = vunpack.c.l.b16 %v1563
    %v5978 = vunpack.c.h.b16 %v1563
    %v5979 = vunpack.c.l.b16 %v1564
    %v5980 = vunpack.c.h.b16 %v1564
    %v5981 = vunpack.c.l.b16 %v1565
    %v5982 = vunpack.c.h.b16 %v1565
    %v5983 = vunpack.c.l.b16 %v1566
    %v5984 = vunpack.c.h.b16 %v1566
    %v5985 = vunpack.c.l.b16 %v1567
    %v5986 = vunpack.c.h.b16 %v1567
    %v5987 = vunpack.c.l.b16 %v1568
    %v5988 = vunpack.c.h.b16 %v1568
    %v5989 = vunpack.c.l.b16 %v1569
    %v5990 = vunpack.c.h.b16 %v1569
    %v5991 = vunpack.c.l.b16 %v1570
    %v5992 = vunpack.c.h.b16 %v1570
    %v5993 = vunpack.c.l.b16 %v1571
    %v5994 = vunpack.c.h.b16 %v1571
    %v5995 = vunpack.c.l.b16 %v1572
    %v5996 = vunpack.c.h.b16 %v1572
    %v5997 = vunpack.c.l.b16 %v1573
    %v5998 = vunpack.c.h.b16 %v1573
    %v5999 = vunpack.c.l.b16 %v1574
    %v6000 = vunpack.c.h.b16 %v1574
    %v6001 = vunpack.c.l.b16 %v1575
    %v6002 = vunpack.c.h.b16 %v1575
    %v6003 = vunpack.c.l.b16 %v1576
    %v6004 = vunpack.c.h.b16 %v1576
    %v6005 = vunpack.c.l.b16 %v1577
    %v6006 = vunpack.c.h.b16 %v1577
    %v6007 = vunpack.c.l.b16 %v1578
    %v6008 = vunpack.c.h.b16 %v1578
    %v6009 = vunpack.c.l.b16 %v1579
    %v6010 = vunpack.c.h.b16 %v1579
    %v6011 = vunpack.c.l.b16 %v1580
    %v6012 = vunpack.c.h.b16 %v1580
    %v6013 = vunpack.c.l.b16 %v1581
    %v6014 = vunpack.c.h.b16 %v1581
    %v6015 = vunpack.c.l.b16 %v1582
    %v6016 = vunpack.c.h.b16 %v1582
    %v6017 = vunpack.c.l.b16 %v1583
    %v6018 = vunpack.c.h.b16 %v1583
    %v6019 = vunpack.c.l.b16 %v1584
    %v6020 = vunpack.c.h.b16 %v1584
    %v6021 = vunpack.c.l.b16 %v1585
    %v6022 = vunpack.c.h.b16 %v1585
    %v6023 = vunpack.c.l.b16 %v1586
    %v6024 = vunpack.c.h.b16 %v1586
    %v6025 = vunpack.c.l.b16 %v1587
    %v6026 = vunpack.c.h.b16 %v1587
    %v6027 = vunpack.c.l.b16 %v1588
    %v6028 = vunpack.c.h.b16 %v1588
    %v6029 = vunpack.c.l.b16 %v1589
    %v6030 = vunpack.c.h.b16 %v1589
    %v6031 = vunpack.c.l.b16 %v1590
    %v6032 = vunpack.c.h.b16 %v1590
    %v6033 = vunpack.c.l.b16 %v1591
    %v6034 = vunpack.c.h.b16 %v1591
    %v6035 = vunpack.c.l.b16 %v1592
    %v6036 = vunpack.c.h.b16 %v1592
    %v6037 = vunpack.c.l.b16 %v1593
    %v6038 = vunpack.c.h.b16 %v1593
    %v6039 = vunpack.c.l.b16 %v1594
    %v6040 = vunpack.c.h.b16 %v1594
    %v6041 = vunpack.c.l.b16 %v1595
    %v6042 = vunpack.c.h.b16 %v1595
    %v6043 = vunpack.c.l.b16 %v1596
    %v6044 = vunpack.c.h.b16 %v1596
    %v6045 = vunpack.c.l.b16 %v1597
    %v6046 = vunpack.c.h.b16 %v1597
    %v6047 = vunpack.c.l.b16 %v1598
    %v6048 = vunpack.c.h.b16 %v1598
    %v6049 = vunpack.c.l.b16 %v1599
    %v6050 = vunpack.c.h.b16 %v1599
    %v6051 = vunpack.c.l.b16 %v1600
    %v6052 = vunpack.c.h.b16 %v1600
    %v6053 = vunpack.c.l.b16 %v1601
    %v6054 = vunpack.c.h.b16 %v1601
    %v6055 = vunpack.c.l.b16 %v1602
    %v6056 = vunpack.c.h.b16 %v1602
    %v6057 = vunpack.c.l.b16 %v1603
    %v6058 = vunpack.c.h.b16 %v1603
    %v6059 = vunpack.c.l.b16 %v1604
    %v6060 = vunpack.c.h.b16 %v1604
    %v6061 = vunpack.c.l.b16 %v1605
    %v6062 = vunpack.c.h.b16 %v1605
    %v6063 = vunpack.c.l.b16 %v1606
    %v6064 = vunpack.c.h.b16 %v1606
    %v6065 = vunpack.c.l.b16 %v1607
    %v6066 = vunpack.c.h.b16 %v1607
    %v6067 = vunpack.c.l.b16 %v1608
    %v6068 = vunpack.c.h.b16 %v1608
    %v6069 = vunpack.c.l.b16 %v1609
    %v6070 = vunpack.c.h.b16 %v1609
    %v6071 = vunpack.c.l.b16 %v1610
    %v6072 = vunpack.c.h.b16 %v1610
    %v6073 = vunpack.c.l.b16 %v1611
    %v6074 = vunpack.c.h.b16 %v1611
    %v6075 = vunpack.c.l.b16 %v1612
    %v6076 = vunpack.c.h.b16 %v1612
    %v6077 = vunpack.c.l.b16 %v1613
    %v6078 = vunpack.c.h.b16 %v1613
    %v6079 = vunpack.c.l.b16 %v1614
    %v6080 = vunpack.c.h.b16 %v1614
    %v6081 = vunpack.c.l.b16 %v1615
    %v6082 = vunpack.c.h.b16 %v1615
    %v6083 = vunpack.c.l.b16 %v1616
    %v6084 = vunpack.c.h.b16 %v1616
    %v6085 = vunpack.c.l.b16 %v1617
    %v6086 = vunpack.c.h.b16 %v1617
    %v6087 = vunpack.c.l.b16 %v1618
    %v6088 = vunpack.c.h.b16 %v1618
    %v6089 = vunpack.c.l.b16 %v1619
    %v6090 = vunpack.c.h.b16 %v1619
    %v6091 = vunpack.c.l.b16 %v1620
    %v6092 = vunpack.c.h.b16 %v1620
    %v6093 = vunpack.c.l.b16 %v1621
    %v6094 = vunpack.c.h.b16 %v1621
    %v6095 = vunpack.c.l.b16 %v1622
    %v6096 = vunpack.c.h.b16 %v1622
    %v6097 = vunpack.c.l.b16 %v1623
    %v6098 = vunpack.c.h.b16 %v1623
    %v6099 = vunpack.c.l.b16 %v1624
    %v6100 = vunpack.c.h.b16 %v1624
    %v6101 = vunpack.c.l.b16 %v1625
    %v6102 = vunpack.c.h.b16 %v1625
    %v6103 = vunpack.c.l.b16 %v1626
    %v6104 = vunpack.c.h.b16 %v1626
    %v6105 = vunpack.c.l.b16 %v1627
    %v6106 = vunpack.c.h.b16 %v1627
    %v6107 = vunpack.c.l.b16 %v1628
    %v6108 = vunpack.c.h.b16 %v1628
    %v6109 = vunpack.c.l.b16 %v1629
    %v6110 = vunpack.c.h.b16 %v1629
    %v6111 = vunpack.c.l.b16 %v1630
    %v6112 = vunpack.c.h.b16 %v1630
    %v6113 = vunpack.c.l.b16 %v1631
    %v6114 = vunpack.c.h.b16 %v1631
    %v6115 = vunpack.c.l.b16 %v1632
    %v6116 = vunpack.c.h.b16 %v1632
    %v6117 = vunpack.c.l.b16 %v1633
    %v6118 = vunpack.c.h.b16 %v1633
    %v6119 = vunpack.c.l.b16 %v1634
    %v6120 = vunpack.c.h.b16 %v1634
    %v6121 = vunpack.c.l.b16 %v1635
    %v6122 = vunpack.c.h.b16 %v1635
    %v6123 = vunpack.c.l.b16 %v1636
    %v6124 = vunpack.c.h.b16 %v1636
    %v6125 = vunpack.c.l.b16 %v1637
    %v6126 = vunpack.c.h.b16 %v1637
    %v6127 = vunpack.c.l.b16 %v1638
    %v6128 = vunpack.c.h.b16 %v1638
    %v6129 = vunpack.c.l.b16 %v1639
    %v6130 = vunpack.c.h.b16 %v1639
    %v6131 = vunpack.c.l.b16 %v1640
    %v6132 = vunpack.c.h.b16 %v1640
    %v6133 = vunpack.c.l.b16 %v1641
    %v6134 = vunpack.c.h.b16 %v1641
    %v6135 = vunpack.c.l.b16 %v1642
    %v6136 = vunpack.c.h.b16 %v1642
    %v6137 = vunpack.c.l.b16 %v1643
    %v6138 = vunpack.c.h.b16 %v1643
    %v6139 = vunpack.c.l.b16 %v1644
    %v6140 = vunpack.c.h.b16 %v1644
    %v6141 = vunpack.c.l.b16 %v1645
    %v6142 = vunpack.c.h.b16 %v1645
    %v6143 = vunpack.c.l.b16 %v1646
    %v6144 = vunpack.c.h.b16 %v1646
    %v6145 = vunpack.c.l.b16 %v1647
    %v6146 = vunpack.c.h.b16 %v1647
    %v6147 = vunpack.c.l.b16 %v1648
    %v6148 = vunpack.c.h.b16 %v1648
    %v6149 = vunpack.c.l.b16 %v1649
    %v6150 = vunpack.c.h.b16 %v1649
    %v6151 = vunpack.c.l.b16 %v1650
    %v6152 = vunpack.c.h.b16 %v1650
    %v6153 = vunpack.c.l.b16 %v1651
    %v6154 = vunpack.c.h.b16 %v1651
    %v6155 = vunpack.c.l.b16 %v1652
    %v6156 = vunpack.c.h.b16 %v1652
    %v6157 = vunpack.c.l.b16 %v1653
    %v6158 = vunpack.c.h.b16 %v1653
    %v6159 = vunpack.c.l.b16 %v1654
    %v6160 = vunpack.c.h.b16 %v1654
    %v6161 = vunpack.c.l.b16 %v1655
    %v6162 = vunpack.c.h.b16 %v1655
    %v6163 = vunpack.c.l.b16 %v1656
    %v6164 = vunpack.c.h.b16 %v1656
    %v6165 = vunpack.c.l.b16 %v1657
    %v6166 = vunpack.c.h.b16 %v1657
    %v6167 = vunpack.c.l.b16 %v1658
    %v6168 = vunpack.c.h.b16 %v1658
    %v6169 = vunpack.c.l.b16 %v1659
    %v6170 = vunpack.c.h.b16 %v1659
    %v6171 = vunpack.c.l.b16 %v1660
    %v6172 = vunpack.c.h.b16 %v1660
    %v6173 = vunpack.c.l.b16 %v1661
    %v6174 = vunpack.c.h.b16 %v1661
    %v6175 = vunpack.c.l.b16 %v1662
    %v6176 = vunpack.c.h.b16 %v1662
    %v6177 = vunpack.c.l.b16 %v1663
    %v6178 = vunpack.c.h.b16 %v1663
    %v6179 = vunpack.c.l.b16 %v1664
    %v6180 = vunpack.c.h.b16 %v1664
    %v6181 = vunpack.c.l.b16 %v1665
    %v6182 = vunpack.c.h.b16 %v1665
    %v6183 = vunpack.c.l.b16 %v1666
    %v6184 = vunpack.c.h.b16 %v1666
    %v6185 = vunpack.c.l.b16 %v1667
    %v6186 = vunpack.c.h.b16 %v1667
    %v6187 = vunpack.c.l.b16 %v1668
    %v6188 = vunpack.c.h.b16 %v1668
    %v6189 = vunpack.c.l.b16 %v1669
    %v6190 = vunpack.c.h.b16 %v1669
    %v6191 = vunpack.c.l.b16 %v1670
    %v6192 = vunpack.c.h.b16 %v1670
    %v6193 = vunpack.c.l.b16 %v1671
    %v6194 = vunpack.c.h.b16 %v1671
    %v6195 = vunpack.c.l.b16 %v1672
    %v6196 = vunpack.c.h.b16 %v1672
    %v6197 = vunpack.c.l.b16 %v1673
    %v6198 = vunpack.c.h.b16 %v1673
    %v6199 = vunpack.c.l.b16 %v1674
    %v6200 = vunpack.c.h.b16 %v1674
    %v6201 = vunpack.c.l.b16 %v1675
    %v6202 = vunpack.c.h.b16 %v1675
    %v6203 = vunpack.c.l.b16 %v1676
    %v6204 = vunpack.c.h.b16 %v1676
    %v6205 = vunpack.c.l.b16 %v1677
    %v6206 = vunpack.c.h.b16 %v1677
    %v6207 = vunpack.c.l.b16 %v1678
    %v6208 = vunpack.c.h.b16 %v1678
    %v6209 = vunpack.c.l.b16 %v1679
    %v6210 = vunpack.c.h.b16 %v1679
    %v6211 = vunpack.c.l.b16 %v1680
    %v6212 = vunpack.c.h.b16 %v1680
    %v6213 = vunpack.c.l.b16 %v1681
    %v6214 = vunpack.c.h.b16 %v1681
    %v6215 = vunpack.c.l.b16 %v1682
    %v6216 = vunpack.c.h.b16 %v1682
    %v6217 = vunpack.c.l.b16 %v1683
    %v6218 = vunpack.c.h.b16 %v1683
    %v6219 = vunpack.c.l.b16 %v1684
    %v6220 = vunpack.c.h.b16 %v1684
    %v6221 = vunpack.c.l.b16 %v1685
    %v6222 = vunpack.c.h.b16 %v1685
    %v6223 = vunpack.c.l.b16 %v1686
    %v6224 = vunpack.c.h.b16 %v1686
    %v6225 = vunpack.c.l.b16 %v1687
    %v6226 = vunpack.c.h.b16 %v1687
    %v6227 = vunpack.c.l.b16 %v1688
    %v6228 = vunpack.c.h.b16 %v1688
    %v6229 = vunpack.c.l.b16 %v1689
    %v6230 = vunpack.c.h.b16 %v1689
    %v6231 = vunpack.c.l.b16 %v1690
    %v6232 = vunpack.c.h.b16 %v1690
    %v6233 = vunpack.c.l.b16 %v1691
    %v6234 = vunpack.c.h.b16 %v1691
    %v6235 = vunpack.c.l.b16 %v1692
    %v6236 = vunpack.c.h.b16 %v1692
    %v6237 = vunpack.c.l.b16 %v1693
    %v6238 = vunpack.c.h.b16 %v1693
    %v6239 = vunpack.c.l.b16 %v1694
    %v6240 = vunpack.c.h.b16 %v1694
    %v6241 = vunpack.c.l.b16 %v1695
    %v6242 = vunpack.c.h.b16 %v1695
    %v6243 = vunpack.c.l.b16 %v1696
    %v6244 = vunpack.c.h.b16 %v1696
    %v6245 = vunpack.c.l.b16 %v1697
    %v6246 = vunpack.c.h.b16 %v1697
    %v6247 = vunpack.c.l.b16 %v1698
    %v6248 = vunpack.c.h.b16 %v1698
    %v6249 = vunpack.c.l.b16 %v1699
    %v6250 = vunpack.c.h.b16 %v1699
    %v6251 = vunpack.c.l.b16 %v1700
    %v6252 = vunpack.c.h.b16 %v1700
    %v6253 = vunpack.c.l.b16 %v1701
    %v6254 = vunpack.c.h.b16 %v1701
    %v6255 = vunpack.c.l.b16 %v1702
    %v6256 = vunpack.c.h.b16 %v1702
    %v6257 = vunpack.c.l.b16 %v1703
    %v6258 = vunpack.c.h.b16 %v1703
    %v6259 = vunpack.c.l.b16 %v1704
    %v6260 = vunpack.c.h.b16 %v1704
    %v6261 = vunpack.c.l.b16 %v1705
    %v6262 = vunpack.c.h.b16 %v1705
    %v6263 = vunpack.c.l.b16 %v1706
    %v6264 = vunpack.c.h.b16 %v1706
    %v6265 = vunpack.c.l.b16 %v1707
    %v6266 = vunpack.c.h.b16 %v1707
    %v6267 = vunpack.c.l.b16 %v1708
    %v6268 = vunpack.c.h.b16 %v1708
    %v6269 = vunpack.c.l.b16 %v1709
    %v6270 = vunpack.c.h.b16 %v1709
    %v6271 = vunpack.c.l.b16 %v1710
    %v6272 = vunpack.c.h.b16 %v1710
    %v6273 = vunpack.c.l.b16 %v1711
    %v6274 = vunpack.c.h.b16 %v1711
    %v6275 = vunpack.c.l.b16 %v1712
    %v6276 = vunpack.c.h.b16 %v1712
    %v6277 = vunpack.c.l.b16 %v1713
    %v6278 = vunpack.c.h.b16 %v1713
    %v6279 = vunpack.c.l.b16 %v1714
    %v6280 = vunpack.c.h.b16 %v1714
    %v6281 = vunpack.c.l.b16 %v1715
    %v6282 = vunpack.c.h.b16 %v1715
    %v6283 = vunpack.c.l.b16 %v1716
    %v6284 = vunpack.c.h.b16 %v1716
    %v6285 = vunpack.c.l.b16 %v1717
    %v6286 = vunpack.c.h.b16 %v1717
    %v6287 = vunpack.c.l.b16 %v1718
    %v6288 = vunpack.c.h.b16 %v1718
    %v6289 = vunpack.c.l.b16 %v1719
    %v6290 = vunpack.c.h.b16 %v1719
    %v6291 = vunpack.c.l.b16 %v1720
    %v6292 = vunpack.c.h.b16 %v1720
    %v6293 = vunpack.c.l.b16 %v1721
    %v6294 = vunpack.c.h.b16 %v1721
    %v6295 = vunpack.c.l.b16 %v1722
    %v6296 = vunpack.c.h.b16 %v1722
    %v6297 = vunpack.c.l.b16 %v1723
    %v6298 = vunpack.c.h.b16 %v1723
    %v6299 = vunpack.c.l.b16 %v1724
    %v6300 = vunpack.c.h.b16 %v1724
    %v6301 = vunpack.c.l.b16 %v1725
    %v6302 = vunpack.c.h.b16 %v1725
    %v6303 = vunpack.c.l.b16 %v1726
    %v6304 = vunpack.c.h.b16 %v1726
    %v6305 = vunpack.c.l.b16 %v1727
    %v6306 = vunpack.c.h.b16 %v1727
    %v6307 = vunpack.c.l.b16 %v1728
    %v6308 = vunpack.c.h.b16 %v1728
    %v6309 = vunpack.c.l.b16 %v1729
    %v6310 = vunpack.c.h.b16 %v1729
    %v6311 = vunpack.c.l.b16 %v1730
    %v6312 = vunpack.c.h.b16 %v1730
    %v6313 = vunpack.c.l.b16 %v1731
    %v6314 = vunpack.c.h.b16 %v1731
    %v6315 = vunpack.c.l.b16 %v1732
    %v6316 = vunpack.c.h.b16 %v1732
    %v6317 = vunpack.c.l.b16 %v1733
    %v6318 = vunpack.c.h.b16 %v1733
    %v6319 = vunpack.c.l.b16 %v1734
    %v6320 = vunpack.c.h.b16 %v1734
    %v6321 = vunpack.c.l.b16 %v1735
    %v6322 = vunpack.c.h.b16 %v1735
    %v6323 = vunpack.c.l.b16 %v1736
    %v6324 = vunpack.c.h.b16 %v1736
    %v6325 = vunpack.c.l.b16 %v1737
    %v6326 = vunpack.c.h.b16 %v1737
    %v6327 = vunpack.c.l.b16 %v1738
    %v6328 = vunpack.c.h.b16 %v1738
    %v6329 = vunpack.c.l.b16 %v1739
    %v6330 = vunpack.c.h.b16 %v1739
    %v6331 = vunpack.c.l.b16 %v1740
    %v6332 = vunpack.c.h.b16 %v1740
    %v6333 = vunpack.c.l.b16 %v1741
    %v6334 = vunpack.c.h.b16 %v1741
    %v6335 = vunpack.c.l.b16 %v1742
    %v6336 = vunpack.c.h.b16 %v1742
    %v6337 = vunpack.c.l.b16 %v1743
    %v6338 = vunpack.c.h.b16 %v1743
    %v6339 = vunpack.c.l.b16 %v1744
    %v6340 = vunpack.c.h.b16 %v1744
    %v6341 = vunpack.c.l.b16 %v1745
    %v6342 = vunpack.c.h.b16 %v1745
    %v6343 = vunpack.c.l.b16 %v1746
    %v6344 = vunpack.c.h.b16 %v1746
    %v6345 = vunpack.c.l.b16 %v1747
    %v6346 = vunpack.c.h.b16 %v1747
    %v6347 = vunpack.c.l.b16 %v1748
    %v6348 = vunpack.c.h.b16 %v1748
    %v6349 = vunpack.c.l.b16 %v1749
    %v6350 = vunpack.c.h.b16 %v1749
    %v6351 = vunpack.c.l.b16 %v1750
    %v6352 = vunpack.c.h.b16 %v1750
    %v6353 = vunpack.c.l.b16 %v1751
    %v6354 = vunpack.c.h.b16 %v1751
    %v6355 = vunpack.c.l.b16 %v1752
    %v6356 = vunpack.c.h.b16 %v1752
    %v6357 = vunpack.c.l.b16 %v1753
    %v6358 = vunpack.c.h.b16 %v1753
    %v6359 = vunpack.c.l.b16 %v1754
    %v6360 = vunpack.c.h.b16 %v1754
    %v6361 = vunpack.c.l.b16 %v1755
    %v6362 = vunpack.c.h.b16 %v1755
    %v6363 = vunpack.c.l.b16 %v1756
    %v6364 = vunpack.c.h.b16 %v1756
    %v6365 = vunpack.c.l.b16 %v1757
    %v6366 = vunpack.c.h.b16 %v1757
    %v6367 = vunpack.c.l.b16 %v1758
    %v6368 = vunpack.c.h.b16 %v1758
    %v6369 = vunpack.c.l.b16 %v1759
    %v6370 = vunpack.c.h.b16 %v1759
    %v6371 = vunpack.c.l.b16 %v1760
    %v6372 = vunpack.c.h.b16 %v1760
    %v6373 = vunpack.c.l.b16 %v1761
    %v6374 = vunpack.c.h.b16 %v1761
    %v6375 = vunpack.c.l.b16 %v1762
    %v6376 = vunpack.c.h.b16 %v1762
    %v6377 = vunpack.c.l.b16 %v1763
    %v6378 = vunpack.c.h.b16 %v1763
    %v6379 = vunpack.c.l.b16 %v1764
    %v6380 = vunpack.c.h.b16 %v1764
    %v6381 = vunpack.c.l.b16 %v1765
    %v6382 = vunpack.c.h.b16 %v1765
    %v6383 = vunpack.c.l.b16 %v1766
    %v6384 = vunpack.c.h.b16 %v1766
    %v6385 = vunpack.c.l.b16 %v1767
    %v6386 = vunpack.c.h.b16 %v1767
    %v6387 = vunpack.c.l.b16 %v1768
    %v6388 = vunpack.c.h.b16 %v1768
    %v6389 = vunpack.c.l.b16 %v1769
    %v6390 = vunpack.c.h.b16 %v1769
    %v6391 = vunpack.c.l.b16 %v1770
    %v6392 = vunpack.c.h.b16 %v1770
    %v6393 = vunpack.c.l.b16 %v1771
    %v6394 = vunpack.c.h.b16 %v1771
    %v6395 = vunpack.c.l.b16 %v1772
    %v6396 = vunpack.c.h.b16 %v1772
    %v6397 = vunpack.c.l.b16 %v1773
    %v6398 = vunpack.c.h.b16 %v1773
    %v6399 = vunpack.c.l.b16 %v1774
    %v6400 = vunpack.c.h.b16 %v1774
    %v6401 = vunpack.c.l.b16 %v1775
    %v6402 = vunpack.c.h.b16 %v1775
    %v6403 = vunpack.c.l.b16 %v1776
    %v6404 = vunpack.c.h.b16 %v1776
    %v6405 = vunpack.c.l.b16 %v1777
    %v6406 = vunpack.c.h.b16 %v1777
    %v6407 = vunpack.c.l.b16 %v1778
    %v6408 = vunpack.c.h.b16 %v1778
    %v6409 = vunpack.c.l.b16 %v1779
    %v6410 = vunpack.c.h.b16 %v1779
    %v6411 = vunpack.c.l.b16 %v1780
    %v6412 = vunpack.c.h.b16 %v1780
    %v6413 = vunpack.c.l.b16 %v1781
    %v6414 = vunpack.c.h.b16 %v1781
    %v6415 = vunpack.c.l.b16 %v1782
    %v6416 = vunpack.c.h.b16 %v1782
    %v6417 = vunpack.c.l.b16 %v1783
    %v6418 = vunpack.c.h.b16 %v1783
    %v6419 = vunpack.c.l.b16 %v1784
    %v6420 = vunpack.c.h.b16 %v1784
    %v6421 = vunpack.c.l.b16 %v1785
    %v6422 = vunpack.c.h.b16 %v1785
    %v6423 = vunpack.c.l.b16 %v1786
    %v6424 = vunpack.c.h.b16 %v1786
    %v6425 = vunpack.c.l.b16 %v1787
    %v6426 = vunpack.c.h.b16 %v1787
    %v6427 = vunpack.c.l.b16 %v1788
    %v6428 = vunpack.c.h.b16 %v1788
    %v6429 = vunpack.c.l.b16 %v1789
    %v6430 = vunpack.c.h.b16 %v1789
    %v6431 = vunpack.c.l.b16 %v1790
    %v6432 = vunpack.c.h.b16 %v1790
    %v6433 = vunpack.c.l.b16 %v1791
    %v6434 = vunpack.c.h.b16 %v1791
    %v6435 = vunpack.c.l.b16 %v1792
    %v6436 = vunpack.c.h.b16 %v1792
    %v6437 = vunpack.c.l.b16 %v1793
    %v6438 = vunpack.c.h.b16 %v1793
    %v6439 = vunpack.c.l.b16 %v1794
    %v6440 = vunpack.c.h.b16 %v1794
    %v6441 = vunpack.c.l.b16 %v1795
    %v6442 = vunpack.c.h.b16 %v1795
    %v6443 = vunpack.c.l.b16 %v1796
    %v6444 = vunpack.c.h.b16 %v1796
    %v6445 = vunpack.c.l.b16 %v1797
    %v6446 = vunpack.c.h.b16 %v1797
    %v6447 = vpack.c.b16 %v3383, %v3375
    %v6448 = vpack.c.b16 %v3384, %v3376
    %v6449 = vpack.c.b16 %v3385, %v3377
    %v6450 = vpack.c.b16 %v3386, %v3378
    %v6451 = vpack.c.b16 %v3387, %v3379
    %v6452 = vpack.c.b16 %v3388, %v3380
    %v6453 = vpack.c.b16 %v3389, %v3381
    %v6454 = vpack.c.b16 %v3390, %v3382
    %v6455 = vpack.c.b16 %v3399, %v3391
    %v6456 = vpack.c.b16 %v3400, %v3392
    %v6457 = vpack.c.b16 %v3401, %v3393
    %v6458 = vpack.c.b16 %v3402, %v3394
    %v6459 = vpack.c.b16 %v3403, %v3395
    %v6460 = vpack.c.b16 %v3404, %v3396
    %v6461 = vpack.c.b16 %v3405, %v3397
    %v6462 = vpack.c.b16 %v3406, %v3398
    %v6463 = vpack.c.b16 %v3415, %v3407
    %v6464 = vpack.c.b16 %v3416, %v3408
    %v6465 = vpack.c.b16 %v3417, %v3409
    %v6466 = vpack.c.b16 %v3418, %v3410
    %v6467 = vpack.c.b16 %v3419, %v3411
    %v6468 = vpack.c.b16 %v3420, %v3412
    %v6469 = vpack.c.b16 %v3421, %v3413
    %v6470 = vpack.c.b16 %v3422, %v3414
    %v6471 = vpack.c.b16 %v3431, %v3423
    %v6472 = vpack.c.b16 %v3432, %v3424
    %v6473 = vpack.c.b16 %v3433, %v3425
    %v6474 = vpack.c.b16 %v3434, %v3426
    %v6475 = vpack.c.b16 %v3435, %v3427
    %v6476 = vpack.c.b16 %v3436, %v3428
    %v6477 = vpack.c.b16 %v3437, %v3429
    %v6478 = vpack.c.b16 %v3438, %v3430
    %v6479 = vpack.c.b16 %v3447, %v3439
    %v6480 = vpack.c.b16 %v3448, %v3440
    %v6481 = vpack.c.b16 %v3449, %v3441
    %v6482 = vpack.c.b16 %v3450, %v3442
    %v6483 = vpack.c.b16 %v3451, %v3443
    %v6484 = vpack.c.b16 %v3452, %v3444
    %v6485 = vpack.c.b16 %v3453, %v3445
    %v6486 = vpack.c.b16 %v3454, %v3446
    %v6487 = vpack.c.b16 %v3463, %v3455
    %v6488 = vpack.c.b16 %v3464, %v3456
    %v6489 = vpack.c.b16 %v3465, %v3457
    %v6490 = vpack.c.b16 %v3466, %v3458
    %v6491 = vpack.c.b16 %v3467, %v3459
    %v6492 = vpack.c.b16 %v3468, %v3460
    %v6493 = vpack.c.b16 %v3469, %v3461
    %v6494 = vpack.c.b16 %v3470, %v3462
    %v6495 = vpack.c.b16 %v3479, %v3471
    %v6496 = vpack.c.b16 %v3480, %v3472
    %v6497 = vpack.c.b16 %v3481, %v3473
    %v6498 = vpack.c.b16 %v3482, %v3474
    %v6499 = vpack.c.b16 %v3483, %v3475
    %v6500 = vpack.c.b16 %v3484, %v3476
    %v6501 = vpack.c.b16 %v3485, %v3477
    %v6502 = vpack.c.b16 %v3486, %v3478
    %v6503 = vpack.c.b16 %v3495, %v3487
    %v6504 = vpack.c.b16 %v3496, %v3488
    %v6505 = vpack.c.b16 %v3497, %v3489
    %v6506 = vpack.c.b16 %v3498, %v3490
    %v6507 = vpack.c.b16 %v3499, %v3491
    %v6508 = vpack.c.b16 %v3500, %v3492
    %v6509 = vpack.c.b16 %v3501, %v3493
    %v6510 = vpack.c.b16 %v3502, %v3494
    %v6511 = vpack.c.b16 %v3511, %v3503
    %v6512 = vpack.c.b16 %v3512, %v3504
    %v6513 = vpack.c.b16 %v3513, %v3505
    %v6514 = vpack.c.b16 %v3514, %v3506
    %v6515 = vpack.c.b16 %v3515, %v3507
    %v6516 = vpack.c.b16 %v3516, %v3508
    %v6517 = vpack.c.b16 %v3517, %v3509
    %v6518 = vpack.c.b16 %v3518, %v3510
    %v6519 = vpack.c.b16 %v3527, %v3519
    %v6520 = vpack.c.b16 %v3528, %v3520
    %v6521 = vpack.c.b16 %v3529, %v3521
    %v6522 = vpack.c.b16 %v3530, %v3522
    %v6523 = vpack.c.b16 %v3531, %v3523
    %v6524 = vpack.c.b16 %v3532, %v3524
    %v6525 = vpack.c.b16 %v3533, %v3525
    %v6526 = vpack.c.b16 %v3534, %v3526
    %v6527 = vpack.c.b16 %v3543, %v3535
    %v6528 = vpack.c.b16 %v3544, %v3536
    %v6529 = vpack.c.b16 %v3545, %v3537
    %v6530 = vpack.c.b16 %v3546, %v3538
    %v6531 = vpack.c.b16 %v3547, %v3539
    %v6532 = vpack.c.b16 %v3548, %v3540
    %v6533 = vpack.c.b16 %v3549, %v3541
    %v6534 = vpack.c.b16 %v3550, %v3542
    %v6535 = vpack.c.b16 %v3559, %v3551
    %v6536 = vpack.c.b16 %v3560, %v3552
    %v6537 = vpack.c.b16 %v3561, %v3553
    %v6538 = vpack.c.b16 %v3562, %v3554
    %v6539 = vpack.c.b16 %v3563, %v3555
    %v6540 = vpack.c.b16 %v3564, %v3556
    %v6541 = vpack.c.b16 %v3565, %v3557
    %v6542 = vpack.c.b16 %v3566, %v3558
    %v6543 = vpack.c.b16 %v3575, %v3567
    %v6544 = vpack.c.b16 %v3576, %v3568
    %v6545 = vpack.c.b16 %v3577, %v3569
    %v6546 = vpack.c.b16 %v3578, %v3570
    %v6547 = vpack.c.b16 %v3579, %v3571
    %v6548 = vpack.c.b16 %v3580, %v3572
    %v6549 = vpack.c.b16 %v3581, %v3573
    %v6550 = vpack.c.b16 %v3582, %v3574
    %v6551 = vpack.c.b16 %v3591, %v3583
    %v6552 = vpack.c.b16 %v3592, %v3584
    %v6553 = vpack.c.b16 %v3593, %v3585
    %v6554 = vpack.c.b16 %v3594, %v3586
    %v6555 = vpack.c.b16 %v3595, %v3587
    %v6556 = vpack.c.b16 %v3596, %v3588
    %v6557 = vpack.c.b16 %v3597, %v3589
    %v6558 = vpack.c.b16 %v3598, %v3590
    %v6559 = vpack.c.b16 %v3607, %v3599
    %v6560 = vpack.c.b16 %v3608, %v3600
    %v6561 = vpack.c.b16 %v3609, %v3601
    %v6562 = vpack.c.b16 %v3610, %v3602
    %v6563 = vpack.c.b16 %v3611, %v3603
    %v6564 = vpack.c.b16 %v3612, %v3604
    %v6565 = vpack.c.b16 %v3613, %v3605
    %v6566 = vpack.c.b16 %v3614, %v3606
    %v6567 = vpack.c.b16 %v3623, %v3615
    %v6568 = vpack.c.b16 %v3624, %v3616
    %v6569 = vpack.c.b16 %v3625, %v3617
    %v6570 = vpack.c.b16 %v3626, %v3618
    %v6571 = vpack.c.b16 %v3627, %v3619
    %v6572 = vpack.c.b16 %v3628, %v3620
    %v6573 = vpack.c.b16 %v3629, %v3621
    %v6574 = vpack.c.b16 %v3630, %v3622
    %v6575 = vpack.c.b16 %v3639, %v3631
    %v6576 = vpack.c.b16 %v3640, %v3632
    %v6577 = vpack.c.b16 %v3641, %v3633
    %v6578 = vpack.c.b16 %v3642, %v3634
    %v6579 = vpack.c.b16 %v3643, %v3635
    %v6580 = vpack.c.b16 %v3644, %v3636
    %v6581 = vpack.c.b16 %v3645, %v3637
    %v6582 = vpack.c.b16 %v3646, %v3638
    %v6583 = vpack.c.b16 %v3655, %v3647
    %v6584 = vpack.c.b16 %v3656, %v3648
    %v6585 = vpack.c.b16 %v3657, %v3649
    %v6586 = vpack.c.b16 %v3658, %v3650
    %v6587 = vpack.c.b16 %v3659, %v3651
    %v6588 = vpack.c.b16 %v3660, %v3652
    %v6589 = vpack.c.b16 %v3661, %v3653
    %v6590 = vpack.c.b16 %v3662, %v3654
    %v6591 = vpack.c.b16 %v3671, %v3663
    %v6592 = vpack.c.b16 %v3672, %v3664
    %v6593 = vpack.c.b16 %v3673, %v3665
    %v6594 = vpack.c.b16 %v3674, %v3666
    %v6595 = vpack.c.b16 %v3675, %v3667
    %v6596 = vpack.c.b16 %v3676, %v3668
    %v6597 = vpack.c.b16 %v3677, %v3669
    %v6598 = vpack.c.b16 %v3678, %v3670
    %v6599 = vpack.c.b16 %v3687, %v3679
    %v6600 = vpack.c.b16 %v3688, %v3680
    %v6601 = vpack.c.b16 %v3689, %v3681
    %v6602 = vpack.c.b16 %v3690, %v3682
    %v6603 = vpack.c.b16 %v3691, %v3683
    %v6604 = vpack.c.b16 %v3692, %v3684
    %v6605 = vpack.c.b16 %v3693, %v3685
    %v6606 = vpack.c.b16 %v3694, %v3686
    %v6607 = vpack.c.b16 %v3703, %v3695
    %v6608 = vpack.c.b16 %v3704, %v3696
    %v6609 = vpack.c.b16 %v3705, %v3697
    %v6610 = vpack.c.b16 %v3706, %v3698
    %v6611 = vpack.c.b16 %v3707, %v3699
    %v6612 = vpack.c.b16 %v3708, %v3700
    %v6613 = vpack.c.b16 %v3709, %v3701
    %v6614 = vpack.c.b16 %v3710, %v3702
    %v6615 = vpack.c.b16 %v3719, %v3711
    %v6616 = vpack.c.b16 %v3720, %v3712
    %v6617 = vpack.c.b16 %v3721, %v3713
    %v6618 = vpack.c.b16 %v3722, %v3714
    %v6619 = vpack.c.b16 %v3723, %v3715
    %v6620 = vpack.c.b16 %v3724, %v3716
    %v6621 = vpack.c.b16 %v3725, %v3717
    %v6622 = vpack.c.b16 %v3726, %v3718
    %v6623 = vpack.c.b16 %v3735, %v3727
    %v6624 = vpack.c.b16 %v3736, %v3728
    %v6625 = vpack.c.b16 %v3737, %v3729
    %v6626 = vpack.c.b16 %v3738, %v3730
    %v6627 = vpack.c.b16 %v3739, %v3731
    %v6628 = vpack.c.b16 %v3740, %v3732
    %v6629 = vpack.c.b16 %v3741, %v3733
    %v6630 = vpack.c.b16 %v3742, %v3734
    %v6631 = vpack.c.b16 %v3751, %v3743
    %v6632 = vpack.c.b16 %v3752, %v3744
    %v6633 = vpack.c.b16 %v3753, %v3745
    %v6634 = vpack.c.b16 %v3754, %v3746
    %v6635 = vpack.c.b16 %v3755, %v3747
    %v6636 = vpack.c.b16 %v3756, %v3748
    %v6637 = vpack.c.b16 %v3757, %v3749
    %v6638 = vpack.c.b16 %v3758, %v3750
    %v6639 = vpack.c.b16 %v3767, %v3759
    %v6640 = vpack.c.b16 %v3768, %v3760
    %v6641 = vpack.c.b16 %v3769, %v3761
    %v6642 = vpack.c.b16 %v3770, %v3762
    %v6643 = vpack.c.b16 %v3771, %v3763
    %v6644 = vpack.c.b16 %v3772, %v3764
    %v6645 = vpack.c.b16 %v3773, %v3765
    %v6646 = vpack.c.b16 %v3774, %v3766
    %v6647 = vpack.c.b16 %v3783, %v3775
    %v6648 = vpack.c.b16 %v3784, %v3776
    %v6649 = vpack.c.b16 %v3785, %v3777
    %v6650 = vpack.c.b16 %v3786, %v3778
    %v6651 = vpack.c.b16 %v3787, %v3779
    %v6652 = vpack.c.b16 %v3788, %v3780
    %v6653 = vpack.c.b16 %v3789, %v3781
    %v6654 = vpack.c.b16 %v3790, %v3782
    %v6655 = vpack.c.b16 %v3799, %v3791
    %v6656 = vpack.c.b16 %v3800, %v3792
    %v6657 = vpack.c.b16 %v3801, %v3793
    %v6658 = vpack.c.b16 %v3802, %v3794
    %v6659 = vpack.c.b16 %v3803, %v3795
    %v6660 = vpack.c.b16 %v3804, %v3796
    %v6661 = vpack.c.b16 %v3805, %v3797
    %v6662 = vpack.c.b16 %v3806, %v3798
    %v6663 = vpack.c.b16 %v3815, %v3807
    %v6664 = vpack.c.b16 %v3816, %v3808
    %v6665 = vpack.c.b16 %v3817, %v3809
    %v6666 = vpack.c.b16 %v3818, %v3810
    %v6667 = vpack.c.b16 %v3819, %v3811
    %v6668 = vpack.c.b16 %v3820, %v3812
    %v6669 = vpack.c.b16 %v3821, %v3813
    %v6670 = vpack.c.b16 %v3822, %v3814
    %v6671 = vpack.c.b16 %v3831, %v3823
    %v6672 = vpack.c.b16 %v3832, %v3824
    %v6673 = vpack.c.b16 %v3833, %v3825
    %v6674 = vpack.c.b16 %v3834, %v3826
    %v6675 = vpack.c.b16 %v3835, %v3827
    %v6676 = vpack.c.b16 %v3836, %v3828
    %v6677 = vpack.c.b16 %v3837, %v3829
    %v6678 = vpack.c.b16 %v3838, %v3830
    %v6679 = vpack.c.b16 %v3847, %v3839
    %v6680 = vpack.c.b16 %v3848, %v3840
    %v6681 = vpack.c.b16 %v3849, %v3841
    %v6682 = vpack.c.b16 %v3850, %v3842
    %v6683 = vpack.c.b16 %v3851, %v3843
    %v6684 = vpack.c.b16 %v3852, %v3844
    %v6685 = vpack.c.b16 %v3853, %v3845
    %v6686 = vpack.c.b16 %v3854, %v3846
    %v6687 = vpack.c.b16 %v3863, %v3855
    %v6688 = vpack.c.b16 %v3864, %v3856
    %v6689 = vpack.c.b16 %v3865, %v3857
    %v6690 = vpack.c.b16 %v3866, %v3858
    %v6691 = vpack.c.b16 %v3867, %v3859
    %v6692 = vpack.c.b16 %v3868, %v3860
    %v6693 = vpack.c.b16 %v3869, %v3861
    %v6694 = vpack.c.b16 %v3870, %v3862
    %v6695 = vpack.c.b16 %v3879, %v3871
    %v6696 = vpack.c.b16 %v3880, %v3872
    %v6697 = vpack.c.b16 %v3881, %v3873
    %v6698 = vpack.c.b16 %v3882, %v3874
    %v6699 = vpack.c.b16 %v3883, %v3875
    %v6700 = vpack.c.b16 %v3884, %v3876
    %v6701 = vpack.c.b16 %v3885, %v3877
    %v6702 = vpack.c.b16 %v3886, %v3878
    %v6703 = vpack.c.b16 %v3895, %v3887
    %v6704 = vpack.c.b16 %v3896, %v3888
    %v6705 = vpack.c.b16 %v3897, %v3889
    %v6706 = vpack.c.b16 %v3898, %v3890
    %v6707 = vpack.c.b16 %v3899, %v3891
    %v6708 = vpack.c.b16 %v3900, %v3892
    %v6709 = vpack.c.b16 %v3901, %v3893
    %v6710 = vpack.c.b16 %v3902, %v3894
    %v6711 = vpack.c.b16 %v3911, %v3903
    %v6712 = vpack.c.b16 %v3912, %v3904
    %v6713 = vpack.c.b16 %v3913, %v3905
    %v6714 = vpack.c.b16 %v3914, %v3906
    %v6715 = vpack.c.b16 %v3915, %v3907
    %v6716 = vpack.c.b16 %v3916, %v3908
    %v6717 = vpack.c.b16 %v3917, %v3909
    %v6718 = vpack.c.b16 %v3918, %v3910
    %v6719 = vpack.c.b16 %v3927, %v3919
    %v6720 = vpack.c.b16 %v3928, %v3920
    %v6721 = vpack.c.b16 %v3929, %v3921
    %v6722 = vpack.c.b16 %v3930, %v3922
    %v6723 = vpack.c.b16 %v3931, %v3923
    %v6724 = vpack.c.b16 %v3932, %v3924
    %v6725 = vpack.c.b16 %v3933, %v3925
    %v6726 = vpack.c.b16 %v3934, %v3926
    %v6727 = vpack.c.b16 %v3943, %v3935
    %v6728 = vpack.c.b16 %v3944, %v3936
    %v6729 = vpack.c.b16 %v3945, %v3937
    %v6730 = vpack.c.b16 %v3946, %v3938
    %v6731 = vpack.c.b16 %v3947, %v3939
    %v6732 = vpack.c.b16 %v3948, %v3940
    %v6733 = vpack.c.b16 %v3949, %v3941
    %v6734 = vpack.c.b16 %v3950, %v3942
    %v6735 = vpack.c.b16 %v3959, %v3951
    %v6736 = vpack.c.b16 %v3960, %v3952
    %v6737 = vpack.c.b16 %v3961, %v3953
    %v6738 = vpack.c.b16 %v3962, %v3954
    %v6739 = vpack.c.b16 %v3963, %v3955
    %v6740 = vpack.c.b16 %v3964, %v3956
    %v6741 = vpack.c.b16 %v3965, %v3957
    %v6742 = vpack.c.b16 %v3966, %v3958
    %v6743 = vpack.c.b16 %v3975, %v3967
    %v6744 = vpack.c.b16 %v3976, %v3968
    %v6745 = vpack.c.b16 %v3977, %v3969
    %v6746 = vpack.c.b16 %v3978, %v3970
    %v6747 = vpack.c.b16 %v3979, %v3971
    %v6748 = vpack.c.b16 %v3980, %v3972
    %v6749 = vpack.c.b16 %v3981, %v3973
    %v6750 = vpack.c.b16 %v3982, %v3974
    %v6751 = vpack.c.b16 %v3991, %v3983
    %v6752 = vpack.c.b16 %v3992, %v3984
    %v6753 = vpack.c.b16 %v3993, %v3985
    %v6754 = vpack.c.b16 %v3994, %v3986
    %v6755 = vpack.c.b16 %v3995, %v3987
    %v6756 = vpack.c.b16 %v3996, %v3988
    %v6757 = vpack.c.b16 %v3997, %v3989
    %v6758 = vpack.c.b16 %v3998, %v3990
    %v6759 = vpack.c.b16 %v4007, %v3999
    %v6760 = vpack.c.b16 %v4008, %v4000
    %v6761 = vpack.c.b16 %v4009, %v4001
    %v6762 = vpack.c.b16 %v4010, %v4002
    %v6763 = vpack.c.b16 %v4011, %v4003
    %v6764 = vpack.c.b16 %v4012, %v4004
    %v6765 = vpack.c.b16 %v4013, %v4005
    %v6766 = vpack.c.b16 %v4014, %v4006
    %v6767 = vpack.c.b16 %v4023, %v4015
    %v6768 = vpack.c.b16 %v4024, %v4016
    %v6769 = vpack.c.b16 %v4025, %v4017
    %v6770 = vpack.c.b16 %v4026, %v4018
    %v6771 = vpack.c.b16 %v4027, %v4019
    %v6772 = vpack.c.b16 %v4028, %v4020
    %v6773 = vpack.c.b16 %v4029, %v4021
    %v6774 = vpack.c.b16 %v4030, %v4022
    %v6775 = vpack.c.b16 %v4039, %v4031
    %v6776 = vpack.c.b16 %v4040, %v4032
    %v6777 = vpack.c.b16 %v4041, %v4033
    %v6778 = vpack.c.b16 %v4042, %v4034
    %v6779 = vpack.c.b16 %v4043, %v4035
    %v6780 = vpack.c.b16 %v4044, %v4036
    %v6781 = vpack.c.b16 %v4045, %v4037
    %v6782 = vpack.c.b16 %v4046, %v4038
    %v6783 = vpack.c.b16 %v4055, %v4047
    %v6784 = vpack.c.b16 %v4056, %v4048
    %v6785 = vpack.c.b16 %v4057, %v4049
    %v6786 = vpack.c.b16 %v4058, %v4050
    %v6787 = vpack.c.b16 %v4059, %v4051
    %v6788 = vpack.c.b16 %v4060, %v4052
    %v6789 = vpack.c.b16 %v4061, %v4053
    %v6790 = vpack.c.b16 %v4062, %v4054
    %v6791 = vpack.c.b16 %v4071, %v4063
    %v6792 = vpack.c.b16 %v4072, %v4064
    %v6793 = vpack.c.b16 %v4073, %v4065
    %v6794 = vpack.c.b16 %v4074, %v4066
    %v6795 = vpack.c.b16 %v4075, %v4067
    %v6796 = vpack.c.b16 %v4076, %v4068
    %v6797 = vpack.c.b16 %v4077, %v4069
    %v6798 = vpack.c.b16 %v4078, %v4070
    %v6799 = vpack.c.b16 %v4087, %v4079
    %v6800 = vpack.c.b16 %v4088, %v4080
    %v6801 = vpack.c.b16 %v4089, %v4081
    %v6802 = vpack.c.b16 %v4090, %v4082
    %v6803 = vpack.c.b16 %v4091, %v4083
    %v6804 = vpack.c.b16 %v4092, %v4084
    %v6805 = vpack.c.b16 %v4093, %v4085
    %v6806 = vpack.c.b16 %v4094, %v4086
    %v6807 = vpack.c.b16 %v4103, %v4095
    %v6808 = vpack.c.b16 %v4104, %v4096
    %v6809 = vpack.c.b16 %v4105, %v4097
    %v6810 = vpack.c.b16 %v4106, %v4098
    %v6811 = vpack.c.b16 %v4107, %v4099
    %v6812 = vpack.c.b16 %v4108, %v4100
    %v6813 = vpack.c.b16 %v4109, %v4101
    %v6814 = vpack.c.b16 %v4110, %v4102
    %v6815 = vpack.c.b16 %v4119, %v4111
    %v6816 = vpack.c.b16 %v4120, %v4112
    %v6817 = vpack.c.b16 %v4121, %v4113
    %v6818 = vpack.c.b16 %v4122, %v4114
    %v6819 = vpack.c.b16 %v4123, %v4115
    %v6820 = vpack.c.b16 %v4124, %v4116
    %v6821 = vpack.c.b16 %v4125, %v4117
    %v6822 = vpack.c.b16 %v4126, %v4118
    %v6823 = vpack.c.b16 %v4135, %v4127
    %v6824 = vpack.c.b16 %v4136, %v4128
    %v6825 = vpack.c.b16 %v4137, %v4129
    %v6826 = vpack.c.b16 %v4138, %v4130
    %v6827 = vpack.c.b16 %v4139, %v4131
    %v6828 = vpack.c.b16 %v4140, %v4132
    %v6829 = vpack.c.b16 %v4141, %v4133
    %v6830 = vpack.c.b16 %v4142, %v4134
    %v6831 = vpack.c.b16 %v4151, %v4143
    %v6832 = vpack.c.b16 %v4152, %v4144
    %v6833 = vpack.c.b16 %v4153, %v4145
    %v6834 = vpack.c.b16 %v4154, %v4146
    %v6835 = vpack.c.b16 %v4155, %v4147
    %v6836 = vpack.c.b16 %v4156, %v4148
    %v6837 = vpack.c.b16 %v4157, %v4149
    %v6838 = vpack.c.b16 %v4158, %v4150
    %v6839 = vpack.c.b16 %v4167, %v4159
    %v6840 = vpack.c.b16 %v4168, %v4160
    %v6841 = vpack.c.b16 %v4169, %v4161
    %v6842 = vpack.c.b16 %v4170, %v4162
    %v6843 = vpack.c.b16 %v4171, %v4163
    %v6844 = vpack.c.b16 %v4172, %v4164
    %v6845 = vpack.c.b16 %v4173, %v4165
    %v6846 = vpack.c.b16 %v4174, %v4166
    %v6847 = vpack.c.b16 %v4183, %v4175
    %v6848 = vpack.c.b16 %v4184, %v4176
    %v6849 = vpack.c.b16 %v4185, %v4177
    %v6850 = vpack.c.b16 %v4186, %v4178
    %v6851 = vpack.c.b16 %v4187, %v4179
    %v6852 = vpack.c.b16 %v4188, %v4180
    %v6853 = vpack.c.b16 %v4189, %v4181
    %v6854 = vpack.c.b16 %v4190, %v4182
    %v6855 = vpack.c.b16 %v4199, %v4191
    %v6856 = vpack.c.b16 %v4200, %v4192
    %v6857 = vpack.c.b16 %v4201, %v4193
    %v6858 = vpack.c.b16 %v4202, %v4194
    %v6859 = vpack.c.b16 %v4203, %v4195
    %v6860 = vpack.c.b16 %v4204, %v4196
    %v6861 = vpack.c.b16 %v4205, %v4197
    %v6862 = vpack.c.b16 %v4206, %v4198
    %v6863 = vpack.c.b16 %v4215, %v4207
    %v6864 = vpack.c.b16 %v4216, %v4208
    %v6865 = vpack.c.b16 %v4217, %v4209
    %v6866 = vpack.c.b16 %v4218, %v4210
    %v6867 = vpack.c.b16 %v4219, %v4211
    %v6868 = vpack.c.b16 %v4220, %v4212
    %v6869 = vpack.c.b16 %v4221, %v4213
    %v6870 = vpack.c.b16 %v4222, %v4214
    %v6871 = vpack.c.b16 %v4231, %v4223
    %v6872 = vpack.c.b16 %v4232, %v4224
    %v6873 = vpack.c.b16 %v4233, %v4225
    %v6874 = vpack.c.b16 %v4234, %v4226
    %v6875 = vpack.c.b16 %v4235, %v4227
    %v6876 = vpack.c.b16 %v4236, %v4228
    %v6877 = vpack.c.b16 %v4237, %v4229
    %v6878 = vpack.c.b16 %v4238, %v4230
    %v6879 = vpack.c.b16 %v4247, %v4239
    %v6880 = vpack.c.b16 %v4248, %v4240
    %v6881 = vpack.c.b16 %v4249, %v4241
    %v6882 = vpack.c.b16 %v4250, %v4242
    %v6883 = vpack.c.b16 %v4251, %v4243
    %v6884 = vpack.c.b16 %v4252, %v4244
    %v6885 = vpack.c.b16 %v4253, %v4245
    %v6886 = vpack.c.b16 %v4254, %v4246
    %v6887 = vpack.c.b16 %v4263, %v4255
    %v6888 = vpack.c.b16 %v4264, %v4256
    %v6889 = vpack.c.b16 %v4265, %v4257
    %v6890 = vpack.c.b16 %v4266, %v4258
    %v6891 = vpack.c.b16 %v4267, %v4259
    %v6892 = vpack.c.b16 %v4268, %v4260
    %v6893 = vpack.c.b16 %v4269, %v4261
    %v6894 = vpack.c.b16 %v4270, %v4262
    %v6895 = vpack.c.b16 %v4279, %v4271
    %v6896 = vpack.c.b16 %v4280, %v4272
    %v6897 = vpack.c.b16 %v4281, %v4273
    %v6898 = vpack.c.b16 %v4282, %v4274
    %v6899 = vpack.c.b16 %v4283, %v4275
    %v6900 = vpack.c.b16 %v4284, %v4276
    %v6901 = vpack.c.b16 %v4285, %v4277
    %v6902 = vpack.c.b16 %v4286, %v4278
    %v6903 = vpack.c.b16 %v4295, %v4287
    %v6904 = vpack.c.b16 %v4296, %v4288
    %v6905 = vpack.c.b16 %v4297, %v4289
    %v6906 = vpack.c.b16 %v4298, %v4290
    %v6907 = vpack.c.b16 %v4299, %v4291
    %v6908 = vpack.c.b16 %v4300, %v4292
    %v6909 = vpack.c.b16 %v4301, %v4293
    %v6910 = vpack.c.b16 %v4302, %v4294
    %v6911 = vpack.c.b16 %v4311, %v4303
    %v6912 = vpack.c.b16 %v4312, %v4304
    %v6913 = vpack.c.b16 %v4313, %v4305
    %v6914 = vpack.c.b16 %v4314, %v4306
    %v6915 = vpack.c.b16 %v4315, %v4307
    %v6916 = vpack.c.b16 %v4316, %v4308
    %v6917 = vpack.c.b16 %v4317, %v4309
    %v6918 = vpack.c.b16 %v4318, %v4310
    %v6919 = vpack.c.b16 %v4327, %v4319
    %v6920 = vpack.c.b16 %v4328, %v4320
    %v6921 = vpack.c.b16 %v4329, %v4321
    %v6922 = vpack.c.b16 %v4330, %v4322
    %v6923 = vpack.c.b16 %v4331, %v4323
    %v6924 = vpack.c.b16 %v4332, %v4324
    %v6925 = vpack.c.b16 %v4333, %v4325
    %v6926 = vpack.c.b16 %v4334, %v4326
    %v6927 = vpack.c.b16 %v4343, %v4335
    %v6928 = vpack.c.b16 %v4344, %v4336
    %v6929 = vpack.c.b16 %v4345, %v4337
    %v6930 = vpack.c.b16 %v4346, %v4338
    %v6931 = vpack.c.b16 %v4347, %v4339
    %v6932 = vpack.c.b16 %v4348, %v4340
    %v6933 = vpack.c.b16 %v4349, %v4341
    %v6934 = vpack.c.b16 %v4350, %v4342
    %v6935 = vpack.c.b16 %v4359, %v4351
    %v6936 = vpack.c.b16 %v4360, %v4352
    %v6937 = vpack.c.b16 %v4361, %v4353
    %v6938 = vpack.c.b16 %v4362, %v4354
    %v6939 = vpack.c.b16 %v4363, %v4355
    %v6940 = vpack.c.b16 %v4364, %v4356
    %v6941 = vpack.c.b16 %v4365, %v4357
    %v6942 = vpack.c.b16 %v4366, %v4358
    %v6943 = vpack.c.b16 %v4375, %v4367
    %v6944 = vpack.c.b16 %v4376, %v4368
    %v6945 = vpack.c.b16 %v4377, %v4369
    %v6946 = vpack.c.b16 %v4378, %v4370
    %v6947 = vpack.c.b16 %v4379, %v4371
    %v6948 = vpack.c.b16 %v4380, %v4372
    %v6949 = vpack.c.b16 %v4381, %v4373
    %v6950 = vpack.c.b16 %v4382, %v4374
    %v6951 = vpack.c.b16 %v4391, %v4383
    %v6952 = vpack.c.b16 %v4392, %v4384
    %v6953 = vpack.c.b16 %v4393, %v4385
    %v6954 = vpack.c.b16 %v4394, %v4386
    %v6955 = vpack.c.b16 %v4395, %v4387
    %v6956 = vpack.c.b16 %v4396, %v4388
    %v6957 = vpack.c.b16 %v4397, %v4389
    %v6958 = vpack.c.b16 %v4398, %v4390
    %v6959 = vpack.c.b16 %v4407, %v4399
    %v6960 = vpack.c.b16 %v4408, %v4400
    %v6961 = vpack.c.b16 %v4409, %v4401
    %v6962 = vpack.c.b16 %v4410, %v4402
    %v6963 = vpack.c.b16 %v4411, %v4403
    %v6964 = vpack.c.b16 %v4412, %v4404
    %v6965 = vpack.c.b16 %v4413, %v4405
    %v6966 = vpack.c.b16 %v4414, %v4406
    %v6967 = vpack.c.b16 %v4423, %v4415
    %v6968 = vpack.c.b16 %v4424, %v4416
    %v6969 = vpack.c.b16 %v4425, %v4417
    %v6970 = vpack.c.b16 %v4426, %v4418
    %v6971 = vpack.c.b16 %v4427, %v4419
    %v6972 = vpack.c.b16 %v4428, %v4420
    %v6973 = vpack.c.b16 %v4429, %v4421
    %v6974 = vpack.c.b16 %v4430, %v4422
    %v6975 = vpack.c.b16 %v4439, %v4431
    %v6976 = vpack.c.b16 %v4440, %v4432
    %v6977 = vpack.c.b16 %v4441, %v4433
    %v6978 = vpack.c.b16 %v4442, %v4434
    %v6979 = vpack.c.b16 %v4443, %v4435
    %v6980 = vpack.c.b16 %v4444, %v4436
    %v6981 = vpack.c.b16 %v4445, %v4437
    %v6982 = vpack.c.b16 %v4446, %v4438
    %v6983 = vpack.c.b16 %v4455, %v4447
    %v6984 = vpack.c.b16 %v4456, %v4448
    %v6985 = vpack.c.b16 %v4457, %v4449
    %v6986 = vpack.c.b16 %v4458, %v4450
    %v6987 = vpack.c.b16 %v4459, %v4451
    %v6988 = vpack.c.b16 %v4460, %v4452
    %v6989 = vpack.c.b16 %v4461, %v4453
    %v6990 = vpack.c.b16 %v4462, %v4454
    %v6991 = vpack.c.b16 %v4471, %v4463
    %v6992 = vpack.c.b16 %v4472, %v4464
    %v6993 = vpack.c.b16 %v4473, %v4465
    %v6994 = vpack.c.b16 %v4474, %v4466
    %v6995 = vpack.c.b16 %v4475, %v4467
    %v6996 = vpack.c.b16 %v4476, %v4468
    %v6997 = vpack.c.b16 %v4477, %v4469
    %v6998 = vpack.c.b16 %v4478, %v4470
    %v6999 = vpack.c.b16 %v4487, %v4479
    %v7000 = vpack.c.b16 %v4488, %v4480
    %v7001 = vpack.c.b16 %v4489, %v4481
    %v7002 = vpack.c.b16 %v4490, %v4482
    %v7003 = vpack.c.b16 %v4491, %v4483
    %v7004 = vpack.c.b16 %v4492, %v4484
    %v7005 = vpack.c.b16 %v4493, %v4485
    %v7006 = vpack.c.b16 %v4494, %v4486
    %v7007 = vpack.c.b16 %v4503, %v4495
    %v7008 = vpack.c.b16 %v4504, %v4496
    %v7009 = vpack.c.b16 %v4505, %v4497
    %v7010 = vpack.c.b16 %v4506, %v4498
    %v7011 = vpack.c.b16 %v4507, %v4499
    %v7012 = vpack.c.b16 %v4508, %v4500
    %v7013 = vpack.c.b16 %v4509, %v4501
    %v7014 = vpack.c.b16 %v4510, %v4502
    %v7015 = vpack.c.b16 %v4519, %v4511
    %v7016 = vpack.c.b16 %v4520, %v4512
    %v7017 = vpack.c.b16 %v4521, %v4513
    %v7018 = vpack.c.b16 %v4522, %v4514
    %v7019 = vpack.c.b16 %v4523, %v4515
    %v7020 = vpack.c.b16 %v4524, %v4516
    %v7021 = vpack.c.b16 %v4525, %v4517
    %v7022 = vpack.c.b16 %v4526, %v4518
    %v7023 = vpack.c.b16 %v4535, %v4527
    %v7024 = vpack.c.b16 %v4536, %v4528
    %v7025 = vpack.c.b16 %v4537, %v4529
    %v7026 = vpack.c.b16 %v4538, %v4530
    %v7027 = vpack.c.b16 %v4539, %v4531
    %v7028 = vpack.c.b16 %v4540, %v4532
    %v7029 = vpack.c.b16 %v4541, %v4533
    %v7030 = vpack.c.b16 %v4542, %v4534
    %v7031 = vpack.c.b16 %v4551, %v4543
    %v7032 = vpack.c.b16 %v4552, %v4544
    %v7033 = vpack.c.b16 %v4553, %v4545
    %v7034 = vpack.c.b16 %v4554, %v4546
    %v7035 = vpack.c.b16 %v4555, %v4547
    %v7036 = vpack.c.b16 %v4556, %v4548
    %v7037 = vpack.c.b16 %v4557, %v4549
    %v7038 = vpack.c.b16 %v4558, %v4550
    %v7039 = vpack.c.b16 %v4567, %v4559
    %v7040 = vpack.c.b16 %v4568, %v4560
    %v7041 = vpack.c.b16 %v4569, %v4561
    %v7042 = vpack.c.b16 %v4570, %v4562
    %v7043 = vpack.c.b16 %v4571, %v4563
    %v7044 = vpack.c.b16 %v4572, %v4564
    %v7045 = vpack.c.b16 %v4573, %v4565
    %v7046 = vpack.c.b16 %v4574, %v4566
    %v7047 = vpack.c.b16 %v4583, %v4575
    %v7048 = vpack.c.b16 %v4584, %v4576
    %v7049 = vpack.c.b16 %v4585, %v4577
    %v7050 = vpack.c.b16 %v4586, %v4578
    %v7051 = vpack.c.b16 %v4587, %v4579
    %v7052 = vpack.c.b16 %v4588, %v4580
    %v7053 = vpack.c.b16 %v4589, %v4581
    %v7054 = vpack.c.b16 %v4590, %v4582
    %v7055 = vpack.c.b16 %v4599, %v4591
    %v7056 = vpack.c.b16 %v4600, %v4592
    %v7057 = vpack.c.b16 %v4601, %v4593
    %v7058 = vpack.c.b16 %v4602, %v4594
    %v7059 = vpack.c.b16 %v4603, %v4595
    %v7060 = vpack.c.b16 %v4604, %v4596
    %v7061 = vpack.c.b16 %v4605, %v4597
    %v7062 = vpack.c.b16 %v4606, %v4598
    %v7063 = vpack.c.b16 %v4615, %v4607
    %v7064 = vpack.c.b16 %v4616, %v4608
    %v7065 = vpack.c.b16 %v4617, %v4609
    %v7066 = vpack.c.b16 %v4618, %v4610
    %v7067 = vpack.c.b16 %v4619, %v4611
    %v7068 = vpack.c.b16 %v4620, %v4612
    %v7069 = vpack.c.b16 %v4621, %v4613
    %v7070 = vpack.c.b16 %v4622, %v4614
    %v7071 = vpack.c.b16 %v4631, %v4623
    %v7072 = vpack.c.b16 %v4632, %v4624
    %v7073 = vpack.c.b16 %v4633, %v4625
    %v7074 = vpack.c.b16 %v4634, %v4626
    %v7075 = vpack.c.b16 %v4635, %v4627
    %v7076 = vpack.c.b16 %v4636, %v4628
    %v7077 = vpack.c.b16 %v4637, %v4629
    %v7078 = vpack.c.b16 %v4638, %v4630
    %v7079 = vpack.c.b16 %v4647, %v4639
    %v7080 = vpack.c.b16 %v4648, %v4640
    %v7081 = vpack.c.b16 %v4649, %v4641
    %v7082 = vpack.c.b16 %v4650, %v4642
    %v7083 = vpack.c.b16 %v4651, %v4643
    %v7084 = vpack.c.b16 %v4652, %v4644
    %v7085 = vpack.c.b16 %v4653, %v4645
    %v7086 = vpack.c.b16 %v4654, %v4646
    %v7087 = vpack.c.b16 %v4663, %v4655
    %v7088 = vpack.c.b16 %v4664, %v4656
    %v7089 = vpack.c.b16 %v4665, %v4657
    %v7090 = vpack.c.b16 %v4666, %v4658
    %v7091 = vpack.c.b16 %v4667, %v4659
    %v7092 = vpack.c.b16 %v4668, %v4660
    %v7093 = vpack.c.b16 %v4669, %v4661
    %v7094 = vpack.c.b16 %v4670, %v4662
    %v7095 = vpack.c.b16 %v4679, %v4671
    %v7096 = vpack.c.b16 %v4680, %v4672
    %v7097 = vpack.c.b16 %v4681, %v4673
    %v7098 = vpack.c.b16 %v4682, %v4674
    %v7099 = vpack.c.b16 %v4683, %v4675
    %v7100 = vpack.c.b16 %v4684, %v4676
    %v7101 = vpack.c.b16 %v4685, %v4677
    %v7102 = vpack.c.b16 %v4686, %v4678
    %v7103 = vpack.c.b16 %v4695, %v4687
    %v7104 = vpack.c.b16 %v4696, %v4688
    %v7105 = vpack.c.b16 %v4697, %v4689
    %v7106 = vpack.c.b16 %v4698, %v4690
    %v7107 = vpack.c.b16 %v4699, %v4691
    %v7108 = vpack.c.b16 %v4700, %v4692
    %v7109 = vpack.c.b16 %v4701, %v4693
    %v7110 = vpack.c.b16 %v4702, %v4694
    %v7111 = vpack.c.b16 %v4711, %v4703
    %v7112 = vpack.c.b16 %v4712, %v4704
    %v7113 = vpack.c.b16 %v4713, %v4705
    %v7114 = vpack.c.b16 %v4714, %v4706
    %v7115 = vpack.c.b16 %v4715, %v4707
    %v7116 = vpack.c.b16 %v4716, %v4708
    %v7117 = vpack.c.b16 %v4717, %v4709
    %v7118 = vpack.c.b16 %v4718, %v4710
    %v7119 = vpack.c.b16 %v4727, %v4719
    %v7120 = vpack.c.b16 %v4728, %v4720
    %v7121 = vpack.c.b16 %v4729, %v4721
    %v7122 = vpack.c.b16 %v4730, %v4722
    %v7123 = vpack.c.b16 %v4731, %v4723
    %v7124 = vpack.c.b16 %v4732, %v4724
    %v7125 = vpack.c.b16 %v4733, %v4725
    %v7126 = vpack.c.b16 %v4734, %v4726
    %v7127 = vpack.c.b16 %v4743, %v4735
    %v7128 = vpack.c.b16 %v4744, %v4736
    %v7129 = vpack.c.b16 %v4745, %v4737
    %v7130 = vpack.c.b16 %v4746, %v4738
    %v7131 = vpack.c.b16 %v4747, %v4739
    %v7132 = vpack.c.b16 %v4748, %v4740
    %v7133 = vpack.c.b16 %v4749, %v4741
    %v7134 = vpack.c.b16 %v4750, %v4742
    %v7135 = vpack.c.b16 %v4759, %v4751
    %v7136 = vpack.c.b16 %v4760, %v4752
    %v7137 = vpack.c.b16 %v4761, %v4753
    %v7138 = vpack.c.b16 %v4762, %v4754
    %v7139 = vpack.c.b16 %v4763, %v4755
    %v7140 = vpack.c.b16 %v4764, %v4756
    %v7141 = vpack.c.b16 %v4765, %v4757
    %v7142 = vpack.c.b16 %v4766, %v4758
    %v7143 = vpack.c.b16 %v4775, %v4767
    %v7144 = vpack.c.b16 %v4776, %v4768
    %v7145 = vpack.c.b16 %v4777, %v4769
    %v7146 = vpack.c.b16 %v4778, %v4770
    %v7147 = vpack.c.b16 %v4779, %v4771
    %v7148 = vpack.c.b16 %v4780, %v4772
    %v7149 = vpack.c.b16 %v4781, %v4773
    %v7150 = vpack.c.b16 %v4782, %v4774
    %v7151 = vpack.c.b16 %v4791, %v4783
    %v7152 = vpack.c.b16 %v4792, %v4784
    %v7153 = vpack.c.b16 %v4793, %v4785
    %v7154 = vpack.c.b16 %v4794, %v4786
    %v7155 = vpack.c.b16 %v4795, %v4787
    %v7156 = vpack.c.b16 %v4796, %v4788
    %v7157 = vpack.c.b16 %v4797, %v4789
    %v7158 = vpack.c.b16 %v4798, %v4790
    %v7159 = vpack.c.b16 %v4807, %v4799
    %v7160 = vpack.c.b16 %v4808, %v4800
    %v7161 = vpack.c.b16 %v4809, %v4801
    %v7162 = vpack.c.b16 %v4810, %v4802
    %v7163 = vpack.c.b16 %v4811, %v4803
    %v7164 = vpack.c.b16 %v4812, %v4804
    %v7165 = vpack.c.b16 %v4813, %v4805
    %v7166 = vpack.c.b16 %v4814, %v4806
    %v7167 = vpack.c.b16 %v4823, %v4815
    %v7168 = vpack.c.b16 %v4824, %v4816
    %v7169 = vpack.c.b16 %v4825, %v4817
    %v7170 = vpack.c.b16 %v4826, %v4818
    %v7171 = vpack.c.b16 %v4827, %v4819
    %v7172 = vpack.c.b16 %v4828, %v4820
    %v7173 = vpack.c.b16 %v4829, %v4821
    %v7174 = vpack.c.b16 %v4830, %v4822
    %v7175 = vpack.c.b16 %v4839, %v4831
    %v7176 = vpack.c.b16 %v4840, %v4832
    %v7177 = vpack.c.b16 %v4841, %v4833
    %v7178 = vpack.c.b16 %v4842, %v4834
    %v7179 = vpack.c.b16 %v4843, %v4835
    %v7180 = vpack.c.b16 %v4844, %v4836
    %v7181 = vpack.c.b16 %v4845, %v4837
    %v7182 = vpack.c.b16 %v4846, %v4838
    %v7183 = vpack.c.b16 %v4855, %v4847
    %v7184 = vpack.c.b16 %v4856, %v4848
    %v7185 = vpack.c.b16 %v4857, %v4849
    %v7186 = vpack.c.b16 %v4858, %v4850
    %v7187 = vpack.c.b16 %v4859, %v4851
    %v7188 = vpack.c.b16 %v4860, %v4852
    %v7189 = vpack.c.b16 %v4861, %v4853
    %v7190 = vpack.c.b16 %v4862, %v4854
    %v7191 = vpack.c.b16 %v4871, %v4863
    %v7192 = vpack.c.b16 %v4872, %v4864
    %v7193 = vpack.c.b16 %v4873, %v4865
    %v7194 = vpack.c.b16 %v4874, %v4866
    %v7195 = vpack.c.b16 %v4875, %v4867
    %v7196 = vpack.c.b16 %v4876, %v4868
    %v7197 = vpack.c.b16 %v4877, %v4869
    %v7198 = vpack.c.b16 %v4878, %v4870
    %v7199 = vpack.c.b16 %v4887, %v4879
    %v7200 = vpack.c.b16 %v4888, %v4880
    %v7201 = vpack.c.b16 %v4889, %v4881
    %v7202 = vpack.c.b16 %v4890, %v4882
    %v7203 = vpack.c.b16 %v4891, %v4883
    %v7204 = vpack.c.b16 %v4892, %v4884
    %v7205 = vpack.c.b16 %v4893, %v4885
    %v7206 = vpack.c.b16 %v4894, %v4886
    %v7207 = vpack.c.b16 %v4903, %v4895
    %v7208 = vpack.c.b16 %v4904, %v4896
    %v7209 = vpack.c.b16 %v4905, %v4897
    %v7210 = vpack.c.b16 %v4906, %v4898
    %v7211 = vpack.c.b16 %v4907, %v4899
    %v7212 = vpack.c.b16 %v4908, %v4900
    %v7213 = vpack.c.b16 %v4909, %v4901
    %v7214 = vpack.c.b16 %v4910, %v4902
    %v7215 = vpack.c.b16 %v4919, %v4911
    %v7216 = vpack.c.b16 %v4920, %v4912
    %v7217 = vpack.c.b16 %v4921, %v4913
    %v7218 = vpack.c.b16 %v4922, %v4914
    %v7219 = vpack.c.b16 %v4923, %v4915
    %v7220 = vpack.c.b16 %v4924, %v4916
    %v7221 = vpack.c.b16 %v4925, %v4917
    %v7222 = vpack.c.b16 %v4926, %v4918
    %v7223 = vpack.c.b16 %v4935, %v4927
    %v7224 = vpack.c.b16 %v4936, %v4928
    %v7225 = vpack.c.b16 %v4937, %v4929
    %v7226 = vpack.c.b16 %v4938, %v4930
    %v7227 = vpack.c.b16 %v4939, %v4931
    %v7228 = vpack.c.b16 %v4940, %v4932
    %v7229 = vpack.c.b16 %v4941, %v4933
    %v7230 = vpack.c.b16 %v4942, %v4934
    %v7231 = vpack.c.b16 %v4951, %v4943
    %v7232 = vpack.c.b16 %v4952, %v4944
    %v7233 = vpack.c.b16 %v4953, %v4945
    %v7234 = vpack.c.b16 %v4954, %v4946
    %v7235 = vpack.c.b16 %v4955, %v4947
    %v7236 = vpack.c.b16 %v4956, %v4948
    %v7237 = vpack.c.b16 %v4957, %v4949
    %v7238 = vpack.c.b16 %v4958, %v4950
    %v7239 = vpack.c.b16 %v4967, %v4959
    %v7240 = vpack.c.b16 %v4968, %v4960
    %v7241 = vpack.c.b16 %v4969, %v4961
    %v7242 = vpack.c.b16 %v4970, %v4962
    %v7243 = vpack.c.b16 %v4971, %v4963
    %v7244 = vpack.c.b16 %v4972, %v4964
    %v7245 = vpack.c.b16 %v4973, %v4965
    %v7246 = vpack.c.b16 %v4974, %v4966
    %v7247 = vpack.c.b16 %v4983, %v4975
    %v7248 = vpack.c.b16 %v4984, %v4976
    %v7249 = vpack.c.b16 %v4985, %v4977
    %v7250 = vpack.c.b16 %v4986, %v4978
    %v7251 = vpack.c.b16 %v4987, %v4979
    %v7252 = vpack.c.b16 %v4988, %v4980
    %v7253 = vpack.c.b16 %v4989, %v4981
    %v7254 = vpack.c.b16 %v4990, %v4982
    %v7255 = vpack.c.b16 %v4999, %v4991
    %v7256 = vpack.c.b16 %v5000, %v4992
    %v7257 = vpack.c.b16 %v5001, %v4993
    %v7258 = vpack.c.b16 %v5002, %v4994
    %v7259 = vpack.c.b16 %v5003, %v4995
    %v7260 = vpack.c.b16 %v5004, %v4996
    %v7261 = vpack.c.b16 %v5005, %v4997
    %v7262 = vpack.c.b16 %v5006, %v4998
    %v7263 = vpack.c.b16 %v5015, %v5007
    %v7264 = vpack.c.b16 %v5016, %v5008
    %v7265 = vpack.c.b16 %v5017, %v5009
    %v7266 = vpack.c.b16 %v5018, %v5010
    %v7267 = vpack.c.b16 %v5019, %v5011
    %v7268 = vpack.c.b16 %v5020, %v5012
    %v7269 = vpack.c.b16 %v5021, %v5013
    %v7270 = vpack.c.b16 %v5022, %v5014
    %v7271 = vpack.c.b16 %v5031, %v5023
    %v7272 = vpack.c.b16 %v5032, %v5024
    %v7273 = vpack.c.b16 %v5033, %v5025
    %v7274 = vpack.c.b16 %v5034, %v5026
    %v7275 = vpack.c.b16 %v5035, %v5027
    %v7276 = vpack.c.b16 %v5036, %v5028
    %v7277 = vpack.c.b16 %v5037, %v5029
    %v7278 = vpack.c.b16 %v5038, %v5030
    %v7279 = vpack.c.b16 %v5047, %v5039
    %v7280 = vpack.c.b16 %v5048, %v5040
    %v7281 = vpack.c.b16 %v5049, %v5041
    %v7282 = vpack.c.b16 %v5050, %v5042
    %v7283 = vpack.c.b16 %v5051, %v5043
    %v7284 = vpack.c.b16 %v5052, %v5044
    %v7285 = vpack.c.b16 %v5053, %v5045
    %v7286 = vpack.c.b16 %v5054, %v5046
    %v7287 = vpack.c.b16 %v5063, %v5055
    %v7288 = vpack.c.b16 %v5064, %v5056
    %v7289 = vpack.c.b16 %v5065, %v5057
    %v7290 = vpack.c.b16 %v5066, %v5058
    %v7291 = vpack.c.b16 %v5067, %v5059
    %v7292 = vpack.c.b16 %v5068, %v5060
    %v7293 = vpack.c.b16 %v5069, %v5061
    %v7294 = vpack.c.b16 %v5070, %v5062
    %v7295 = vpack.c.b16 %v5079, %v5071
    %v7296 = vpack.c.b16 %v5080, %v5072
    %v7297 = vpack.c.b16 %v5081, %v5073
    %v7298 = vpack.c.b16 %v5082, %v5074
    %v7299 = vpack.c.b16 %v5083, %v5075
    %v7300 = vpack.c.b16 %v5084, %v5076
    %v7301 = vpack.c.b16 %v5085, %v5077
    %v7302 = vpack.c.b16 %v5086, %v5078
    %v7303 = vpack.c.b16 %v5095, %v5087
    %v7304 = vpack.c.b16 %v5096, %v5088
    %v7305 = vpack.c.b16 %v5097, %v5089
    %v7306 = vpack.c.b16 %v5098, %v5090
    %v7307 = vpack.c.b16 %v5099, %v5091
    %v7308 = vpack.c.b16 %v5100, %v5092
    %v7309 = vpack.c.b16 %v5101, %v5093
    %v7310 = vpack.c.b16 %v5102, %v5094
    %v7311 = vpack.c.b16 %v5111, %v5103
    %v7312 = vpack.c.b16 %v5112, %v5104
    %v7313 = vpack.c.b16 %v5113, %v5105
    %v7314 = vpack.c.b16 %v5114, %v5106
    %v7315 = vpack.c.b16 %v5115, %v5107
    %v7316 = vpack.c.b16 %v5116, %v5108
    %v7317 = vpack.c.b16 %v5117, %v5109
    %v7318 = vpack.c.b16 %v5118, %v5110
    %v7319 = vpack.c.b16 %v5127, %v5119
    %v7320 = vpack.c.b16 %v5128, %v5120
    %v7321 = vpack.c.b16 %v5129, %v5121
    %v7322 = vpack.c.b16 %v5130, %v5122
    %v7323 = vpack.c.b16 %v5131, %v5123
    %v7324 = vpack.c.b16 %v5132, %v5124
    %v7325 = vpack.c.b16 %v5133, %v5125
    %v7326 = vpack.c.b16 %v5134, %v5126
    %v7327 = vpack.c.b16 %v5143, %v5135
    %v7328 = vpack.c.b16 %v5144, %v5136
    %v7329 = vpack.c.b16 %v5145, %v5137
    %v7330 = vpack.c.b16 %v5146, %v5138
    %v7331 = vpack.c.b16 %v5147, %v5139
    %v7332 = vpack.c.b16 %v5148, %v5140
    %v7333 = vpack.c.b16 %v5149, %v5141
    %v7334 = vpack.c.b16 %v5150, %v5142
    %v7335 = vpack.c.b16 %v5159, %v5151
    %v7336 = vpack.c.b16 %v5160, %v5152
    %v7337 = vpack.c.b16 %v5161, %v5153
    %v7338 = vpack.c.b16 %v5162, %v5154
    %v7339 = vpack.c.b16 %v5163, %v5155
    %v7340 = vpack.c.b16 %v5164, %v5156
    %v7341 = vpack.c.b16 %v5165, %v5157
    %v7342 = vpack.c.b16 %v5166, %v5158
    %v7343 = vpack.c.b16 %v5175, %v5167
    %v7344 = vpack.c.b16 %v5176, %v5168
    %v7345 = vpack.c.b16 %v5177, %v5169
    %v7346 = vpack.c.b16 %v5178, %v5170
    %v7347 = vpack.c.b16 %v5179, %v5171
    %v7348 = vpack.c.b16 %v5180, %v5172
    %v7349 = vpack.c.b16 %v5181, %v5173
    %v7350 = vpack.c.b16 %v5182, %v5174
    %v7351 = vpack.c.b16 %v5191, %v5183
    %v7352 = vpack.c.b16 %v5192, %v5184
    %v7353 = vpack.c.b16 %v5193, %v5185
    %v7354 = vpack.c.b16 %v5194, %v5186
    %v7355 = vpack.c.b16 %v5195, %v5187
    %v7356 = vpack.c.b16 %v5196, %v5188
    %v7357 = vpack.c.b16 %v5197, %v5189
    %v7358 = vpack.c.b16 %v5198, %v5190
    %v7359 = vpack.c.b16 %v5207, %v5199
    %v7360 = vpack.c.b16 %v5208, %v5200
    %v7361 = vpack.c.b16 %v5209, %v5201
    %v7362 = vpack.c.b16 %v5210, %v5202
    %v7363 = vpack.c.b16 %v5211, %v5203
    %v7364 = vpack.c.b16 %v5212, %v5204
    %v7365 = vpack.c.b16 %v5213, %v5205
    %v7366 = vpack.c.b16 %v5214, %v5206
    %v7367 = vpack.c.b16 %v5223, %v5215
    %v7368 = vpack.c.b16 %v5224, %v5216
    %v7369 = vpack.c.b16 %v5225, %v5217
    %v7370 = vpack.c.b16 %v5226, %v5218
    %v7371 = vpack.c.b16 %v5227, %v5219
    %v7372 = vpack.c.b16 %v5228, %v5220
    %v7373 = vpack.c.b16 %v5229, %v5221
    %v7374 = vpack.c.b16 %v5230, %v5222
    %v7375 = vpack.c.b16 %v5239, %v5231
    %v7376 = vpack.c.b16 %v5240, %v5232
    %v7377 = vpack.c.b16 %v5241, %v5233
    %v7378 = vpack.c.b16 %v5242, %v5234
    %v7379 = vpack.c.b16 %v5243, %v5235
    %v7380 = vpack.c.b16 %v5244, %v5236
    %v7381 = vpack.c.b16 %v5245, %v5237
    %v7382 = vpack.c.b16 %v5246, %v5238
    %v7383 = vpack.c.b16 %v5255, %v5247
    %v7384 = vpack.c.b16 %v5256, %v5248
    %v7385 = vpack.c.b16 %v5257, %v5249
    %v7386 = vpack.c.b16 %v5258, %v5250
    %v7387 = vpack.c.b16 %v5259, %v5251
    %v7388 = vpack.c.b16 %v5260, %v5252
    %v7389 = vpack.c.b16 %v5261, %v5253
    %v7390 = vpack.c.b16 %v5262, %v5254
    %v7391 = vpack.c.b16 %v5271, %v5263
    %v7392 = vpack.c.b16 %v5272, %v5264
    %v7393 = vpack.c.b16 %v5273, %v5265
    %v7394 = vpack.c.b16 %v5274, %v5266
    %v7395 = vpack.c.b16 %v5275, %v5267
    %v7396 = vpack.c.b16 %v5276, %v5268
    %v7397 = vpack.c.b16 %v5277, %v5269
    %v7398 = vpack.c.b16 %v5278, %v5270
    %v7399 = vpack.c.b16 %v5287, %v5279
    %v7400 = vpack.c.b16 %v5288, %v5280
    %v7401 = vpack.c.b16 %v5289, %v5281
    %v7402 = vpack.c.b16 %v5290, %v5282
    %v7403 = vpack.c.b16 %v5291, %v5283
    %v7404 = vpack.c.b16 %v5292, %v5284
    %v7405 = vpack.c.b16 %v5293, %v5285
    %v7406 = vpack.c.b16 %v5294, %v5286
    %v7407 = vpack.c.b16 %v5303, %v5295
    %v7408 = vpack.c.b16 %v5304, %v5296
    %v7409 = vpack.c.b16 %v5305, %v5297
    %v7410 = vpack.c.b16 %v5306, %v5298
    %v7411 = vpack.c.b16 %v5307, %v5299
    %v7412 = vpack.c.b16 %v5308, %v5300
    %v7413 = vpack.c.b16 %v5309, %v5301
    %v7414 = vpack.c.b16 %v5310, %v5302
    %v7415 = vpack.c.b16 %v5319, %v5311
    %v7416 = vpack.c.b16 %v5320, %v5312
    %v7417 = vpack.c.b16 %v5321, %v5313
    %v7418 = vpack.c.b16 %v5322, %v5314
    %v7419 = vpack.c.b16 %v5323, %v5315
    %v7420 = vpack.c.b16 %v5324, %v5316
    %v7421 = vpack.c.b16 %v5325, %v5317
    %v7422 = vpack.c.b16 %v5326, %v5318
    %v7423 = vpack.c.b16 %v5335, %v5327
    %v7424 = vpack.c.b16 %v5336, %v5328
    %v7425 = vpack.c.b16 %v5337, %v5329
    %v7426 = vpack.c.b16 %v5338, %v5330
    %v7427 = vpack.c.b16 %v5339, %v5331
    %v7428 = vpack.c.b16 %v5340, %v5332
    %v7429 = vpack.c.b16 %v5341, %v5333
    %v7430 = vpack.c.b16 %v5342, %v5334
    %v7431 = vpack.c.b16 %v5351, %v5343
    %v7432 = vpack.c.b16 %v5352, %v5344
    %v7433 = vpack.c.b16 %v5353, %v5345
    %v7434 = vpack.c.b16 %v5354, %v5346
    %v7435 = vpack.c.b16 %v5355, %v5347
    %v7436 = vpack.c.b16 %v5356, %v5348
    %v7437 = vpack.c.b16 %v5357, %v5349
    %v7438 = vpack.c.b16 %v5358, %v5350
    %v7439 = vpack.c.b16 %v5367, %v5359
    %v7440 = vpack.c.b16 %v5368, %v5360
    %v7441 = vpack.c.b16 %v5369, %v5361
    %v7442 = vpack.c.b16 %v5370, %v5362
    %v7443 = vpack.c.b16 %v5371, %v5363
    %v7444 = vpack.c.b16 %v5372, %v5364
    %v7445 = vpack.c.b16 %v5373, %v5365
    %v7446 = vpack.c.b16 %v5374, %v5366
    %v7447 = vpack.c.b16 %v5383, %v5375
    %v7448 = vpack.c.b16 %v5384, %v5376
    %v7449 = vpack.c.b16 %v5385, %v5377
    %v7450 = vpack.c.b16 %v5386, %v5378
    %v7451 = vpack.c.b16 %v5387, %v5379
    %v7452 = vpack.c.b16 %v5388, %v5380
    %v7453 = vpack.c.b16 %v5389, %v5381
    %v7454 = vpack.c.b16 %v5390, %v5382
    %v7455 = vpack.c.b16 %v5399, %v5391
    %v7456 = vpack.c.b16 %v5400, %v5392
    %v7457 = vpack.c.b16 %v5401, %v5393
    %v7458 = vpack.c.b16 %v5402, %v5394
    %v7459 = vpack.c.b16 %v5403, %v5395
    %v7460 = vpack.c.b16 %v5404, %v5396
    %v7461 = vpack.c.b16 %v5405, %v5397
    %v7462 = vpack.c.b16 %v5406, %v5398
    %v7463 = vpack.c.b16 %v5415, %v5407
    %v7464 = vpack.c.b16 %v5416, %v5408
    %v7465 = vpack.c.b16 %v5417, %v5409
    %v7466 = vpack.c.b16 %v5418, %v5410
    %v7467 = vpack.c.b16 %v5419, %v5411
    %v7468 = vpack.c.b16 %v5420, %v5412
    %v7469 = vpack.c.b16 %v5421, %v5413
    %v7470 = vpack.c.b16 %v5422, %v5414
    %v7471 = vpack.c.b16 %v5431, %v5423
    %v7472 = vpack.c.b16 %v5432, %v5424
    %v7473 = vpack.c.b16 %v5433, %v5425
    %v7474 = vpack.c.b16 %v5434, %v5426
    %v7475 = vpack.c.b16 %v5435, %v5427
    %v7476 = vpack.c.b16 %v5436, %v5428
    %v7477 = vpack.c.b16 %v5437, %v5429
    %v7478 = vpack.c.b16 %v5438, %v5430
    %v7479 = vpack.c.b16 %v5447, %v5439
    %v7480 = vpack.c.b16 %v5448, %v5440
    %v7481 = vpack.c.b16 %v5449, %v5441
    %v7482 = vpack.c.b16 %v5450, %v5442
    %v7483 = vpack.c.b16 %v5451, %v5443
    %v7484 = vpack.c.b16 %v5452, %v5444
    %v7485 = vpack.c.b16 %v5453, %v5445
    %v7486 = vpack.c.b16 %v5454, %v5446
    %v7487 = vpack.c.b16 %v5463, %v5455
    %v7488 = vpack.c.b16 %v5464, %v5456
    %v7489 = vpack.c.b16 %v5465, %v5457
    %v7490 = vpack.c.b16 %v5466, %v5458
    %v7491 = vpack.c.b16 %v5467, %v5459
    %v7492 = vpack.c.b16 %v5468, %v5460
    %v7493 = vpack.c.b16 %v5469, %v5461
    %v7494 = vpack.c.b16 %v5470, %v5462
    %v7495 = vpack.c.b16 %v5479, %v5471
    %v7496 = vpack.c.b16 %v5480, %v5472
    %v7497 = vpack.c.b16 %v5481, %v5473
    %v7498 = vpack.c.b16 %v5482, %v5474
    %v7499 = vpack.c.b16 %v5483, %v5475
    %v7500 = vpack.c.b16 %v5484, %v5476
    %v7501 = vpack.c.b16 %v5485, %v5477
    %v7502 = vpack.c.b16 %v5486, %v5478
    %v7503 = vpack.c.b16 %v5495, %v5487
    %v7504 = vpack.c.b16 %v5496, %v5488
    %v7505 = vpack.c.b16 %v5497, %v5489
    %v7506 = vpack.c.b16 %v5498, %v5490
    %v7507 = vpack.c.b16 %v5499, %v5491
    %v7508 = vpack.c.b16 %v5500, %v5492
    %v7509 = vpack.c.b16 %v5501, %v5493
    %v7510 = vpack.c.b16 %v5502, %v5494
    %v7511 = vpack.c.b16 %v5511, %v5503
    %v7512 = vpack.c.b16 %v5512, %v5504
    %v7513 = vpack.c.b16 %v5513, %v5505
    %v7514 = vpack.c.b16 %v5514, %v5506
    %v7515 = vpack.c.b16 %v5515, %v5507
    %v7516 = vpack.c.b16 %v5516, %v5508
    %v7517 = vpack.c.b16 %v5517, %v5509
    %v7518 = vpack.c.b16 %v5518, %v5510
    %v7519 = vpack.c.b16 %v5527, %v5519
    %v7520 = vpack.c.b16 %v5528, %v5520
    %v7521 = vpack.c.b16 %v5529, %v5521
    %v7522 = vpack.c.b16 %v5530, %v5522
    %v7523 = vpack.c.b16 %v5531, %v5523
    %v7524 = vpack.c.b16 %v5532, %v5524
    %v7525 = vpack.c.b16 %v5533, %v5525
    %v7526 = vpack.c.b16 %v5534, %v5526
    %v7527 = vpack.c.b16 %v5543, %v5535
    %v7528 = vpack.c.b16 %v5544, %v5536
    %v7529 = vpack.c.b16 %v5545, %v5537
    %v7530 = vpack.c.b16 %v5546, %v5538
    %v7531 = vpack.c.b16 %v5547, %v5539
    %v7532 = vpack.c.b16 %v5548, %v5540
    %v7533 = vpack.c.b16 %v5549, %v5541
    %v7534 = vpack.c.b16 %v5550, %v5542
    %v7535 = vpack.c.b16 %v5559, %v5551
    %v7536 = vpack.c.b16 %v5560, %v5552
    %v7537 = vpack.c.b16 %v5561, %v5553
    %v7538 = vpack.c.b16 %v5562, %v5554
    %v7539 = vpack.c.b16 %v5563, %v5555
    %v7540 = vpack.c.b16 %v5564, %v5556
    %v7541 = vpack.c.b16 %v5565, %v5557
    %v7542 = vpack.c.b16 %v5566, %v5558
    %v7543 = vpack.c.b16 %v5575, %v5567
    %v7544 = vpack.c.b16 %v5576, %v5568
    %v7545 = vpack.c.b16 %v5577, %v5569
    %v7546 = vpack.c.b16 %v5578, %v5570
    %v7547 = vpack.c.b16 %v5579, %v5571
    %v7548 = vpack.c.b16 %v5580, %v5572
    %v7549 = vpack.c.b16 %v5581, %v5573
    %v7550 = vpack.c.b16 %v5582, %v5574
    %v7551 = vpack.c.b16 %v5591, %v5583
    %v7552 = vpack.c.b16 %v5592, %v5584
    %v7553 = vpack.c.b16 %v5593, %v5585
    %v7554 = vpack.c.b16 %v5594, %v5586
    %v7555 = vpack.c.b16 %v5595, %v5587
    %v7556 = vpack.c.b16 %v5596, %v5588
    %v7557 = vpack.c.b16 %v5597, %v5589
    %v7558 = vpack.c.b16 %v5598, %v5590
    %v7559 = vpack.c.b16 %v5607, %v5599
    %v7560 = vpack.c.b16 %v5608, %v5600
    %v7561 = vpack.c.b16 %v5609, %v5601
    %v7562 = vpack.c.b16 %v5610, %v5602
    %v7563 = vpack.c.b16 %v5611, %v5603
    %v7564 = vpack.c.b16 %v5612, %v5604
    %v7565 = vpack.c.b16 %v5613, %v5605
    %v7566 = vpack.c.b16 %v5614, %v5606
    %v7567 = vpack.c.b16 %v5623, %v5615
    %v7568 = vpack.c.b16 %v5624, %v5616
    %v7569 = vpack.c.b16 %v5625, %v5617
    %v7570 = vpack.c.b16 %v5626, %v5618
    %v7571 = vpack.c.b16 %v5627, %v5619
    %v7572 = vpack.c.b16 %v5628, %v5620
    %v7573 = vpack.c.b16 %v5629, %v5621
    %v7574 = vpack.c.b16 %v5630, %v5622
    %v7575 = vpack.c.b16 %v5639, %v5631
    %v7576 = vpack.c.b16 %v5640, %v5632
    %v7577 = vpack.c.b16 %v5641, %v5633
    %v7578 = vpack.c.b16 %v5642, %v5634
    %v7579 = vpack.c.b16 %v5643, %v5635
    %v7580 = vpack.c.b16 %v5644, %v5636
    %v7581 = vpack.c.b16 %v5645, %v5637
    %v7582 = vpack.c.b16 %v5646, %v5638
    %v7583 = vpack.c.b16 %v5655, %v5647
    %v7584 = vpack.c.b16 %v5656, %v5648
    %v7585 = vpack.c.b16 %v5657, %v5649
    %v7586 = vpack.c.b16 %v5658, %v5650
    %v7587 = vpack.c.b16 %v5659, %v5651
    %v7588 = vpack.c.b16 %v5660, %v5652
    %v7589 = vpack.c.b16 %v5661, %v5653
    %v7590 = vpack.c.b16 %v5662, %v5654
    %v7591 = vpack.c.b16 %v5671, %v5663
    %v7592 = vpack.c.b16 %v5672, %v5664
    %v7593 = vpack.c.b16 %v5673, %v5665
    %v7594 = vpack.c.b16 %v5674, %v5666
    %v7595 = vpack.c.b16 %v5675, %v5667
    %v7596 = vpack.c.b16 %v5676, %v5668
    %v7597 = vpack.c.b16 %v5677, %v5669
    %v7598 = vpack.c.b16 %v5678, %v5670
    %v7599 = vpack.c.b16 %v5687, %v5679
    %v7600 = vpack.c.b16 %v5688, %v5680
    %v7601 = vpack.c.b16 %v5689, %v5681
    %v7602 = vpack.c.b16 %v5690, %v5682
    %v7603 = vpack.c.b16 %v5691, %v5683
    %v7604 = vpack.c.b16 %v5692, %v5684
    %v7605 = vpack.c.b16 %v5693, %v5685
    %v7606 = vpack.c.b16 %v5694, %v5686
    %v7607 = vpack.c.b16 %v5703, %v5695
    %v7608 = vpack.c.b16 %v5704, %v5696
    %v7609 = vpack.c.b16 %v5705, %v5697
    %v7610 = vpack.c.b16 %v5706, %v5698
    %v7611 = vpack.c.b16 %v5707, %v5699
    %v7612 = vpack.c.b16 %v5708, %v5700
    %v7613 = vpack.c.b16 %v5709, %v5701
    %v7614 = vpack.c.b16 %v5710, %v5702
    %v7615 = vpack.c.b16 %v5719, %v5711
    %v7616 = vpack.c.b16 %v5720, %v5712
    %v7617 = vpack.c.b16 %v5721, %v5713
    %v7618 = vpack.c.b16 %v5722, %v5714
    %v7619 = vpack.c.b16 %v5723, %v5715
    %v7620 = vpack.c.b16 %v5724, %v5716
    %v7621 = vpack.c.b16 %v5725, %v5717
    %v7622 = vpack.c.b16 %v5726, %v5718
    %v7623 = vpack.c.b16 %v5735, %v5727
    %v7624 = vpack.c.b16 %v5736, %v5728
    %v7625 = vpack.c.b16 %v5737, %v5729
    %v7626 = vpack.c.b16 %v5738, %v5730
    %v7627 = vpack.c.b16 %v5739, %v5731
    %v7628 = vpack.c.b16 %v5740, %v5732
    %v7629 = vpack.c.b16 %v5741, %v5733
    %v7630 = vpack.c.b16 %v5742, %v5734
    %v7631 = vpack.c.b16 %v5751, %v5743
    %v7632 = vpack.c.b16 %v5752, %v5744
    %v7633 = vpack.c.b16 %v5753, %v5745
    %v7634 = vpack.c.b16 %v5754, %v5746
    %v7635 = vpack.c.b16 %v5755, %v5747
    %v7636 = vpack.c.b16 %v5756, %v5748
    %v7637 = vpack.c.b16 %v5757, %v5749
    %v7638 = vpack.c.b16 %v5758, %v5750
    %v7639 = vpack.c.b16 %v5767, %v5759
    %v7640 = vpack.c.b16 %v5768, %v5760
    %v7641 = vpack.c.b16 %v5769, %v5761
    %v7642 = vpack.c.b16 %v5770, %v5762
    %v7643 = vpack.c.b16 %v5771, %v5763
    %v7644 = vpack.c.b16 %v5772, %v5764
    %v7645 = vpack.c.b16 %v5773, %v5765
    %v7646 = vpack.c.b16 %v5774, %v5766
    %v7647 = vpack.c.b16 %v5783, %v5775
    %v7648 = vpack.c.b16 %v5784, %v5776
    %v7649 = vpack.c.b16 %v5785, %v5777
    %v7650 = vpack.c.b16 %v5786, %v5778
    %v7651 = vpack.c.b16 %v5787, %v5779
    %v7652 = vpack.c.b16 %v5788, %v5780
    %v7653 = vpack.c.b16 %v5789, %v5781
    %v7654 = vpack.c.b16 %v5790, %v5782
    %v7655 = vpack.c.b16 %v5799, %v5791
    %v7656 = vpack.c.b16 %v5800, %v5792
    %v7657 = vpack.c.b16 %v5801, %v5793
    %v7658 = vpack.c.b16 %v5802, %v5794
    %v7659 = vpack.c.b16 %v5803, %v5795
    %v7660 = vpack.c.b16 %v5804, %v5796
    %v7661 = vpack.c.b16 %v5805, %v5797
    %v7662 = vpack.c.b16 %v5806, %v5798
    %v7663 = vpack.c.b16 %v5815, %v5807
    %v7664 = vpack.c.b16 %v5816, %v5808
    %v7665 = vpack.c.b16 %v5817, %v5809
    %v7666 = vpack.c.b16 %v5818, %v5810
    %v7667 = vpack.c.b16 %v5819, %v5811
    %v7668 = vpack.c.b16 %v5820, %v5812
    %v7669 = vpack.c.b16 %v5821, %v5813
    %v7670 = vpack.c.b16 %v5822, %v5814
    %v7671 = vpack.c.b16 %v5831, %v5823
    %v7672 = vpack.c.b16 %v5832, %v5824
    %v7673 = vpack.c.b16 %v5833, %v5825
    %v7674 = vpack.c.b16 %v5834, %v5826
    %v7675 = vpack.c.b16 %v5835, %v5827
    %v7676 = vpack.c.b16 %v5836, %v5828
    %v7677 = vpack.c.b16 %v5837, %v5829
    %v7678 = vpack.c.b16 %v5838, %v5830
    %v7679 = vpack.c.b16 %v5847, %v5839
    %v7680 = vpack.c.b16 %v5848, %v5840
    %v7681 = vpack.c.b16 %v5849, %v5841
    %v7682 = vpack.c.b16 %v5850, %v5842
    %v7683 = vpack.c.b16 %v5851, %v5843
    %v7684 = vpack.c.b16 %v5852, %v5844
    %v7685 = vpack.c.b16 %v5853, %v5845
    %v7686 = vpack.c.b16 %v5854, %v5846
    %v7687 = vpack.c.b16 %v5863, %v5855
    %v7688 = vpack.c.b16 %v5864, %v5856
    %v7689 = vpack.c.b16 %v5865, %v5857
    %v7690 = vpack.c.b16 %v5866, %v5858
    %v7691 = vpack.c.b16 %v5867, %v5859
    %v7692 = vpack.c.b16 %v5868, %v5860
    %v7693 = vpack.c.b16 %v5869, %v5861
    %v7694 = vpack.c.b16 %v5870, %v5862
    %v7695 = vpack.c.b16 %v5879, %v5871
    %v7696 = vpack.c.b16 %v5880, %v5872
    %v7697 = vpack.c.b16 %v5881, %v5873
    %v7698 = vpack.c.b16 %v5882, %v5874
    %v7699 = vpack.c.b16 %v5883, %v5875
    %v7700 = vpack.c.b16 %v5884, %v5876
    %v7701 = vpack.c.b16 %v5885, %v5877
    %v7702 = vpack.c.b16 %v5886, %v5878
    %v7703 = vpack.c.b16 %v5895, %v5887
    %v7704 = vpack.c.b16 %v5896, %v5888
    %v7705 = vpack.c.b16 %v5897, %v5889
    %v7706 = vpack.c.b16 %v5898, %v5890
    %v7707 = vpack.c.b16 %v5899, %v5891
    %v7708 = vpack.c.b16 %v5900, %v5892
    %v7709 = vpack.c.b16 %v5901, %v5893
    %v7710 = vpack.c.b16 %v5902, %v5894
    %v7711 = vpack.c.b16 %v5911, %v5903
    %v7712 = vpack.c.b16 %v5912, %v5904
    %v7713 = vpack.c.b16 %v5913, %v5905
    %v7714 = vpack.c.b16 %v5914, %v5906
    %v7715 = vpack.c.b16 %v5915, %v5907
    %v7716 = vpack.c.b16 %v5916, %v5908
    %v7717 = vpack.c.b16 %v5917, %v5909
    %v7718 = vpack.c.b16 %v5918, %v5910
    %v7719 = vpack.c.b16 %v5927, %v5919
    %v7720 = vpack.c.b16 %v5928, %v5920
    %v7721 = vpack.c.b16 %v5929, %v5921
    %v7722 = vpack.c.b16 %v5930, %v5922
    %v7723 = vpack.c.b16 %v5931, %v5923
    %v7724 = vpack.c.b16 %v5932, %v5924
    %v7725 = vpack.c.b16 %v5933, %v5925
    %v7726 = vpack.c.b16 %v5934, %v5926
    %v7727 = vpack.c.b16 %v5943, %v5935
    %v7728 = vpack.c.b16 %v5944, %v5936
    %v7729 = vpack.c.b16 %v5945, %v5937
    %v7730 = vpack.c.b16 %v5946, %v5938
    %v7731 = vpack.c.b16 %v5947, %v5939
    %v7732 = vpack.c.b16 %v5948, %v5940
    %v7733 = vpack.c.b16 %v5949, %v5941
    %v7734 = vpack.c.b16 %v5950, %v5942
    %v7735 = vpack.c.b16 %v5959, %v5951
    %v7736 = vpack.c.b16 %v5960, %v5952
    %v7737 = vpack.c.b16 %v5961, %v5953
    %v7738 = vpack.c.b16 %v5962, %v5954
    %v7739 = vpack.c.b16 %v5963, %v5955
    %v7740 = vpack.c.b16 %v5964, %v5956
    %v7741 = vpack.c.b16 %v5965, %v5957
    %v7742 = vpack.c.b16 %v5966, %v5958
    %v7743 = vpack.c.b16 %v5975, %v5967
    %v7744 = vpack.c.b16 %v5976, %v5968
    %v7745 = vpack.c.b16 %v5977, %v5969
    %v7746 = vpack.c.b16 %v5978, %v5970
    %v7747 = vpack.c.b16 %v5979, %v5971
    %v7748 = vpack.c.b16 %v5980, %v5972
    %v7749 = vpack.c.b16 %v5981, %v5973
    %v7750 = vpack.c.b16 %v5982, %v5974
    %v7751 = vpack.c.b16 %v5991, %v5983
    %v7752 = vpack.c.b16 %v5992, %v5984
    %v7753 = vpack.c.b16 %v5993, %v5985
    %v7754 = vpack.c.b16 %v5994, %v5986
    %v7755 = vpack.c.b16 %v5995, %v5987
    %v7756 = vpack.c.b16 %v5996, %v5988
    %v7757 = vpack.c.b16 %v5997, %v5989
    %v7758 = vpack.c.b16 %v5998, %v5990
    %v7759 = vpack.c.b16 %v6007, %v5999
    %v7760 = vpack.c.b16 %v6008, %v6000
    %v7761 = vpack.c.b16 %v6009, %v6001
    %v7762 = vpack.c.b16 %v6010, %v6002
    %v7763 = vpack.c.b16 %v6011, %v6003
    %v7764 = vpack.c.b16 %v6012, %v6004
    %v7765 = vpack.c.b16 %v6013, %v6005
    %v7766 = vpack.c.b16 %v6014, %v6006
    %v7767 = vpack.c.b16 %v6023, %v6015
    %v7768 = vpack.c.b16 %v6024, %v6016
    %v7769 = vpack.c.b16 %v6025, %v6017
    %v7770 = vpack.c.b16 %v6026, %v6018
    %v7771 = vpack.c.b16 %v6027, %v6019
    %v7772 = vpack.c.b16 %v6028, %v6020
    %v7773 = vpack.c.b16 %v6029, %v6021
    %v7774 = vpack.c.b16 %v6030, %v6022
    %v7775 = vpack.c.b16 %v6039, %v6031
    %v7776 = vpack.c.b16 %v6040, %v6032
    %v7777 = vpack.c.b16 %v6041, %v6033
    %v7778 = vpack.c.b16 %v6042, %v6034
    %v7779 = vpack.c.b16 %v6043, %v6035
    %v7780 = vpack.c.b16 %v6044, %v6036
    %v7781 = vpack.c.b16 %v6045, %v6037
    %v7782 = vpack.c.b16 %v6046, %v6038
    %v7783 = vpack.c.b16 %v6055, %v6047
    %v7784 = vpack.c.b16 %v6056, %v6048
    %v7785 = vpack.c.b16 %v6057, %v6049
    %v7786 = vpack.c.b16 %v6058, %v6050
    %v7787 = vpack.c.b16 %v6059, %v6051
    %v7788 = vpack.c.b16 %v6060, %v6052
    %v7789 = vpack.c.b16 %v6061, %v6053
    %v7790 = vpack.c.b16 %v6062, %v6054
    %v7791 = vpack.c.b16 %v6071, %v6063
    %v7792 = vpack.c.b16 %v6072, %v6064
    %v7793 = vpack.c.b16 %v6073, %v6065
    %v7794 = vpack.c.b16 %v6074, %v6066
    %v7795 = vpack.c.b16 %v6075, %v6067
    %v7796 = vpack.c.b16 %v6076, %v6068
    %v7797 = vpack.c.b16 %v6077, %v6069
    %v7798 = vpack.c.b16 %v6078, %v6070
    %v7799 = vpack.c.b16 %v6087, %v6079
    %v7800 = vpack.c.b16 %v6088, %v6080
    %v7801 = vpack.c.b16 %v6089, %v6081
    %v7802 = vpack.c.b16 %v6090, %v6082
    %v7803 = vpack.c.b16 %v6091, %v6083
    %v7804 = vpack.c.b16 %v6092, %v6084
    %v7805 = vpack.c.b16 %v6093, %v6085
    %v7806 = vpack.c.b16 %v6094, %v6086
    %v7807 = vpack.c.b16 %v6103, %v6095
    %v7808 = vpack.c.b16 %v6104, %v6096
    %v7809 = vpack.c.b16 %v6105, %v6097
    %v7810 = vpack.c.b16 %v6106, %v6098
    %v7811 = vpack.c.b16 %v6107, %v6099
    %v7812 = vpack.c.b16 %v6108, %v6100
    %v7813 = vpack.c.b16 %v6109, %v6101
    %v7814 = vpack.c.b16 %v6110, %v6102
    %v7815 = vpack.c.b16 %v6119, %v6111
    %v7816 = vpack.c.b16 %v6120, %v6112
    %v7817 = vpack.c.b16 %v6121, %v6113
    %v7818 = vpack.c.b16 %v6122, %v6114
    %v7819 = vpack.c.b16 %v6123, %v6115
    %v7820 = vpack.c.b16 %v6124, %v6116
    %v7821 = vpack.c.b16 %v6125, %v6117
    %v7822 = vpack.c.b16 %v6126, %v6118
    %v7823 = vpack.c.b16 %v6135, %v6127
    %v7824 = vpack.c.b16 %v6136, %v6128
    %v7825 = vpack.c.b16 %v6137, %v6129
    %v7826 = vpack.c.b16 %v6138, %v6130
    %v7827 = vpack.c.b16 %v6139, %v6131
    %v7828 = vpack.c.b16 %v6140, %v6132
    %v7829 = vpack.c.b16 %v6141, %v6133
    %v7830 = vpack.c.b16 %v6142, %v6134
    %v7831 = vpack.c.b16 %v6151, %v6143
    %v7832 = vpack.c.b16 %v6152, %v6144
    %v7833 = vpack.c.b16 %v6153, %v6145
    %v7834 = vpack.c.b16 %v6154, %v6146
    %v7835 = vpack.c.b16 %v6155, %v6147
    %v7836 = vpack.c.b16 %v6156, %v6148
    %v7837 = vpack.c.b16 %v6157, %v6149
    %v7838 = vpack.c.b16 %v6158, %v6150
    %v7839 = vpack.c.b16 %v6167, %v6159
    %v7840 = vpack.c.b16 %v6168, %v6160
    %v7841 = vpack.c.b16 %v6169, %v6161
    %v7842 = vpack.c.b16 %v6170, %v6162
    %v7843 = vpack.c.b16 %v6171, %v6163
    %v7844 = vpack.c.b16 %v6172, %v6164
    %v7845 = vpack.c.b16 %v6173, %v6165
    %v7846 = vpack.c.b16 %v6174, %v6166
    %v7847 = vpack.c.b16 %v6183, %v6175
    %v7848 = vpack.c.b16 %v6184, %v6176
    %v7849 = vpack.c.b16 %v6185, %v6177
    %v7850 = vpack.c.b16 %v6186, %v6178
    %v7851 = vpack.c.b16 %v6187, %v6179
    %v7852 = vpack.c.b16 %v6188, %v6180
    %v7853 = vpack.c.b16 %v6189, %v6181
    %v7854 = vpack.c.b16 %v6190, %v6182
    %v7855 = vpack.c.b16 %v6199, %v6191
    %v7856 = vpack.c.b16 %v6200, %v6192
    %v7857 = vpack.c.b16 %v6201, %v6193
    %v7858 = vpack.c.b16 %v6202, %v6194
    %v7859 = vpack.c.b16 %v6203, %v6195
    %v7860 = vpack.c.b16 %v6204, %v6196
    %v7861 = vpack.c.b16 %v6205, %v6197
    %v7862 = vpack.c.b16 %v6206, %v6198
    %v7863 = vpack.c.b16 %v6215, %v6207
    %v7864 = vpack.c.b16 %v6216, %v6208
    %v7865 = vpack.c.b16 %v6217, %v6209
    %v7866 = vpack.c.b16 %v6218, %v6210
    %v7867 = vpack.c.b16 %v6219, %v6211
    %v7868 = vpack.c.b16 %v6220, %v6212
    %v7869 = vpack.c.b16 %v6221, %v6213
    %v7870 = vpack.c.b16 %v6222, %v6214
    %v7871 = vpack.c.b16 %v6231, %v6223
    %v7872 = vpack.c.b16 %v6232, %v6224
    %v7873 = vpack.c.b16 %v6233, %v6225
    %v7874 = vpack.c.b16 %v6234, %v6226
    %v7875 = vpack.c.b16 %v6235, %v6227
    %v7876 = vpack.c.b16 %v6236, %v6228
    %v7877 = vpack.c.b16 %v6237, %v6229
    %v7878 = vpack.c.b16 %v6238, %v6230
    %v7879 = vpack.c.b16 %v6247, %v6239
    %v7880 = vpack.c.b16 %v6248, %v6240
    %v7881 = vpack.c.b16 %v6249, %v6241
    %v7882 = vpack.c.b16 %v6250, %v6242
    %v7883 = vpack.c.b16 %v6251, %v6243
    %v7884 = vpack.c.b16 %v6252, %v6244
    %v7885 = vpack.c.b16 %v6253, %v6245
    %v7886 = vpack.c.b16 %v6254, %v6246
    %v7887 = vpack.c.b16 %v6263, %v6255
    %v7888 = vpack.c.b16 %v6264, %v6256
    %v7889 = vpack.c.b16 %v6265, %v6257
    %v7890 = vpack.c.b16 %v6266, %v6258
    %v7891 = vpack.c.b16 %v6267, %v6259
    %v7892 = vpack.c.b16 %v6268, %v6260
    %v7893 = vpack.c.b16 %v6269, %v6261
    %v7894 = vpack.c.b16 %v6270, %v6262
    %v7895 = vpack.c.b16 %v6279, %v6271
    %v7896 = vpack.c.b16 %v6280, %v6272
    %v7897 = vpack.c.b16 %v6281, %v6273
    %v7898 = vpack.c.b16 %v6282, %v6274
    %v7899 = vpack.c.b16 %v6283, %v6275
    %v7900 = vpack.c.b16 %v6284, %v6276
    %v7901 = vpack.c.b16 %v6285, %v6277
    %v7902 = vpack.c.b16 %v6286, %v6278
    %v7903 = vpack.c.b16 %v6295, %v6287
    %v7904 = vpack.c.b16 %v6296, %v6288
    %v7905 = vpack.c.b16 %v6297, %v6289
    %v7906 = vpack.c.b16 %v6298, %v6290
    %v7907 = vpack.c.b16 %v6299, %v6291
    %v7908 = vpack.c.b16 %v6300, %v6292
    %v7909 = vpack.c.b16 %v6301, %v6293
    %v7910 = vpack.c.b16 %v6302, %v6294
    %v7911 = vpack.c.b16 %v6311, %v6303
    %v7912 = vpack.c.b16 %v6312, %v6304
    %v7913 = vpack.c.b16 %v6313, %v6305
    %v7914 = vpack.c.b16 %v6314, %v6306
    %v7915 = vpack.c.b16 %v6315, %v6307
    %v7916 = vpack.c.b16 %v6316, %v6308
    %v7917 = vpack.c.b16 %v6317, %v6309
    %v7918 = vpack.c.b16 %v6318, %v6310
    %v7919 = vpack.c.b16 %v6327, %v6319
    %v7920 = vpack.c.b16 %v6328, %v6320
    %v7921 = vpack.c.b16 %v6329, %v6321
    %v7922 = vpack.c.b16 %v6330, %v6322
    %v7923 = vpack.c.b16 %v6331, %v6323
    %v7924 = vpack.c.b16 %v6332, %v6324
    %v7925 = vpack.c.b16 %v6333, %v6325
    %v7926 = vpack.c.b16 %v6334, %v6326
    %v7927 = vpack.c.b16 %v6343, %v6335
    %v7928 = vpack.c.b16 %v6344, %v6336
    %v7929 = vpack.c.b16 %v6345, %v6337
    %v7930 = vpack.c.b16 %v6346, %v6338
    %v7931 = vpack.c.b16 %v6347, %v6339
    %v7932 = vpack.c.b16 %v6348, %v6340
    %v7933 = vpack.c.b16 %v6349, %v6341
    %v7934 = vpack.c.b16 %v6350, %v6342
    %v7935 = vpack.c.b16 %v6359, %v6351
    %v7936 = vpack.c.b16 %v6360, %v6352
    %v7937 = vpack.c.b16 %v6361, %v6353
    %v7938 = vpack.c.b16 %v6362, %v6354
    %v7939 = vpack.c.b16 %v6363, %v6355
    %v7940 = vpack.c.b16 %v6364, %v6356
    %v7941 = vpack.c.b16 %v6365, %v6357
    %v7942 = vpack.c.b16 %v6366, %v6358
    %v7943 = vpack.c.b16 %v6375, %v6367
    %v7944 = vpack.c.b16 %v6376, %v6368
    %v7945 = vpack.c.b16 %v6377, %v6369
    %v7946 = vpack.c.b16 %v6378, %v6370
    %v7947 = vpack.c.b16 %v6379, %v6371
    %v7948 = vpack.c.b16 %v6380, %v6372
    %v7949 = vpack.c.b16 %v6381, %v6373
    %v7950 = vpack.c.b16 %v6382, %v6374
    %v7951 = vpack.c.b16 %v6391, %v6383
    %v7952 = vpack.c.b16 %v6392, %v6384
    %v7953 = vpack.c.b16 %v6393, %v6385
    %v7954 = vpack.c.b16 %v6394, %v6386
    %v7955 = vpack.c.b16 %v6395, %v6387
    %v7956 = vpack.c.b16 %v6396, %v6388
    %v7957 = vpack.c.b16 %v6397, %v6389
    %v7958 = vpack.c.b16 %v6398, %v6390
    %v7959 = vpack.c.b16 %v6407, %v6399
    %v7960 = vpack.c.b16 %v6408, %v6400
    %v7961 = vpack.c.b16 %v6409, %v6401
    %v7962 = vpack.c.b16 %v6410, %v6402
    %v7963 = vpack.c.b16 %v6411, %v6403
    %v7964 = vpack.c.b16 %v6412, %v6404
    %v7965 = vpack.c.b16 %v6413, %v6405
    %v7966 = vpack.c.b16 %v6414, %v6406
    %v7967 = vpack.c.b16 %v6423, %v6415
    %v7968 = vpack.c.b16 %v6424, %v6416
    %v7969 = vpack.c.b16 %v6425, %v6417
    %v7970 = vpack.c.b16 %v6426, %v6418
    %v7971 = vpack.c.b16 %v6427, %v6419
    %v7972 = vpack.c.b16 %v6428, %v6420
    %v7973 = vpack.c.b16 %v6429, %v6421
    %v7974 = vpack.c.b16 %v6430, %v6422
    %v7975 = vpack.c.b16 %v6439, %v6431
    %v7976 = vpack.c.b16 %v6440, %v6432
    %v7977 = vpack.c.b16 %v6441, %v6433
    %v7978 = vpack.c.b16 %v6442, %v6434
    %v7979 = vpack.c.b16 %v6443, %v6435
    %v7980 = vpack.c.b16 %v6444, %v6436
    %v7981 = vpack.c.b16 %v6445, %v6437
    %v7982 = vpack.c.b16 %v6446, %v6438
    %9519 = vmatprep.subr.bf16.mxu0 %v6504
    %9520 = vmatpush1.bf16.msra.mxu0 %v6503
    %9521 = vmatprep.subr.bf16.mxu0 %v6496
    %9522 = vmatpush1.bf16.msra.mxu0 %v6495
    %9523 = vmatprep.subr.bf16.mxu0 %v6488
    %9524 = vmatpush1.bf16.msra.mxu0 %v6487
    %9525 = vmatprep.subr.bf16.mxu0 %v6480
    %9526 = vmatpush1.bf16.msra.mxu0 %v6479
    %9527 = vmatprep.subr.bf16.mxu0 %v6472
    %9528 = vmatpush1.bf16.msra.mxu0 %v6471
    %9529 = vmatprep.subr.bf16.mxu0 %v6464
    %9530 = vmatpush1.bf16.msra.mxu0 %v6463
    %9531 = vmatprep.subr.bf16.mxu0 %v6456
    %9532 = vmatpush1.bf16.msra.mxu0 %v6455
    %9533 = vmatprep.subr.bf16.mxu0 %v6448
    %9534 = vmatpush1.bf16.msra.mxu0 %v6447
    %9535 = vmatprep.subr.bf16.mxu0 %v6568
    %9536 = vmatpush2.bf16.msra.mxu0 %v6567
    %9537 = vmatprep.subr.bf16.mxu0 %v6560
    %9538 = vmatpush2.bf16.msra.mxu0 %v6559
    %9539 = vmatprep.subr.bf16.mxu0 %v6552
    %9540 = vmatpush2.bf16.msra.mxu0 %v6551
    %9541 = vmatprep.subr.bf16.mxu0 %v6544
    %9542 = vmatpush2.bf16.msra.mxu0 %v6543
    %9543 = vmatprep.subr.bf16.mxu0 %v6536
    %9544 = vmatpush2.bf16.msra.mxu0 %v6535
    %9545 = vmatprep.subr.bf16.mxu0 %v6528
    %9546 = vmatpush2.bf16.msra.mxu0 %v6527
    %9547 = vmatprep.subr.bf16.mxu0 %v6520
    %9548 = vmatpush2.bf16.msra.mxu0 %v6519
    %9549 = vmatprep.subr.bf16.mxu0 %v6512
    %9550 = vmatpush2.bf16.msra.mxu0 %v6511
    %9551 = vmatprep.mubr.bf16.mxu0 %v239
    %9552 = vmatmul.mubr.bf16.gmra.mxu0 %v238
    %v9553 = vpop.f32.mrf.mxu0
    %v9554 = vadd.f32 %v1802, %v9553
    %v9555 = vpop.f32.mrf.mxu0
    %v9556 = vadd.f32 %v1806, %v9555
    %v9557 = vpop.f32.mrf.mxu0
    %v9558 = vpop.f32.mrf.mxu0
    %9559 = vdwg.mxu0
    %9560 = vmatprep.subr.bf16.mxu0 %v6632
    %9561 = vmatpush1.bf16.msra.mxu0 %v6631
    %9562 = vmatprep.subr.bf16.mxu0 %v6624
    %9563 = vmatpush1.bf16.msra.mxu0 %v6623
    %9564 = vmatprep.subr.bf16.mxu0 %v6616
    %9565 = vmatpush1.bf16.msra.mxu0 %v6615
    %9566 = vmatprep.subr.bf16.mxu0 %v6608
    %9567 = vmatpush1.bf16.msra.mxu0 %v6607
    %9568 = vmatprep.subr.bf16.mxu0 %v6600
    %9569 = vmatpush1.bf16.msra.mxu0 %v6599
    %9570 = vmatprep.subr.bf16.mxu0 %v6592
    %9571 = vmatpush1.bf16.msra.mxu0 %v6591
    %9572 = vmatprep.subr.bf16.mxu0 %v6584
    %9573 = vmatpush1.bf16.msra.mxu0 %v6583
    %9574 = vmatprep.subr.bf16.mxu0 %v6576
    %9575 = vmatpush1.bf16.msra.mxu0 %v6575
    %9576 = vmatprep.subr.bf16.mxu0 %v6696
    %9577 = vmatpush2.bf16.msra.mxu0 %v6695
    %9578 = vmatprep.subr.bf16.mxu0 %v6688
    %9579 = vmatpush2.bf16.msra.mxu0 %v6687
    %9580 = vmatprep.subr.bf16.mxu0 %v6680
    %9581 = vmatpush2.bf16.msra.mxu0 %v6679
    %9582 = vmatprep.subr.bf16.mxu0 %v6672
    %9583 = vmatpush2.bf16.msra.mxu0 %v6671
    %9584 = vmatprep.subr.bf16.mxu0 %v6664
    %9585 = vmatpush2.bf16.msra.mxu0 %v6663
    %9586 = vmatprep.subr.bf16.mxu0 %v6656
    %9587 = vmatpush2.bf16.msra.mxu0 %v6655
    %9588 = vmatprep.subr.bf16.mxu0 %v6648
    %9589 = vmatpush2.bf16.msra.mxu0 %v6647
    %9590 = vmatprep.subr.bf16.mxu0 %v6640
    %9591 = vmatpush2.bf16.msra.mxu0 %v6639
    %9592 = vmatprep.mubr.bf16.mxu0 %v241
    %9593 = vmatmul.mubr.bf16.gmra.mxu0 %v240
    %v9594 = vpop.f32.mrf.mxu0
    %v9595 = vadd.f32 %v9554, %v9594
    %v9596 = vpop.f32.mrf.mxu0
    %v9597 = vadd.f32 %v9556, %v9596
    %v9598 = vpop.f32.mrf.mxu0
    %v9599 = vpop.f32.mrf.mxu0
    %9600 = vdwg.mxu0
    %9601 = vmatprep.subr.bf16.mxu0 %v6760
    %9602 = vmatpush1.bf16.msra.mxu0 %v6759
    %9603 = vmatprep.subr.bf16.mxu0 %v6752
    %9604 = vmatpush1.bf16.msra.mxu0 %v6751
    %9605 = vmatprep.subr.bf16.mxu0 %v6744
    %9606 = vmatpush1.bf16.msra.mxu0 %v6743
    %9607 = vmatprep.subr.bf16.mxu0 %v6736
    %9608 = vmatpush1.bf16.msra.mxu0 %v6735
    %9609 = vmatprep.subr.bf16.mxu0 %v6728
    %9610 = vmatpush1.bf16.msra.mxu0 %v6727
    %9611 = vmatprep.subr.bf16.mxu0 %v6720
    %9612 = vmatpush1.bf16.msra.mxu0 %v6719
    %9613 = vmatprep.subr.bf16.mxu0 %v6712
    %9614 = vmatpush1.bf16.msra.mxu0 %v6711
    %9615 = vmatprep.subr.bf16.mxu0 %v6704
    %9616 = vmatpush1.bf16.msra.mxu0 %v6703
    %9617 = vmatprep.subr.bf16.mxu0 %v6824
    %9618 = vmatpush2.bf16.msra.mxu0 %v6823
    %9619 = vmatprep.subr.bf16.mxu0 %v6816
    %9620 = vmatpush2.bf16.msra.mxu0 %v6815
    %9621 = vmatprep.subr.bf16.mxu0 %v6808
    %9622 = vmatpush2.bf16.msra.mxu0 %v6807
    %9623 = vmatprep.subr.bf16.mxu0 %v6800
    %9624 = vmatpush2.bf16.msra.mxu0 %v6799
    %9625 = vmatprep.subr.bf16.mxu0 %v6792
    %9626 = vmatpush2.bf16.msra.mxu0 %v6791
    %9627 = vmatprep.subr.bf16.mxu0 %v6784
    %9628 = vmatpush2.bf16.msra.mxu0 %v6783
    %9629 = vmatprep.subr.bf16.mxu0 %v6776
    %9630 = vmatpush2.bf16.msra.mxu0 %v6775
    %9631 = vmatprep.subr.bf16.mxu0 %v6768
    %9632 = vmatpush2.bf16.msra.mxu0 %v6767
    %9633 = vmatprep.mubr.bf16.mxu0 %v243
    %9634 = vmatmul.mubr.bf16.gmra.mxu0 %v242
    %v9635 = vpop.f32.mrf.mxu0
    %v9636 = vadd.f32 %v9595, %v9635
    %v9637 = vpop.f32.mrf.mxu0
    %v9638 = vadd.f32 %v9597, %v9637
    %v9639 = vpop.f32.mrf.mxu0
    %v9640 = vpop.f32.mrf.mxu0
    %9641 = vdwg.mxu0
    %9642 = vmatprep.subr.bf16.mxu0 %v6888
    %9643 = vmatpush1.bf16.msra.mxu0 %v6887
    %9644 = vmatprep.subr.bf16.mxu0 %v6880
    %9645 = vmatpush1.bf16.msra.mxu0 %v6879
    %9646 = vmatprep.subr.bf16.mxu0 %v6872
    %9647 = vmatpush1.bf16.msra.mxu0 %v6871
    %9648 = vmatprep.subr.bf16.mxu0 %v6864
    %9649 = vmatpush1.bf16.msra.mxu0 %v6863
    %9650 = vmatprep.subr.bf16.mxu0 %v6856
    %9651 = vmatpush1.bf16.msra.mxu0 %v6855
    %9652 = vmatprep.subr.bf16.mxu0 %v6848
    %9653 = vmatpush1.bf16.msra.mxu0 %v6847
    %9654 = vmatprep.subr.bf16.mxu0 %v6840
    %9655 = vmatpush1.bf16.msra.mxu0 %v6839
    %9656 = vmatprep.subr.bf16.mxu0 %v6832
    %9657 = vmatpush1.bf16.msra.mxu0 %v6831
    %9658 = vmatprep.subr.bf16.mxu0 %v6952
    %9659 = vmatpush2.bf16.msra.mxu0 %v6951
    %9660 = vmatprep.subr.bf16.mxu0 %v6944
    %9661 = vmatpush2.bf16.msra.mxu0 %v6943
    %9662 = vmatprep.subr.bf16.mxu0 %v6936
    %9663 = vmatpush2.bf16.msra.mxu0 %v6935
    %9664 = vmatprep.subr.bf16.mxu0 %v6928
    %9665 = vmatpush2.bf16.msra.mxu0 %v6927
    %9666 = vmatprep.subr.bf16.mxu0 %v6920
    %9667 = vmatpush2.bf16.msra.mxu0 %v6919
    %9668 = vmatprep.subr.bf16.mxu0 %v6912
    %9669 = vmatpush2.bf16.msra.mxu0 %v6911
    %9670 = vmatprep.subr.bf16.mxu0 %v6904
    %9671 = vmatpush2.bf16.msra.mxu0 %v6903
    %9672 = vmatprep.subr.bf16.mxu0 %v6896
    %9673 = vmatpush2.bf16.msra.mxu0 %v6895
    %9674 = vmatprep.mubr.bf16.mxu0 %v245
    %9675 = vmatmul.mubr.bf16.gmra.mxu0 %v244
    %v9676 = vpop.f32.mrf.mxu0
    %v9677 = vadd.f32 %v9636, %v9676
    %v9678 = vpop.f32.mrf.mxu0
    %v9679 = vadd.f32 %v9638, %v9678
    %v9680 = vpop.f32.mrf.mxu0
    %v9681 = vpop.f32.mrf.mxu0
    %9682 = vdwg.mxu0
    %9683 = vmatprep.subr.bf16.mxu0 %v7016
    %9684 = vmatpush1.bf16.msra.mxu0 %v7015
    %9685 = vmatprep.subr.bf16.mxu0 %v7008
    %9686 = vmatpush1.bf16.msra.mxu0 %v7007
    %9687 = vmatprep.subr.bf16.mxu0 %v7000
    %9688 = vmatpush1.bf16.msra.mxu0 %v6999
    %9689 = vmatprep.subr.bf16.mxu0 %v6992
    %9690 = vmatpush1.bf16.msra.mxu0 %v6991
    %9691 = vmatprep.subr.bf16.mxu0 %v6984
    %9692 = vmatpush1.bf16.msra.mxu0 %v6983
    %9693 = vmatprep.subr.bf16.mxu0 %v6976
    %9694 = vmatpush1.bf16.msra.mxu0 %v6975
    %9695 = vmatprep.subr.bf16.mxu0 %v6968
    %9696 = vmatpush1.bf16.msra.mxu0 %v6967
    %9697 = vmatprep.subr.bf16.mxu0 %v6960
    %9698 = vmatpush1.bf16.msra.mxu0 %v6959
    %9699 = vmatprep.subr.bf16.mxu0 %v7080
    %9700 = vmatpush2.bf16.msra.mxu0 %v7079
    %9701 = vmatprep.subr.bf16.mxu0 %v7072
    %9702 = vmatpush2.bf16.msra.mxu0 %v7071
    %9703 = vmatprep.subr.bf16.mxu0 %v7064
    %9704 = vmatpush2.bf16.msra.mxu0 %v7063
    %9705 = vmatprep.subr.bf16.mxu0 %v7056
    %9706 = vmatpush2.bf16.msra.mxu0 %v7055
    %9707 = vmatprep.subr.bf16.mxu0 %v7048
    %9708 = vmatpush2.bf16.msra.mxu0 %v7047
    %9709 = vmatprep.subr.bf16.mxu0 %v7040
    %9710 = vmatpush2.bf16.msra.mxu0 %v7039
    %9711 = vmatprep.subr.bf16.mxu0 %v7032
    %9712 = vmatpush2.bf16.msra.mxu0 %v7031
    %9713 = vmatprep.subr.bf16.mxu0 %v7024
    %9714 = vmatpush2.bf16.msra.mxu0 %v7023
    %9715 = vmatprep.mubr.bf16.mxu0 %v247
    %9716 = vmatmul.mubr.bf16.gmra.mxu0 %v246
    %v9717 = vpop.f32.mrf.mxu0
    %v9718 = vadd.f32 %v9677, %v9717
    %v9719 = vpop.f32.mrf.mxu0
    %v9720 = vadd.f32 %v9679, %v9719
    %v9721 = vpop.f32.mrf.mxu0
    %v9722 = vpop.f32.mrf.mxu0
    %9723 = vdwg.mxu0
    %9724 = vmatprep.subr.bf16.mxu0 %v7144
    %9725 = vmatpush1.bf16.msra.mxu0 %v7143
    %9726 = vmatprep.subr.bf16.mxu0 %v7136
    %9727 = vmatpush1.bf16.msra.mxu0 %v7135
    %9728 = vmatprep.subr.bf16.mxu0 %v7128
    %9729 = vmatpush1.bf16.msra.mxu0 %v7127
    %9730 = vmatprep.subr.bf16.mxu0 %v7120
    %9731 = vmatpush1.bf16.msra.mxu0 %v7119
    %9732 = vmatprep.subr.bf16.mxu0 %v7112
    %9733 = vmatpush1.bf16.msra.mxu0 %v7111
    %9734 = vmatprep.subr.bf16.mxu0 %v7104
    %9735 = vmatpush1.bf16.msra.mxu0 %v7103
    %9736 = vmatprep.subr.bf16.mxu0 %v7096
    %9737 = vmatpush1.bf16.msra.mxu0 %v7095
    %9738 = vmatprep.subr.bf16.mxu0 %v7088
    %9739 = vmatpush1.bf16.msra.mxu0 %v7087
    %9740 = vmatprep.subr.bf16.mxu0 %v7208
    %9741 = vmatpush2.bf16.msra.mxu0 %v7207
    %9742 = vmatprep.subr.bf16.mxu0 %v7200
    %9743 = vmatpush2.bf16.msra.mxu0 %v7199
    %9744 = vmatprep.subr.bf16.mxu0 %v7192
    %9745 = vmatpush2.bf16.msra.mxu0 %v7191
    %9746 = vmatprep.subr.bf16.mxu0 %v7184
    %9747 = vmatpush2.bf16.msra.mxu0 %v7183
    %9748 = vmatprep.subr.bf16.mxu0 %v7176
    %9749 = vmatpush2.bf16.msra.mxu0 %v7175
    %9750 = vmatprep.subr.bf16.mxu0 %v7168
    %9751 = vmatpush2.bf16.msra.mxu0 %v7167
    %9752 = vmatprep.subr.bf16.mxu0 %v7160
    %9753 = vmatpush2.bf16.msra.mxu0 %v7159
    %9754 = vmatprep.subr.bf16.mxu0 %v7152
    %9755 = vmatpush2.bf16.msra.mxu0 %v7151
    %9756 = vmatprep.mubr.bf16.mxu0 %v249
    %9757 = vmatmul.mubr.bf16.gmra.mxu0 %v248
    %v9758 = vpop.f32.mrf.mxu0
    %v9759 = vadd.f32 %v9718, %v9758
    %v9760 = vpop.f32.mrf.mxu0
    %v9761 = vadd.f32 %v9720, %v9760
    %v9762 = vpop.f32.mrf.mxu0
    %v9763 = vpop.f32.mrf.mxu0
    %9764 = vdwg.mxu0
    %9765 = vmatprep.subr.bf16.mxu0 %v7272
    %9766 = vmatpush1.bf16.msra.mxu0 %v7271
    %9767 = vmatprep.subr.bf16.mxu0 %v7264
    %9768 = vmatpush1.bf16.msra.mxu0 %v7263
    %9769 = vmatprep.subr.bf16.mxu0 %v7256
    %9770 = vmatpush1.bf16.msra.mxu0 %v7255
    %9771 = vmatprep.subr.bf16.mxu0 %v7248
    %9772 = vmatpush1.bf16.msra.mxu0 %v7247
    %9773 = vmatprep.subr.bf16.mxu0 %v7240
    %9774 = vmatpush1.bf16.msra.mxu0 %v7239
    %9775 = vmatprep.subr.bf16.mxu0 %v7232
    %9776 = vmatpush1.bf16.msra.mxu0 %v7231
    %9777 = vmatprep.subr.bf16.mxu0 %v7224
    %9778 = vmatpush1.bf16.msra.mxu0 %v7223
    %9779 = vmatprep.subr.bf16.mxu0 %v7216
    %9780 = vmatpush1.bf16.msra.mxu0 %v7215
    %9781 = vmatprep.subr.bf16.mxu0 %v7336
    %9782 = vmatpush2.bf16.msra.mxu0 %v7335
    %9783 = vmatprep.subr.bf16.mxu0 %v7328
    %9784 = vmatpush2.bf16.msra.mxu0 %v7327
    %9785 = vmatprep.subr.bf16.mxu0 %v7320
    %9786 = vmatpush2.bf16.msra.mxu0 %v7319
    %9787 = vmatprep.subr.bf16.mxu0 %v7312
    %9788 = vmatpush2.bf16.msra.mxu0 %v7311
    %9789 = vmatprep.subr.bf16.mxu0 %v7304
    %9790 = vmatpush2.bf16.msra.mxu0 %v7303
    %9791 = vmatprep.subr.bf16.mxu0 %v7296
    %9792 = vmatpush2.bf16.msra.mxu0 %v7295
    %9793 = vmatprep.subr.bf16.mxu0 %v7288
    %9794 = vmatpush2.bf16.msra.mxu0 %v7287
    %9795 = vmatprep.subr.bf16.mxu0 %v7280
    %9796 = vmatpush2.bf16.msra.mxu0 %v7279
    %9797 = vmatprep.mubr.bf16.mxu0 %v251
    %9798 = vmatmul.mubr.bf16.gmra.mxu0 %v250
    %v9799 = vpop.f32.mrf.mxu0
    %v9800 = vadd.f32 %v9759, %v9799
    %v9801 = vpop.f32.mrf.mxu0
    %v9802 = vadd.f32 %v9761, %v9801
    %v9803 = vpop.f32.mrf.mxu0
    %v9804 = vpop.f32.mrf.mxu0
    %9805 = vdwg.mxu0
    %9806 = vmatprep.subr.bf16.mxu0 %v7400
    %9807 = vmatpush1.bf16.msra.mxu0 %v7399
    %9808 = vmatprep.subr.bf16.mxu0 %v7392
    %9809 = vmatpush1.bf16.msra.mxu0 %v7391
    %9810 = vmatprep.subr.bf16.mxu0 %v7384
    %9811 = vmatpush1.bf16.msra.mxu0 %v7383
    %9812 = vmatprep.subr.bf16.mxu0 %v7376
    %9813 = vmatpush1.bf16.msra.mxu0 %v7375
    %9814 = vmatprep.subr.bf16.mxu0 %v7368
    %9815 = vmatpush1.bf16.msra.mxu0 %v7367
    %9816 = vmatprep.subr.bf16.mxu0 %v7360
    %9817 = vmatpush1.bf16.msra.mxu0 %v7359
    %9818 = vmatprep.subr.bf16.mxu0 %v7352
    %9819 = vmatpush1.bf16.msra.mxu0 %v7351
    %9820 = vmatprep.subr.bf16.mxu0 %v7344
    %9821 = vmatpush1.bf16.msra.mxu0 %v7343
    %9822 = vmatprep.subr.bf16.mxu0 %v7464
    %9823 = vmatpush2.bf16.msra.mxu0 %v7463
    %9824 = vmatprep.subr.bf16.mxu0 %v7456
    %9825 = vmatpush2.bf16.msra.mxu0 %v7455
    %9826 = vmatprep.subr.bf16.mxu0 %v7448
    %9827 = vmatpush2.bf16.msra.mxu0 %v7447
    %9828 = vmatprep.subr.bf16.mxu0 %v7440
    %9829 = vmatpush2.bf16.msra.mxu0 %v7439
    %9830 = vmatprep.subr.bf16.mxu0 %v7432
    %9831 = vmatpush2.bf16.msra.mxu0 %v7431
    %9832 = vmatprep.subr.bf16.mxu0 %v7424
    %9833 = vmatpush2.bf16.msra.mxu0 %v7423
    %9834 = vmatprep.subr.bf16.mxu0 %v7416
    %9835 = vmatpush2.bf16.msra.mxu0 %v7415
    %9836 = vmatprep.subr.bf16.mxu0 %v7408
    %9837 = vmatpush2.bf16.msra.mxu0 %v7407
    %9838 = vmatprep.mubr.bf16.mxu0 %v253
    %9839 = vmatmul.mubr.bf16.gmra.mxu0 %v252
    %v9840 = vpop.f32.mrf.mxu0
    %v9841 = vadd.f32 %v9800, %v9840
    %v9842 = vpop.f32.mrf.mxu0
    %v9843 = vadd.f32 %v9802, %v9842
    %v9844 = vpop.f32.mrf.mxu0
    %v9845 = vpop.f32.mrf.mxu0
    %9846 = vdwg.mxu0
    %9847 = vmatprep.subr.bf16.mxu0 %v7528
    %9848 = vmatpush1.bf16.msra.mxu0 %v7527
    %9849 = vmatprep.subr.bf16.mxu0 %v7520
    %9850 = vmatpush1.bf16.msra.mxu0 %v7519
    %9851 = vmatprep.subr.bf16.mxu0 %v7512
    %9852 = vmatpush1.bf16.msra.mxu0 %v7511
    %9853 = vmatprep.subr.bf16.mxu0 %v7504
    %9854 = vmatpush1.bf16.msra.mxu0 %v7503
    %9855 = vmatprep.subr.bf16.mxu0 %v7496
    %9856 = vmatpush1.bf16.msra.mxu0 %v7495
    %9857 = vmatprep.subr.bf16.mxu0 %v7488
    %9858 = vmatpush1.bf16.msra.mxu0 %v7487
    %9859 = vmatprep.subr.bf16.mxu0 %v7480
    %9860 = vmatpush1.bf16.msra.mxu0 %v7479
    %9861 = vmatprep.subr.bf16.mxu0 %v7472
    %9862 = vmatpush1.bf16.msra.mxu0 %v7471
    %9863 = vmatprep.subr.bf16.mxu0 %v7592
    %9864 = vmatpush2.bf16.msra.mxu0 %v7591
    %9865 = vmatprep.subr.bf16.mxu0 %v7584
    %9866 = vmatpush2.bf16.msra.mxu0 %v7583
    %9867 = vmatprep.subr.bf16.mxu0 %v7576
    %9868 = vmatpush2.bf16.msra.mxu0 %v7575
    %9869 = vmatprep.subr.bf16.mxu0 %v7568
    %9870 = vmatpush2.bf16.msra.mxu0 %v7567
    %9871 = vmatprep.subr.bf16.mxu0 %v7560
    %9872 = vmatpush2.bf16.msra.mxu0 %v7559
    %9873 = vmatprep.subr.bf16.mxu0 %v7552
    %9874 = vmatpush2.bf16.msra.mxu0 %v7551
    %9875 = vmatprep.subr.bf16.mxu0 %v7544
    %9876 = vmatpush2.bf16.msra.mxu0 %v7543
    %9877 = vmatprep.subr.bf16.mxu0 %v7536
    %9878 = vmatpush2.bf16.msra.mxu0 %v7535
    %9879 = vmatprep.mubr.bf16.mxu0 %v255
    %9880 = vmatmul.mubr.bf16.gmra.mxu0 %v254
    %v9881 = vpop.f32.mrf.mxu0
    %v9882 = vadd.f32 %v9841, %v9881
    %v9883 = vpop.f32.mrf.mxu0
    %v9884 = vadd.f32 %v9843, %v9883
    %v9885 = vpop.f32.mrf.mxu0
    %v9886 = vpop.f32.mrf.mxu0
    %9887 = vdwg.mxu0
    %9888 = vmatprep.subr.bf16.mxu0 %v7656
    %9889 = vmatpush1.bf16.msra.mxu0 %v7655
    %9890 = vmatprep.subr.bf16.mxu0 %v7648
    %9891 = vmatpush1.bf16.msra.mxu0 %v7647
    %9892 = vmatprep.subr.bf16.mxu0 %v7640
    %9893 = vmatpush1.bf16.msra.mxu0 %v7639
    %9894 = vmatprep.subr.bf16.mxu0 %v7632
    %9895 = vmatpush1.bf16.msra.mxu0 %v7631
    %9896 = vmatprep.subr.bf16.mxu0 %v7624
    %9897 = vmatpush1.bf16.msra.mxu0 %v7623
    %9898 = vmatprep.subr.bf16.mxu0 %v7616
    %9899 = vmatpush1.bf16.msra.mxu0 %v7615
    %9900 = vmatprep.subr.bf16.mxu0 %v7608
    %9901 = vmatpush1.bf16.msra.mxu0 %v7607
    %9902 = vmatprep.subr.bf16.mxu0 %v7600
    %9903 = vmatpush1.bf16.msra.mxu0 %v7599
    %9904 = vmatprep.subr.bf16.mxu0 %v7720
    %9905 = vmatpush2.bf16.msra.mxu0 %v7719
    %9906 = vmatprep.subr.bf16.mxu0 %v7712
    %9907 = vmatpush2.bf16.msra.mxu0 %v7711
    %9908 = vmatprep.subr.bf16.mxu0 %v7704
    %9909 = vmatpush2.bf16.msra.mxu0 %v7703
    %9910 = vmatprep.subr.bf16.mxu0 %v7696
    %9911 = vmatpush2.bf16.msra.mxu0 %v7695
    %9912 = vmatprep.subr.bf16.mxu0 %v7688
    %9913 = vmatpush2.bf16.msra.mxu0 %v7687
    %9914 = vmatprep.subr.bf16.mxu0 %v7680
    %9915 = vmatpush2.bf16.msra.mxu0 %v7679
    %9916 = vmatprep.subr.bf16.mxu0 %v7672
    %9917 = vmatpush2.bf16.msra.mxu0 %v7671
    %9918 = vmatprep.subr.bf16.mxu0 %v7664
    %9919 = vmatpush2.bf16.msra.mxu0 %v7663
    %9920 = vmatprep.mubr.bf16.mxu0 %v257
    %9921 = vmatmul.mubr.bf16.gmra.mxu0 %v256
    %v9922 = vpop.f32.mrf.mxu0
    %v9923 = vadd.f32 %v9882, %v9922
    %v9924 = vpop.f32.mrf.mxu0
    %v9925 = vadd.f32 %v9884, %v9924
    %v9926 = vpop.f32.mrf.mxu0
    %v9927 = vpop.f32.mrf.mxu0
    %9928 = vdwg.mxu0
    %9929 = vmatprep.subr.bf16.mxu0 %v7784
    %9930 = vmatpush1.bf16.msra.mxu0 %v7783
    %9931 = vmatprep.subr.bf16.mxu0 %v7776
    %9932 = vmatpush1.bf16.msra.mxu0 %v7775
    %9933 = vmatprep.subr.bf16.mxu0 %v7768
    %9934 = vmatpush1.bf16.msra.mxu0 %v7767
    %9935 = vmatprep.subr.bf16.mxu0 %v7760
    %9936 = vmatpush1.bf16.msra.mxu0 %v7759
    %9937 = vmatprep.subr.bf16.mxu0 %v7752
    %9938 = vmatpush1.bf16.msra.mxu0 %v7751
    %9939 = vmatprep.subr.bf16.mxu0 %v7744
    %9940 = vmatpush1.bf16.msra.mxu0 %v7743
    %9941 = vmatprep.subr.bf16.mxu0 %v7736
    %9942 = vmatpush1.bf16.msra.mxu0 %v7735
    %9943 = vmatprep.subr.bf16.mxu0 %v7728
    %9944 = vmatpush1.bf16.msra.mxu0 %v7727
    %9945 = vmatprep.subr.bf16.mxu0 %v7848
    %9946 = vmatpush2.bf16.msra.mxu0 %v7847
    %9947 = vmatprep.subr.bf16.mxu0 %v7840
    %9948 = vmatpush2.bf16.msra.mxu0 %v7839
    %9949 = vmatprep.subr.bf16.mxu0 %v7832
    %9950 = vmatpush2.bf16.msra.mxu0 %v7831
    %9951 = vmatprep.subr.bf16.mxu0 %v7824
    %9952 = vmatpush2.bf16.msra.mxu0 %v7823
    %9953 = vmatprep.subr.bf16.mxu0 %v7816
    %9954 = vmatpush2.bf16.msra.mxu0 %v7815
    %9955 = vmatprep.subr.bf16.mxu0 %v7808
    %9956 = vmatpush2.bf16.msra.mxu0 %v7807
    %9957 = vmatprep.subr.bf16.mxu0 %v7800
    %9958 = vmatpush2.bf16.msra.mxu0 %v7799
    %9959 = vmatprep.subr.bf16.mxu0 %v7792
    %9960 = vmatpush2.bf16.msra.mxu0 %v7791
    %9961 = vmatprep.mubr.bf16.mxu0 %v259
    %9962 = vmatmul.mubr.bf16.gmra.mxu0 %v258
    %v9963 = vpop.f32.mrf.mxu0
    %v9964 = vadd.f32 %v9923, %v9963
    %v9965 = vpop.f32.mrf.mxu0
    %v9966 = vadd.f32 %v9925, %v9965
    %v9967 = vpop.f32.mrf.mxu0
    %v9968 = vpop.f32.mrf.mxu0
    %9969 = vdwg.mxu0
    %9970 = vmatprep.subr.bf16.mxu0 %v7912
    %9971 = vmatpush1.bf16.msra.mxu0 %v7911
    %9972 = vmatprep.subr.bf16.mxu0 %v7904
    %9973 = vmatpush1.bf16.msra.mxu0 %v7903
    %9974 = vmatprep.subr.bf16.mxu0 %v7896
    %9975 = vmatpush1.bf16.msra.mxu0 %v7895
    %9976 = vmatprep.subr.bf16.mxu0 %v7888
    %9977 = vmatpush1.bf16.msra.mxu0 %v7887
    %9978 = vmatprep.subr.bf16.mxu0 %v7880
    %9979 = vmatpush1.bf16.msra.mxu0 %v7879
    %9980 = vmatprep.subr.bf16.mxu0 %v7872
    %9981 = vmatpush1.bf16.msra.mxu0 %v7871
    %9982 = vmatprep.subr.bf16.mxu0 %v7864
    %9983 = vmatpush1.bf16.msra.mxu0 %v7863
    %9984 = vmatprep.subr.bf16.mxu0 %v7856
    %9985 = vmatpush1.bf16.msra.mxu0 %v7855
    %9986 = vmatprep.subr.bf16.mxu0 %v7976
    %9987 = vmatpush2.bf16.msra.mxu0 %v7975
    %9988 = vmatprep.subr.bf16.mxu0 %v7968
    %9989 = vmatpush2.bf16.msra.mxu0 %v7967
    %9990 = vmatprep.subr.bf16.mxu0 %v7960
    %9991 = vmatpush2.bf16.msra.mxu0 %v7959
    %9992 = vmatprep.subr.bf16.mxu0 %v7952
    %9993 = vmatpush2.bf16.msra.mxu0 %v7951
    %9994 = vmatprep.subr.bf16.mxu0 %v7944
    %9995 = vmatpush2.bf16.msra.mxu0 %v7943
    %9996 = vmatprep.subr.bf16.mxu0 %v7936
    %9997 = vmatpush2.bf16.msra.mxu0 %v7935
    %9998 = vmatprep.subr.bf16.mxu0 %v7928
    %9999 = vmatpush2.bf16.msra.mxu0 %v7927
    %10000 = vmatprep.subr.bf16.mxu0 %v7920
    %10001 = vmatpush2.bf16.msra.mxu0 %v7919
    %10002 = vmatprep.mubr.bf16.mxu0 %v261
    %10003 = vmatmul.mubr.bf16.gmra.mxu0 %v260
    %v10004 = vpop.f32.mrf.mxu0
    %v10005 = vadd.f32 %v9964, %v10004
    %v10006 = vpop.f32.mrf.mxu0
    %v10007 = vadd.f32 %v9966, %v10006
    %v10008 = vpop.f32.mrf.mxu0
    %v10009 = vpop.f32.mrf.mxu0
    %10010 = vdwg.mxu0
    %10011 = vmatprep.subr.bf16.mxu0 %v6506
    %10012 = vmatpush1.bf16.msra.mxu0 %v6505
    %10013 = vmatprep.subr.bf16.mxu0 %v6498
    %10014 = vmatpush1.bf16.msra.mxu0 %v6497
    %10015 = vmatprep.subr.bf16.mxu0 %v6490
    %10016 = vmatpush1.bf16.msra.mxu0 %v6489
    %10017 = vmatprep.subr.bf16.mxu0 %v6482
    %10018 = vmatpush1.bf16.msra.mxu0 %v6481
    %10019 = vmatprep.subr.bf16.mxu0 %v6474
    %10020 = vmatpush1.bf16.msra.mxu0 %v6473
    %10021 = vmatprep.subr.bf16.mxu0 %v6466
    %10022 = vmatpush1.bf16.msra.mxu0 %v6465
    %10023 = vmatprep.subr.bf16.mxu0 %v6458
    %10024 = vmatpush1.bf16.msra.mxu0 %v6457
    %10025 = vmatprep.subr.bf16.mxu0 %v6450
    %10026 = vmatpush1.bf16.msra.mxu0 %v6449
    %10027 = vmatprep.subr.bf16.mxu0 %v6570
    %10028 = vmatpush2.bf16.msra.mxu0 %v6569
    %10029 = vmatprep.subr.bf16.mxu0 %v6562
    %10030 = vmatpush2.bf16.msra.mxu0 %v6561
    %10031 = vmatprep.subr.bf16.mxu0 %v6554
    %10032 = vmatpush2.bf16.msra.mxu0 %v6553
    %10033 = vmatprep.subr.bf16.mxu0 %v6546
    %10034 = vmatpush2.bf16.msra.mxu0 %v6545
    %10035 = vmatprep.subr.bf16.mxu0 %v6538
    %10036 = vmatpush2.bf16.msra.mxu0 %v6537
    %10037 = vmatprep.subr.bf16.mxu0 %v6530
    %10038 = vmatpush2.bf16.msra.mxu0 %v6529
    %10039 = vmatprep.subr.bf16.mxu0 %v6522
    %10040 = vmatpush2.bf16.msra.mxu0 %v6521
    %10041 = vmatprep.subr.bf16.mxu0 %v6514
    %10042 = vmatpush2.bf16.msra.mxu0 %v6513
    %10043 = vmatprep.mubr.bf16.mxu0 %v239
    %10044 = vmatmul.mubr.bf16.gmra.mxu0 %v238
    %v10045 = vpop.f32.mrf.mxu0
    %v10046 = vadd.f32 %v1810, %v10045
    %v10047 = vpop.f32.mrf.mxu0
    %v10048 = vadd.f32 %v1814, %v10047
    %v10049 = vpop.f32.mrf.mxu0
    %v10050 = vpop.f32.mrf.mxu0
    %10051 = vdwg.mxu0
    %10052 = vmatprep.subr.bf16.mxu0 %v6634
    %10053 = vmatpush1.bf16.msra.mxu0 %v6633
    %10054 = vmatprep.subr.bf16.mxu0 %v6626
    %10055 = vmatpush1.bf16.msra.mxu0 %v6625
    %10056 = vmatprep.subr.bf16.mxu0 %v6618
    %10057 = vmatpush1.bf16.msra.mxu0 %v6617
    %10058 = vmatprep.subr.bf16.mxu0 %v6610
    %10059 = vmatpush1.bf16.msra.mxu0 %v6609
    %10060 = vmatprep.subr.bf16.mxu0 %v6602
    %10061 = vmatpush1.bf16.msra.mxu0 %v6601
    %10062 = vmatprep.subr.bf16.mxu0 %v6594
    %10063 = vmatpush1.bf16.msra.mxu0 %v6593
    %10064 = vmatprep.subr.bf16.mxu0 %v6586
    %10065 = vmatpush1.bf16.msra.mxu0 %v6585
    %10066 = vmatprep.subr.bf16.mxu0 %v6578
    %10067 = vmatpush1.bf16.msra.mxu0 %v6577
    %10068 = vmatprep.subr.bf16.mxu0 %v6698
    %10069 = vmatpush2.bf16.msra.mxu0 %v6697
    %10070 = vmatprep.subr.bf16.mxu0 %v6690
    %10071 = vmatpush2.bf16.msra.mxu0 %v6689
    %10072 = vmatprep.subr.bf16.mxu0 %v6682
    %10073 = vmatpush2.bf16.msra.mxu0 %v6681
    %10074 = vmatprep.subr.bf16.mxu0 %v6674
    %10075 = vmatpush2.bf16.msra.mxu0 %v6673
    %10076 = vmatprep.subr.bf16.mxu0 %v6666
    %10077 = vmatpush2.bf16.msra.mxu0 %v6665
    %10078 = vmatprep.subr.bf16.mxu0 %v6658
    %10079 = vmatpush2.bf16.msra.mxu0 %v6657
    %10080 = vmatprep.subr.bf16.mxu0 %v6650
    %10081 = vmatpush2.bf16.msra.mxu0 %v6649
    %10082 = vmatprep.subr.bf16.mxu0 %v6642
    %10083 = vmatpush2.bf16.msra.mxu0 %v6641
    %10084 = vmatprep.mubr.bf16.mxu0 %v241
    %10085 = vmatmul.mubr.bf16.gmra.mxu0 %v240
    %v10086 = vpop.f32.mrf.mxu0
    %v10087 = vadd.f32 %v10046, %v10086
    %v10088 = vpop.f32.mrf.mxu0
    %v10089 = vadd.f32 %v10048, %v10088
    %v10090 = vpop.f32.mrf.mxu0
    %v10091 = vpop.f32.mrf.mxu0
    %10092 = vdwg.mxu0
    %10093 = vmatprep.subr.bf16.mxu0 %v6762
    %10094 = vmatpush1.bf16.msra.mxu0 %v6761
    %10095 = vmatprep.subr.bf16.mxu0 %v6754
    %10096 = vmatpush1.bf16.msra.mxu0 %v6753
    %10097 = vmatprep.subr.bf16.mxu0 %v6746
    %10098 = vmatpush1.bf16.msra.mxu0 %v6745
    %10099 = vmatprep.subr.bf16.mxu0 %v6738
    %10100 = vmatpush1.bf16.msra.mxu0 %v6737
    %10101 = vmatprep.subr.bf16.mxu0 %v6730
    %10102 = vmatpush1.bf16.msra.mxu0 %v6729
    %10103 = vmatprep.subr.bf16.mxu0 %v6722
    %10104 = vmatpush1.bf16.msra.mxu0 %v6721
    %10105 = vmatprep.subr.bf16.mxu0 %v6714
    %10106 = vmatpush1.bf16.msra.mxu0 %v6713
    %10107 = vmatprep.subr.bf16.mxu0 %v6706
    %10108 = vmatpush1.bf16.msra.mxu0 %v6705
    %10109 = vmatprep.subr.bf16.mxu0 %v6826
    %10110 = vmatpush2.bf16.msra.mxu0 %v6825
    %10111 = vmatprep.subr.bf16.mxu0 %v6818
    %10112 = vmatpush2.bf16.msra.mxu0 %v6817
    %10113 = vmatprep.subr.bf16.mxu0 %v6810
    %10114 = vmatpush2.bf16.msra.mxu0 %v6809
    %10115 = vmatprep.subr.bf16.mxu0 %v6802
    %10116 = vmatpush2.bf16.msra.mxu0 %v6801
    %10117 = vmatprep.subr.bf16.mxu0 %v6794
    %10118 = vmatpush2.bf16.msra.mxu0 %v6793
    %10119 = vmatprep.subr.bf16.mxu0 %v6786
    %10120 = vmatpush2.bf16.msra.mxu0 %v6785
    %10121 = vmatprep.subr.bf16.mxu0 %v6778
    %10122 = vmatpush2.bf16.msra.mxu0 %v6777
    %10123 = vmatprep.subr.bf16.mxu0 %v6770
    %10124 = vmatpush2.bf16.msra.mxu0 %v6769
    %10125 = vmatprep.mubr.bf16.mxu0 %v243
    %10126 = vmatmul.mubr.bf16.gmra.mxu0 %v242
    %v10127 = vpop.f32.mrf.mxu0
    %v10128 = vadd.f32 %v10087, %v10127
    %v10129 = vpop.f32.mrf.mxu0
    %v10130 = vadd.f32 %v10089, %v10129
    %v10131 = vpop.f32.mrf.mxu0
    %v10132 = vpop.f32.mrf.mxu0
    %10133 = vdwg.mxu0
    %10134 = vmatprep.subr.bf16.mxu0 %v6890
    %10135 = vmatpush1.bf16.msra.mxu0 %v6889
    %10136 = vmatprep.subr.bf16.mxu0 %v6882
    %10137 = vmatpush1.bf16.msra.mxu0 %v6881
    %10138 = vmatprep.subr.bf16.mxu0 %v6874
    %10139 = vmatpush1.bf16.msra.mxu0 %v6873
    %10140 = vmatprep.subr.bf16.mxu0 %v6866
    %10141 = vmatpush1.bf16.msra.mxu0 %v6865
    %10142 = vmatprep.subr.bf16.mxu0 %v6858
    %10143 = vmatpush1.bf16.msra.mxu0 %v6857
    %10144 = vmatprep.subr.bf16.mxu0 %v6850
    %10145 = vmatpush1.bf16.msra.mxu0 %v6849
    %10146 = vmatprep.subr.bf16.mxu0 %v6842
    %10147 = vmatpush1.bf16.msra.mxu0 %v6841
    %10148 = vmatprep.subr.bf16.mxu0 %v6834
    %10149 = vmatpush1.bf16.msra.mxu0 %v6833
    %10150 = vmatprep.subr.bf16.mxu0 %v6954
    %10151 = vmatpush2.bf16.msra.mxu0 %v6953
    %10152 = vmatprep.subr.bf16.mxu0 %v6946
    %10153 = vmatpush2.bf16.msra.mxu0 %v6945
    %10154 = vmatprep.subr.bf16.mxu0 %v6938
    %10155 = vmatpush2.bf16.msra.mxu0 %v6937
    %10156 = vmatprep.subr.bf16.mxu0 %v6930
    %10157 = vmatpush2.bf16.msra.mxu0 %v6929
    %10158 = vmatprep.subr.bf16.mxu0 %v6922
    %10159 = vmatpush2.bf16.msra.mxu0 %v6921
    %10160 = vmatprep.subr.bf16.mxu0 %v6914
    %10161 = vmatpush2.bf16.msra.mxu0 %v6913
    %10162 = vmatprep.subr.bf16.mxu0 %v6906
    %10163 = vmatpush2.bf16.msra.mxu0 %v6905
    %10164 = vmatprep.subr.bf16.mxu0 %v6898
    %10165 = vmatpush2.bf16.msra.mxu0 %v6897
    %10166 = vmatprep.mubr.bf16.mxu0 %v245
    %10167 = vmatmul.mubr.bf16.gmra.mxu0 %v244
    %v10168 = vpop.f32.mrf.mxu0
    %v10169 = vadd.f32 %v10128, %v10168
    %v10170 = vpop.f32.mrf.mxu0
    %v10171 = vadd.f32 %v10130, %v10170
    %v10172 = vpop.f32.mrf.mxu0
    %v10173 = vpop.f32.mrf.mxu0
    %10174 = vdwg.mxu0
    %10175 = vmatprep.subr.bf16.mxu0 %v7018
    %10176 = vmatpush1.bf16.msra.mxu0 %v7017
    %10177 = vmatprep.subr.bf16.mxu0 %v7010
    %10178 = vmatpush1.bf16.msra.mxu0 %v7009
    %10179 = vmatprep.subr.bf16.mxu0 %v7002
    %10180 = vmatpush1.bf16.msra.mxu0 %v7001
    %10181 = vmatprep.subr.bf16.mxu0 %v6994
    %10182 = vmatpush1.bf16.msra.mxu0 %v6993
    %10183 = vmatprep.subr.bf16.mxu0 %v6986
    %10184 = vmatpush1.bf16.msra.mxu0 %v6985
    %10185 = vmatprep.subr.bf16.mxu0 %v6978
    %10186 = vmatpush1.bf16.msra.mxu0 %v6977
    %10187 = vmatprep.subr.bf16.mxu0 %v6970
    %10188 = vmatpush1.bf16.msra.mxu0 %v6969
    %10189 = vmatprep.subr.bf16.mxu0 %v6962
    %10190 = vmatpush1.bf16.msra.mxu0 %v6961
    %10191 = vmatprep.subr.bf16.mxu0 %v7082
    %10192 = vmatpush2.bf16.msra.mxu0 %v7081
    %10193 = vmatprep.subr.bf16.mxu0 %v7074
    %10194 = vmatpush2.bf16.msra.mxu0 %v7073
    %10195 = vmatprep.subr.bf16.mxu0 %v7066
    %10196 = vmatpush2.bf16.msra.mxu0 %v7065
    %10197 = vmatprep.subr.bf16.mxu0 %v7058
    %10198 = vmatpush2.bf16.msra.mxu0 %v7057
    %10199 = vmatprep.subr.bf16.mxu0 %v7050
    %10200 = vmatpush2.bf16.msra.mxu0 %v7049
    %10201 = vmatprep.subr.bf16.mxu0 %v7042
    %10202 = vmatpush2.bf16.msra.mxu0 %v7041
    %10203 = vmatprep.subr.bf16.mxu0 %v7034
    %10204 = vmatpush2.bf16.msra.mxu0 %v7033
    %10205 = vmatprep.subr.bf16.mxu0 %v7026
    %10206 = vmatpush2.bf16.msra.mxu0 %v7025
    %10207 = vmatprep.mubr.bf16.mxu0 %v247
    %10208 = vmatmul.mubr.bf16.gmra.mxu0 %v246
    %v10209 = vpop.f32.mrf.mxu0
    %v10210 = vadd.f32 %v10169, %v10209
    %v10211 = vpop.f32.mrf.mxu0
    %v10212 = vadd.f32 %v10171, %v10211
    %v10213 = vpop.f32.mrf.mxu0
    %v10214 = vpop.f32.mrf.mxu0
    %10215 = vdwg.mxu0
    %10216 = vmatprep.subr.bf16.mxu0 %v7146
    %10217 = vmatpush1.bf16.msra.mxu0 %v7145
    %10218 = vmatprep.subr.bf16.mxu0 %v7138
    %10219 = vmatpush1.bf16.msra.mxu0 %v7137
    %10220 = vmatprep.subr.bf16.mxu0 %v7130
    %10221 = vmatpush1.bf16.msra.mxu0 %v7129
    %10222 = vmatprep.subr.bf16.mxu0 %v7122
    %10223 = vmatpush1.bf16.msra.mxu0 %v7121
    %10224 = vmatprep.subr.bf16.mxu0 %v7114
    %10225 = vmatpush1.bf16.msra.mxu0 %v7113
    %10226 = vmatprep.subr.bf16.mxu0 %v7106
    %10227 = vmatpush1.bf16.msra.mxu0 %v7105
    %10228 = vmatprep.subr.bf16.mxu0 %v7098
    %10229 = vmatpush1.bf16.msra.mxu0 %v7097
    %10230 = vmatprep.subr.bf16.mxu0 %v7090
    %10231 = vmatpush1.bf16.msra.mxu0 %v7089
    %10232 = vmatprep.subr.bf16.mxu0 %v7210
    %10233 = vmatpush2.bf16.msra.mxu0 %v7209
    %10234 = vmatprep.subr.bf16.mxu0 %v7202
    %10235 = vmatpush2.bf16.msra.mxu0 %v7201
    %10236 = vmatprep.subr.bf16.mxu0 %v7194
    %10237 = vmatpush2.bf16.msra.mxu0 %v7193
    %10238 = vmatprep.subr.bf16.mxu0 %v7186
    %10239 = vmatpush2.bf16.msra.mxu0 %v7185
    %10240 = vmatprep.subr.bf16.mxu0 %v7178
    %10241 = vmatpush2.bf16.msra.mxu0 %v7177
    %10242 = vmatprep.subr.bf16.mxu0 %v7170
    %10243 = vmatpush2.bf16.msra.mxu0 %v7169
    %10244 = vmatprep.subr.bf16.mxu0 %v7162
    %10245 = vmatpush2.bf16.msra.mxu0 %v7161
    %10246 = vmatprep.subr.bf16.mxu0 %v7154
    %10247 = vmatpush2.bf16.msra.mxu0 %v7153
    %10248 = vmatprep.mubr.bf16.mxu0 %v249
    %10249 = vmatmul.mubr.bf16.gmra.mxu0 %v248
    %v10250 = vpop.f32.mrf.mxu0
    %v10251 = vadd.f32 %v10210, %v10250
    %v10252 = vpop.f32.mrf.mxu0
    %v10253 = vadd.f32 %v10212, %v10252
    %v10254 = vpop.f32.mrf.mxu0
    %v10255 = vpop.f32.mrf.mxu0
    %10256 = vdwg.mxu0
    %10257 = vmatprep.subr.bf16.mxu0 %v7274
    %10258 = vmatpush1.bf16.msra.mxu0 %v7273
    %10259 = vmatprep.subr.bf16.mxu0 %v7266
    %10260 = vmatpush1.bf16.msra.mxu0 %v7265
    %10261 = vmatprep.subr.bf16.mxu0 %v7258
    %10262 = vmatpush1.bf16.msra.mxu0 %v7257
    %10263 = vmatprep.subr.bf16.mxu0 %v7250
    %10264 = vmatpush1.bf16.msra.mxu0 %v7249
    %10265 = vmatprep.subr.bf16.mxu0 %v7242
    %10266 = vmatpush1.bf16.msra.mxu0 %v7241
    %10267 = vmatprep.subr.bf16.mxu0 %v7234
    %10268 = vmatpush1.bf16.msra.mxu0 %v7233
    %10269 = vmatprep.subr.bf16.mxu0 %v7226
    %10270 = vmatpush1.bf16.msra.mxu0 %v7225
    %10271 = vmatprep.subr.bf16.mxu0 %v7218
    %10272 = vmatpush1.bf16.msra.mxu0 %v7217
    %10273 = vmatprep.subr.bf16.mxu0 %v7338
    %10274 = vmatpush2.bf16.msra.mxu0 %v7337
    %10275 = vmatprep.subr.bf16.mxu0 %v7330
    %10276 = vmatpush2.bf16.msra.mxu0 %v7329
    %10277 = vmatprep.subr.bf16.mxu0 %v7322
    %10278 = vmatpush2.bf16.msra.mxu0 %v7321
    %10279 = vmatprep.subr.bf16.mxu0 %v7314
    %10280 = vmatpush2.bf16.msra.mxu0 %v7313
    %10281 = vmatprep.subr.bf16.mxu0 %v7306
    %10282 = vmatpush2.bf16.msra.mxu0 %v7305
    %10283 = vmatprep.subr.bf16.mxu0 %v7298
    %10284 = vmatpush2.bf16.msra.mxu0 %v7297
    %10285 = vmatprep.subr.bf16.mxu0 %v7290
    %10286 = vmatpush2.bf16.msra.mxu0 %v7289
    %10287 = vmatprep.subr.bf16.mxu0 %v7282
    %10288 = vmatpush2.bf16.msra.mxu0 %v7281
    %10289 = vmatprep.mubr.bf16.mxu0 %v251
    %10290 = vmatmul.mubr.bf16.gmra.mxu0 %v250
    %v10291 = vpop.f32.mrf.mxu0
    %v10292 = vadd.f32 %v10251, %v10291
    %v10293 = vpop.f32.mrf.mxu0
    %v10294 = vadd.f32 %v10253, %v10293
    %v10295 = vpop.f32.mrf.mxu0
    %v10296 = vpop.f32.mrf.mxu0
    %10297 = vdwg.mxu0
    %10298 = vmatprep.subr.bf16.mxu0 %v7402
    %10299 = vmatpush1.bf16.msra.mxu0 %v7401
    %10300 = vmatprep.subr.bf16.mxu0 %v7394
    %10301 = vmatpush1.bf16.msra.mxu0 %v7393
    %10302 = vmatprep.subr.bf16.mxu0 %v7386
    %10303 = vmatpush1.bf16.msra.mxu0 %v7385
    %10304 = vmatprep.subr.bf16.mxu0 %v7378
    %10305 = vmatpush1.bf16.msra.mxu0 %v7377
    %10306 = vmatprep.subr.bf16.mxu0 %v7370
    %10307 = vmatpush1.bf16.msra.mxu0 %v7369
    %10308 = vmatprep.subr.bf16.mxu0 %v7362
    %10309 = vmatpush1.bf16.msra.mxu0 %v7361
    %10310 = vmatprep.subr.bf16.mxu0 %v7354
    %10311 = vmatpush1.bf16.msra.mxu0 %v7353
    %10312 = vmatprep.subr.bf16.mxu0 %v7346
    %10313 = vmatpush1.bf16.msra.mxu0 %v7345
    %10314 = vmatprep.subr.bf16.mxu0 %v7466
    %10315 = vmatpush2.bf16.msra.mxu0 %v7465
    %10316 = vmatprep.subr.bf16.mxu0 %v7458
    %10317 = vmatpush2.bf16.msra.mxu0 %v7457
    %10318 = vmatprep.subr.bf16.mxu0 %v7450
    %10319 = vmatpush2.bf16.msra.mxu0 %v7449
    %10320 = vmatprep.subr.bf16.mxu0 %v7442
    %10321 = vmatpush2.bf16.msra.mxu0 %v7441
    %10322 = vmatprep.subr.bf16.mxu0 %v7434
    %10323 = vmatpush2.bf16.msra.mxu0 %v7433
    %10324 = vmatprep.subr.bf16.mxu0 %v7426
    %10325 = vmatpush2.bf16.msra.mxu0 %v7425
    %10326 = vmatprep.subr.bf16.mxu0 %v7418
    %10327 = vmatpush2.bf16.msra.mxu0 %v7417
    %10328 = vmatprep.subr.bf16.mxu0 %v7410
    %10329 = vmatpush2.bf16.msra.mxu0 %v7409
    %10330 = vmatprep.mubr.bf16.mxu0 %v253
    %10331 = vmatmul.mubr.bf16.gmra.mxu0 %v252
    %v10332 = vpop.f32.mrf.mxu0
    %v10333 = vadd.f32 %v10292, %v10332
    %v10334 = vpop.f32.mrf.mxu0
    %v10335 = vadd.f32 %v10294, %v10334
    %v10336 = vpop.f32.mrf.mxu0
    %v10337 = vpop.f32.mrf.mxu0
    %10338 = vdwg.mxu0
    %10339 = vmatprep.subr.bf16.mxu0 %v7530
    %10340 = vmatpush1.bf16.msra.mxu0 %v7529
    %10341 = vmatprep.subr.bf16.mxu0 %v7522
    %10342 = vmatpush1.bf16.msra.mxu0 %v7521
    %10343 = vmatprep.subr.bf16.mxu0 %v7514
    %10344 = vmatpush1.bf16.msra.mxu0 %v7513
    %10345 = vmatprep.subr.bf16.mxu0 %v7506
    %10346 = vmatpush1.bf16.msra.mxu0 %v7505
    %10347 = vmatprep.subr.bf16.mxu0 %v7498
    %10348 = vmatpush1.bf16.msra.mxu0 %v7497
    %10349 = vmatprep.subr.bf16.mxu0 %v7490
    %10350 = vmatpush1.bf16.msra.mxu0 %v7489
    %10351 = vmatprep.subr.bf16.mxu0 %v7482
    %10352 = vmatpush1.bf16.msra.mxu0 %v7481
    %10353 = vmatprep.subr.bf16.mxu0 %v7474
    %10354 = vmatpush1.bf16.msra.mxu0 %v7473
    %10355 = vmatprep.subr.bf16.mxu0 %v7594
    %10356 = vmatpush2.bf16.msra.mxu0 %v7593
    %10357 = vmatprep.subr.bf16.mxu0 %v7586
    %10358 = vmatpush2.bf16.msra.mxu0 %v7585
    %10359 = vmatprep.subr.bf16.mxu0 %v7578
    %10360 = vmatpush2.bf16.msra.mxu0 %v7577
    %10361 = vmatprep.subr.bf16.mxu0 %v7570
    %10362 = vmatpush2.bf16.msra.mxu0 %v7569
    %10363 = vmatprep.subr.bf16.mxu0 %v7562
    %10364 = vmatpush2.bf16.msra.mxu0 %v7561
    %10365 = vmatprep.subr.bf16.mxu0 %v7554
    %10366 = vmatpush2.bf16.msra.mxu0 %v7553
    %10367 = vmatprep.subr.bf16.mxu0 %v7546
    %10368 = vmatpush2.bf16.msra.mxu0 %v7545
    %10369 = vmatprep.subr.bf16.mxu0 %v7538
    %10370 = vmatpush2.bf16.msra.mxu0 %v7537
    %10371 = vmatprep.mubr.bf16.mxu0 %v255
    %10372 = vmatmul.mubr.bf16.gmra.mxu0 %v254
    %v10373 = vpop.f32.mrf.mxu0
    %v10374 = vadd.f32 %v10333, %v10373
    %v10375 = vpop.f32.mrf.mxu0
    %v10376 = vadd.f32 %v10335, %v10375
    %v10377 = vpop.f32.mrf.mxu0
    %v10378 = vpop.f32.mrf.mxu0
    %10379 = vdwg.mxu0
    %10380 = vmatprep.subr.bf16.mxu0 %v7658
    %10381 = vmatpush1.bf16.msra.mxu0 %v7657
    %10382 = vmatprep.subr.bf16.mxu0 %v7650
    %10383 = vmatpush1.bf16.msra.mxu0 %v7649
    %10384 = vmatprep.subr.bf16.mxu0 %v7642
    %10385 = vmatpush1.bf16.msra.mxu0 %v7641
    %10386 = vmatprep.subr.bf16.mxu0 %v7634
    %10387 = vmatpush1.bf16.msra.mxu0 %v7633
    %10388 = vmatprep.subr.bf16.mxu0 %v7626
    %10389 = vmatpush1.bf16.msra.mxu0 %v7625
    %10390 = vmatprep.subr.bf16.mxu0 %v7618
    %10391 = vmatpush1.bf16.msra.mxu0 %v7617
    %10392 = vmatprep.subr.bf16.mxu0 %v7610
    %10393 = vmatpush1.bf16.msra.mxu0 %v7609
    %10394 = vmatprep.subr.bf16.mxu0 %v7602
    %10395 = vmatpush1.bf16.msra.mxu0 %v7601
    %10396 = vmatprep.subr.bf16.mxu0 %v7722
    %10397 = vmatpush2.bf16.msra.mxu0 %v7721
    %10398 = vmatprep.subr.bf16.mxu0 %v7714
    %10399 = vmatpush2.bf16.msra.mxu0 %v7713
    %10400 = vmatprep.subr.bf16.mxu0 %v7706
    %10401 = vmatpush2.bf16.msra.mxu0 %v7705
    %10402 = vmatprep.subr.bf16.mxu0 %v7698
    %10403 = vmatpush2.bf16.msra.mxu0 %v7697
    %10404 = vmatprep.subr.bf16.mxu0 %v7690
    %10405 = vmatpush2.bf16.msra.mxu0 %v7689
    %10406 = vmatprep.subr.bf16.mxu0 %v7682
    %10407 = vmatpush2.bf16.msra.mxu0 %v7681
    %10408 = vmatprep.subr.bf16.mxu0 %v7674
    %10409 = vmatpush2.bf16.msra.mxu0 %v7673
    %10410 = vmatprep.subr.bf16.mxu0 %v7666
    %10411 = vmatpush2.bf16.msra.mxu0 %v7665
    %10412 = vmatprep.mubr.bf16.mxu0 %v257
    %10413 = vmatmul.mubr.bf16.gmra.mxu0 %v256
    %v10414 = vpop.f32.mrf.mxu0
    %v10415 = vadd.f32 %v10374, %v10414
    %v10416 = vpop.f32.mrf.mxu0
    %v10417 = vadd.f32 %v10376, %v10416
    %v10418 = vpop.f32.mrf.mxu0
    %v10419 = vpop.f32.mrf.mxu0
    %10420 = vdwg.mxu0
    %10421 = vmatprep.subr.bf16.mxu0 %v7786
    %10422 = vmatpush1.bf16.msra.mxu0 %v7785
    %10423 = vmatprep.subr.bf16.mxu0 %v7778
    %10424 = vmatpush1.bf16.msra.mxu0 %v7777
    %10425 = vmatprep.subr.bf16.mxu0 %v7770
    %10426 = vmatpush1.bf16.msra.mxu0 %v7769
    %10427 = vmatprep.subr.bf16.mxu0 %v7762
    %10428 = vmatpush1.bf16.msra.mxu0 %v7761
    %10429 = vmatprep.subr.bf16.mxu0 %v7754
    %10430 = vmatpush1.bf16.msra.mxu0 %v7753
    %10431 = vmatprep.subr.bf16.mxu0 %v7746
    %10432 = vmatpush1.bf16.msra.mxu0 %v7745
    %10433 = vmatprep.subr.bf16.mxu0 %v7738
    %10434 = vmatpush1.bf16.msra.mxu0 %v7737
    %10435 = vmatprep.subr.bf16.mxu0 %v7730
    %10436 = vmatpush1.bf16.msra.mxu0 %v7729
    %10437 = vmatprep.subr.bf16.mxu0 %v7850
    %10438 = vmatpush2.bf16.msra.mxu0 %v7849
    %10439 = vmatprep.subr.bf16.mxu0 %v7842
    %10440 = vmatpush2.bf16.msra.mxu0 %v7841
    %10441 = vmatprep.subr.bf16.mxu0 %v7834
    %10442 = vmatpush2.bf16.msra.mxu0 %v7833
    %10443 = vmatprep.subr.bf16.mxu0 %v7826
    %10444 = vmatpush2.bf16.msra.mxu0 %v7825
    %10445 = vmatprep.subr.bf16.mxu0 %v7818
    %10446 = vmatpush2.bf16.msra.mxu0 %v7817
    %10447 = vmatprep.subr.bf16.mxu0 %v7810
    %10448 = vmatpush2.bf16.msra.mxu0 %v7809
    %10449 = vmatprep.subr.bf16.mxu0 %v7802
    %10450 = vmatpush2.bf16.msra.mxu0 %v7801
    %10451 = vmatprep.subr.bf16.mxu0 %v7794
    %10452 = vmatpush2.bf16.msra.mxu0 %v7793
    %10453 = vmatprep.mubr.bf16.mxu0 %v259
    %10454 = vmatmul.mubr.bf16.gmra.mxu0 %v258
    %v10455 = vpop.f32.mrf.mxu0
    %v10456 = vadd.f32 %v10415, %v10455
    %v10457 = vpop.f32.mrf.mxu0
    %v10458 = vadd.f32 %v10417, %v10457
    %v10459 = vpop.f32.mrf.mxu0
    %v10460 = vpop.f32.mrf.mxu0
    %10461 = vdwg.mxu0
    %10462 = vmatprep.subr.bf16.mxu0 %v7914
    %10463 = vmatpush1.bf16.msra.mxu0 %v7913
    %10464 = vmatprep.subr.bf16.mxu0 %v7906
    %10465 = vmatpush1.bf16.msra.mxu0 %v7905
    %10466 = vmatprep.subr.bf16.mxu0 %v7898
    %10467 = vmatpush1.bf16.msra.mxu0 %v7897
    %10468 = vmatprep.subr.bf16.mxu0 %v7890
    %10469 = vmatpush1.bf16.msra.mxu0 %v7889
    %10470 = vmatprep.subr.bf16.mxu0 %v7882
    %10471 = vmatpush1.bf16.msra.mxu0 %v7881
    %10472 = vmatprep.subr.bf16.mxu0 %v7874
    %10473 = vmatpush1.bf16.msra.mxu0 %v7873
    %10474 = vmatprep.subr.bf16.mxu0 %v7866
    %10475 = vmatpush1.bf16.msra.mxu0 %v7865
    %10476 = vmatprep.subr.bf16.mxu0 %v7858
    %10477 = vmatpush1.bf16.msra.mxu0 %v7857
    %10478 = vmatprep.subr.bf16.mxu0 %v7978
    %10479 = vmatpush2.bf16.msra.mxu0 %v7977
    %10480 = vmatprep.subr.bf16.mxu0 %v7970
    %10481 = vmatpush2.bf16.msra.mxu0 %v7969
    %10482 = vmatprep.subr.bf16.mxu0 %v7962
    %10483 = vmatpush2.bf16.msra.mxu0 %v7961
    %10484 = vmatprep.subr.bf16.mxu0 %v7954
    %10485 = vmatpush2.bf16.msra.mxu0 %v7953
    %10486 = vmatprep.subr.bf16.mxu0 %v7946
    %10487 = vmatpush2.bf16.msra.mxu0 %v7945
    %10488 = vmatprep.subr.bf16.mxu0 %v7938
    %10489 = vmatpush2.bf16.msra.mxu0 %v7937
    %10490 = vmatprep.subr.bf16.mxu0 %v7930
    %10491 = vmatpush2.bf16.msra.mxu0 %v7929
    %10492 = vmatprep.subr.bf16.mxu0 %v7922
    %10493 = vmatpush2.bf16.msra.mxu0 %v7921
    %10494 = vmatprep.mubr.bf16.mxu0 %v261
    %10495 = vmatmul.mubr.bf16.gmra.mxu0 %v260
    %v10496 = vpop.f32.mrf.mxu0
    %v10497 = vadd.f32 %v10456, %v10496
    %v10498 = vpop.f32.mrf.mxu0
    %v10499 = vadd.f32 %v10458, %v10498
    %v10500 = vpop.f32.mrf.mxu0
    %v10501 = vpop.f32.mrf.mxu0
    %10502 = vdwg.mxu0
    %10503 = vmatprep.subr.bf16.mxu0 %v6508
    %10504 = vmatpush1.bf16.msra.mxu0 %v6507
    %10505 = vmatprep.subr.bf16.mxu0 %v6500
    %10506 = vmatpush1.bf16.msra.mxu0 %v6499
    %10507 = vmatprep.subr.bf16.mxu0 %v6492
    %10508 = vmatpush1.bf16.msra.mxu0 %v6491
    %10509 = vmatprep.subr.bf16.mxu0 %v6484
    %10510 = vmatpush1.bf16.msra.mxu0 %v6483
    %10511 = vmatprep.subr.bf16.mxu0 %v6476
    %10512 = vmatpush1.bf16.msra.mxu0 %v6475
    %10513 = vmatprep.subr.bf16.mxu0 %v6468
    %10514 = vmatpush1.bf16.msra.mxu0 %v6467
    %10515 = vmatprep.subr.bf16.mxu0 %v6460
    %10516 = vmatpush1.bf16.msra.mxu0 %v6459
    %10517 = vmatprep.subr.bf16.mxu0 %v6452
    %10518 = vmatpush1.bf16.msra.mxu0 %v6451
    %10519 = vmatprep.subr.bf16.mxu0 %v6572
    %10520 = vmatpush2.bf16.msra.mxu0 %v6571
    %10521 = vmatprep.subr.bf16.mxu0 %v6564
    %10522 = vmatpush2.bf16.msra.mxu0 %v6563
    %10523 = vmatprep.subr.bf16.mxu0 %v6556
    %10524 = vmatpush2.bf16.msra.mxu0 %v6555
    %10525 = vmatprep.subr.bf16.mxu0 %v6548
    %10526 = vmatpush2.bf16.msra.mxu0 %v6547
    %10527 = vmatprep.subr.bf16.mxu0 %v6540
    %10528 = vmatpush2.bf16.msra.mxu0 %v6539
    %10529 = vmatprep.subr.bf16.mxu0 %v6532
    %10530 = vmatpush2.bf16.msra.mxu0 %v6531
    %10531 = vmatprep.subr.bf16.mxu0 %v6524
    %10532 = vmatpush2.bf16.msra.mxu0 %v6523
    %10533 = vmatprep.subr.bf16.mxu0 %v6516
    %10534 = vmatpush2.bf16.msra.mxu0 %v6515
    %10535 = vmatprep.mubr.bf16.mxu0 %v239
    %10536 = vmatmul.mubr.bf16.gmra.mxu0 %v238
    %v10537 = vpop.f32.mrf.mxu0
    %v10538 = vadd.f32 %v1818, %v10537
    %v10539 = vpop.f32.mrf.mxu0
    %v10540 = vadd.f32 %v1822, %v10539
    %v10541 = vpop.f32.mrf.mxu0
    %v10542 = vpop.f32.mrf.mxu0
    %10543 = vdwg.mxu0
    %10544 = vmatprep.subr.bf16.mxu0 %v6636
    %10545 = vmatpush1.bf16.msra.mxu0 %v6635
    %10546 = vmatprep.subr.bf16.mxu0 %v6628
    %10547 = vmatpush1.bf16.msra.mxu0 %v6627
    %10548 = vmatprep.subr.bf16.mxu0 %v6620
    %10549 = vmatpush1.bf16.msra.mxu0 %v6619
    %10550 = vmatprep.subr.bf16.mxu0 %v6612
    %10551 = vmatpush1.bf16.msra.mxu0 %v6611
    %10552 = vmatprep.subr.bf16.mxu0 %v6604
    %10553 = vmatpush1.bf16.msra.mxu0 %v6603
    %10554 = vmatprep.subr.bf16.mxu0 %v6596
    %10555 = vmatpush1.bf16.msra.mxu0 %v6595
    %10556 = vmatprep.subr.bf16.mxu0 %v6588
    %10557 = vmatpush1.bf16.msra.mxu0 %v6587
    %10558 = vmatprep.subr.bf16.mxu0 %v6580
    %10559 = vmatpush1.bf16.msra.mxu0 %v6579
    %10560 = vmatprep.subr.bf16.mxu0 %v6700
    %10561 = vmatpush2.bf16.msra.mxu0 %v6699
    %10562 = vmatprep.subr.bf16.mxu0 %v6692
    %10563 = vmatpush2.bf16.msra.mxu0 %v6691
    %10564 = vmatprep.subr.bf16.mxu0 %v6684
    %10565 = vmatpush2.bf16.msra.mxu0 %v6683
    %10566 = vmatprep.subr.bf16.mxu0 %v6676
    %10567 = vmatpush2.bf16.msra.mxu0 %v6675
    %10568 = vmatprep.subr.bf16.mxu0 %v6668
    %10569 = vmatpush2.bf16.msra.mxu0 %v6667
    %10570 = vmatprep.subr.bf16.mxu0 %v6660
    %10571 = vmatpush2.bf16.msra.mxu0 %v6659
    %10572 = vmatprep.subr.bf16.mxu0 %v6652
    %10573 = vmatpush2.bf16.msra.mxu0 %v6651
    %10574 = vmatprep.subr.bf16.mxu0 %v6644
    %10575 = vmatpush2.bf16.msra.mxu0 %v6643
    %10576 = vmatprep.mubr.bf16.mxu0 %v241
    %10577 = vmatmul.mubr.bf16.gmra.mxu0 %v240
    %v10578 = vpop.f32.mrf.mxu0
    %v10579 = vadd.f32 %v10538, %v10578
    %v10580 = vpop.f32.mrf.mxu0
    %v10581 = vadd.f32 %v10540, %v10580
    %v10582 = vpop.f32.mrf.mxu0
    %v10583 = vpop.f32.mrf.mxu0
    %10584 = vdwg.mxu0
    %10585 = vmatprep.subr.bf16.mxu0 %v6764
    %10586 = vmatpush1.bf16.msra.mxu0 %v6763
    %10587 = vmatprep.subr.bf16.mxu0 %v6756
    %10588 = vmatpush1.bf16.msra.mxu0 %v6755
    %10589 = vmatprep.subr.bf16.mxu0 %v6748
    %10590 = vmatpush1.bf16.msra.mxu0 %v6747
    %10591 = vmatprep.subr.bf16.mxu0 %v6740
    %10592 = vmatpush1.bf16.msra.mxu0 %v6739
    %10593 = vmatprep.subr.bf16.mxu0 %v6732
    %10594 = vmatpush1.bf16.msra.mxu0 %v6731
    %10595 = vmatprep.subr.bf16.mxu0 %v6724
    %10596 = vmatpush1.bf16.msra.mxu0 %v6723
    %10597 = vmatprep.subr.bf16.mxu0 %v6716
    %10598 = vmatpush1.bf16.msra.mxu0 %v6715
    %10599 = vmatprep.subr.bf16.mxu0 %v6708
    %10600 = vmatpush1.bf16.msra.mxu0 %v6707
    %10601 = vmatprep.subr.bf16.mxu0 %v6828
    %10602 = vmatpush2.bf16.msra.mxu0 %v6827
    %10603 = vmatprep.subr.bf16.mxu0 %v6820
    %10604 = vmatpush2.bf16.msra.mxu0 %v6819
    %10605 = vmatprep.subr.bf16.mxu0 %v6812
    %10606 = vmatpush2.bf16.msra.mxu0 %v6811
    %10607 = vmatprep.subr.bf16.mxu0 %v6804
    %10608 = vmatpush2.bf16.msra.mxu0 %v6803
    %10609 = vmatprep.subr.bf16.mxu0 %v6796
    %10610 = vmatpush2.bf16.msra.mxu0 %v6795
    %10611 = vmatprep.subr.bf16.mxu0 %v6788
    %10612 = vmatpush2.bf16.msra.mxu0 %v6787
    %10613 = vmatprep.subr.bf16.mxu0 %v6780
    %10614 = vmatpush2.bf16.msra.mxu0 %v6779
    %10615 = vmatprep.subr.bf16.mxu0 %v6772
    %10616 = vmatpush2.bf16.msra.mxu0 %v6771
    %10617 = vmatprep.mubr.bf16.mxu0 %v243
    %10618 = vmatmul.mubr.bf16.gmra.mxu0 %v242
    %v10619 = vpop.f32.mrf.mxu0
    %v10620 = vadd.f32 %v10579, %v10619
    %v10621 = vpop.f32.mrf.mxu0
    %v10622 = vadd.f32 %v10581, %v10621
    %v10623 = vpop.f32.mrf.mxu0
    %v10624 = vpop.f32.mrf.mxu0
    %10625 = vdwg.mxu0
    %10626 = vmatprep.subr.bf16.mxu0 %v6892
    %10627 = vmatpush1.bf16.msra.mxu0 %v6891
    %10628 = vmatprep.subr.bf16.mxu0 %v6884
    %10629 = vmatpush1.bf16.msra.mxu0 %v6883
    %10630 = vmatprep.subr.bf16.mxu0 %v6876
    %10631 = vmatpush1.bf16.msra.mxu0 %v6875
    %10632 = vmatprep.subr.bf16.mxu0 %v6868
    %10633 = vmatpush1.bf16.msra.mxu0 %v6867
    %10634 = vmatprep.subr.bf16.mxu0 %v6860
    %10635 = vmatpush1.bf16.msra.mxu0 %v6859
    %10636 = vmatprep.subr.bf16.mxu0 %v6852
    %10637 = vmatpush1.bf16.msra.mxu0 %v6851
    %10638 = vmatprep.subr.bf16.mxu0 %v6844
    %10639 = vmatpush1.bf16.msra.mxu0 %v6843
    %10640 = vmatprep.subr.bf16.mxu0 %v6836
    %10641 = vmatpush1.bf16.msra.mxu0 %v6835
    %10642 = vmatprep.subr.bf16.mxu0 %v6956
    %10643 = vmatpush2.bf16.msra.mxu0 %v6955
    %10644 = vmatprep.subr.bf16.mxu0 %v6948
    %10645 = vmatpush2.bf16.msra.mxu0 %v6947
    %10646 = vmatprep.subr.bf16.mxu0 %v6940
    %10647 = vmatpush2.bf16.msra.mxu0 %v6939
    %10648 = vmatprep.subr.bf16.mxu0 %v6932
    %10649 = vmatpush2.bf16.msra.mxu0 %v6931
    %10650 = vmatprep.subr.bf16.mxu0 %v6924
    %10651 = vmatpush2.bf16.msra.mxu0 %v6923
    %10652 = vmatprep.subr.bf16.mxu0 %v6916
    %10653 = vmatpush2.bf16.msra.mxu0 %v6915
    %10654 = vmatprep.subr.bf16.mxu0 %v6908
    %10655 = vmatpush2.bf16.msra.mxu0 %v6907
    %10656 = vmatprep.subr.bf16.mxu0 %v6900
    %10657 = vmatpush2.bf16.msra.mxu0 %v6899
    %10658 = vmatprep.mubr.bf16.mxu0 %v245
    %10659 = vmatmul.mubr.bf16.gmra.mxu0 %v244
    %v10660 = vpop.f32.mrf.mxu0
    %v10661 = vadd.f32 %v10620, %v10660
    %v10662 = vpop.f32.mrf.mxu0
    %v10663 = vadd.f32 %v10622, %v10662
    %v10664 = vpop.f32.mrf.mxu0
    %v10665 = vpop.f32.mrf.mxu0
    %10666 = vdwg.mxu0
    %10667 = vmatprep.subr.bf16.mxu0 %v7020
    %10668 = vmatpush1.bf16.msra.mxu0 %v7019
    %10669 = vmatprep.subr.bf16.mxu0 %v7012
    %10670 = vmatpush1.bf16.msra.mxu0 %v7011
    %10671 = vmatprep.subr.bf16.mxu0 %v7004
    %10672 = vmatpush1.bf16.msra.mxu0 %v7003
    %10673 = vmatprep.subr.bf16.mxu0 %v6996
    %10674 = vmatpush1.bf16.msra.mxu0 %v6995
    %10675 = vmatprep.subr.bf16.mxu0 %v6988
    %10676 = vmatpush1.bf16.msra.mxu0 %v6987
    %10677 = vmatprep.subr.bf16.mxu0 %v6980
    %10678 = vmatpush1.bf16.msra.mxu0 %v6979
    %10679 = vmatprep.subr.bf16.mxu0 %v6972
    %10680 = vmatpush1.bf16.msra.mxu0 %v6971
    %10681 = vmatprep.subr.bf16.mxu0 %v6964
    %10682 = vmatpush1.bf16.msra.mxu0 %v6963
    %10683 = vmatprep.subr.bf16.mxu0 %v7084
    %10684 = vmatpush2.bf16.msra.mxu0 %v7083
    %10685 = vmatprep.subr.bf16.mxu0 %v7076
    %10686 = vmatpush2.bf16.msra.mxu0 %v7075
    %10687 = vmatprep.subr.bf16.mxu0 %v7068
    %10688 = vmatpush2.bf16.msra.mxu0 %v7067
    %10689 = vmatprep.subr.bf16.mxu0 %v7060
    %10690 = vmatpush2.bf16.msra.mxu0 %v7059
    %10691 = vmatprep.subr.bf16.mxu0 %v7052
    %10692 = vmatpush2.bf16.msra.mxu0 %v7051
    %10693 = vmatprep.subr.bf16.mxu0 %v7044
    %10694 = vmatpush2.bf16.msra.mxu0 %v7043
    %10695 = vmatprep.subr.bf16.mxu0 %v7036
    %10696 = vmatpush2.bf16.msra.mxu0 %v7035
    %10697 = vmatprep.subr.bf16.mxu0 %v7028
    %10698 = vmatpush2.bf16.msra.mxu0 %v7027
    %10699 = vmatprep.mubr.bf16.mxu0 %v247
    %10700 = vmatmul.mubr.bf16.gmra.mxu0 %v246
    %v10701 = vpop.f32.mrf.mxu0
    %v10702 = vadd.f32 %v10661, %v10701
    %v10703 = vpop.f32.mrf.mxu0
    %v10704 = vadd.f32 %v10663, %v10703
    %v10705 = vpop.f32.mrf.mxu0
    %v10706 = vpop.f32.mrf.mxu0
    %10707 = vdwg.mxu0
    %10708 = vmatprep.subr.bf16.mxu0 %v7148
    %10709 = vmatpush1.bf16.msra.mxu0 %v7147
    %10710 = vmatprep.subr.bf16.mxu0 %v7140
    %10711 = vmatpush1.bf16.msra.mxu0 %v7139
    %10712 = vmatprep.subr.bf16.mxu0 %v7132
    %10713 = vmatpush1.bf16.msra.mxu0 %v7131
    %10714 = vmatprep.subr.bf16.mxu0 %v7124
    %10715 = vmatpush1.bf16.msra.mxu0 %v7123
    %10716 = vmatprep.subr.bf16.mxu0 %v7116
    %10717 = vmatpush1.bf16.msra.mxu0 %v7115
    %10718 = vmatprep.subr.bf16.mxu0 %v7108
    %10719 = vmatpush1.bf16.msra.mxu0 %v7107
    %10720 = vmatprep.subr.bf16.mxu0 %v7100
    %10721 = vmatpush1.bf16.msra.mxu0 %v7099
    %10722 = vmatprep.subr.bf16.mxu0 %v7092
    %10723 = vmatpush1.bf16.msra.mxu0 %v7091
    %10724 = vmatprep.subr.bf16.mxu0 %v7212
    %10725 = vmatpush2.bf16.msra.mxu0 %v7211
    %10726 = vmatprep.subr.bf16.mxu0 %v7204
    %10727 = vmatpush2.bf16.msra.mxu0 %v7203
    %10728 = vmatprep.subr.bf16.mxu0 %v7196
    %10729 = vmatpush2.bf16.msra.mxu0 %v7195
    %10730 = vmatprep.subr.bf16.mxu0 %v7188
    %10731 = vmatpush2.bf16.msra.mxu0 %v7187
    %10732 = vmatprep.subr.bf16.mxu0 %v7180
    %10733 = vmatpush2.bf16.msra.mxu0 %v7179
    %10734 = vmatprep.subr.bf16.mxu0 %v7172
    %10735 = vmatpush2.bf16.msra.mxu0 %v7171
    %10736 = vmatprep.subr.bf16.mxu0 %v7164
    %10737 = vmatpush2.bf16.msra.mxu0 %v7163
    %10738 = vmatprep.subr.bf16.mxu0 %v7156
    %10739 = vmatpush2.bf16.msra.mxu0 %v7155
    %10740 = vmatprep.mubr.bf16.mxu0 %v249
    %10741 = vmatmul.mubr.bf16.gmra.mxu0 %v248
    %v10742 = vpop.f32.mrf.mxu0
    %v10743 = vadd.f32 %v10702, %v10742
    %v10744 = vpop.f32.mrf.mxu0
    %v10745 = vadd.f32 %v10704, %v10744
    %v10746 = vpop.f32.mrf.mxu0
    %v10747 = vpop.f32.mrf.mxu0
    %10748 = vdwg.mxu0
    %10749 = vmatprep.subr.bf16.mxu0 %v7276
    %10750 = vmatpush1.bf16.msra.mxu0 %v7275
    %10751 = vmatprep.subr.bf16.mxu0 %v7268
    %10752 = vmatpush1.bf16.msra.mxu0 %v7267
    %10753 = vmatprep.subr.bf16.mxu0 %v7260
    %10754 = vmatpush1.bf16.msra.mxu0 %v7259
    %10755 = vmatprep.subr.bf16.mxu0 %v7252
    %10756 = vmatpush1.bf16.msra.mxu0 %v7251
    %10757 = vmatprep.subr.bf16.mxu0 %v7244
    %10758 = vmatpush1.bf16.msra.mxu0 %v7243
    %10759 = vmatprep.subr.bf16.mxu0 %v7236
    %10760 = vmatpush1.bf16.msra.mxu0 %v7235
    %10761 = vmatprep.subr.bf16.mxu0 %v7228
    %10762 = vmatpush1.bf16.msra.mxu0 %v7227
    %10763 = vmatprep.subr.bf16.mxu0 %v7220
    %10764 = vmatpush1.bf16.msra.mxu0 %v7219
    %10765 = vmatprep.subr.bf16.mxu0 %v7340
    %10766 = vmatpush2.bf16.msra.mxu0 %v7339
    %10767 = vmatprep.subr.bf16.mxu0 %v7332
    %10768 = vmatpush2.bf16.msra.mxu0 %v7331
    %10769 = vmatprep.subr.bf16.mxu0 %v7324
    %10770 = vmatpush2.bf16.msra.mxu0 %v7323
    %10771 = vmatprep.subr.bf16.mxu0 %v7316
    %10772 = vmatpush2.bf16.msra.mxu0 %v7315
    %10773 = vmatprep.subr.bf16.mxu0 %v7308
    %10774 = vmatpush2.bf16.msra.mxu0 %v7307
    %10775 = vmatprep.subr.bf16.mxu0 %v7300
    %10776 = vmatpush2.bf16.msra.mxu0 %v7299
    %10777 = vmatprep.subr.bf16.mxu0 %v7292
    %10778 = vmatpush2.bf16.msra.mxu0 %v7291
    %10779 = vmatprep.subr.bf16.mxu0 %v7284
    %10780 = vmatpush2.bf16.msra.mxu0 %v7283
    %10781 = vmatprep.mubr.bf16.mxu0 %v251
    %10782 = vmatmul.mubr.bf16.gmra.mxu0 %v250
    %v10783 = vpop.f32.mrf.mxu0
    %v10784 = vadd.f32 %v10743, %v10783
    %v10785 = vpop.f32.mrf.mxu0
    %v10786 = vadd.f32 %v10745, %v10785
    %v10787 = vpop.f32.mrf.mxu0
    %v10788 = vpop.f32.mrf.mxu0
    %10789 = vdwg.mxu0
    %10790 = vmatprep.subr.bf16.mxu0 %v7404
    %10791 = vmatpush1.bf16.msra.mxu0 %v7403
    %10792 = vmatprep.subr.bf16.mxu0 %v7396
    %10793 = vmatpush1.bf16.msra.mxu0 %v7395
    %10794 = vmatprep.subr.bf16.mxu0 %v7388
    %10795 = vmatpush1.bf16.msra.mxu0 %v7387
    %10796 = vmatprep.subr.bf16.mxu0 %v7380
    %10797 = vmatpush1.bf16.msra.mxu0 %v7379
    %10798 = vmatprep.subr.bf16.mxu0 %v7372
    %10799 = vmatpush1.bf16.msra.mxu0 %v7371
    %10800 = vmatprep.subr.bf16.mxu0 %v7364
    %10801 = vmatpush1.bf16.msra.mxu0 %v7363
    %10802 = vmatprep.subr.bf16.mxu0 %v7356
    %10803 = vmatpush1.bf16.msra.mxu0 %v7355
    %10804 = vmatprep.subr.bf16.mxu0 %v7348
    %10805 = vmatpush1.bf16.msra.mxu0 %v7347
    %10806 = vmatprep.subr.bf16.mxu0 %v7468
    %10807 = vmatpush2.bf16.msra.mxu0 %v7467
    %10808 = vmatprep.subr.bf16.mxu0 %v7460
    %10809 = vmatpush2.bf16.msra.mxu0 %v7459
    %10810 = vmatprep.subr.bf16.mxu0 %v7452
    %10811 = vmatpush2.bf16.msra.mxu0 %v7451
    %10812 = vmatprep.subr.bf16.mxu0 %v7444
    %10813 = vmatpush2.bf16.msra.mxu0 %v7443
    %10814 = vmatprep.subr.bf16.mxu0 %v7436
    %10815 = vmatpush2.bf16.msra.mxu0 %v7435
    %10816 = vmatprep.subr.bf16.mxu0 %v7428
    %10817 = vmatpush2.bf16.msra.mxu0 %v7427
    %10818 = vmatprep.subr.bf16.mxu0 %v7420
    %10819 = vmatpush2.bf16.msra.mxu0 %v7419
    %10820 = vmatprep.subr.bf16.mxu0 %v7412
    %10821 = vmatpush2.bf16.msra.mxu0 %v7411
    %10822 = vmatprep.mubr.bf16.mxu0 %v253
    %10823 = vmatmul.mubr.bf16.gmra.mxu0 %v252
    %v10824 = vpop.f32.mrf.mxu0
    %v10825 = vadd.f32 %v10784, %v10824
    %v10826 = vpop.f32.mrf.mxu0
    %v10827 = vadd.f32 %v10786, %v10826
    %v10828 = vpop.f32.mrf.mxu0
    %v10829 = vpop.f32.mrf.mxu0
    %10830 = vdwg.mxu0
    %10831 = vmatprep.subr.bf16.mxu0 %v7532
    %10832 = vmatpush1.bf16.msra.mxu0 %v7531
    %10833 = vmatprep.subr.bf16.mxu0 %v7524
    %10834 = vmatpush1.bf16.msra.mxu0 %v7523
    %10835 = vmatprep.subr.bf16.mxu0 %v7516
    %10836 = vmatpush1.bf16.msra.mxu0 %v7515
    %10837 = vmatprep.subr.bf16.mxu0 %v7508
    %10838 = vmatpush1.bf16.msra.mxu0 %v7507
    %10839 = vmatprep.subr.bf16.mxu0 %v7500
    %10840 = vmatpush1.bf16.msra.mxu0 %v7499
    %10841 = vmatprep.subr.bf16.mxu0 %v7492
    %10842 = vmatpush1.bf16.msra.mxu0 %v7491
    %10843 = vmatprep.subr.bf16.mxu0 %v7484
    %10844 = vmatpush1.bf16.msra.mxu0 %v7483
    %10845 = vmatprep.subr.bf16.mxu0 %v7476
    %10846 = vmatpush1.bf16.msra.mxu0 %v7475
    %10847 = vmatprep.subr.bf16.mxu0 %v7596
    %10848 = vmatpush2.bf16.msra.mxu0 %v7595
    %10849 = vmatprep.subr.bf16.mxu0 %v7588
    %10850 = vmatpush2.bf16.msra.mxu0 %v7587
    %10851 = vmatprep.subr.bf16.mxu0 %v7580
    %10852 = vmatpush2.bf16.msra.mxu0 %v7579
    %10853 = vmatprep.subr.bf16.mxu0 %v7572
    %10854 = vmatpush2.bf16.msra.mxu0 %v7571
    %10855 = vmatprep.subr.bf16.mxu0 %v7564
    %10856 = vmatpush2.bf16.msra.mxu0 %v7563
    %10857 = vmatprep.subr.bf16.mxu0 %v7556
    %10858 = vmatpush2.bf16.msra.mxu0 %v7555
    %10859 = vmatprep.subr.bf16.mxu0 %v7548
    %10860 = vmatpush2.bf16.msra.mxu0 %v7547
    %10861 = vmatprep.subr.bf16.mxu0 %v7540
    %10862 = vmatpush2.bf16.msra.mxu0 %v7539
    %10863 = vmatprep.mubr.bf16.mxu0 %v255
    %10864 = vmatmul.mubr.bf16.gmra.mxu0 %v254
    %v10865 = vpop.f32.mrf.mxu0
    %v10866 = vadd.f32 %v10825, %v10865
    %v10867 = vpop.f32.mrf.mxu0
    %v10868 = vadd.f32 %v10827, %v10867
    %v10869 = vpop.f32.mrf.mxu0
    %v10870 = vpop.f32.mrf.mxu0
    %10871 = vdwg.mxu0
    %10872 = vmatprep.subr.bf16.mxu0 %v7660
    %10873 = vmatpush1.bf16.msra.mxu0 %v7659
    %10874 = vmatprep.subr.bf16.mxu0 %v7652
    %10875 = vmatpush1.bf16.msra.mxu0 %v7651
    %10876 = vmatprep.subr.bf16.mxu0 %v7644
    %10877 = vmatpush1.bf16.msra.mxu0 %v7643
    %10878 = vmatprep.subr.bf16.mxu0 %v7636
    %10879 = vmatpush1.bf16.msra.mxu0 %v7635
    %10880 = vmatprep.subr.bf16.mxu0 %v7628
    %10881 = vmatpush1.bf16.msra.mxu0 %v7627
    %10882 = vmatprep.subr.bf16.mxu0 %v7620
    %10883 = vmatpush1.bf16.msra.mxu0 %v7619
    %10884 = vmatprep.subr.bf16.mxu0 %v7612
    %10885 = vmatpush1.bf16.msra.mxu0 %v7611
    %10886 = vmatprep.subr.bf16.mxu0 %v7604
    %10887 = vmatpush1.bf16.msra.mxu0 %v7603
    %10888 = vmatprep.subr.bf16.mxu0 %v7724
    %10889 = vmatpush2.bf16.msra.mxu0 %v7723
    %10890 = vmatprep.subr.bf16.mxu0 %v7716
    %10891 = vmatpush2.bf16.msra.mxu0 %v7715
    %10892 = vmatprep.subr.bf16.mxu0 %v7708
    %10893 = vmatpush2.bf16.msra.mxu0 %v7707
    %10894 = vmatprep.subr.bf16.mxu0 %v7700
    %10895 = vmatpush2.bf16.msra.mxu0 %v7699
    %10896 = vmatprep.subr.bf16.mxu0 %v7692
    %10897 = vmatpush2.bf16.msra.mxu0 %v7691
    %10898 = vmatprep.subr.bf16.mxu0 %v7684
    %10899 = vmatpush2.bf16.msra.mxu0 %v7683
    %10900 = vmatprep.subr.bf16.mxu0 %v7676
    %10901 = vmatpush2.bf16.msra.mxu0 %v7675
    %10902 = vmatprep.subr.bf16.mxu0 %v7668
    %10903 = vmatpush2.bf16.msra.mxu0 %v7667
    %10904 = vmatprep.mubr.bf16.mxu0 %v257
    %10905 = vmatmul.mubr.bf16.gmra.mxu0 %v256
    %v10906 = vpop.f32.mrf.mxu0
    %v10907 = vadd.f32 %v10866, %v10906
    %v10908 = vpop.f32.mrf.mxu0
    %v10909 = vadd.f32 %v10868, %v10908
    %v10910 = vpop.f32.mrf.mxu0
    %v10911 = vpop.f32.mrf.mxu0
    %10912 = vdwg.mxu0
    %10913 = vmatprep.subr.bf16.mxu0 %v7788
    %10914 = vmatpush1.bf16.msra.mxu0 %v7787
    %10915 = vmatprep.subr.bf16.mxu0 %v7780
    %10916 = vmatpush1.bf16.msra.mxu0 %v7779
    %10917 = vmatprep.subr.bf16.mxu0 %v7772
    %10918 = vmatpush1.bf16.msra.mxu0 %v7771
    %10919 = vmatprep.subr.bf16.mxu0 %v7764
    %10920 = vmatpush1.bf16.msra.mxu0 %v7763
    %10921 = vmatprep.subr.bf16.mxu0 %v7756
    %10922 = vmatpush1.bf16.msra.mxu0 %v7755
    %10923 = vmatprep.subr.bf16.mxu0 %v7748
    %10924 = vmatpush1.bf16.msra.mxu0 %v7747
    %10925 = vmatprep.subr.bf16.mxu0 %v7740
    %10926 = vmatpush1.bf16.msra.mxu0 %v7739
    %10927 = vmatprep.subr.bf16.mxu0 %v7732
    %10928 = vmatpush1.bf16.msra.mxu0 %v7731
    %10929 = vmatprep.subr.bf16.mxu0 %v7852
    %10930 = vmatpush2.bf16.msra.mxu0 %v7851
    %10931 = vmatprep.subr.bf16.mxu0 %v7844
    %10932 = vmatpush2.bf16.msra.mxu0 %v7843
    %10933 = vmatprep.subr.bf16.mxu0 %v7836
    %10934 = vmatpush2.bf16.msra.mxu0 %v7835
    %10935 = vmatprep.subr.bf16.mxu0 %v7828
    %10936 = vmatpush2.bf16.msra.mxu0 %v7827
    %10937 = vmatprep.subr.bf16.mxu0 %v7820
    %10938 = vmatpush2.bf16.msra.mxu0 %v7819
    %10939 = vmatprep.subr.bf16.mxu0 %v7812
    %10940 = vmatpush2.bf16.msra.mxu0 %v7811
    %10941 = vmatprep.subr.bf16.mxu0 %v7804
    %10942 = vmatpush2.bf16.msra.mxu0 %v7803
    %10943 = vmatprep.subr.bf16.mxu0 %v7796
    %10944 = vmatpush2.bf16.msra.mxu0 %v7795
    %10945 = vmatprep.mubr.bf16.mxu0 %v259
    %10946 = vmatmul.mubr.bf16.gmra.mxu0 %v258
    %v10947 = vpop.f32.mrf.mxu0
    %v10948 = vadd.f32 %v10907, %v10947
    %v10949 = vpop.f32.mrf.mxu0
    %v10950 = vadd.f32 %v10909, %v10949
    %v10951 = vpop.f32.mrf.mxu0
    %v10952 = vpop.f32.mrf.mxu0
    %10953 = vdwg.mxu0
    %10954 = vmatprep.subr.bf16.mxu0 %v7916
    %10955 = vmatpush1.bf16.msra.mxu0 %v7915
    %10956 = vmatprep.subr.bf16.mxu0 %v7908
    %10957 = vmatpush1.bf16.msra.mxu0 %v7907
    %10958 = vmatprep.subr.bf16.mxu0 %v7900
    %10959 = vmatpush1.bf16.msra.mxu0 %v7899
    %10960 = vmatprep.subr.bf16.mxu0 %v7892
    %10961 = vmatpush1.bf16.msra.mxu0 %v7891
    %10962 = vmatprep.subr.bf16.mxu0 %v7884
    %10963 = vmatpush1.bf16.msra.mxu0 %v7883
    %10964 = vmatprep.subr.bf16.mxu0 %v7876
    %10965 = vmatpush1.bf16.msra.mxu0 %v7875
    %10966 = vmatprep.subr.bf16.mxu0 %v7868
    %10967 = vmatpush1.bf16.msra.mxu0 %v7867
    %10968 = vmatprep.subr.bf16.mxu0 %v7860
    %10969 = vmatpush1.bf16.msra.mxu0 %v7859
    %10970 = vmatprep.subr.bf16.mxu0 %v7980
    %10971 = vmatpush2.bf16.msra.mxu0 %v7979
    %10972 = vmatprep.subr.bf16.mxu0 %v7972
    %10973 = vmatpush2.bf16.msra.mxu0 %v7971
    %10974 = vmatprep.subr.bf16.mxu0 %v7964
    %10975 = vmatpush2.bf16.msra.mxu0 %v7963
    %10976 = vmatprep.subr.bf16.mxu0 %v7956
    %10977 = vmatpush2.bf16.msra.mxu0 %v7955
    %10978 = vmatprep.subr.bf16.mxu0 %v7948
    %10979 = vmatpush2.bf16.msra.mxu0 %v7947
    %10980 = vmatprep.subr.bf16.mxu0 %v7940
    %10981 = vmatpush2.bf16.msra.mxu0 %v7939
    %10982 = vmatprep.subr.bf16.mxu0 %v7932
    %10983 = vmatpush2.bf16.msra.mxu0 %v7931
    %10984 = vmatprep.subr.bf16.mxu0 %v7924
    %10985 = vmatpush2.bf16.msra.mxu0 %v7923
    %10986 = vmatprep.mubr.bf16.mxu0 %v261
    %10987 = vmatmul.mubr.bf16.gmra.mxu0 %v260
    %v10988 = vpop.f32.mrf.mxu0
    %v10989 = vadd.f32 %v10948, %v10988
    %v10990 = vpop.f32.mrf.mxu0
    %v10991 = vadd.f32 %v10950, %v10990
    %v10992 = vpop.f32.mrf.mxu0
    %v10993 = vpop.f32.mrf.mxu0
    %10994 = vdwg.mxu0
    %10995 = vmatprep.subr.bf16.mxu0 %v6510
    %10996 = vmatpush1.bf16.msra.mxu0 %v6509
    %10997 = vmatprep.subr.bf16.mxu0 %v6502
    %10998 = vmatpush1.bf16.msra.mxu0 %v6501
    %10999 = vmatprep.subr.bf16.mxu0 %v6494
    %11000 = vmatpush1.bf16.msra.mxu0 %v6493
    %11001 = vmatprep.subr.bf16.mxu0 %v6486
    %11002 = vmatpush1.bf16.msra.mxu0 %v6485
    %11003 = vmatprep.subr.bf16.mxu0 %v6478
    %11004 = vmatpush1.bf16.msra.mxu0 %v6477
    %11005 = vmatprep.subr.bf16.mxu0 %v6470
    %11006 = vmatpush1.bf16.msra.mxu0 %v6469
    %11007 = vmatprep.subr.bf16.mxu0 %v6462
    %11008 = vmatpush1.bf16.msra.mxu0 %v6461
    %11009 = vmatprep.subr.bf16.mxu0 %v6454
    %11010 = vmatpush1.bf16.msra.mxu0 %v6453
    %11011 = vmatprep.subr.bf16.mxu0 %v6574
    %11012 = vmatpush2.bf16.msra.mxu0 %v6573
    %11013 = vmatprep.subr.bf16.mxu0 %v6566
    %11014 = vmatpush2.bf16.msra.mxu0 %v6565
    %11015 = vmatprep.subr.bf16.mxu0 %v6558
    %11016 = vmatpush2.bf16.msra.mxu0 %v6557
    %11017 = vmatprep.subr.bf16.mxu0 %v6550
    %11018 = vmatpush2.bf16.msra.mxu0 %v6549
    %11019 = vmatprep.subr.bf16.mxu0 %v6542
    %11020 = vmatpush2.bf16.msra.mxu0 %v6541
    %11021 = vmatprep.subr.bf16.mxu0 %v6534
    %11022 = vmatpush2.bf16.msra.mxu0 %v6533
    %11023 = vmatprep.subr.bf16.mxu0 %v6526
    %11024 = vmatpush2.bf16.msra.mxu0 %v6525
    %11025 = vmatprep.subr.bf16.mxu0 %v6518
    %11026 = vmatpush2.bf16.msra.mxu0 %v6517
    %11027 = vmatprep.mubr.bf16.mxu0 %v239
    %11028 = vmatmul.mubr.bf16.gmra.mxu0 %v238
    %v11029 = vpop.f32.mrf.mxu0
    %v11030 = vadd.f32 %v1826, %v11029
    %v11031 = vpop.f32.mrf.mxu0
    %v11032 = vadd.f32 %v1830, %v11031
    %v11033 = vpop.f32.mrf.mxu0
    %v11034 = vpop.f32.mrf.mxu0
    %11035 = vdwg.mxu0
    %11036 = vmatprep.subr.bf16.mxu0 %v6638
    %11037 = vmatpush1.bf16.msra.mxu0 %v6637
    %11038 = vmatprep.subr.bf16.mxu0 %v6630
    %11039 = vmatpush1.bf16.msra.mxu0 %v6629
    %11040 = vmatprep.subr.bf16.mxu0 %v6622
    %11041 = vmatpush1.bf16.msra.mxu0 %v6621
    %11042 = vmatprep.subr.bf16.mxu0 %v6614
    %11043 = vmatpush1.bf16.msra.mxu0 %v6613
    %11044 = vmatprep.subr.bf16.mxu0 %v6606
    %11045 = vmatpush1.bf16.msra.mxu0 %v6605
    %11046 = vmatprep.subr.bf16.mxu0 %v6598
    %11047 = vmatpush1.bf16.msra.mxu0 %v6597
    %11048 = vmatprep.subr.bf16.mxu0 %v6590
    %11049 = vmatpush1.bf16.msra.mxu0 %v6589
    %11050 = vmatprep.subr.bf16.mxu0 %v6582
    %11051 = vmatpush1.bf16.msra.mxu0 %v6581
    %11052 = vmatprep.subr.bf16.mxu0 %v6702
    %11053 = vmatpush2.bf16.msra.mxu0 %v6701
    %11054 = vmatprep.subr.bf16.mxu0 %v6694
    %11055 = vmatpush2.bf16.msra.mxu0 %v6693
    %11056 = vmatprep.subr.bf16.mxu0 %v6686
    %11057 = vmatpush2.bf16.msra.mxu0 %v6685
    %11058 = vmatprep.subr.bf16.mxu0 %v6678
    %11059 = vmatpush2.bf16.msra.mxu0 %v6677
    %11060 = vmatprep.subr.bf16.mxu0 %v6670
    %11061 = vmatpush2.bf16.msra.mxu0 %v6669
    %11062 = vmatprep.subr.bf16.mxu0 %v6662
    %11063 = vmatpush2.bf16.msra.mxu0 %v6661
    %11064 = vmatprep.subr.bf16.mxu0 %v6654
    %11065 = vmatpush2.bf16.msra.mxu0 %v6653
    %11066 = vmatprep.subr.bf16.mxu0 %v6646
    %11067 = vmatpush2.bf16.msra.mxu0 %v6645
    %11068 = vmatprep.mubr.bf16.mxu0 %v241
    %11069 = vmatmul.mubr.bf16.gmra.mxu0 %v240
    %v11070 = vpop.f32.mrf.mxu0
    %v11071 = vadd.f32 %v11030, %v11070
    %v11072 = vpop.f32.mrf.mxu0
    %v11073 = vadd.f32 %v11032, %v11072
    %v11074 = vpop.f32.mrf.mxu0
    %v11075 = vpop.f32.mrf.mxu0
    %11076 = vdwg.mxu0
    %11077 = vmatprep.subr.bf16.mxu0 %v6766
    %11078 = vmatpush1.bf16.msra.mxu0 %v6765
    %11079 = vmatprep.subr.bf16.mxu0 %v6758
    %11080 = vmatpush1.bf16.msra.mxu0 %v6757
    %11081 = vmatprep.subr.bf16.mxu0 %v6750
    %11082 = vmatpush1.bf16.msra.mxu0 %v6749
    %11083 = vmatprep.subr.bf16.mxu0 %v6742
    %11084 = vmatpush1.bf16.msra.mxu0 %v6741
    %11085 = vmatprep.subr.bf16.mxu0 %v6734
    %11086 = vmatpush1.bf16.msra.mxu0 %v6733
    %11087 = vmatprep.subr.bf16.mxu0 %v6726
    %11088 = vmatpush1.bf16.msra.mxu0 %v6725
    %11089 = vmatprep.subr.bf16.mxu0 %v6718
    %11090 = vmatpush1.bf16.msra.mxu0 %v6717
    %11091 = vmatprep.subr.bf16.mxu0 %v6710
    %11092 = vmatpush1.bf16.msra.mxu0 %v6709
    %11093 = vmatprep.subr.bf16.mxu0 %v6830
    %11094 = vmatpush2.bf16.msra.mxu0 %v6829
    %11095 = vmatprep.subr.bf16.mxu0 %v6822
    %11096 = vmatpush2.bf16.msra.mxu0 %v6821
    %11097 = vmatprep.subr.bf16.mxu0 %v6814
    %11098 = vmatpush2.bf16.msra.mxu0 %v6813
    %11099 = vmatprep.subr.bf16.mxu0 %v6806
    %11100 = vmatpush2.bf16.msra.mxu0 %v6805
    %11101 = vmatprep.subr.bf16.mxu0 %v6798
    %11102 = vmatpush2.bf16.msra.mxu0 %v6797
    %11103 = vmatprep.subr.bf16.mxu0 %v6790
    %11104 = vmatpush2.bf16.msra.mxu0 %v6789
    %11105 = vmatprep.subr.bf16.mxu0 %v6782
    %11106 = vmatpush2.bf16.msra.mxu0 %v6781
    %11107 = vmatprep.subr.bf16.mxu0 %v6774
    %11108 = vmatpush2.bf16.msra.mxu0 %v6773
    %11109 = vmatprep.mubr.bf16.mxu0 %v243
    %11110 = vmatmul.mubr.bf16.gmra.mxu0 %v242
    %v11111 = vpop.f32.mrf.mxu0
    %v11112 = vadd.f32 %v11071, %v11111
    %v11113 = vpop.f32.mrf.mxu0
    %v11114 = vadd.f32 %v11073, %v11113
    %v11115 = vpop.f32.mrf.mxu0
    %v11116 = vpop.f32.mrf.mxu0
    %11117 = vdwg.mxu0
    %11118 = vmatprep.subr.bf16.mxu0 %v6894
    %11119 = vmatpush1.bf16.msra.mxu0 %v6893
    %11120 = vmatprep.subr.bf16.mxu0 %v6886
    %11121 = vmatpush1.bf16.msra.mxu0 %v6885
    %11122 = vmatprep.subr.bf16.mxu0 %v6878
    %11123 = vmatpush1.bf16.msra.mxu0 %v6877
    %11124 = vmatprep.subr.bf16.mxu0 %v6870
    %11125 = vmatpush1.bf16.msra.mxu0 %v6869
    %11126 = vmatprep.subr.bf16.mxu0 %v6862
    %11127 = vmatpush1.bf16.msra.mxu0 %v6861
    %11128 = vmatprep.subr.bf16.mxu0 %v6854
    %11129 = vmatpush1.bf16.msra.mxu0 %v6853
    %11130 = vmatprep.subr.bf16.mxu0 %v6846
    %11131 = vmatpush1.bf16.msra.mxu0 %v6845
    %11132 = vmatprep.subr.bf16.mxu0 %v6838
    %11133 = vmatpush1.bf16.msra.mxu0 %v6837
    %11134 = vmatprep.subr.bf16.mxu0 %v6958
    %11135 = vmatpush2.bf16.msra.mxu0 %v6957
    %11136 = vmatprep.subr.bf16.mxu0 %v6950
    %11137 = vmatpush2.bf16.msra.mxu0 %v6949
    %11138 = vmatprep.subr.bf16.mxu0 %v6942
    %11139 = vmatpush2.bf16.msra.mxu0 %v6941
    %11140 = vmatprep.subr.bf16.mxu0 %v6934
    %11141 = vmatpush2.bf16.msra.mxu0 %v6933
    %11142 = vmatprep.subr.bf16.mxu0 %v6926
    %11143 = vmatpush2.bf16.msra.mxu0 %v6925
    %11144 = vmatprep.subr.bf16.mxu0 %v6918
    %11145 = vmatpush2.bf16.msra.mxu0 %v6917
    %11146 = vmatprep.subr.bf16.mxu0 %v6910
    %11147 = vmatpush2.bf16.msra.mxu0 %v6909
    %11148 = vmatprep.subr.bf16.mxu0 %v6902
    %11149 = vmatpush2.bf16.msra.mxu0 %v6901
    %11150 = vmatprep.mubr.bf16.mxu0 %v245
    %11151 = vmatmul.mubr.bf16.gmra.mxu0 %v244
    %v11152 = vpop.f32.mrf.mxu0
    %v11153 = vadd.f32 %v11112, %v11152
    %v11154 = vpop.f32.mrf.mxu0
    %v11155 = vadd.f32 %v11114, %v11154
    %v11156 = vpop.f32.mrf.mxu0
    %v11157 = vpop.f32.mrf.mxu0
    %11158 = vdwg.mxu0
    %11159 = vmatprep.subr.bf16.mxu0 %v7022
    %11160 = vmatpush1.bf16.msra.mxu0 %v7021
    %11161 = vmatprep.subr.bf16.mxu0 %v7014
    %11162 = vmatpush1.bf16.msra.mxu0 %v7013
    %11163 = vmatprep.subr.bf16.mxu0 %v7006
    %11164 = vmatpush1.bf16.msra.mxu0 %v7005
    %11165 = vmatprep.subr.bf16.mxu0 %v6998
    %11166 = vmatpush1.bf16.msra.mxu0 %v6997
    %11167 = vmatprep.subr.bf16.mxu0 %v6990
    %11168 = vmatpush1.bf16.msra.mxu0 %v6989
    %11169 = vmatprep.subr.bf16.mxu0 %v6982
    %11170 = vmatpush1.bf16.msra.mxu0 %v6981
    %11171 = vmatprep.subr.bf16.mxu0 %v6974
    %11172 = vmatpush1.bf16.msra.mxu0 %v6973
    %11173 = vmatprep.subr.bf16.mxu0 %v6966
    %11174 = vmatpush1.bf16.msra.mxu0 %v6965
    %11175 = vmatprep.subr.bf16.mxu0 %v7086
    %11176 = vmatpush2.bf16.msra.mxu0 %v7085
    %11177 = vmatprep.subr.bf16.mxu0 %v7078
    %11178 = vmatpush2.bf16.msra.mxu0 %v7077
    %11179 = vmatprep.subr.bf16.mxu0 %v7070
    %11180 = vmatpush2.bf16.msra.mxu0 %v7069
    %11181 = vmatprep.subr.bf16.mxu0 %v7062
    %11182 = vmatpush2.bf16.msra.mxu0 %v7061
    %11183 = vmatprep.subr.bf16.mxu0 %v7054
    %11184 = vmatpush2.bf16.msra.mxu0 %v7053
    %11185 = vmatprep.subr.bf16.mxu0 %v7046
    %11186 = vmatpush2.bf16.msra.mxu0 %v7045
    %11187 = vmatprep.subr.bf16.mxu0 %v7038
    %11188 = vmatpush2.bf16.msra.mxu0 %v7037
    %11189 = vmatprep.subr.bf16.mxu0 %v7030
    %11190 = vmatpush2.bf16.msra.mxu0 %v7029
    %11191 = vmatprep.mubr.bf16.mxu0 %v247
    %11192 = vmatmul.mubr.bf16.gmra.mxu0 %v246
    %v11193 = vpop.f32.mrf.mxu0
    %v11194 = vadd.f32 %v11153, %v11193
    %v11195 = vpop.f32.mrf.mxu0
    %v11196 = vadd.f32 %v11155, %v11195
    %v11197 = vpop.f32.mrf.mxu0
    %v11198 = vpop.f32.mrf.mxu0
    %11199 = vdwg.mxu0
    %11200 = vmatprep.subr.bf16.mxu0 %v7150
    %11201 = vmatpush1.bf16.msra.mxu0 %v7149
    %11202 = vmatprep.subr.bf16.mxu0 %v7142
    %11203 = vmatpush1.bf16.msra.mxu0 %v7141
    %11204 = vmatprep.subr.bf16.mxu0 %v7134
    %11205 = vmatpush1.bf16.msra.mxu0 %v7133
    %11206 = vmatprep.subr.bf16.mxu0 %v7126
    %11207 = vmatpush1.bf16.msra.mxu0 %v7125
    %11208 = vmatprep.subr.bf16.mxu0 %v7118
    %11209 = vmatpush1.bf16.msra.mxu0 %v7117
    %11210 = vmatprep.subr.bf16.mxu0 %v7110
    %11211 = vmatpush1.bf16.msra.mxu0 %v7109
    %11212 = vmatprep.subr.bf16.mxu0 %v7102
    %11213 = vmatpush1.bf16.msra.mxu0 %v7101
    %11214 = vmatprep.subr.bf16.mxu0 %v7094
    %11215 = vmatpush1.bf16.msra.mxu0 %v7093
    %11216 = vmatprep.subr.bf16.mxu0 %v7214
    %11217 = vmatpush2.bf16.msra.mxu0 %v7213
    %11218 = vmatprep.subr.bf16.mxu0 %v7206
    %11219 = vmatpush2.bf16.msra.mxu0 %v7205
    %11220 = vmatprep.subr.bf16.mxu0 %v7198
    %11221 = vmatpush2.bf16.msra.mxu0 %v7197
    %11222 = vmatprep.subr.bf16.mxu0 %v7190
    %11223 = vmatpush2.bf16.msra.mxu0 %v7189
    %11224 = vmatprep.subr.bf16.mxu0 %v7182
    %11225 = vmatpush2.bf16.msra.mxu0 %v7181
    %11226 = vmatprep.subr.bf16.mxu0 %v7174
    %11227 = vmatpush2.bf16.msra.mxu0 %v7173
    %11228 = vmatprep.subr.bf16.mxu0 %v7166
    %11229 = vmatpush2.bf16.msra.mxu0 %v7165
    %11230 = vmatprep.subr.bf16.mxu0 %v7158
    %11231 = vmatpush2.bf16.msra.mxu0 %v7157
    %11232 = vmatprep.mubr.bf16.mxu0 %v249
    %11233 = vmatmul.mubr.bf16.gmra.mxu0 %v248
    %v11234 = vpop.f32.mrf.mxu0
    %v11235 = vadd.f32 %v11194, %v11234
    %v11236 = vpop.f32.mrf.mxu0
    %v11237 = vadd.f32 %v11196, %v11236
    %v11238 = vpop.f32.mrf.mxu0
    %v11239 = vpop.f32.mrf.mxu0
    %11240 = vdwg.mxu0
    %11241 = vmatprep.subr.bf16.mxu0 %v7278
    %11242 = vmatpush1.bf16.msra.mxu0 %v7277
    %11243 = vmatprep.subr.bf16.mxu0 %v7270
    %11244 = vmatpush1.bf16.msra.mxu0 %v7269
    %11245 = vmatprep.subr.bf16.mxu0 %v7262
    %11246 = vmatpush1.bf16.msra.mxu0 %v7261
    %11247 = vmatprep.subr.bf16.mxu0 %v7254
    %11248 = vmatpush1.bf16.msra.mxu0 %v7253
    %11249 = vmatprep.subr.bf16.mxu0 %v7246
    %11250 = vmatpush1.bf16.msra.mxu0 %v7245
    %11251 = vmatprep.subr.bf16.mxu0 %v7238
    %11252 = vmatpush1.bf16.msra.mxu0 %v7237
    %11253 = vmatprep.subr.bf16.mxu0 %v7230
    %11254 = vmatpush1.bf16.msra.mxu0 %v7229
    %11255 = vmatprep.subr.bf16.mxu0 %v7222
    %11256 = vmatpush1.bf16.msra.mxu0 %v7221
    %11257 = vmatprep.subr.bf16.mxu0 %v7342
    %11258 = vmatpush2.bf16.msra.mxu0 %v7341
    %11259 = vmatprep.subr.bf16.mxu0 %v7334
    %11260 = vmatpush2.bf16.msra.mxu0 %v7333
    %11261 = vmatprep.subr.bf16.mxu0 %v7326
    %11262 = vmatpush2.bf16.msra.mxu0 %v7325
    %11263 = vmatprep.subr.bf16.mxu0 %v7318
    %11264 = vmatpush2.bf16.msra.mxu0 %v7317
    %11265 = vmatprep.subr.bf16.mxu0 %v7310
    %11266 = vmatpush2.bf16.msra.mxu0 %v7309
    %11267 = vmatprep.subr.bf16.mxu0 %v7302
    %11268 = vmatpush2.bf16.msra.mxu0 %v7301
    %11269 = vmatprep.subr.bf16.mxu0 %v7294
    %11270 = vmatpush2.bf16.msra.mxu0 %v7293
    %11271 = vmatprep.subr.bf16.mxu0 %v7286
    %11272 = vmatpush2.bf16.msra.mxu0 %v7285
    %11273 = vmatprep.mubr.bf16.mxu0 %v251
    %11274 = vmatmul.mubr.bf16.gmra.mxu0 %v250
    %v11275 = vpop.f32.mrf.mxu0
    %v11276 = vadd.f32 %v11235, %v11275
    %v11277 = vpop.f32.mrf.mxu0
    %v11278 = vadd.f32 %v11237, %v11277
    %v11279 = vpop.f32.mrf.mxu0
    %v11280 = vpop.f32.mrf.mxu0
    %11281 = vdwg.mxu0
    %11282 = vmatprep.subr.bf16.mxu0 %v7406
    %11283 = vmatpush1.bf16.msra.mxu0 %v7405
    %11284 = vmatprep.subr.bf16.mxu0 %v7398
    %11285 = vmatpush1.bf16.msra.mxu0 %v7397
    %11286 = vmatprep.subr.bf16.mxu0 %v7390
    %11287 = vmatpush1.bf16.msra.mxu0 %v7389
    %11288 = vmatprep.subr.bf16.mxu0 %v7382
    %11289 = vmatpush1.bf16.msra.mxu0 %v7381
    %11290 = vmatprep.subr.bf16.mxu0 %v7374
    %11291 = vmatpush1.bf16.msra.mxu0 %v7373
    %11292 = vmatprep.subr.bf16.mxu0 %v7366
    %11293 = vmatpush1.bf16.msra.mxu0 %v7365
    %11294 = vmatprep.subr.bf16.mxu0 %v7358
    %11295 = vmatpush1.bf16.msra.mxu0 %v7357
    %11296 = vmatprep.subr.bf16.mxu0 %v7350
    %11297 = vmatpush1.bf16.msra.mxu0 %v7349
    %11298 = vmatprep.subr.bf16.mxu0 %v7470
    %11299 = vmatpush2.bf16.msra.mxu0 %v7469
    %11300 = vmatprep.subr.bf16.mxu0 %v7462
    %11301 = vmatpush2.bf16.msra.mxu0 %v7461
    %11302 = vmatprep.subr.bf16.mxu0 %v7454
    %11303 = vmatpush2.bf16.msra.mxu0 %v7453
    %11304 = vmatprep.subr.bf16.mxu0 %v7446
    %11305 = vmatpush2.bf16.msra.mxu0 %v7445
    %11306 = vmatprep.subr.bf16.mxu0 %v7438
    %11307 = vmatpush2.bf16.msra.mxu0 %v7437
    %11308 = vmatprep.subr.bf16.mxu0 %v7430
    %11309 = vmatpush2.bf16.msra.mxu0 %v7429
    %11310 = vmatprep.subr.bf16.mxu0 %v7422
    %11311 = vmatpush2.bf16.msra.mxu0 %v7421
    %11312 = vmatprep.subr.bf16.mxu0 %v7414
    %11313 = vmatpush2.bf16.msra.mxu0 %v7413
    %11314 = vmatprep.mubr.bf16.mxu0 %v253
    %11315 = vmatmul.mubr.bf16.gmra.mxu0 %v252
    %v11316 = vpop.f32.mrf.mxu0
    %v11317 = vadd.f32 %v11276, %v11316
    %v11318 = vpop.f32.mrf.mxu0
    %v11319 = vadd.f32 %v11278, %v11318
    %v11320 = vpop.f32.mrf.mxu0
    %v11321 = vpop.f32.mrf.mxu0
    %11322 = vdwg.mxu0
    %11323 = vmatprep.subr.bf16.mxu0 %v7534
    %11324 = vmatpush1.bf16.msra.mxu0 %v7533
    %11325 = vmatprep.subr.bf16.mxu0 %v7526
    %11326 = vmatpush1.bf16.msra.mxu0 %v7525
    %11327 = vmatprep.subr.bf16.mxu0 %v7518
    %11328 = vmatpush1.bf16.msra.mxu0 %v7517
    %11329 = vmatprep.subr.bf16.mxu0 %v7510
    %11330 = vmatpush1.bf16.msra.mxu0 %v7509
    %11331 = vmatprep.subr.bf16.mxu0 %v7502
    %11332 = vmatpush1.bf16.msra.mxu0 %v7501
    %11333 = vmatprep.subr.bf16.mxu0 %v7494
    %11334 = vmatpush1.bf16.msra.mxu0 %v7493
    %11335 = vmatprep.subr.bf16.mxu0 %v7486
    %11336 = vmatpush1.bf16.msra.mxu0 %v7485
    %11337 = vmatprep.subr.bf16.mxu0 %v7478
    %11338 = vmatpush1.bf16.msra.mxu0 %v7477
    %11339 = vmatprep.subr.bf16.mxu0 %v7598
    %11340 = vmatpush2.bf16.msra.mxu0 %v7597
    %11341 = vmatprep.subr.bf16.mxu0 %v7590
    %11342 = vmatpush2.bf16.msra.mxu0 %v7589
    %11343 = vmatprep.subr.bf16.mxu0 %v7582
    %11344 = vmatpush2.bf16.msra.mxu0 %v7581
    %11345 = vmatprep.subr.bf16.mxu0 %v7574
    %11346 = vmatpush2.bf16.msra.mxu0 %v7573
    %11347 = vmatprep.subr.bf16.mxu0 %v7566
    %11348 = vmatpush2.bf16.msra.mxu0 %v7565
    %11349 = vmatprep.subr.bf16.mxu0 %v7558
    %11350 = vmatpush2.bf16.msra.mxu0 %v7557
    %11351 = vmatprep.subr.bf16.mxu0 %v7550
    %11352 = vmatpush2.bf16.msra.mxu0 %v7549
    %11353 = vmatprep.subr.bf16.mxu0 %v7542
    %11354 = vmatpush2.bf16.msra.mxu0 %v7541
    %11355 = vmatprep.mubr.bf16.mxu0 %v255
    %11356 = vmatmul.mubr.bf16.gmra.mxu0 %v254
    %v11357 = vpop.f32.mrf.mxu0
    %v11358 = vadd.f32 %v11317, %v11357
    %v11359 = vpop.f32.mrf.mxu0
    %v11360 = vadd.f32 %v11319, %v11359
    %v11361 = vpop.f32.mrf.mxu0
    %v11362 = vpop.f32.mrf.mxu0
    %11363 = vdwg.mxu0
    %11364 = vmatprep.subr.bf16.mxu0 %v7662
    %11365 = vmatpush1.bf16.msra.mxu0 %v7661
    %11366 = vmatprep.subr.bf16.mxu0 %v7654
    %11367 = vmatpush1.bf16.msra.mxu0 %v7653
    %11368 = vmatprep.subr.bf16.mxu0 %v7646
    %11369 = vmatpush1.bf16.msra.mxu0 %v7645
    %11370 = vmatprep.subr.bf16.mxu0 %v7638
    %11371 = vmatpush1.bf16.msra.mxu0 %v7637
    %11372 = vmatprep.subr.bf16.mxu0 %v7630
    %11373 = vmatpush1.bf16.msra.mxu0 %v7629
    %11374 = vmatprep.subr.bf16.mxu0 %v7622
    %11375 = vmatpush1.bf16.msra.mxu0 %v7621
    %11376 = vmatprep.subr.bf16.mxu0 %v7614
    %11377 = vmatpush1.bf16.msra.mxu0 %v7613
    %11378 = vmatprep.subr.bf16.mxu0 %v7606
    %11379 = vmatpush1.bf16.msra.mxu0 %v7605
    %11380 = vmatprep.subr.bf16.mxu0 %v7726
    %11381 = vmatpush2.bf16.msra.mxu0 %v7725
    %11382 = vmatprep.subr.bf16.mxu0 %v7718
    %11383 = vmatpush2.bf16.msra.mxu0 %v7717
    %11384 = vmatprep.subr.bf16.mxu0 %v7710
    %11385 = vmatpush2.bf16.msra.mxu0 %v7709
    %11386 = vmatprep.subr.bf16.mxu0 %v7702
    %11387 = vmatpush2.bf16.msra.mxu0 %v7701
    %11388 = vmatprep.subr.bf16.mxu0 %v7694
    %11389 = vmatpush2.bf16.msra.mxu0 %v7693
    %11390 = vmatprep.subr.bf16.mxu0 %v7686
    %11391 = vmatpush2.bf16.msra.mxu0 %v7685
    %11392 = vmatprep.subr.bf16.mxu0 %v7678
    %11393 = vmatpush2.bf16.msra.mxu0 %v7677
    %11394 = vmatprep.subr.bf16.mxu0 %v7670
    %11395 = vmatpush2.bf16.msra.mxu0 %v7669
    %11396 = vmatprep.mubr.bf16.mxu0 %v257
    %11397 = vmatmul.mubr.bf16.gmra.mxu0 %v256
    %v11398 = vpop.f32.mrf.mxu0
    %v11399 = vadd.f32 %v11358, %v11398
    %v11400 = vpop.f32.mrf.mxu0
    %v11401 = vadd.f32 %v11360, %v11400
    %v11402 = vpop.f32.mrf.mxu0
    %v11403 = vpop.f32.mrf.mxu0
    %11404 = vdwg.mxu0
    %11405 = vmatprep.subr.bf16.mxu0 %v7790
    %11406 = vmatpush1.bf16.msra.mxu0 %v7789
    %11407 = vmatprep.subr.bf16.mxu0 %v7782
    %11408 = vmatpush1.bf16.msra.mxu0 %v7781
    %11409 = vmatprep.subr.bf16.mxu0 %v7774
    %11410 = vmatpush1.bf16.msra.mxu0 %v7773
    %11411 = vmatprep.subr.bf16.mxu0 %v7766
    %11412 = vmatpush1.bf16.msra.mxu0 %v7765
    %11413 = vmatprep.subr.bf16.mxu0 %v7758
    %11414 = vmatpush1.bf16.msra.mxu0 %v7757
    %11415 = vmatprep.subr.bf16.mxu0 %v7750
    %11416 = vmatpush1.bf16.msra.mxu0 %v7749
    %11417 = vmatprep.subr.bf16.mxu0 %v7742
    %11418 = vmatpush1.bf16.msra.mxu0 %v7741
    %11419 = vmatprep.subr.bf16.mxu0 %v7734
    %11420 = vmatpush1.bf16.msra.mxu0 %v7733
    %11421 = vmatprep.subr.bf16.mxu0 %v7854
    %11422 = vmatpush2.bf16.msra.mxu0 %v7853
    %11423 = vmatprep.subr.bf16.mxu0 %v7846
    %11424 = vmatpush2.bf16.msra.mxu0 %v7845
    %11425 = vmatprep.subr.bf16.mxu0 %v7838
    %11426 = vmatpush2.bf16.msra.mxu0 %v7837
    %11427 = vmatprep.subr.bf16.mxu0 %v7830
    %11428 = vmatpush2.bf16.msra.mxu0 %v7829
    %11429 = vmatprep.subr.bf16.mxu0 %v7822
    %11430 = vmatpush2.bf16.msra.mxu0 %v7821
    %11431 = vmatprep.subr.bf16.mxu0 %v7814
    %11432 = vmatpush2.bf16.msra.mxu0 %v7813
    %11433 = vmatprep.subr.bf16.mxu0 %v7806
    %11434 = vmatpush2.bf16.msra.mxu0 %v7805
    %11435 = vmatprep.subr.bf16.mxu0 %v7798
    %11436 = vmatpush2.bf16.msra.mxu0 %v7797
    %11437 = vmatprep.mubr.bf16.mxu0 %v259
    %11438 = vmatmul.mubr.bf16.gmra.mxu0 %v258
    %v11439 = vpop.f32.mrf.mxu0
    %v11440 = vadd.f32 %v11399, %v11439
    %v11441 = vpop.f32.mrf.mxu0
    %v11442 = vadd.f32 %v11401, %v11441
    %v11443 = vpop.f32.mrf.mxu0
    %v11444 = vpop.f32.mrf.mxu0
    %11445 = vdwg.mxu0
    %11446 = vmatprep.subr.bf16.mxu0 %v7918
    %11447 = vmatpush1.bf16.msra.mxu0 %v7917
    %11448 = vmatprep.subr.bf16.mxu0 %v7910
    %11449 = vmatpush1.bf16.msra.mxu0 %v7909
    %11450 = vmatprep.subr.bf16.mxu0 %v7902
    %11451 = vmatpush1.bf16.msra.mxu0 %v7901
    %11452 = vmatprep.subr.bf16.mxu0 %v7894
    %11453 = vmatpush1.bf16.msra.mxu0 %v7893
    %11454 = vmatprep.subr.bf16.mxu0 %v7886
    %11455 = vmatpush1.bf16.msra.mxu0 %v7885
    %11456 = vmatprep.subr.bf16.mxu0 %v7878
    %11457 = vmatpush1.bf16.msra.mxu0 %v7877
    %11458 = vmatprep.subr.bf16.mxu0 %v7870
    %11459 = vmatpush1.bf16.msra.mxu0 %v7869
    %11460 = vmatprep.subr.bf16.mxu0 %v7862
    %11461 = vmatpush1.bf16.msra.mxu0 %v7861
    %11462 = vmatprep.subr.bf16.mxu0 %v7982
    %11463 = vmatpush2.bf16.msra.mxu0 %v7981
    %11464 = vmatprep.subr.bf16.mxu0 %v7974
    %11465 = vmatpush2.bf16.msra.mxu0 %v7973
    %11466 = vmatprep.subr.bf16.mxu0 %v7966
    %11467 = vmatpush2.bf16.msra.mxu0 %v7965
    %11468 = vmatprep.subr.bf16.mxu0 %v7958
    %11469 = vmatpush2.bf16.msra.mxu0 %v7957
    %11470 = vmatprep.subr.bf16.mxu0 %v7950
    %11471 = vmatpush2.bf16.msra.mxu0 %v7949
    %11472 = vmatprep.subr.bf16.mxu0 %v7942
    %11473 = vmatpush2.bf16.msra.mxu0 %v7941
    %11474 = vmatprep.subr.bf16.mxu0 %v7934
    %11475 = vmatpush2.bf16.msra.mxu0 %v7933
    %11476 = vmatprep.subr.bf16.mxu0 %v7926
    %11477 = vmatpush2.bf16.msra.mxu0 %v7925
    %11478 = vmatprep.mubr.bf16.mxu0 %v261
    %11479 = vmatmul.mubr.bf16.gmra.mxu0 %v260
    %v11480 = vpop.f32.mrf.mxu0
    %v11481 = vadd.f32 %v11440, %v11480
    %v11482 = vpop.f32.mrf.mxu0
    %v11483 = vadd.f32 %v11442, %v11482
    %v11484 = vpop.f32.mrf.mxu0
    %v11485 = vpop.f32.mrf.mxu0
    %11486 = vdwg.mxu0
    %v11487 = vmax.f32 %v10005, 0.0
    %v11488 = vmax.f32 %v10007, 0.0
    %v11489 = vmax.f32 %v10497, 0.0
    %v11490 = vmax.f32 %v10499, 0.0
    %v11491 = vmax.f32 %v10989, 0.0
    %v11492 = vmax.f32 %v10991, 0.0
    %v11493 = vmax.f32 %v11481, 0.0
    %v11494 = vmax.f32 %v11483, 0.0
    %v11495 = vmul.f32 %v11487, %v206
    %v11496 = vmul.f32 %v11488, %v206
    %v11497 = vmul.f32 %v11489, %v206
    %v11498 = vmul.f32 %v11490, %v206
    %v11499 = vmul.f32 %v11491, %v206
    %v11500 = vmul.f32 %v11492, %v206
    %v11501 = vmul.f32 %v11493, %v206
    %v11502 = vmul.f32 %v11494, %v206
    %v11503 = vrot.slane %v11495, 4
    %v11504 = vadd.f32 %v11495, %v11503
    %v11505 = vrot.slane %v11504, 2
    %v11506 = vadd.f32 %v11504, %v11505
    %v11507 = vrot.slane %v11506, 1
    %v11508 = vadd.f32 %v11506, %v11507
    %v11509 = vrot.slane %v11496, 4
    %v11510 = vadd.f32 %v11496, %v11509
    %v11511 = vrot.slane %v11510, 2
    %v11512 = vadd.f32 %v11510, %v11511
    %v11513 = vrot.slane %v11512, 1
    %v11514 = vadd.f32 %v11512, %v11513
    %v11515 = vrot.slane %v11497, 4
    %v11516 = vadd.f32 %v11497, %v11515
    %v11517 = vrot.slane %v11516, 2
    %v11518 = vadd.f32 %v11516, %v11517
    %v11519 = vrot.slane %v11518, 1
    %v11520 = vadd.f32 %v11518, %v11519
    %v11521 = vrot.slane %v11498, 4
    %v11522 = vadd.f32 %v11498, %v11521
    %v11523 = vrot.slane %v11522, 2
    %v11524 = vadd.f32 %v11522, %v11523
    %v11525 = vrot.slane %v11524, 1
    %v11526 = vadd.f32 %v11524, %v11525
    %v11527 = vrot.slane %v11499, 4
    %v11528 = vadd.f32 %v11499, %v11527
    %v11529 = vrot.slane %v11528, 2
    %v11530 = vadd.f32 %v11528, %v11529
    %v11531 = vrot.slane %v11530, 1
    %v11532 = vadd.f32 %v11530, %v11531
    %v11533 = vrot.slane %v11500, 4
    %v11534 = vadd.f32 %v11500, %v11533
    %v11535 = vrot.slane %v11534, 2
    %v11536 = vadd.f32 %v11534, %v11535
    %v11537 = vrot.slane %v11536, 1
    %v11538 = vadd.f32 %v11536, %v11537
    %v11539 = vrot.slane %v11501, 4
    %v11540 = vadd.f32 %v11501, %v11539
    %v11541 = vrot.slane %v11540, 2
    %v11542 = vadd.f32 %v11540, %v11541
    %v11543 = vrot.slane %v11542, 1
    %v11544 = vadd.f32 %v11542, %v11543
    %v11545 = vrot.slane %v11502, 4
    %v11546 = vadd.f32 %v11502, %v11545
    %v11547 = vrot.slane %v11546, 2
    %v11548 = vadd.f32 %v11546, %v11547
    %v11549 = vrot.slane %v11548, 1
    %v11550 = vadd.f32 %v11548, %v11549
    %v11551 = vstv %s210
    %v11552 = vmul.f32 %v11508, %v11551
    %v11553 = vmul.f32 %v11514, %v11551
    %v11554 = vmul.f32 %v11520, %v11551
    %v11555 = vmul.f32 %v11526, %v11551
    %v11556 = vmul.f32 %v11532, %v11551
    %v11557 = vmul.f32 %v11538, %v11551
    %v11558 = vmul.f32 %v11544, %v11551
    %v11559 = vmul.f32 %v11550, %v11551
    %v11560 = vsub.f32 %v11487, %v11552
    %v11561 = vsub.f32 %v11488, %v11553
    %v11562 = vsub.f32 %v11489, %v11554
    %v11563 = vsub.f32 %v11490, %v11555
    %v11564 = vsub.f32 %v11491, %v11556
    %v11565 = vsub.f32 %v11492, %v11557
    %v11566 = vsub.f32 %v11493, %v11558
    %v11567 = vsub.f32 %v11494, %v11559
    %v11568 = vmul.f32 %v11560, %v206
    %v11569 = vmul.f32 %v11561, %v206
    %v11570 = vmul.f32 %v11562, %v206
    %v11571 = vmul.f32 %v11563, %v206
    %v11572 = vmul.f32 %v11564, %v206
    %v11573 = vmul.f32 %v11565, %v206
    %v11574 = vmul.f32 %v11566, %v206
    %v11575 = vmul.f32 %v11567, %v206
    %v11576 = vmul.f32 %v11568, %v11568
    %v11577 = vmul.f32 %v11569, %v11569
    %v11578 = vmul.f32 %v11570, %v11570
    %v11579 = vmul.f32 %v11571, %v11571
    %v11580 = vmul.f32 %v11572, %v11572
    %v11581 = vmul.f32 %v11573, %v11573
    %v11582 = vmul.f32 %v11574, %v11574
    %v11583 = vmul.f32 %v11575, %v11575
    %v11584 = vrot.slane %v11576, 4
    %v11585 = vadd.f32 %v11576, %v11584
    %v11586 = vrot.slane %v11585, 2
    %v11587 = vadd.f32 %v11585, %v11586
    %v11588 = vrot.slane %v11587, 1
    %v11589 = vadd.f32 %v11587, %v11588
    %v11590 = vrot.slane %v11577, 4
    %v11591 = vadd.f32 %v11577, %v11590
    %v11592 = vrot.slane %v11591, 2
    %v11593 = vadd.f32 %v11591, %v11592
    %v11594 = vrot.slane %v11593, 1
    %v11595 = vadd.f32 %v11593, %v11594
    %v11596 = vrot.slane %v11578, 4
    %v11597 = vadd.f32 %v11578, %v11596
    %v11598 = vrot.slane %v11597, 2
    %v11599 = vadd.f32 %v11597, %v11598
    %v11600 = vrot.slane %v11599, 1
    %v11601 = vadd.f32 %v11599, %v11600
    %v11602 = vrot.slane %v11579, 4
    %v11603 = vadd.f32 %v11579, %v11602
    %v11604 = vrot.slane %v11603, 2
    %v11605 = vadd.f32 %v11603, %v11604
    %v11606 = vrot.slane %v11605, 1
    %v11607 = vadd.f32 %v11605, %v11606
    %v11608 = vrot.slane %v11580, 4
    %v11609 = vadd.f32 %v11580, %v11608
    %v11610 = vrot.slane %v11609, 2
    %v11611 = vadd.f32 %v11609, %v11610
    %v11612 = vrot.slane %v11611, 1
    %v11613 = vadd.f32 %v11611, %v11612
    %v11614 = vrot.slane %v11581, 4
    %v11615 = vadd.f32 %v11581, %v11614
    %v11616 = vrot.slane %v11615, 2
    %v11617 = vadd.f32 %v11615, %v11616
    %v11618 = vrot.slane %v11617, 1
    %v11619 = vadd.f32 %v11617, %v11618
    %v11620 = vrot.slane %v11582, 4
    %v11621 = vadd.f32 %v11582, %v11620
    %v11622 = vrot.slane %v11621, 2
    %v11623 = vadd.f32 %v11621, %v11622
    %v11624 = vrot.slane %v11623, 1
    %v11625 = vadd.f32 %v11623, %v11624
    %v11626 = vrot.slane %v11583, 4
    %v11627 = vadd.f32 %v11583, %v11626
    %v11628 = vrot.slane %v11627, 2
    %v11629 = vadd.f32 %v11627, %v11628
    %v11630 = vrot.slane %v11629, 1
    %v11631 = vadd.f32 %v11629, %v11630
    %v11632 = vmul.f32 %v11589, %v11551
    %v11633 = vmul.f32 %v11595, %v11551
    %v11634 = vmul.f32 %v11601, %v11551
    %v11635 = vmul.f32 %v11607, %v11551
    %v11636 = vmul.f32 %v11613, %v11551
    %v11637 = vmul.f32 %v11619, %v11551
    %v11638 = vmul.f32 %v11625, %v11551
    %v11639 = vmul.f32 %v11631, %v11551
    %v11640 = vadd.f32 %v11632, 1e-05
    %v11641 = vadd.f32 %v11633, 1e-05
    %v11642 = vadd.f32 %v11634, 1e-05
    %v11643 = vadd.f32 %v11635, 1e-05
    %v11644 = vadd.f32 %v11636, 1e-05
    %v11645 = vadd.f32 %v11637, 1e-05
    %v11646 = vadd.f32 %v11638, 1e-05
    %v11647 = vadd.f32 %v11639, 1e-05
    %v11648 = vrsqrt.pop %v11640
    %v11649 = vrsqrt.pop %v11641
    %v11650 = vrsqrt.pop %v11642
    %v11651 = vrsqrt.pop %v11643
    %v11652 = vrsqrt.pop %v11644
    %v11653 = vrsqrt.pop %v11645
    %v11654 = vrsqrt.pop %v11646
    %v11655 = vrsqrt.pop %v11647
    %v11656 = vmul.f32 %v11560, %v11648
    %v11657 = vmul.f32 %v11561, %v11649
    %v11658 = vmul.f32 %v11562, %v11650
    %v11659 = vmul.f32 %v11563, %v11651
    %v11660 = vmul.f32 %v11564, %v11652
    %v11661 = vmul.f32 %v11565, %v11653
    %v11662 = vmul.f32 %v11566, %v11654
    %v11663 = vmul.f32 %v11567, %v11655
    %v11665 = vlaneseq
    %v11666 = vshrl.u32 %v11665, 7
    %v11667 = vsub.s32 0, %v11666
    %v11668 = vrot.slane %v236, %v11667
    %v11669 = vlaneseq
    %v11670 = vshrl.u32 %v11669, 7
    %v11671 = vsub.s32 1, %v11670
    %v11672 = vrot.slane %v236, %v11671
    %v11673 = vlaneseq
    %v11674 = vshrl.u32 %v11673, 7
    %v11675 = vsub.s32 2, %v11674
    %v11676 = vrot.slane %v236, %v11675
    %v11677 = vlaneseq
    %v11678 = vshrl.u32 %v11677, 7
    %v11679 = vsub.s32 3, %v11678
    %v11680 = vrot.slane %v236, %v11679
    %v11681 = vlaneseq
    %v11682 = vshrl.u32 %v11681, 7
    %v11683 = vsub.s32 4, %v11682
    %v11684 = vrot.slane %v236, %v11683
    %v11685 = vlaneseq
    %v11686 = vshrl.u32 %v11685, 7
    %v11687 = vsub.s32 5, %v11686
    %v11688 = vrot.slane %v236, %v11687
    %v11689 = vlaneseq
    %v11690 = vshrl.u32 %v11689, 7
    %v11691 = vsub.s32 6, %v11690
    %v11692 = vrot.slane %v236, %v11691
    %v11693 = vlaneseq
    %v11694 = vshrl.u32 %v11693, 7
    %v11695 = vsub.s32 7, %v11694
    %v11696 = vrot.slane %v236, %v11695
    %v11705 = vmul.f32 %v11656, %v11668
    %v11706 = vmul.f32 %v11657, %v11672
    %v11707 = vmul.f32 %v11658, %v11676
    %v11708 = vmul.f32 %v11659, %v11680
    %v11709 = vmul.f32 %v11660, %v11684
    %v11710 = vmul.f32 %v11661, %v11688
    %v11711 = vmul.f32 %v11662, %v11692
    %v11712 = vmul.f32 %v11663, %v11696
    %v11714 = vlaneseq
    %v11715 = vshrl.u32 %v11714, 7
    %v11716 = vsub.s32 0, %v11715
    %v11717 = vrot.slane %v237, %v11716
    %v11718 = vlaneseq
    %v11719 = vshrl.u32 %v11718, 7
    %v11720 = vsub.s32 1, %v11719
    %v11721 = vrot.slane %v237, %v11720
    %v11722 = vlaneseq
    %v11723 = vshrl.u32 %v11722, 7
    %v11724 = vsub.s32 2, %v11723
    %v11725 = vrot.slane %v237, %v11724
    %v11726 = vlaneseq
    %v11727 = vshrl.u32 %v11726, 7
    %v11728 = vsub.s32 3, %v11727
    %v11729 = vrot.slane %v237, %v11728
    %v11730 = vlaneseq
    %v11731 = vshrl.u32 %v11730, 7
    %v11732 = vsub.s32 4, %v11731
    %v11733 = vrot.slane %v237, %v11732
    %v11734 = vlaneseq
    %v11735 = vshrl.u32 %v11734, 7
    %v11736 = vsub.s32 5, %v11735
    %v11737 = vrot.slane %v237, %v11736
    %v11738 = vlaneseq
    %v11739 = vshrl.u32 %v11738, 7
    %v11740 = vsub.s32 6, %v11739
    %v11741 = vrot.slane %v237, %v11740
    %v11742 = vlaneseq
    %v11743 = vshrl.u32 %v11742, 7
    %v11744 = vsub.s32 7, %v11743
    %v11745 = vrot.slane %v237, %v11744
    %v11754 = vadd.f32 %v11705, %v11717
    %v11755 = vadd.f32 %v11706, %v11721
    %v11756 = vadd.f32 %v11707, %v11725
    %v11757 = vadd.f32 %v11708, %v11729
    %v11758 = vadd.f32 %v11709, %v11733
    %v11759 = vadd.f32 %v11710, %v11737
    %v11760 = vadd.f32 %v11711, %v11741
    %v11761 = vadd.f32 %v11712, %v11745
    %v11762 = vld [vmem:[#allocation11] sm:$0xf]
    %v11763 = vld [vmem:[#allocation13] sm:$0xf]
    %v11764 = vld [vmem:[#allocation14] sm:$0xf]
    %v11765 = vpack.c.bf16 %v11754, %v11754
    %v11766 = vpack.c.bf16 %v11755, %v11755
    %v11767 = vpack.c.bf16 %v11756, %v11756
    %v11768 = vpack.c.bf16 %v11757, %v11757
    %v11769 = vpack.c.bf16 %v11758, %v11758
    %v11770 = vpack.c.bf16 %v11759, %v11759
    %v11771 = vpack.c.bf16 %v11760, %v11760
    %v11772 = vpack.c.bf16 %v11761, %v11761
    %v11773 = vld [vmem:[#allocation10] sm:$0xff]
    %v11774 = vld [vmem:[#allocation10 + $0x8] sm:$0xff]
    %v11775 = vld [vmem:[#allocation10 + $0x10] sm:$0xff]
    %v11776 = vld [vmem:[#allocation10 + $0x18] sm:$0xff]
    %v11777 = vld [vmem:[#allocation10 + $0x20] sm:$0xff]
    %v11778 = vld [vmem:[#allocation10 + $0x28] sm:$0xff]
    %v11779 = vld [vmem:[#allocation10 + $0x30] sm:$0xff]
    %v11780 = vld [vmem:[#allocation10 + $0x38] sm:$0xff]
    %v11781 = vld [vmem:[#allocation10 + $0x40] sm:$0xff]
    %v11782 = vld [vmem:[#allocation10 + $0x48] sm:$0xff]
    %v11783 = vld [vmem:[#allocation10 + $0x50] sm:$0xff]
    %v11784 = vld [vmem:[#allocation10 + $0x58] sm:$0xff]
    %v11785 = vld [vmem:[#allocation10 + $0x60] sm:$0xff]
    %v11786 = vld [vmem:[#allocation10 + $0x68] sm:$0xff]
    %v11787 = vld [vmem:[#allocation10 + $0x70] sm:$0xff]
    %v11788 = vld [vmem:[#allocation10 + $0x78] sm:$0xff]
    %v11789 = vld [vmem:[#allocation10 + $0x80] sm:$0xff]
    %v11790 = vld [vmem:[#allocation10 + $0x88] sm:$0xff]
    %v11791 = vld [vmem:[#allocation10 + $0x90] sm:$0xff]
    %v11792 = vld [vmem:[#allocation10 + $0x98] sm:$0xff]
    %v11793 = vld [vmem:[#allocation10 + $0xa0] sm:$0xff]
    %v11794 = vld [vmem:[#allocation10 + $0xa8] sm:$0xff]
    %v11795 = vld [vmem:[#allocation10 + $0xb0] sm:$0xff]
    %v11796 = vld [vmem:[#allocation10 + $0xb8] sm:$0xff]
    %v11797 = vld [vmem:[#allocation10 + $0xc0] sm:$0xff]
    %v11798 = vld [vmem:[#allocation10 + $0xc8] sm:$0xff]
    %v11799 = vld [vmem:[#allocation10 + $0xd0] sm:$0xff]
    %v11800 = vld [vmem:[#allocation10 + $0xd8] sm:$0xff]
    %v11801 = vld [vmem:[#allocation10 + $0xe0] sm:$0xff]
    %v11802 = vld [vmem:[#allocation10 + $0xe8] sm:$0xff]
    %v11803 = vld [vmem:[#allocation10 + $0xf0] sm:$0xff]
    %v11804 = vld [vmem:[#allocation10 + $0xf8] sm:$0xff]
    %v11805 = vld [vmem:[#allocation10 + $0x100] sm:$0xff]
    %v11806 = vld [vmem:[#allocation10 + $0x108] sm:$0xff]
    %v11807 = vld [vmem:[#allocation10 + $0x110] sm:$0xff]
    %v11808 = vld [vmem:[#allocation10 + $0x118] sm:$0xff]
    %v11809 = vld [vmem:[#allocation10 + $0x120] sm:$0xff]
    %v11810 = vld [vmem:[#allocation10 + $0x128] sm:$0xff]
    %v11811 = vld [vmem:[#allocation10 + $0x130] sm:$0xff]
    %v11812 = vld [vmem:[#allocation10 + $0x138] sm:$0xff]
    %v11813 = vld [vmem:[#allocation10 + $0x140] sm:$0xff]
    %v11814 = vld [vmem:[#allocation10 + $0x148] sm:$0xff]
    %v11815 = vld [vmem:[#allocation10 + $0x150] sm:$0xff]
    %v11816 = vld [vmem:[#allocation10 + $0x158] sm:$0xff]
    %v11817 = vld [vmem:[#allocation10 + $0x160] sm:$0xff]
    %v11818 = vld [vmem:[#allocation10 + $0x168] sm:$0xff]
    %v11819 = vld [vmem:[#allocation10 + $0x170] sm:$0xff]
    %v11820 = vld [vmem:[#allocation10 + $0x178] sm:$0xff]
    %v11821 = vld [vmem:[#allocation10 + $0x180] sm:$0xff]
    %v11822 = vld [vmem:[#allocation10 + $0x188] sm:$0xff]
    %v11823 = vld [vmem:[#allocation10 + $0x190] sm:$0xff]
    %v11824 = vld [vmem:[#allocation10 + $0x198] sm:$0xff]
    %v11825 = vld [vmem:[#allocation10 + $0x1a0] sm:$0xff]
    %v11826 = vld [vmem:[#allocation10 + $0x1a8] sm:$0xff]
    %v11827 = vld [vmem:[#allocation10 + $0x1b0] sm:$0xff]
    %v11828 = vld [vmem:[#allocation10 + $0x1b8] sm:$0xff]
    %v11829 = vld [vmem:[#allocation10 + $0x1c0] sm:$0xff]
    %v11830 = vld [vmem:[#allocation10 + $0x1c8] sm:$0xff]
    %v11831 = vld [vmem:[#allocation10 + $0x1d0] sm:$0xff]
    %v11832 = vld [vmem:[#allocation10 + $0x1d8] sm:$0xff]
    %v11833 = vld [vmem:[#allocation10 + $0x1e0] sm:$0xff]
    %v11834 = vld [vmem:[#allocation10 + $0x1e8] sm:$0xff]
    %v11835 = vld [vmem:[#allocation10 + $0x1f0] sm:$0xff]
    %v11836 = vld [vmem:[#allocation10 + $0x1f8] sm:$0xff]
    %v11837 = vld [vmem:[#allocation10 + $0x200] sm:$0xff]
    %v11838 = vld [vmem:[#allocation10 + $0x208] sm:$0xff]
    %v11839 = vld [vmem:[#allocation10 + $0x210] sm:$0xff]
    %v11840 = vld [vmem:[#allocation10 + $0x218] sm:$0xff]
    %v11841 = vld [vmem:[#allocation10 + $0x220] sm:$0xff]
    %v11842 = vld [vmem:[#allocation10 + $0x228] sm:$0xff]
    %v11843 = vld [vmem:[#allocation10 + $0x230] sm:$0xff]
    %v11844 = vld [vmem:[#allocation10 + $0x238] sm:$0xff]
    %v11845 = vld [vmem:[#allocation10 + $0x240] sm:$0xff]
    %v11846 = vld [vmem:[#allocation10 + $0x248] sm:$0xff]
    %v11847 = vld [vmem:[#allocation10 + $0x250] sm:$0xff]
    %v11848 = vld [vmem:[#allocation10 + $0x258] sm:$0xff]
    %v11849 = vld [vmem:[#allocation10 + $0x260] sm:$0xff]
    %v11850 = vld [vmem:[#allocation10 + $0x268] sm:$0xff]
    %v11851 = vld [vmem:[#allocation10 + $0x270] sm:$0xff]
    %v11852 = vld [vmem:[#allocation10 + $0x278] sm:$0xff]
    %v11853 = vld [vmem:[#allocation10 + $0x280] sm:$0xff]
    %v11854 = vld [vmem:[#allocation10 + $0x288] sm:$0xff]
    %v11855 = vld [vmem:[#allocation10 + $0x290] sm:$0xff]
    %v11856 = vld [vmem:[#allocation10 + $0x298] sm:$0xff]
    %v11857 = vld [vmem:[#allocation10 + $0x2a0] sm:$0xff]
    %v11858 = vld [vmem:[#allocation10 + $0x2a8] sm:$0xff]
    %v11859 = vld [vmem:[#allocation10 + $0x2b0] sm:$0xff]
    %v11860 = vld [vmem:[#allocation10 + $0x2b8] sm:$0xff]
    %v11861 = vld [vmem:[#allocation10 + $0x2c0] sm:$0xff]
    %v11862 = vld [vmem:[#allocation10 + $0x2c8] sm:$0xff]
    %v11863 = vld [vmem:[#allocation10 + $0x2d0] sm:$0xff]
    %v11864 = vld [vmem:[#allocation10 + $0x2d8] sm:$0xff]
    %v11865 = vld [vmem:[#allocation10 + $0x2e0] sm:$0xff]
    %v11866 = vld [vmem:[#allocation10 + $0x2e8] sm:$0xff]
    %v11867 = vld [vmem:[#allocation10 + $0x2f0] sm:$0xff]
    %v11868 = vld [vmem:[#allocation10 + $0x2f8] sm:$0xff]
    %v11869 = vld [vmem:[#allocation10 + $0x300] sm:$0xff]
    %v11870 = vld [vmem:[#allocation10 + $0x308] sm:$0xff]
    %v11871 = vld [vmem:[#allocation10 + $0x310] sm:$0xff]
    %v11872 = vld [vmem:[#allocation10 + $0x318] sm:$0xff]
    %v11873 = vld [vmem:[#allocation10 + $0x320] sm:$0xff]
    %v11874 = vld [vmem:[#allocation10 + $0x328] sm:$0xff]
    %v11875 = vld [vmem:[#allocation10 + $0x330] sm:$0xff]
    %v11876 = vld [vmem:[#allocation10 + $0x338] sm:$0xff]
    %v11877 = vld [vmem:[#allocation10 + $0x340] sm:$0xff]
    %v11878 = vld [vmem:[#allocation10 + $0x348] sm:$0xff]
    %v11879 = vld [vmem:[#allocation10 + $0x350] sm:$0xff]
    %v11880 = vld [vmem:[#allocation10 + $0x358] sm:$0xff]
    %v11881 = vld [vmem:[#allocation10 + $0x360] sm:$0xff]
    %v11882 = vld [vmem:[#allocation10 + $0x368] sm:$0xff]
    %v11883 = vld [vmem:[#allocation10 + $0x370] sm:$0xff]
    %v11884 = vld [vmem:[#allocation10 + $0x378] sm:$0xff]
    %v11885 = vld [vmem:[#allocation10 + $0x380] sm:$0xff]
    %v11886 = vld [vmem:[#allocation10 + $0x388] sm:$0xff]
    %v11887 = vld [vmem:[#allocation10 + $0x390] sm:$0xff]
    %v11888 = vld [vmem:[#allocation10 + $0x398] sm:$0xff]
    %v11889 = vld [vmem:[#allocation10 + $0x3a0] sm:$0xff]
    %v11890 = vld [vmem:[#allocation10 + $0x3a8] sm:$0xff]
    %v11891 = vld [vmem:[#allocation10 + $0x3b0] sm:$0xff]
    %v11892 = vld [vmem:[#allocation10 + $0x3b8] sm:$0xff]
    %v11893 = vld [vmem:[#allocation10 + $0x3c0] sm:$0xff]
    %v11894 = vld [vmem:[#allocation10 + $0x3c8] sm:$0xff]
    %v11895 = vld [vmem:[#allocation10 + $0x3d0] sm:$0xff]
    %v11896 = vld [vmem:[#allocation10 + $0x3d8] sm:$0xff]
    %v11897 = vld [vmem:[#allocation10 + $0x3e0] sm:$0xff]
    %v11898 = vld [vmem:[#allocation10 + $0x3e8] sm:$0xff]
    %v11899 = vld [vmem:[#allocation10 + $0x3f0] sm:$0xff]
    %v11900 = vld [vmem:[#allocation10 + $0x3f8] sm:$0xff]
    %v11901 = vld [vmem:[#allocation10 + $0x400] sm:$0xff]
    %v11902 = vld [vmem:[#allocation10 + $0x408] sm:$0xff]
    %v11903 = vld [vmem:[#allocation10 + $0x410] sm:$0xff]
    %v11904 = vld [vmem:[#allocation10 + $0x418] sm:$0xff]
    %v11905 = vld [vmem:[#allocation10 + $0x420] sm:$0xff]
    %v11906 = vld [vmem:[#allocation10 + $0x428] sm:$0xff]
    %v11907 = vld [vmem:[#allocation10 + $0x430] sm:$0xff]
    %v11908 = vld [vmem:[#allocation10 + $0x438] sm:$0xff]
    %v11909 = vld [vmem:[#allocation10 + $0x440] sm:$0xff]
    %v11910 = vld [vmem:[#allocation10 + $0x448] sm:$0xff]
    %v11911 = vld [vmem:[#allocation10 + $0x450] sm:$0xff]
    %v11912 = vld [vmem:[#allocation10 + $0x458] sm:$0xff]
    %v11913 = vld [vmem:[#allocation10 + $0x460] sm:$0xff]
    %v11914 = vld [vmem:[#allocation10 + $0x468] sm:$0xff]
    %v11915 = vld [vmem:[#allocation10 + $0x470] sm:$0xff]
    %v11916 = vld [vmem:[#allocation10 + $0x478] sm:$0xff]
    %v11917 = vld [vmem:[#allocation10 + $0x480] sm:$0xff]
    %v11918 = vld [vmem:[#allocation10 + $0x488] sm:$0xff]
    %v11919 = vld [vmem:[#allocation10 + $0x490] sm:$0xff]
    %v11920 = vld [vmem:[#allocation10 + $0x498] sm:$0xff]
    %v11921 = vld [vmem:[#allocation10 + $0x4a0] sm:$0xff]
    %v11922 = vld [vmem:[#allocation10 + $0x4a8] sm:$0xff]
    %v11923 = vld [vmem:[#allocation10 + $0x4b0] sm:$0xff]
    %v11924 = vld [vmem:[#allocation10 + $0x4b8] sm:$0xff]
    %v11925 = vld [vmem:[#allocation10 + $0x4c0] sm:$0xff]
    %v11926 = vld [vmem:[#allocation10 + $0x4c8] sm:$0xff]
    %v11927 = vld [vmem:[#allocation10 + $0x4d0] sm:$0xff]
    %v11928 = vld [vmem:[#allocation10 + $0x4d8] sm:$0xff]
    %v11929 = vld [vmem:[#allocation10 + $0x4e0] sm:$0xff]
    %v11930 = vld [vmem:[#allocation10 + $0x4e8] sm:$0xff]
    %v11931 = vld [vmem:[#allocation10 + $0x4f0] sm:$0xff]
    %v11932 = vld [vmem:[#allocation10 + $0x4f8] sm:$0xff]
    %v11933 = vld [vmem:[#allocation10 + $0x500] sm:$0xff]
    %v11934 = vld [vmem:[#allocation10 + $0x508] sm:$0xff]
    %v11935 = vld [vmem:[#allocation10 + $0x510] sm:$0xff]
    %v11936 = vld [vmem:[#allocation10 + $0x518] sm:$0xff]
    %v11937 = vld [vmem:[#allocation10 + $0x520] sm:$0xff]
    %v11938 = vld [vmem:[#allocation10 + $0x528] sm:$0xff]
    %v11939 = vld [vmem:[#allocation10 + $0x530] sm:$0xff]
    %v11940 = vld [vmem:[#allocation10 + $0x538] sm:$0xff]
    %v11941 = vld [vmem:[#allocation10 + $0x540] sm:$0xff]
    %v11942 = vld [vmem:[#allocation10 + $0x548] sm:$0xff]
    %v11943 = vld [vmem:[#allocation10 + $0x550] sm:$0xff]
    %v11944 = vld [vmem:[#allocation10 + $0x558] sm:$0xff]
    %v11945 = vld [vmem:[#allocation10 + $0x560] sm:$0xff]
    %v11946 = vld [vmem:[#allocation10 + $0x568] sm:$0xff]
    %v11947 = vld [vmem:[#allocation10 + $0x570] sm:$0xff]
    %v11948 = vld [vmem:[#allocation10 + $0x578] sm:$0xff]
    %v11949 = vld [vmem:[#allocation10 + $0x580] sm:$0xff]
    %v11950 = vld [vmem:[#allocation10 + $0x588] sm:$0xff]
    %v11951 = vld [vmem:[#allocation10 + $0x590] sm:$0xff]
    %v11952 = vld [vmem:[#allocation10 + $0x598] sm:$0xff]
    %v11953 = vld [vmem:[#allocation10 + $0x5a0] sm:$0xff]
    %v11954 = vld [vmem:[#allocation10 + $0x5a8] sm:$0xff]
    %v11955 = vld [vmem:[#allocation10 + $0x5b0] sm:$0xff]
    %v11956 = vld [vmem:[#allocation10 + $0x5b8] sm:$0xff]
    %v11957 = vld [vmem:[#allocation10 + $0x5c0] sm:$0xff]
    %v11958 = vld [vmem:[#allocation10 + $0x5c8] sm:$0xff]
    %v11959 = vld [vmem:[#allocation10 + $0x5d0] sm:$0xff]
    %v11960 = vld [vmem:[#allocation10 + $0x5d8] sm:$0xff]
    %v11961 = vld [vmem:[#allocation10 + $0x5e0] sm:$0xff]
    %v11962 = vld [vmem:[#allocation10 + $0x5e8] sm:$0xff]
    %v11963 = vld [vmem:[#allocation10 + $0x5f0] sm:$0xff]
    %v11964 = vld [vmem:[#allocation10 + $0x5f8] sm:$0xff]
    %v11965 = vld [vmem:[#allocation10 + $0x600] sm:$0xff]
    %v11966 = vld [vmem:[#allocation10 + $0x608] sm:$0xff]
    %v11967 = vld [vmem:[#allocation10 + $0x610] sm:$0xff]
    %v11968 = vld [vmem:[#allocation10 + $0x618] sm:$0xff]
    %v11969 = vld [vmem:[#allocation10 + $0x620] sm:$0xff]
    %v11970 = vld [vmem:[#allocation10 + $0x628] sm:$0xff]
    %v11971 = vld [vmem:[#allocation10 + $0x630] sm:$0xff]
    %v11972 = vld [vmem:[#allocation10 + $0x638] sm:$0xff]
    %v11973 = vld [vmem:[#allocation10 + $0x640] sm:$0xff]
    %v11974 = vld [vmem:[#allocation10 + $0x648] sm:$0xff]
    %v11975 = vld [vmem:[#allocation10 + $0x650] sm:$0xff]
    %v11976 = vld [vmem:[#allocation10 + $0x658] sm:$0xff]
    %v11977 = vld [vmem:[#allocation10 + $0x660] sm:$0xff]
    %v11978 = vld [vmem:[#allocation10 + $0x668] sm:$0xff]
    %v11979 = vld [vmem:[#allocation10 + $0x670] sm:$0xff]
    %v11980 = vld [vmem:[#allocation10 + $0x678] sm:$0xff]
    %v11981 = vld [vmem:[#allocation10 + $0x680] sm:$0xff]
    %v11982 = vld [vmem:[#allocation10 + $0x688] sm:$0xff]
    %v11983 = vld [vmem:[#allocation10 + $0x690] sm:$0xff]
    %v11984 = vld [vmem:[#allocation10 + $0x698] sm:$0xff]
    %v11985 = vld [vmem:[#allocation10 + $0x6a0] sm:$0xff]
    %v11986 = vld [vmem:[#allocation10 + $0x6a8] sm:$0xff]
    %v11987 = vld [vmem:[#allocation10 + $0x6b0] sm:$0xff]
    %v11988 = vld [vmem:[#allocation10 + $0x6b8] sm:$0xff]
    %v11989 = vld [vmem:[#allocation10 + $0x6c0] sm:$0xff]
    %v11990 = vld [vmem:[#allocation10 + $0x6c8] sm:$0xff]
    %v11991 = vld [vmem:[#allocation10 + $0x6d0] sm:$0xff]
    %v11992 = vld [vmem:[#allocation10 + $0x6d8] sm:$0xff]
    %v11993 = vld [vmem:[#allocation10 + $0x6e0] sm:$0xff]
    %v11994 = vld [vmem:[#allocation10 + $0x6e8] sm:$0xff]
    %v11995 = vld [vmem:[#allocation10 + $0x6f0] sm:$0xff]
    %v11996 = vld [vmem:[#allocation10 + $0x6f8] sm:$0xff]
    %v11997 = vld [vmem:[#allocation10 + $0x700] sm:$0xff]
    %v11998 = vld [vmem:[#allocation10 + $0x708] sm:$0xff]
    %v11999 = vld [vmem:[#allocation10 + $0x710] sm:$0xff]
    %v12000 = vld [vmem:[#allocation10 + $0x718] sm:$0xff]
    %v12001 = vld [vmem:[#allocation10 + $0x720] sm:$0xff]
    %v12002 = vld [vmem:[#allocation10 + $0x728] sm:$0xff]
    %v12003 = vld [vmem:[#allocation10 + $0x730] sm:$0xff]
    %v12004 = vld [vmem:[#allocation10 + $0x738] sm:$0xff]
    %v12005 = vld [vmem:[#allocation10 + $0x740] sm:$0xff]
    %v12006 = vld [vmem:[#allocation10 + $0x748] sm:$0xff]
    %v12007 = vld [vmem:[#allocation10 + $0x750] sm:$0xff]
    %v12008 = vld [vmem:[#allocation10 + $0x758] sm:$0xff]
    %v12009 = vld [vmem:[#allocation10 + $0x760] sm:$0xff]
    %v12010 = vld [vmem:[#allocation10 + $0x768] sm:$0xff]
    %v12011 = vld [vmem:[#allocation10 + $0x770] sm:$0xff]
    %v12012 = vld [vmem:[#allocation10 + $0x778] sm:$0xff]
    %v12013 = vld [vmem:[#allocation10 + $0x780] sm:$0xff]
    %v12014 = vld [vmem:[#allocation10 + $0x788] sm:$0xff]
    %v12015 = vld [vmem:[#allocation10 + $0x790] sm:$0xff]
    %v12016 = vld [vmem:[#allocation10 + $0x798] sm:$0xff]
    %v12017 = vld [vmem:[#allocation10 + $0x7a0] sm:$0xff]
    %v12018 = vld [vmem:[#allocation10 + $0x7a8] sm:$0xff]
    %v12019 = vld [vmem:[#allocation10 + $0x7b0] sm:$0xff]
    %v12020 = vld [vmem:[#allocation10 + $0x7b8] sm:$0xff]
    %v12021 = vld [vmem:[#allocation10 + $0x7c0] sm:$0xff]
    %v12022 = vld [vmem:[#allocation10 + $0x7c8] sm:$0xff]
    %v12023 = vld [vmem:[#allocation10 + $0x7d0] sm:$0xff]
    %v12024 = vld [vmem:[#allocation10 + $0x7d8] sm:$0xff]
    %v12025 = vld [vmem:[#allocation10 + $0x7e0] sm:$0xff]
    %v12026 = vld [vmem:[#allocation10 + $0x7e8] sm:$0xff]
    %v12027 = vld [vmem:[#allocation10 + $0x7f0] sm:$0xff]
    %v12028 = vld [vmem:[#allocation10 + $0x7f8] sm:$0xff]
    %v12030 = vlaneseq
    %v12031 = vshrl.u32 %v12030, 7
    %v12032 = vsub.s32 0, %v12031
    %v12033 = vrot.slane %v11762, %v12032
    %v12034 = vlaneseq
    %v12035 = vshrl.u32 %v12034, 7
    %v12036 = vsub.s32 1, %v12035
    %v12037 = vrot.slane %v11762, %v12036
    %v12038 = vlaneseq
    %v12039 = vshrl.u32 %v12038, 7
    %v12040 = vsub.s32 2, %v12039
    %v12041 = vrot.slane %v11762, %v12040
    %v12042 = vlaneseq
    %v12043 = vshrl.u32 %v12042, 7
    %v12044 = vsub.s32 3, %v12043
    %v12045 = vrot.slane %v11762, %v12044
    %v12306 = vunpack.c.l.b16 %v11773
    %v12307 = vunpack.c.h.b16 %v11773
    %v12308 = vunpack.c.l.b16 %v11774
    %v12309 = vunpack.c.h.b16 %v11774
    %v12310 = vunpack.c.l.b16 %v11775
    %v12311 = vunpack.c.h.b16 %v11775
    %v12312 = vunpack.c.l.b16 %v11776
    %v12313 = vunpack.c.h.b16 %v11776
    %v12314 = vunpack.c.l.b16 %v11777
    %v12315 = vunpack.c.h.b16 %v11777
    %v12316 = vunpack.c.l.b16 %v11778
    %v12317 = vunpack.c.h.b16 %v11778
    %v12318 = vunpack.c.l.b16 %v11779
    %v12319 = vunpack.c.h.b16 %v11779
    %v12320 = vunpack.c.l.b16 %v11780
    %v12321 = vunpack.c.h.b16 %v11780
    %v12322 = vunpack.c.l.b16 %v11781
    %v12323 = vunpack.c.h.b16 %v11781
    %v12324 = vunpack.c.l.b16 %v11782
    %v12325 = vunpack.c.h.b16 %v11782
    %v12326 = vunpack.c.l.b16 %v11783
    %v12327 = vunpack.c.h.b16 %v11783
    %v12328 = vunpack.c.l.b16 %v11784
    %v12329 = vunpack.c.h.b16 %v11784
    %v12330 = vunpack.c.l.b16 %v11785
    %v12331 = vunpack.c.h.b16 %v11785
    %v12332 = vunpack.c.l.b16 %v11786
    %v12333 = vunpack.c.h.b16 %v11786
    %v12334 = vunpack.c.l.b16 %v11787
    %v12335 = vunpack.c.h.b16 %v11787
    %v12336 = vunpack.c.l.b16 %v11788
    %v12337 = vunpack.c.h.b16 %v11788
    %v12338 = vunpack.c.l.b16 %v11789
    %v12339 = vunpack.c.h.b16 %v11789
    %v12340 = vunpack.c.l.b16 %v11790
    %v12341 = vunpack.c.h.b16 %v11790
    %v12342 = vunpack.c.l.b16 %v11791
    %v12343 = vunpack.c.h.b16 %v11791
    %v12344 = vunpack.c.l.b16 %v11792
    %v12345 = vunpack.c.h.b16 %v11792
    %v12346 = vunpack.c.l.b16 %v11793
    %v12347 = vunpack.c.h.b16 %v11793
    %v12348 = vunpack.c.l.b16 %v11794
    %v12349 = vunpack.c.h.b16 %v11794
    %v12350 = vunpack.c.l.b16 %v11795
    %v12351 = vunpack.c.h.b16 %v11795
    %v12352 = vunpack.c.l.b16 %v11796
    %v12353 = vunpack.c.h.b16 %v11796
    %v12354 = vunpack.c.l.b16 %v11797
    %v12355 = vunpack.c.h.b16 %v11797
    %v12356 = vunpack.c.l.b16 %v11798
    %v12357 = vunpack.c.h.b16 %v11798
    %v12358 = vunpack.c.l.b16 %v11799
    %v12359 = vunpack.c.h.b16 %v11799
    %v12360 = vunpack.c.l.b16 %v11800
    %v12361 = vunpack.c.h.b16 %v11800
    %v12362 = vunpack.c.l.b16 %v11801
    %v12363 = vunpack.c.h.b16 %v11801
    %v12364 = vunpack.c.l.b16 %v11802
    %v12365 = vunpack.c.h.b16 %v11802
    %v12366 = vunpack.c.l.b16 %v11803
    %v12367 = vunpack.c.h.b16 %v11803
    %v12368 = vunpack.c.l.b16 %v11804
    %v12369 = vunpack.c.h.b16 %v11804
    %v12370 = vunpack.c.l.b16 %v11805
    %v12371 = vunpack.c.h.b16 %v11805
    %v12372 = vunpack.c.l.b16 %v11806
    %v12373 = vunpack.c.h.b16 %v11806
    %v12374 = vunpack.c.l.b16 %v11807
    %v12375 = vunpack.c.h.b16 %v11807
    %v12376 = vunpack.c.l.b16 %v11808
    %v12377 = vunpack.c.h.b16 %v11808
    %v12378 = vunpack.c.l.b16 %v11809
    %v12379 = vunpack.c.h.b16 %v11809
    %v12380 = vunpack.c.l.b16 %v11810
    %v12381 = vunpack.c.h.b16 %v11810
    %v12382 = vunpack.c.l.b16 %v11811
    %v12383 = vunpack.c.h.b16 %v11811
    %v12384 = vunpack.c.l.b16 %v11812
    %v12385 = vunpack.c.h.b16 %v11812
    %v12386 = vunpack.c.l.b16 %v11813
    %v12387 = vunpack.c.h.b16 %v11813
    %v12388 = vunpack.c.l.b16 %v11814
    %v12389 = vunpack.c.h.b16 %v11814
    %v12390 = vunpack.c.l.b16 %v11815
    %v12391 = vunpack.c.h.b16 %v11815
    %v12392 = vunpack.c.l.b16 %v11816
    %v12393 = vunpack.c.h.b16 %v11816
    %v12394 = vunpack.c.l.b16 %v11817
    %v12395 = vunpack.c.h.b16 %v11817
    %v12396 = vunpack.c.l.b16 %v11818
    %v12397 = vunpack.c.h.b16 %v11818
    %v12398 = vunpack.c.l.b16 %v11819
    %v12399 = vunpack.c.h.b16 %v11819
    %v12400 = vunpack.c.l.b16 %v11820
    %v12401 = vunpack.c.h.b16 %v11820
    %v12402 = vunpack.c.l.b16 %v11821
    %v12403 = vunpack.c.h.b16 %v11821
    %v12404 = vunpack.c.l.b16 %v11822
    %v12405 = vunpack.c.h.b16 %v11822
    %v12406 = vunpack.c.l.b16 %v11823
    %v12407 = vunpack.c.h.b16 %v11823
    %v12408 = vunpack.c.l.b16 %v11824
    %v12409 = vunpack.c.h.b16 %v11824
    %v12410 = vunpack.c.l.b16 %v11825
    %v12411 = vunpack.c.h.b16 %v11825
    %v12412 = vunpack.c.l.b16 %v11826
    %v12413 = vunpack.c.h.b16 %v11826
    %v12414 = vunpack.c.l.b16 %v11827
    %v12415 = vunpack.c.h.b16 %v11827
    %v12416 = vunpack.c.l.b16 %v11828
    %v12417 = vunpack.c.h.b16 %v11828
    %v12418 = vunpack.c.l.b16 %v11829
    %v12419 = vunpack.c.h.b16 %v11829
    %v12420 = vunpack.c.l.b16 %v11830
    %v12421 = vunpack.c.h.b16 %v11830
    %v12422 = vunpack.c.l.b16 %v11831
    %v12423 = vunpack.c.h.b16 %v11831
    %v12424 = vunpack.c.l.b16 %v11832
    %v12425 = vunpack.c.h.b16 %v11832
    %v12426 = vunpack.c.l.b16 %v11833
    %v12427 = vunpack.c.h.b16 %v11833
    %v12428 = vunpack.c.l.b16 %v11834
    %v12429 = vunpack.c.h.b16 %v11834
    %v12430 = vunpack.c.l.b16 %v11835
    %v12431 = vunpack.c.h.b16 %v11835
    %v12432 = vunpack.c.l.b16 %v11836
    %v12433 = vunpack.c.h.b16 %v11836
    %v12434 = vunpack.c.l.b16 %v11837
    %v12435 = vunpack.c.h.b16 %v11837
    %v12436 = vunpack.c.l.b16 %v11838
    %v12437 = vunpack.c.h.b16 %v11838
    %v12438 = vunpack.c.l.b16 %v11839
    %v12439 = vunpack.c.h.b16 %v11839
    %v12440 = vunpack.c.l.b16 %v11840
    %v12441 = vunpack.c.h.b16 %v11840
    %v12442 = vunpack.c.l.b16 %v11841
    %v12443 = vunpack.c.h.b16 %v11841
    %v12444 = vunpack.c.l.b16 %v11842
    %v12445 = vunpack.c.h.b16 %v11842
    %v12446 = vunpack.c.l.b16 %v11843
    %v12447 = vunpack.c.h.b16 %v11843
    %v12448 = vunpack.c.l.b16 %v11844
    %v12449 = vunpack.c.h.b16 %v11844
    %v12450 = vunpack.c.l.b16 %v11845
    %v12451 = vunpack.c.h.b16 %v11845
    %v12452 = vunpack.c.l.b16 %v11846
    %v12453 = vunpack.c.h.b16 %v11846
    %v12454 = vunpack.c.l.b16 %v11847
    %v12455 = vunpack.c.h.b16 %v11847
    %v12456 = vunpack.c.l.b16 %v11848
    %v12457 = vunpack.c.h.b16 %v11848
    %v12458 = vunpack.c.l.b16 %v11849
    %v12459 = vunpack.c.h.b16 %v11849
    %v12460 = vunpack.c.l.b16 %v11850
    %v12461 = vunpack.c.h.b16 %v11850
    %v12462 = vunpack.c.l.b16 %v11851
    %v12463 = vunpack.c.h.b16 %v11851
    %v12464 = vunpack.c.l.b16 %v11852
    %v12465 = vunpack.c.h.b16 %v11852
    %v12466 = vunpack.c.l.b16 %v11853
    %v12467 = vunpack.c.h.b16 %v11853
    %v12468 = vunpack.c.l.b16 %v11854
    %v12469 = vunpack.c.h.b16 %v11854
    %v12470 = vunpack.c.l.b16 %v11855
    %v12471 = vunpack.c.h.b16 %v11855
    %v12472 = vunpack.c.l.b16 %v11856
    %v12473 = vunpack.c.h.b16 %v11856
    %v12474 = vunpack.c.l.b16 %v11857
    %v12475 = vunpack.c.h.b16 %v11857
    %v12476 = vunpack.c.l.b16 %v11858
    %v12477 = vunpack.c.h.b16 %v11858
    %v12478 = vunpack.c.l.b16 %v11859
    %v12479 = vunpack.c.h.b16 %v11859
    %v12480 = vunpack.c.l.b16 %v11860
    %v12481 = vunpack.c.h.b16 %v11860
    %v12482 = vunpack.c.l.b16 %v11861
    %v12483 = vunpack.c.h.b16 %v11861
    %v12484 = vunpack.c.l.b16 %v11862
    %v12485 = vunpack.c.h.b16 %v11862
    %v12486 = vunpack.c.l.b16 %v11863
    %v12487 = vunpack.c.h.b16 %v11863
    %v12488 = vunpack.c.l.b16 %v11864
    %v12489 = vunpack.c.h.b16 %v11864
    %v12490 = vunpack.c.l.b16 %v11865
    %v12491 = vunpack.c.h.b16 %v11865
    %v12492 = vunpack.c.l.b16 %v11866
    %v12493 = vunpack.c.h.b16 %v11866
    %v12494 = vunpack.c.l.b16 %v11867
    %v12495 = vunpack.c.h.b16 %v11867
    %v12496 = vunpack.c.l.b16 %v11868
    %v12497 = vunpack.c.h.b16 %v11868
    %v12498 = vunpack.c.l.b16 %v11869
    %v12499 = vunpack.c.h.b16 %v11869
    %v12500 = vunpack.c.l.b16 %v11870
    %v12501 = vunpack.c.h.b16 %v11870
    %v12502 = vunpack.c.l.b16 %v11871
    %v12503 = vunpack.c.h.b16 %v11871
    %v12504 = vunpack.c.l.b16 %v11872
    %v12505 = vunpack.c.h.b16 %v11872
    %v12506 = vunpack.c.l.b16 %v11873
    %v12507 = vunpack.c.h.b16 %v11873
    %v12508 = vunpack.c.l.b16 %v11874
    %v12509 = vunpack.c.h.b16 %v11874
    %v12510 = vunpack.c.l.b16 %v11875
    %v12511 = vunpack.c.h.b16 %v11875
    %v12512 = vunpack.c.l.b16 %v11876
    %v12513 = vunpack.c.h.b16 %v11876
    %v12514 = vunpack.c.l.b16 %v11877
    %v12515 = vunpack.c.h.b16 %v11877
    %v12516 = vunpack.c.l.b16 %v11878
    %v12517 = vunpack.c.h.b16 %v11878
    %v12518 = vunpack.c.l.b16 %v11879
    %v12519 = vunpack.c.h.b16 %v11879
    %v12520 = vunpack.c.l.b16 %v11880
    %v12521 = vunpack.c.h.b16 %v11880
    %v12522 = vunpack.c.l.b16 %v11881
    %v12523 = vunpack.c.h.b16 %v11881
    %v12524 = vunpack.c.l.b16 %v11882
    %v12525 = vunpack.c.h.b16 %v11882
    %v12526 = vunpack.c.l.b16 %v11883
    %v12527 = vunpack.c.h.b16 %v11883
    %v12528 = vunpack.c.l.b16 %v11884
    %v12529 = vunpack.c.h.b16 %v11884
    %v12530 = vunpack.c.l.b16 %v11885
    %v12531 = vunpack.c.h.b16 %v11885
    %v12532 = vunpack.c.l.b16 %v11886
    %v12533 = vunpack.c.h.b16 %v11886
    %v12534 = vunpack.c.l.b16 %v11887
    %v12535 = vunpack.c.h.b16 %v11887
    %v12536 = vunpack.c.l.b16 %v11888
    %v12537 = vunpack.c.h.b16 %v11888
    %v12538 = vunpack.c.l.b16 %v11889
    %v12539 = vunpack.c.h.b16 %v11889
    %v12540 = vunpack.c.l.b16 %v11890
    %v12541 = vunpack.c.h.b16 %v11890
    %v12542 = vunpack.c.l.b16 %v11891
    %v12543 = vunpack.c.h.b16 %v11891
    %v12544 = vunpack.c.l.b16 %v11892
    %v12545 = vunpack.c.h.b16 %v11892
    %v12546 = vunpack.c.l.b16 %v11893
    %v12547 = vunpack.c.h.b16 %v11893
    %v12548 = vunpack.c.l.b16 %v11894
    %v12549 = vunpack.c.h.b16 %v11894
    %v12550 = vunpack.c.l.b16 %v11895
    %v12551 = vunpack.c.h.b16 %v11895
    %v12552 = vunpack.c.l.b16 %v11896
    %v12553 = vunpack.c.h.b16 %v11896
    %v12554 = vunpack.c.l.b16 %v11897
    %v12555 = vunpack.c.h.b16 %v11897
    %v12556 = vunpack.c.l.b16 %v11898
    %v12557 = vunpack.c.h.b16 %v11898
    %v12558 = vunpack.c.l.b16 %v11899
    %v12559 = vunpack.c.h.b16 %v11899
    %v12560 = vunpack.c.l.b16 %v11900
    %v12561 = vunpack.c.h.b16 %v11900
    %v12562 = vunpack.c.l.b16 %v11901
    %v12563 = vunpack.c.h.b16 %v11901
    %v12564 = vunpack.c.l.b16 %v11902
    %v12565 = vunpack.c.h.b16 %v11902
    %v12566 = vunpack.c.l.b16 %v11903
    %v12567 = vunpack.c.h.b16 %v11903
    %v12568 = vunpack.c.l.b16 %v11904
    %v12569 = vunpack.c.h.b16 %v11904
    %v12570 = vunpack.c.l.b16 %v11905
    %v12571 = vunpack.c.h.b16 %v11905
    %v12572 = vunpack.c.l.b16 %v11906
    %v12573 = vunpack.c.h.b16 %v11906
    %v12574 = vunpack.c.l.b16 %v11907
    %v12575 = vunpack.c.h.b16 %v11907
    %v12576 = vunpack.c.l.b16 %v11908
    %v12577 = vunpack.c.h.b16 %v11908
    %v12578 = vunpack.c.l.b16 %v11909
    %v12579 = vunpack.c.h.b16 %v11909
    %v12580 = vunpack.c.l.b16 %v11910
    %v12581 = vunpack.c.h.b16 %v11910
    %v12582 = vunpack.c.l.b16 %v11911
    %v12583 = vunpack.c.h.b16 %v11911
    %v12584 = vunpack.c.l.b16 %v11912
    %v12585 = vunpack.c.h.b16 %v11912
    %v12586 = vunpack.c.l.b16 %v11913
    %v12587 = vunpack.c.h.b16 %v11913
    %v12588 = vunpack.c.l.b16 %v11914
    %v12589 = vunpack.c.h.b16 %v11914
    %v12590 = vunpack.c.l.b16 %v11915
    %v12591 = vunpack.c.h.b16 %v11915
    %v12592 = vunpack.c.l.b16 %v11916
    %v12593 = vunpack.c.h.b16 %v11916
    %v12594 = vunpack.c.l.b16 %v11917
    %v12595 = vunpack.c.h.b16 %v11917
    %v12596 = vunpack.c.l.b16 %v11918
    %v12597 = vunpack.c.h.b16 %v11918
    %v12598 = vunpack.c.l.b16 %v11919
    %v12599 = vunpack.c.h.b16 %v11919
    %v12600 = vunpack.c.l.b16 %v11920
    %v12601 = vunpack.c.h.b16 %v11920
    %v12602 = vunpack.c.l.b16 %v11921
    %v12603 = vunpack.c.h.b16 %v11921
    %v12604 = vunpack.c.l.b16 %v11922
    %v12605 = vunpack.c.h.b16 %v11922
    %v12606 = vunpack.c.l.b16 %v11923
    %v12607 = vunpack.c.h.b16 %v11923
    %v12608 = vunpack.c.l.b16 %v11924
    %v12609 = vunpack.c.h.b16 %v11924
    %v12610 = vunpack.c.l.b16 %v11925
    %v12611 = vunpack.c.h.b16 %v11925
    %v12612 = vunpack.c.l.b16 %v11926
    %v12613 = vunpack.c.h.b16 %v11926
    %v12614 = vunpack.c.l.b16 %v11927
    %v12615 = vunpack.c.h.b16 %v11927
    %v12616 = vunpack.c.l.b16 %v11928
    %v12617 = vunpack.c.h.b16 %v11928
    %v12618 = vunpack.c.l.b16 %v11929
    %v12619 = vunpack.c.h.b16 %v11929
    %v12620 = vunpack.c.l.b16 %v11930
    %v12621 = vunpack.c.h.b16 %v11930
    %v12622 = vunpack.c.l.b16 %v11931
    %v12623 = vunpack.c.h.b16 %v11931
    %v12624 = vunpack.c.l.b16 %v11932
    %v12625 = vunpack.c.h.b16 %v11932
    %v12626 = vunpack.c.l.b16 %v11933
    %v12627 = vunpack.c.h.b16 %v11933
    %v12628 = vunpack.c.l.b16 %v11934
    %v12629 = vunpack.c.h.b16 %v11934
    %v12630 = vunpack.c.l.b16 %v11935
    %v12631 = vunpack.c.h.b16 %v11935
    %v12632 = vunpack.c.l.b16 %v11936
    %v12633 = vunpack.c.h.b16 %v11936
    %v12634 = vunpack.c.l.b16 %v11937
    %v12635 = vunpack.c.h.b16 %v11937
    %v12636 = vunpack.c.l.b16 %v11938
    %v12637 = vunpack.c.h.b16 %v11938
    %v12638 = vunpack.c.l.b16 %v11939
    %v12639 = vunpack.c.h.b16 %v11939
    %v12640 = vunpack.c.l.b16 %v11940
    %v12641 = vunpack.c.h.b16 %v11940
    %v12642 = vunpack.c.l.b16 %v11941
    %v12643 = vunpack.c.h.b16 %v11941
    %v12644 = vunpack.c.l.b16 %v11942
    %v12645 = vunpack.c.h.b16 %v11942
    %v12646 = vunpack.c.l.b16 %v11943
    %v12647 = vunpack.c.h.b16 %v11943
    %v12648 = vunpack.c.l.b16 %v11944
    %v12649 = vunpack.c.h.b16 %v11944
    %v12650 = vunpack.c.l.b16 %v11945
    %v12651 = vunpack.c.h.b16 %v11945
    %v12652 = vunpack.c.l.b16 %v11946
    %v12653 = vunpack.c.h.b16 %v11946
    %v12654 = vunpack.c.l.b16 %v11947
    %v12655 = vunpack.c.h.b16 %v11947
    %v12656 = vunpack.c.l.b16 %v11948
    %v12657 = vunpack.c.h.b16 %v11948
    %v12658 = vunpack.c.l.b16 %v11949
    %v12659 = vunpack.c.h.b16 %v11949
    %v12660 = vunpack.c.l.b16 %v11950
    %v12661 = vunpack.c.h.b16 %v11950
    %v12662 = vunpack.c.l.b16 %v11951
    %v12663 = vunpack.c.h.b16 %v11951
    %v12664 = vunpack.c.l.b16 %v11952
    %v12665 = vunpack.c.h.b16 %v11952
    %v12666 = vunpack.c.l.b16 %v11953
    %v12667 = vunpack.c.h.b16 %v11953
    %v12668 = vunpack.c.l.b16 %v11954
    %v12669 = vunpack.c.h.b16 %v11954
    %v12670 = vunpack.c.l.b16 %v11955
    %v12671 = vunpack.c.h.b16 %v11955
    %v12672 = vunpack.c.l.b16 %v11956
    %v12673 = vunpack.c.h.b16 %v11956
    %v12674 = vunpack.c.l.b16 %v11957
    %v12675 = vunpack.c.h.b16 %v11957
    %v12676 = vunpack.c.l.b16 %v11958
    %v12677 = vunpack.c.h.b16 %v11958
    %v12678 = vunpack.c.l.b16 %v11959
    %v12679 = vunpack.c.h.b16 %v11959
    %v12680 = vunpack.c.l.b16 %v11960
    %v12681 = vunpack.c.h.b16 %v11960
    %v12682 = vunpack.c.l.b16 %v11961
    %v12683 = vunpack.c.h.b16 %v11961
    %v12684 = vunpack.c.l.b16 %v11962
    %v12685 = vunpack.c.h.b16 %v11962
    %v12686 = vunpack.c.l.b16 %v11963
    %v12687 = vunpack.c.h.b16 %v11963
    %v12688 = vunpack.c.l.b16 %v11964
    %v12689 = vunpack.c.h.b16 %v11964
    %v12690 = vunpack.c.l.b16 %v11965
    %v12691 = vunpack.c.h.b16 %v11965
    %v12692 = vunpack.c.l.b16 %v11966
    %v12693 = vunpack.c.h.b16 %v11966
    %v12694 = vunpack.c.l.b16 %v11967
    %v12695 = vunpack.c.h.b16 %v11967
    %v12696 = vunpack.c.l.b16 %v11968
    %v12697 = vunpack.c.h.b16 %v11968
    %v12698 = vunpack.c.l.b16 %v11969
    %v12699 = vunpack.c.h.b16 %v11969
    %v12700 = vunpack.c.l.b16 %v11970
    %v12701 = vunpack.c.h.b16 %v11970
    %v12702 = vunpack.c.l.b16 %v11971
    %v12703 = vunpack.c.h.b16 %v11971
    %v12704 = vunpack.c.l.b16 %v11972
    %v12705 = vunpack.c.h.b16 %v11972
    %v12706 = vunpack.c.l.b16 %v11973
    %v12707 = vunpack.c.h.b16 %v11973
    %v12708 = vunpack.c.l.b16 %v11974
    %v12709 = vunpack.c.h.b16 %v11974
    %v12710 = vunpack.c.l.b16 %v11975
    %v12711 = vunpack.c.h.b16 %v11975
    %v12712 = vunpack.c.l.b16 %v11976
    %v12713 = vunpack.c.h.b16 %v11976
    %v12714 = vunpack.c.l.b16 %v11977
    %v12715 = vunpack.c.h.b16 %v11977
    %v12716 = vunpack.c.l.b16 %v11978
    %v12717 = vunpack.c.h.b16 %v11978
    %v12718 = vunpack.c.l.b16 %v11979
    %v12719 = vunpack.c.h.b16 %v11979
    %v12720 = vunpack.c.l.b16 %v11980
    %v12721 = vunpack.c.h.b16 %v11980
    %v12722 = vunpack.c.l.b16 %v11981
    %v12723 = vunpack.c.h.b16 %v11981
    %v12724 = vunpack.c.l.b16 %v11982
    %v12725 = vunpack.c.h.b16 %v11982
    %v12726 = vunpack.c.l.b16 %v11983
    %v12727 = vunpack.c.h.b16 %v11983
    %v12728 = vunpack.c.l.b16 %v11984
    %v12729 = vunpack.c.h.b16 %v11984
    %v12730 = vunpack.c.l.b16 %v11985
    %v12731 = vunpack.c.h.b16 %v11985
    %v12732 = vunpack.c.l.b16 %v11986
    %v12733 = vunpack.c.h.b16 %v11986
    %v12734 = vunpack.c.l.b16 %v11987
    %v12735 = vunpack.c.h.b16 %v11987
    %v12736 = vunpack.c.l.b16 %v11988
    %v12737 = vunpack.c.h.b16 %v11988
    %v12738 = vunpack.c.l.b16 %v11989
    %v12739 = vunpack.c.h.b16 %v11989
    %v12740 = vunpack.c.l.b16 %v11990
    %v12741 = vunpack.c.h.b16 %v11990
    %v12742 = vunpack.c.l.b16 %v11991
    %v12743 = vunpack.c.h.b16 %v11991
    %v12744 = vunpack.c.l.b16 %v11992
    %v12745 = vunpack.c.h.b16 %v11992
    %v12746 = vunpack.c.l.b16 %v11993
    %v12747 = vunpack.c.h.b16 %v11993
    %v12748 = vunpack.c.l.b16 %v11994
    %v12749 = vunpack.c.h.b16 %v11994
    %v12750 = vunpack.c.l.b16 %v11995
    %v12751 = vunpack.c.h.b16 %v11995
    %v12752 = vunpack.c.l.b16 %v11996
    %v12753 = vunpack.c.h.b16 %v11996
    %v12754 = vunpack.c.l.b16 %v11997
    %v12755 = vunpack.c.h.b16 %v11997
    %v12756 = vunpack.c.l.b16 %v11998
    %v12757 = vunpack.c.h.b16 %v11998
    %v12758 = vunpack.c.l.b16 %v11999
    %v12759 = vunpack.c.h.b16 %v11999
    %v12760 = vunpack.c.l.b16 %v12000
    %v12761 = vunpack.c.h.b16 %v12000
    %v12762 = vunpack.c.l.b16 %v12001
    %v12763 = vunpack.c.h.b16 %v12001
    %v12764 = vunpack.c.l.b16 %v12002
    %v12765 = vunpack.c.h.b16 %v12002
    %v12766 = vunpack.c.l.b16 %v12003
    %v12767 = vunpack.c.h.b16 %v12003
    %v12768 = vunpack.c.l.b16 %v12004
    %v12769 = vunpack.c.h.b16 %v12004
    %v12770 = vunpack.c.l.b16 %v12005
    %v12771 = vunpack.c.h.b16 %v12005
    %v12772 = vunpack.c.l.b16 %v12006
    %v12773 = vunpack.c.h.b16 %v12006
    %v12774 = vunpack.c.l.b16 %v12007
    %v12775 = vunpack.c.h.b16 %v12007
    %v12776 = vunpack.c.l.b16 %v12008
    %v12777 = vunpack.c.h.b16 %v12008
    %v12778 = vunpack.c.l.b16 %v12009
    %v12779 = vunpack.c.h.b16 %v12009
    %v12780 = vunpack.c.l.b16 %v12010
    %v12781 = vunpack.c.h.b16 %v12010
    %v12782 = vunpack.c.l.b16 %v12011
    %v12783 = vunpack.c.h.b16 %v12011
    %v12784 = vunpack.c.l.b16 %v12012
    %v12785 = vunpack.c.h.b16 %v12012
    %v12786 = vunpack.c.l.b16 %v12013
    %v12787 = vunpack.c.h.b16 %v12013
    %v12788 = vunpack.c.l.b16 %v12014
    %v12789 = vunpack.c.h.b16 %v12014
    %v12790 = vunpack.c.l.b16 %v12015
    %v12791 = vunpack.c.h.b16 %v12015
    %v12792 = vunpack.c.l.b16 %v12016
    %v12793 = vunpack.c.h.b16 %v12016
    %v12794 = vunpack.c.l.b16 %v12017
    %v12795 = vunpack.c.h.b16 %v12017
    %v12796 = vunpack.c.l.b16 %v12018
    %v12797 = vunpack.c.h.b16 %v12018
    %v12798 = vunpack.c.l.b16 %v12019
    %v12799 = vunpack.c.h.b16 %v12019
    %v12800 = vunpack.c.l.b16 %v12020
    %v12801 = vunpack.c.h.b16 %v12020
    %v12802 = vunpack.c.l.b16 %v12021
    %v12803 = vunpack.c.h.b16 %v12021
    %v12804 = vunpack.c.l.b16 %v12022
    %v12805 = vunpack.c.h.b16 %v12022
    %v12806 = vunpack.c.l.b16 %v12023
    %v12807 = vunpack.c.h.b16 %v12023
    %v12808 = vunpack.c.l.b16 %v12024
    %v12809 = vunpack.c.h.b16 %v12024
    %v12810 = vunpack.c.l.b16 %v12025
    %v12811 = vunpack.c.h.b16 %v12025
    %v12812 = vunpack.c.l.b16 %v12026
    %v12813 = vunpack.c.h.b16 %v12026
    %v12814 = vunpack.c.l.b16 %v12027
    %v12815 = vunpack.c.h.b16 %v12027
    %v12816 = vunpack.c.l.b16 %v12028
    %v12817 = vunpack.c.h.b16 %v12028
    %v12818 = vpack.c.b16 %v12310, %v12306
    %v12819 = vpack.c.b16 %v12311, %v12307
    %v12820 = vpack.c.b16 %v12312, %v12308
    %v12821 = vpack.c.b16 %v12313, %v12309
    %v12822 = vpack.c.b16 %v12318, %v12314
    %v12823 = vpack.c.b16 %v12319, %v12315
    %v12824 = vpack.c.b16 %v12320, %v12316
    %v12825 = vpack.c.b16 %v12321, %v12317
    %v12826 = vpack.c.b16 %v12326, %v12322
    %v12827 = vpack.c.b16 %v12327, %v12323
    %v12828 = vpack.c.b16 %v12328, %v12324
    %v12829 = vpack.c.b16 %v12329, %v12325
    %v12830 = vpack.c.b16 %v12334, %v12330
    %v12831 = vpack.c.b16 %v12335, %v12331
    %v12832 = vpack.c.b16 %v12336, %v12332
    %v12833 = vpack.c.b16 %v12337, %v12333
    %v12834 = vpack.c.b16 %v12342, %v12338
    %v12835 = vpack.c.b16 %v12343, %v12339
    %v12836 = vpack.c.b16 %v12344, %v12340
    %v12837 = vpack.c.b16 %v12345, %v12341
    %v12838 = vpack.c.b16 %v12350, %v12346
    %v12839 = vpack.c.b16 %v12351, %v12347
    %v12840 = vpack.c.b16 %v12352, %v12348
    %v12841 = vpack.c.b16 %v12353, %v12349
    %v12842 = vpack.c.b16 %v12358, %v12354
    %v12843 = vpack.c.b16 %v12359, %v12355
    %v12844 = vpack.c.b16 %v12360, %v12356
    %v12845 = vpack.c.b16 %v12361, %v12357
    %v12846 = vpack.c.b16 %v12366, %v12362
    %v12847 = vpack.c.b16 %v12367, %v12363
    %v12848 = vpack.c.b16 %v12368, %v12364
    %v12849 = vpack.c.b16 %v12369, %v12365
    %v12850 = vpack.c.b16 %v12374, %v12370
    %v12851 = vpack.c.b16 %v12375, %v12371
    %v12852 = vpack.c.b16 %v12376, %v12372
    %v12853 = vpack.c.b16 %v12377, %v12373
    %v12854 = vpack.c.b16 %v12382, %v12378
    %v12855 = vpack.c.b16 %v12383, %v12379
    %v12856 = vpack.c.b16 %v12384, %v12380
    %v12857 = vpack.c.b16 %v12385, %v12381
    %v12858 = vpack.c.b16 %v12390, %v12386
    %v12859 = vpack.c.b16 %v12391, %v12387
    %v12860 = vpack.c.b16 %v12392, %v12388
    %v12861 = vpack.c.b16 %v12393, %v12389
    %v12862 = vpack.c.b16 %v12398, %v12394
    %v12863 = vpack.c.b16 %v12399, %v12395
    %v12864 = vpack.c.b16 %v12400, %v12396
    %v12865 = vpack.c.b16 %v12401, %v12397
    %v12866 = vpack.c.b16 %v12406, %v12402
    %v12867 = vpack.c.b16 %v12407, %v12403
    %v12868 = vpack.c.b16 %v12408, %v12404
    %v12869 = vpack.c.b16 %v12409, %v12405
    %v12870 = vpack.c.b16 %v12414, %v12410
    %v12871 = vpack.c.b16 %v12415, %v12411
    %v12872 = vpack.c.b16 %v12416, %v12412
    %v12873 = vpack.c.b16 %v12417, %v12413
    %v12874 = vpack.c.b16 %v12422, %v12418
    %v12875 = vpack.c.b16 %v12423, %v12419
    %v12876 = vpack.c.b16 %v12424, %v12420
    %v12877 = vpack.c.b16 %v12425, %v12421
    %v12878 = vpack.c.b16 %v12430, %v12426
    %v12879 = vpack.c.b16 %v12431, %v12427
    %v12880 = vpack.c.b16 %v12432, %v12428
    %v12881 = vpack.c.b16 %v12433, %v12429
    %v12882 = vpack.c.b16 %v12438, %v12434
    %v12883 = vpack.c.b16 %v12439, %v12435
    %v12884 = vpack.c.b16 %v12440, %v12436
    %v12885 = vpack.c.b16 %v12441, %v12437
    %v12886 = vpack.c.b16 %v12446, %v12442
    %v12887 = vpack.c.b16 %v12447, %v12443
    %v12888 = vpack.c.b16 %v12448, %v12444
    %v12889 = vpack.c.b16 %v12449, %v12445
    %v12890 = vpack.c.b16 %v12454, %v12450
    %v12891 = vpack.c.b16 %v12455, %v12451
    %v12892 = vpack.c.b16 %v12456, %v12452
    %v12893 = vpack.c.b16 %v12457, %v12453
    %v12894 = vpack.c.b16 %v12462, %v12458
    %v12895 = vpack.c.b16 %v12463, %v12459
    %v12896 = vpack.c.b16 %v12464, %v12460
    %v12897 = vpack.c.b16 %v12465, %v12461
    %v12898 = vpack.c.b16 %v12470, %v12466
    %v12899 = vpack.c.b16 %v12471, %v12467
    %v12900 = vpack.c.b16 %v12472, %v12468
    %v12901 = vpack.c.b16 %v12473, %v12469
    %v12902 = vpack.c.b16 %v12478, %v12474
    %v12903 = vpack.c.b16 %v12479, %v12475
    %v12904 = vpack.c.b16 %v12480, %v12476
    %v12905 = vpack.c.b16 %v12481, %v12477
    %v12906 = vpack.c.b16 %v12486, %v12482
    %v12907 = vpack.c.b16 %v12487, %v12483
    %v12908 = vpack.c.b16 %v12488, %v12484
    %v12909 = vpack.c.b16 %v12489, %v12485
    %v12910 = vpack.c.b16 %v12494, %v12490
    %v12911 = vpack.c.b16 %v12495, %v12491
    %v12912 = vpack.c.b16 %v12496, %v12492
    %v12913 = vpack.c.b16 %v12497, %v12493
    %v12914 = vpack.c.b16 %v12502, %v12498
    %v12915 = vpack.c.b16 %v12503, %v12499
    %v12916 = vpack.c.b16 %v12504, %v12500
    %v12917 = vpack.c.b16 %v12505, %v12501
    %v12918 = vpack.c.b16 %v12510, %v12506
    %v12919 = vpack.c.b16 %v12511, %v12507
    %v12920 = vpack.c.b16 %v12512, %v12508
    %v12921 = vpack.c.b16 %v12513, %v12509
    %v12922 = vpack.c.b16 %v12518, %v12514
    %v12923 = vpack.c.b16 %v12519, %v12515
    %v12924 = vpack.c.b16 %v12520, %v12516
    %v12925 = vpack.c.b16 %v12521, %v12517
    %v12926 = vpack.c.b16 %v12526, %v12522
    %v12927 = vpack.c.b16 %v12527, %v12523
    %v12928 = vpack.c.b16 %v12528, %v12524
    %v12929 = vpack.c.b16 %v12529, %v12525
    %v12930 = vpack.c.b16 %v12534, %v12530
    %v12931 = vpack.c.b16 %v12535, %v12531
    %v12932 = vpack.c.b16 %v12536, %v12532
    %v12933 = vpack.c.b16 %v12537, %v12533
    %v12934 = vpack.c.b16 %v12542, %v12538
    %v12935 = vpack.c.b16 %v12543, %v12539
    %v12936 = vpack.c.b16 %v12544, %v12540
    %v12937 = vpack.c.b16 %v12545, %v12541
    %v12938 = vpack.c.b16 %v12550, %v12546
    %v12939 = vpack.c.b16 %v12551, %v12547
    %v12940 = vpack.c.b16 %v12552, %v12548
    %v12941 = vpack.c.b16 %v12553, %v12549
    %v12942 = vpack.c.b16 %v12558, %v12554
    %v12943 = vpack.c.b16 %v12559, %v12555
    %v12944 = vpack.c.b16 %v12560, %v12556
    %v12945 = vpack.c.b16 %v12561, %v12557
    %v12946 = vpack.c.b16 %v12566, %v12562
    %v12947 = vpack.c.b16 %v12567, %v12563
    %v12948 = vpack.c.b16 %v12568, %v12564
    %v12949 = vpack.c.b16 %v12569, %v12565
    %v12950 = vpack.c.b16 %v12574, %v12570
    %v12951 = vpack.c.b16 %v12575, %v12571
    %v12952 = vpack.c.b16 %v12576, %v12572
    %v12953 = vpack.c.b16 %v12577, %v12573
    %v12954 = vpack.c.b16 %v12582, %v12578
    %v12955 = vpack.c.b16 %v12583, %v12579
    %v12956 = vpack.c.b16 %v12584, %v12580
    %v12957 = vpack.c.b16 %v12585, %v12581
    %v12958 = vpack.c.b16 %v12590, %v12586
    %v12959 = vpack.c.b16 %v12591, %v12587
    %v12960 = vpack.c.b16 %v12592, %v12588
    %v12961 = vpack.c.b16 %v12593, %v12589
    %v12962 = vpack.c.b16 %v12598, %v12594
    %v12963 = vpack.c.b16 %v12599, %v12595
    %v12964 = vpack.c.b16 %v12600, %v12596
    %v12965 = vpack.c.b16 %v12601, %v12597
    %v12966 = vpack.c.b16 %v12606, %v12602
    %v12967 = vpack.c.b16 %v12607, %v12603
    %v12968 = vpack.c.b16 %v12608, %v12604
    %v12969 = vpack.c.b16 %v12609, %v12605
    %v12970 = vpack.c.b16 %v12614, %v12610
    %v12971 = vpack.c.b16 %v12615, %v12611
    %v12972 = vpack.c.b16 %v12616, %v12612
    %v12973 = vpack.c.b16 %v12617, %v12613
    %v12974 = vpack.c.b16 %v12622, %v12618
    %v12975 = vpack.c.b16 %v12623, %v12619
    %v12976 = vpack.c.b16 %v12624, %v12620
    %v12977 = vpack.c.b16 %v12625, %v12621
    %v12978 = vpack.c.b16 %v12630, %v12626
    %v12979 = vpack.c.b16 %v12631, %v12627
    %v12980 = vpack.c.b16 %v12632, %v12628
    %v12981 = vpack.c.b16 %v12633, %v12629
    %v12982 = vpack.c.b16 %v12638, %v12634
    %v12983 = vpack.c.b16 %v12639, %v12635
    %v12984 = vpack.c.b16 %v12640, %v12636
    %v12985 = vpack.c.b16 %v12641, %v12637
    %v12986 = vpack.c.b16 %v12646, %v12642
    %v12987 = vpack.c.b16 %v12647, %v12643
    %v12988 = vpack.c.b16 %v12648, %v12644
    %v12989 = vpack.c.b16 %v12649, %v12645
    %v12990 = vpack.c.b16 %v12654, %v12650
    %v12991 = vpack.c.b16 %v12655, %v12651
    %v12992 = vpack.c.b16 %v12656, %v12652
    %v12993 = vpack.c.b16 %v12657, %v12653
    %v12994 = vpack.c.b16 %v12662, %v12658
    %v12995 = vpack.c.b16 %v12663, %v12659
    %v12996 = vpack.c.b16 %v12664, %v12660
    %v12997 = vpack.c.b16 %v12665, %v12661
    %v12998 = vpack.c.b16 %v12670, %v12666
    %v12999 = vpack.c.b16 %v12671, %v12667
    %v13000 = vpack.c.b16 %v12672, %v12668
    %v13001 = vpack.c.b16 %v12673, %v12669
    %v13002 = vpack.c.b16 %v12678, %v12674
    %v13003 = vpack.c.b16 %v12679, %v12675
    %v13004 = vpack.c.b16 %v12680, %v12676
    %v13005 = vpack.c.b16 %v12681, %v12677
    %v13006 = vpack.c.b16 %v12686, %v12682
    %v13007 = vpack.c.b16 %v12687, %v12683
    %v13008 = vpack.c.b16 %v12688, %v12684
    %v13009 = vpack.c.b16 %v12689, %v12685
    %v13010 = vpack.c.b16 %v12694, %v12690
    %v13011 = vpack.c.b16 %v12695, %v12691
    %v13012 = vpack.c.b16 %v12696, %v12692
    %v13013 = vpack.c.b16 %v12697, %v12693
    %v13014 = vpack.c.b16 %v12702, %v12698
    %v13015 = vpack.c.b16 %v12703, %v12699
    %v13016 = vpack.c.b16 %v12704, %v12700
    %v13017 = vpack.c.b16 %v12705, %v12701
    %v13018 = vpack.c.b16 %v12710, %v12706
    %v13019 = vpack.c.b16 %v12711, %v12707
    %v13020 = vpack.c.b16 %v12712, %v12708
    %v13021 = vpack.c.b16 %v12713, %v12709
    %v13022 = vpack.c.b16 %v12718, %v12714
    %v13023 = vpack.c.b16 %v12719, %v12715
    %v13024 = vpack.c.b16 %v12720, %v12716
    %v13025 = vpack.c.b16 %v12721, %v12717
    %v13026 = vpack.c.b16 %v12726, %v12722
    %v13027 = vpack.c.b16 %v12727, %v12723
    %v13028 = vpack.c.b16 %v12728, %v12724
    %v13029 = vpack.c.b16 %v12729, %v12725
    %v13030 = vpack.c.b16 %v12734, %v12730
    %v13031 = vpack.c.b16 %v12735, %v12731
    %v13032 = vpack.c.b16 %v12736, %v12732
    %v13033 = vpack.c.b16 %v12737, %v12733
    %v13034 = vpack.c.b16 %v12742, %v12738
    %v13035 = vpack.c.b16 %v12743, %v12739
    %v13036 = vpack.c.b16 %v12744, %v12740
    %v13037 = vpack.c.b16 %v12745, %v12741
    %v13038 = vpack.c.b16 %v12750, %v12746
    %v13039 = vpack.c.b16 %v12751, %v12747
    %v13040 = vpack.c.b16 %v12752, %v12748
    %v13041 = vpack.c.b16 %v12753, %v12749
    %v13042 = vpack.c.b16 %v12758, %v12754
    %v13043 = vpack.c.b16 %v12759, %v12755
    %v13044 = vpack.c.b16 %v12760, %v12756
    %v13045 = vpack.c.b16 %v12761, %v12757
    %v13046 = vpack.c.b16 %v12766, %v12762
    %v13047 = vpack.c.b16 %v12767, %v12763
    %v13048 = vpack.c.b16 %v12768, %v12764
    %v13049 = vpack.c.b16 %v12769, %v12765
    %v13050 = vpack.c.b16 %v12774, %v12770
    %v13051 = vpack.c.b16 %v12775, %v12771
    %v13052 = vpack.c.b16 %v12776, %v12772
    %v13053 = vpack.c.b16 %v12777, %v12773
    %v13054 = vpack.c.b16 %v12782, %v12778
    %v13055 = vpack.c.b16 %v12783, %v12779
    %v13056 = vpack.c.b16 %v12784, %v12780
    %v13057 = vpack.c.b16 %v12785, %v12781
    %v13058 = vpack.c.b16 %v12790, %v12786
    %v13059 = vpack.c.b16 %v12791, %v12787
    %v13060 = vpack.c.b16 %v12792, %v12788
    %v13061 = vpack.c.b16 %v12793, %v12789
    %v13062 = vpack.c.b16 %v12798, %v12794
    %v13063 = vpack.c.b16 %v12799, %v12795
    %v13064 = vpack.c.b16 %v12800, %v12796
    %v13065 = vpack.c.b16 %v12801, %v12797
    %v13066 = vpack.c.b16 %v12806, %v12802
    %v13067 = vpack.c.b16 %v12807, %v12803
    %v13068 = vpack.c.b16 %v12808, %v12804
    %v13069 = vpack.c.b16 %v12809, %v12805
    %v13070 = vpack.c.b16 %v12814, %v12810
    %v13071 = vpack.c.b16 %v12815, %v12811
    %v13072 = vpack.c.b16 %v12816, %v12812
    %v13073 = vpack.c.b16 %v12817, %v12813
    %13330 = vmatprep.subr.bf16.mxu0 %v12847
    %13331 = vmatpush1.bf16.msra.mxu0 %v12846
    %13332 = vmatprep.subr.bf16.mxu0 %v12843
    %13333 = vmatpush1.bf16.msra.mxu0 %v12842
    %13334 = vmatprep.subr.bf16.mxu0 %v12839
    %13335 = vmatpush1.bf16.msra.mxu0 %v12838
    %13336 = vmatprep.subr.bf16.mxu0 %v12835
    %13337 = vmatpush1.bf16.msra.mxu0 %v12834
    %13338 = vmatprep.subr.bf16.mxu0 %v12831
    %13339 = vmatpush1.bf16.msra.mxu0 %v12830
    %13340 = vmatprep.subr.bf16.mxu0 %v12827
    %13341 = vmatpush1.bf16.msra.mxu0 %v12826
    %13342 = vmatprep.subr.bf16.mxu0 %v12823
    %13343 = vmatpush1.bf16.msra.mxu0 %v12822
    %13344 = vmatprep.subr.bf16.mxu0 %v12819
    %13345 = vmatpush1.bf16.msra.mxu0 %v12818
    %13346 = vmatprep.subr.bf16.mxu0 %v12879
    %13347 = vmatpush2.bf16.msra.mxu0 %v12878
    %13348 = vmatprep.subr.bf16.mxu0 %v12875
    %13349 = vmatpush2.bf16.msra.mxu0 %v12874
    %13350 = vmatprep.subr.bf16.mxu0 %v12871
    %13351 = vmatpush2.bf16.msra.mxu0 %v12870
    %13352 = vmatprep.subr.bf16.mxu0 %v12867
    %13353 = vmatpush2.bf16.msra.mxu0 %v12866
    %13354 = vmatprep.subr.bf16.mxu0 %v12863
    %13355 = vmatpush2.bf16.msra.mxu0 %v12862
    %13356 = vmatprep.subr.bf16.mxu0 %v12859
    %13357 = vmatpush2.bf16.msra.mxu0 %v12858
    %13358 = vmatprep.subr.bf16.mxu0 %v12855
    %13359 = vmatpush2.bf16.msra.mxu0 %v12854
    %13360 = vmatprep.subr.bf16.mxu0 %v12851
    %13361 = vmatpush2.bf16.msra.mxu0 %v12850
    %13362 = vmatprep.mubr.bf16.mxu0 %v11766
    %13363 = vmatmul.mubr.bf16.gmra.mxu0 %v11765
    %v13364 = vpop.f32.mrf.mxu0
    %v13365 = vadd.f32 %v12033, %v13364
    %v13366 = vpop.f32.mrf.mxu0
    %v13367 = vadd.f32 %v12037, %v13366
    %v13368 = vpop.f32.mrf.mxu0
    %v13369 = vpop.f32.mrf.mxu0
    %13370 = vdwg.mxu0
    %13371 = vmatprep.subr.bf16.mxu0 %v12911
    %13372 = vmatpush1.bf16.msra.mxu0 %v12910
    %13373 = vmatprep.subr.bf16.mxu0 %v12907
    %13374 = vmatpush1.bf16.msra.mxu0 %v12906
    %13375 = vmatprep.subr.bf16.mxu0 %v12903
    %13376 = vmatpush1.bf16.msra.mxu0 %v12902
    %13377 = vmatprep.subr.bf16.mxu0 %v12899
    %13378 = vmatpush1.bf16.msra.mxu0 %v12898
    %13379 = vmatprep.subr.bf16.mxu0 %v12895
    %13380 = vmatpush1.bf16.msra.mxu0 %v12894
    %13381 = vmatprep.subr.bf16.mxu0 %v12891
    %13382 = vmatpush1.bf16.msra.mxu0 %v12890
    %13383 = vmatprep.subr.bf16.mxu0 %v12887
    %13384 = vmatpush1.bf16.msra.mxu0 %v12886
    %13385 = vmatprep.subr.bf16.mxu0 %v12883
    %13386 = vmatpush1.bf16.msra.mxu0 %v12882
    %13387 = vmatprep.subr.bf16.mxu0 %v12943
    %13388 = vmatpush2.bf16.msra.mxu0 %v12942
    %13389 = vmatprep.subr.bf16.mxu0 %v12939
    %13390 = vmatpush2.bf16.msra.mxu0 %v12938
    %13391 = vmatprep.subr.bf16.mxu0 %v12935
    %13392 = vmatpush2.bf16.msra.mxu0 %v12934
    %13393 = vmatprep.subr.bf16.mxu0 %v12931
    %13394 = vmatpush2.bf16.msra.mxu0 %v12930
    %13395 = vmatprep.subr.bf16.mxu0 %v12927
    %13396 = vmatpush2.bf16.msra.mxu0 %v12926
    %13397 = vmatprep.subr.bf16.mxu0 %v12923
    %13398 = vmatpush2.bf16.msra.mxu0 %v12922
    %13399 = vmatprep.subr.bf16.mxu0 %v12919
    %13400 = vmatpush2.bf16.msra.mxu0 %v12918
    %13401 = vmatprep.subr.bf16.mxu0 %v12915
    %13402 = vmatpush2.bf16.msra.mxu0 %v12914
    %13403 = vmatprep.mubr.bf16.mxu0 %v11768
    %13404 = vmatmul.mubr.bf16.gmra.mxu0 %v11767
    %v13405 = vpop.f32.mrf.mxu0
    %v13406 = vadd.f32 %v13365, %v13405
    %v13407 = vpop.f32.mrf.mxu0
    %v13408 = vadd.f32 %v13367, %v13407
    %v13409 = vpop.f32.mrf.mxu0
    %v13410 = vpop.f32.mrf.mxu0
    %13411 = vdwg.mxu0
    %13412 = vmatprep.subr.bf16.mxu0 %v12975
    %13413 = vmatpush1.bf16.msra.mxu0 %v12974
    %13414 = vmatprep.subr.bf16.mxu0 %v12971
    %13415 = vmatpush1.bf16.msra.mxu0 %v12970
    %13416 = vmatprep.subr.bf16.mxu0 %v12967
    %13417 = vmatpush1.bf16.msra.mxu0 %v12966
    %13418 = vmatprep.subr.bf16.mxu0 %v12963
    %13419 = vmatpush1.bf16.msra.mxu0 %v12962
    %13420 = vmatprep.subr.bf16.mxu0 %v12959
    %13421 = vmatpush1.bf16.msra.mxu0 %v12958
    %13422 = vmatprep.subr.bf16.mxu0 %v12955
    %13423 = vmatpush1.bf16.msra.mxu0 %v12954
    %13424 = vmatprep.subr.bf16.mxu0 %v12951
    %13425 = vmatpush1.bf16.msra.mxu0 %v12950
    %13426 = vmatprep.subr.bf16.mxu0 %v12947
    %13427 = vmatpush1.bf16.msra.mxu0 %v12946
    %13428 = vmatprep.subr.bf16.mxu0 %v13007
    %13429 = vmatpush2.bf16.msra.mxu0 %v13006
    %13430 = vmatprep.subr.bf16.mxu0 %v13003
    %13431 = vmatpush2.bf16.msra.mxu0 %v13002
    %13432 = vmatprep.subr.bf16.mxu0 %v12999
    %13433 = vmatpush2.bf16.msra.mxu0 %v12998
    %13434 = vmatprep.subr.bf16.mxu0 %v12995
    %13435 = vmatpush2.bf16.msra.mxu0 %v12994
    %13436 = vmatprep.subr.bf16.mxu0 %v12991
    %13437 = vmatpush2.bf16.msra.mxu0 %v12990
    %13438 = vmatprep.subr.bf16.mxu0 %v12987
    %13439 = vmatpush2.bf16.msra.mxu0 %v12986
    %13440 = vmatprep.subr.bf16.mxu0 %v12983
    %13441 = vmatpush2.bf16.msra.mxu0 %v12982
    %13442 = vmatprep.subr.bf16.mxu0 %v12979
    %13443 = vmatpush2.bf16.msra.mxu0 %v12978
    %13444 = vmatprep.mubr.bf16.mxu0 %v11770
    %13445 = vmatmul.mubr.bf16.gmra.mxu0 %v11769
    %v13446 = vpop.f32.mrf.mxu0
    %v13447 = vadd.f32 %v13406, %v13446
    %v13448 = vpop.f32.mrf.mxu0
    %v13449 = vadd.f32 %v13408, %v13448
    %v13450 = vpop.f32.mrf.mxu0
    %v13451 = vpop.f32.mrf.mxu0
    %13452 = vdwg.mxu0
    %13453 = vmatprep.subr.bf16.mxu0 %v13039
    %13454 = vmatpush1.bf16.msra.mxu0 %v13038
    %13455 = vmatprep.subr.bf16.mxu0 %v13035
    %13456 = vmatpush1.bf16.msra.mxu0 %v13034
    %13457 = vmatprep.subr.bf16.mxu0 %v13031
    %13458 = vmatpush1.bf16.msra.mxu0 %v13030
    %13459 = vmatprep.subr.bf16.mxu0 %v13027
    %13460 = vmatpush1.bf16.msra.mxu0 %v13026
    %13461 = vmatprep.subr.bf16.mxu0 %v13023
    %13462 = vmatpush1.bf16.msra.mxu0 %v13022
    %13463 = vmatprep.subr.bf16.mxu0 %v13019
    %13464 = vmatpush1.bf16.msra.mxu0 %v13018
    %13465 = vmatprep.subr.bf16.mxu0 %v13015
    %13466 = vmatpush1.bf16.msra.mxu0 %v13014
    %13467 = vmatprep.subr.bf16.mxu0 %v13011
    %13468 = vmatpush1.bf16.msra.mxu0 %v13010
    %13469 = vmatprep.subr.bf16.mxu0 %v13071
    %13470 = vmatpush2.bf16.msra.mxu0 %v13070
    %13471 = vmatprep.subr.bf16.mxu0 %v13067
    %13472 = vmatpush2.bf16.msra.mxu0 %v13066
    %13473 = vmatprep.subr.bf16.mxu0 %v13063
    %13474 = vmatpush2.bf16.msra.mxu0 %v13062
    %13475 = vmatprep.subr.bf16.mxu0 %v13059
    %13476 = vmatpush2.bf16.msra.mxu0 %v13058
    %13477 = vmatprep.subr.bf16.mxu0 %v13055
    %13478 = vmatpush2.bf16.msra.mxu0 %v13054
    %13479 = vmatprep.subr.bf16.mxu0 %v13051
    %13480 = vmatpush2.bf16.msra.mxu0 %v13050
    %13481 = vmatprep.subr.bf16.mxu0 %v13047
    %13482 = vmatpush2.bf16.msra.mxu0 %v13046
    %13483 = vmatprep.subr.bf16.mxu0 %v13043
    %13484 = vmatpush2.bf16.msra.mxu0 %v13042
    %13485 = vmatprep.mubr.bf16.mxu0 %v11772
    %13486 = vmatmul.mubr.bf16.gmra.mxu0 %v11771
    %v13487 = vpop.f32.mrf.mxu0
    %v13488 = vadd.f32 %v13447, %v13487
    %v13489 = vpop.f32.mrf.mxu0
    %v13490 = vadd.f32 %v13449, %v13489
    %v13491 = vpop.f32.mrf.mxu0
    %v13492 = vpop.f32.mrf.mxu0
    %13493 = vdwg.mxu0
    %13494 = vmatprep.subr.bf16.mxu0 %v12849
    %13495 = vmatpush1.bf16.msra.mxu0 %v12848
    %13496 = vmatprep.subr.bf16.mxu0 %v12845
    %13497 = vmatpush1.bf16.msra.mxu0 %v12844
    %13498 = vmatprep.subr.bf16.mxu0 %v12841
    %13499 = vmatpush1.bf16.msra.mxu0 %v12840
    %13500 = vmatprep.subr.bf16.mxu0 %v12837
    %13501 = vmatpush1.bf16.msra.mxu0 %v12836
    %13502 = vmatprep.subr.bf16.mxu0 %v12833
    %13503 = vmatpush1.bf16.msra.mxu0 %v12832
    %13504 = vmatprep.subr.bf16.mxu0 %v12829
    %13505 = vmatpush1.bf16.msra.mxu0 %v12828
    %13506 = vmatprep.subr.bf16.mxu0 %v12825
    %13507 = vmatpush1.bf16.msra.mxu0 %v12824
    %13508 = vmatprep.subr.bf16.mxu0 %v12821
    %13509 = vmatpush1.bf16.msra.mxu0 %v12820
    %13510 = vmatprep.subr.bf16.mxu0 %v12881
    %13511 = vmatpush2.bf16.msra.mxu0 %v12880
    %13512 = vmatprep.subr.bf16.mxu0 %v12877
    %13513 = vmatpush2.bf16.msra.mxu0 %v12876
    %13514 = vmatprep.subr.bf16.mxu0 %v12873
    %13515 = vmatpush2.bf16.msra.mxu0 %v12872
    %13516 = vmatprep.subr.bf16.mxu0 %v12869
    %13517 = vmatpush2.bf16.msra.mxu0 %v12868
    %13518 = vmatprep.subr.bf16.mxu0 %v12865
    %13519 = vmatpush2.bf16.msra.mxu0 %v12864
    %13520 = vmatprep.subr.bf16.mxu0 %v12861
    %13521 = vmatpush2.bf16.msra.mxu0 %v12860
    %13522 = vmatprep.subr.bf16.mxu0 %v12857
    %13523 = vmatpush2.bf16.msra.mxu0 %v12856
    %13524 = vmatprep.subr.bf16.mxu0 %v12853
    %13525 = vmatpush2.bf16.msra.mxu0 %v12852
    %13526 = vmatprep.mubr.bf16.mxu0 %v11766
    %13527 = vmatmul.mubr.bf16.gmra.mxu0 %v11765
    %v13528 = vpop.f32.mrf.mxu0
    %v13529 = vadd.f32 %v12041, %v13528
    %v13530 = vpop.f32.mrf.mxu0
    %v13531 = vadd.f32 %v12045, %v13530
    %v13532 = vpop.f32.mrf.mxu0
    %v13533 = vpop.f32.mrf.mxu0
    %13534 = vdwg.mxu0
    %13535 = vmatprep.subr.bf16.mxu0 %v12913
    %13536 = vmatpush1.bf16.msra.mxu0 %v12912
    %13537 = vmatprep.subr.bf16.mxu0 %v12909
    %13538 = vmatpush1.bf16.msra.mxu0 %v12908
    %13539 = vmatprep.subr.bf16.mxu0 %v12905
    %13540 = vmatpush1.bf16.msra.mxu0 %v12904
    %13541 = vmatprep.subr.bf16.mxu0 %v12901
    %13542 = vmatpush1.bf16.msra.mxu0 %v12900
    %13543 = vmatprep.subr.bf16.mxu0 %v12897
    %13544 = vmatpush1.bf16.msra.mxu0 %v12896
    %13545 = vmatprep.subr.bf16.mxu0 %v12893
    %13546 = vmatpush1.bf16.msra.mxu0 %v12892
    %13547 = vmatprep.subr.bf16.mxu0 %v12889
    %13548 = vmatpush1.bf16.msra.mxu0 %v12888
    %13549 = vmatprep.subr.bf16.mxu0 %v12885
    %13550 = vmatpush1.bf16.msra.mxu0 %v12884
    %13551 = vmatprep.subr.bf16.mxu0 %v12945
    %13552 = vmatpush2.bf16.msra.mxu0 %v12944
    %13553 = vmatprep.subr.bf16.mxu0 %v12941
    %13554 = vmatpush2.bf16.msra.mxu0 %v12940
    %13555 = vmatprep.subr.bf16.mxu0 %v12937
    %13556 = vmatpush2.bf16.msra.mxu0 %v12936
    %13557 = vmatprep.subr.bf16.mxu0 %v12933
    %13558 = vmatpush2.bf16.msra.mxu0 %v12932
    %13559 = vmatprep.subr.bf16.mxu0 %v12929
    %13560 = vmatpush2.bf16.msra.mxu0 %v12928
    %13561 = vmatprep.subr.bf16.mxu0 %v12925
    %13562 = vmatpush2.bf16.msra.mxu0 %v12924
    %13563 = vmatprep.subr.bf16.mxu0 %v12921
    %13564 = vmatpush2.bf16.msra.mxu0 %v12920
    %13565 = vmatprep.subr.bf16.mxu0 %v12917
    %13566 = vmatpush2.bf16.msra.mxu0 %v12916
    %13567 = vmatprep.mubr.bf16.mxu0 %v11768
    %13568 = vmatmul.mubr.bf16.gmra.mxu0 %v11767
    %v13569 = vpop.f32.mrf.mxu0
    %v13570 = vadd.f32 %v13529, %v13569
    %v13571 = vpop.f32.mrf.mxu0
    %v13572 = vadd.f32 %v13531, %v13571
    %v13573 = vpop.f32.mrf.mxu0
    %v13574 = vpop.f32.mrf.mxu0
    %13575 = vdwg.mxu0
    %13576 = vmatprep.subr.bf16.mxu0 %v12977
    %13577 = vmatpush1.bf16.msra.mxu0 %v12976
    %13578 = vmatprep.subr.bf16.mxu0 %v12973
    %13579 = vmatpush1.bf16.msra.mxu0 %v12972
    %13580 = vmatprep.subr.bf16.mxu0 %v12969
    %13581 = vmatpush1.bf16.msra.mxu0 %v12968
    %13582 = vmatprep.subr.bf16.mxu0 %v12965
    %13583 = vmatpush1.bf16.msra.mxu0 %v12964
    %13584 = vmatprep.subr.bf16.mxu0 %v12961
    %13585 = vmatpush1.bf16.msra.mxu0 %v12960
    %13586 = vmatprep.subr.bf16.mxu0 %v12957
    %13587 = vmatpush1.bf16.msra.mxu0 %v12956
    %13588 = vmatprep.subr.bf16.mxu0 %v12953
    %13589 = vmatpush1.bf16.msra.mxu0 %v12952
    %13590 = vmatprep.subr.bf16.mxu0 %v12949
    %13591 = vmatpush1.bf16.msra.mxu0 %v12948
    %13592 = vmatprep.subr.bf16.mxu0 %v13009
    %13593 = vmatpush2.bf16.msra.mxu0 %v13008
    %13594 = vmatprep.subr.bf16.mxu0 %v13005
    %13595 = vmatpush2.bf16.msra.mxu0 %v13004
    %13596 = vmatprep.subr.bf16.mxu0 %v13001
    %13597 = vmatpush2.bf16.msra.mxu0 %v13000
    %13598 = vmatprep.subr.bf16.mxu0 %v12997
    %13599 = vmatpush2.bf16.msra.mxu0 %v12996
    %13600 = vmatprep.subr.bf16.mxu0 %v12993
    %13601 = vmatpush2.bf16.msra.mxu0 %v12992
    %13602 = vmatprep.subr.bf16.mxu0 %v12989
    %13603 = vmatpush2.bf16.msra.mxu0 %v12988
    %13604 = vmatprep.subr.bf16.mxu0 %v12985
    %13605 = vmatpush2.bf16.msra.mxu0 %v12984
    %13606 = vmatprep.subr.bf16.mxu0 %v12981
    %13607 = vmatpush2.bf16.msra.mxu0 %v12980
    %13608 = vmatprep.mubr.bf16.mxu0 %v11770
    %13609 = vmatmul.mubr.bf16.gmra.mxu0 %v11769
    %v13610 = vpop.f32.mrf.mxu0
    %v13611 = vadd.f32 %v13570, %v13610
    %v13612 = vpop.f32.mrf.mxu0
    %v13613 = vadd.f32 %v13572, %v13612
    %v13614 = vpop.f32.mrf.mxu0
    %v13615 = vpop.f32.mrf.mxu0
    %13616 = vdwg.mxu0
    %13617 = vmatprep.subr.bf16.mxu0 %v13041
    %13618 = vmatpush1.bf16.msra.mxu0 %v13040
    %13619 = vmatprep.subr.bf16.mxu0 %v13037
    %13620 = vmatpush1.bf16.msra.mxu0 %v13036
    %13621 = vmatprep.subr.bf16.mxu0 %v13033
    %13622 = vmatpush1.bf16.msra.mxu0 %v13032
    %13623 = vmatprep.subr.bf16.mxu0 %v13029
    %13624 = vmatpush1.bf16.msra.mxu0 %v13028
    %13625 = vmatprep.subr.bf16.mxu0 %v13025
    %13626 = vmatpush1.bf16.msra.mxu0 %v13024
    %13627 = vmatprep.subr.bf16.mxu0 %v13021
    %13628 = vmatpush1.bf16.msra.mxu0 %v13020
    %13629 = vmatprep.subr.bf16.mxu0 %v13017
    %13630 = vmatpush1.bf16.msra.mxu0 %v13016
    %13631 = vmatprep.subr.bf16.mxu0 %v13013
    %13632 = vmatpush1.bf16.msra.mxu0 %v13012
    %13633 = vmatprep.subr.bf16.mxu0 %v13073
    %13634 = vmatpush2.bf16.msra.mxu0 %v13072
    %13635 = vmatprep.subr.bf16.mxu0 %v13069
    %13636 = vmatpush2.bf16.msra.mxu0 %v13068
    %13637 = vmatprep.subr.bf16.mxu0 %v13065
    %13638 = vmatpush2.bf16.msra.mxu0 %v13064
    %13639 = vmatprep.subr.bf16.mxu0 %v13061
    %13640 = vmatpush2.bf16.msra.mxu0 %v13060
    %13641 = vmatprep.subr.bf16.mxu0 %v13057
    %13642 = vmatpush2.bf16.msra.mxu0 %v13056
    %13643 = vmatprep.subr.bf16.mxu0 %v13053
    %13644 = vmatpush2.bf16.msra.mxu0 %v13052
    %13645 = vmatprep.subr.bf16.mxu0 %v13049
    %13646 = vmatpush2.bf16.msra.mxu0 %v13048
    %13647 = vmatprep.subr.bf16.mxu0 %v13045
    %13648 = vmatpush2.bf16.msra.mxu0 %v13044
    %13649 = vmatprep.mubr.bf16.mxu0 %v11772
    %13650 = vmatmul.mubr.bf16.gmra.mxu0 %v11771
    %v13651 = vpop.f32.mrf.mxu0
    %v13652 = vadd.f32 %v13611, %v13651
    %v13653 = vpop.f32.mrf.mxu0
    %v13654 = vadd.f32 %v13613, %v13653
    %v13655 = vpop.f32.mrf.mxu0
    %v13656 = vpop.f32.mrf.mxu0
    %13657 = vdwg.mxu0
    %v13658 = vmax.f32 %v13488, 0.0
    %v13659 = vmax.f32 %v13490, 0.0
    %v13660 = vmax.f32 %v13652, 0.0
    %v13661 = vmax.f32 %v13654, 0.0
    %v13662 = vmul.f32 %v13658, %v206
    %v13663 = vmul.f32 %v13659, %v206
    %v13664 = vmul.f32 %v13660, %v206
    %v13665 = vmul.f32 %v13661, %v206
    %v13666 = vrot.slane %v13662, 4
    %v13667 = vadd.f32 %v13662, %v13666
    %v13668 = vrot.slane %v13667, 2
    %v13669 = vadd.f32 %v13667, %v13668
    %v13670 = vrot.slane %v13669, 1
    %v13671 = vadd.f32 %v13669, %v13670
    %v13672 = vrot.slane %v13663, 4
    %v13673 = vadd.f32 %v13663, %v13672
    %v13674 = vrot.slane %v13673, 2
    %v13675 = vadd.f32 %v13673, %v13674
    %v13676 = vrot.slane %v13675, 1
    %v13677 = vadd.f32 %v13675, %v13676
    %v13678 = vrot.slane %v13664, 4
    %v13679 = vadd.f32 %v13664, %v13678
    %v13680 = vrot.slane %v13679, 2
    %v13681 = vadd.f32 %v13679, %v13680
    %v13682 = vrot.slane %v13681, 1
    %v13683 = vadd.f32 %v13681, %v13682
    %v13684 = vrot.slane %v13665, 4
    %v13685 = vadd.f32 %v13665, %v13684
    %v13686 = vrot.slane %v13685, 2
    %v13687 = vadd.f32 %v13685, %v13686
    %v13688 = vrot.slane %v13687, 1
    %v13689 = vadd.f32 %v13687, %v13688
    %v13690 = vmul.f32 %v13671, %v11551
    %v13691 = vmul.f32 %v13677, %v11551
    %v13692 = vmul.f32 %v13683, %v11551
    %v13693 = vmul.f32 %v13689, %v11551
    %v13694 = vsub.f32 %v13658, %v13690
    %v13695 = vsub.f32 %v13659, %v13691
    %v13696 = vsub.f32 %v13660, %v13692
    %v13697 = vsub.f32 %v13661, %v13693
    %v13698 = vmul.f32 %v13694, %v206
    %v13699 = vmul.f32 %v13695, %v206
    %v13700 = vmul.f32 %v13696, %v206
    %v13701 = vmul.f32 %v13697, %v206
    %v13702 = vmul.f32 %v13698, %v13698
    %v13703 = vmul.f32 %v13699, %v13699
    %v13704 = vmul.f32 %v13700, %v13700
    %v13705 = vmul.f32 %v13701, %v13701
    %v13706 = vrot.slane %v13702, 4
    %v13707 = vadd.f32 %v13702, %v13706
    %v13708 = vrot.slane %v13707, 2
    %v13709 = vadd.f32 %v13707, %v13708
    %v13710 = vrot.slane %v13709, 1
    %v13711 = vadd.f32 %v13709, %v13710
    %v13712 = vrot.slane %v13703, 4
    %v13713 = vadd.f32 %v13703, %v13712
    %v13714 = vrot.slane %v13713, 2
    %v13715 = vadd.f32 %v13713, %v13714
    %v13716 = vrot.slane %v13715, 1
    %v13717 = vadd.f32 %v13715, %v13716
    %v13718 = vrot.slane %v13704, 4
    %v13719 = vadd.f32 %v13704, %v13718
    %v13720 = vrot.slane %v13719, 2
    %v13721 = vadd.f32 %v13719, %v13720
    %v13722 = vrot.slane %v13721, 1
    %v13723 = vadd.f32 %v13721, %v13722
    %v13724 = vrot.slane %v13705, 4
    %v13725 = vadd.f32 %v13705, %v13724
    %v13726 = vrot.slane %v13725, 2
    %v13727 = vadd.f32 %v13725, %v13726
    %v13728 = vrot.slane %v13727, 1
    %v13729 = vadd.f32 %v13727, %v13728
    %v13730 = vmul.f32 %v13711, %v11551
    %v13731 = vmul.f32 %v13717, %v11551
    %v13732 = vmul.f32 %v13723, %v11551
    %v13733 = vmul.f32 %v13729, %v11551
    %v13734 = vadd.f32 %v13730, 1e-05
    %v13735 = vadd.f32 %v13731, 1e-05
    %v13736 = vadd.f32 %v13732, 1e-05
    %v13737 = vadd.f32 %v13733, 1e-05
    %v13738 = vrsqrt.pop %v13734
    %v13739 = vrsqrt.pop %v13735
    %v13740 = vrsqrt.pop %v13736
    %v13741 = vrsqrt.pop %v13737
    %v13742 = vmul.f32 %v13694, %v13738
    %v13743 = vmul.f32 %v13695, %v13739
    %v13744 = vmul.f32 %v13696, %v13740
    %v13745 = vmul.f32 %v13697, %v13741
    %v13747 = vlaneseq
    %v13748 = vshrl.u32 %v13747, 7
    %v13749 = vsub.s32 0, %v13748
    %v13750 = vrot.slane %v11763, %v13749
    %v13751 = vlaneseq
    %v13752 = vshrl.u32 %v13751, 7
    %v13753 = vsub.s32 1, %v13752
    %v13754 = vrot.slane %v11763, %v13753
    %v13755 = vlaneseq
    %v13756 = vshrl.u32 %v13755, 7
    %v13757 = vsub.s32 2, %v13756
    %v13758 = vrot.slane %v11763, %v13757
    %v13759 = vlaneseq
    %v13760 = vshrl.u32 %v13759, 7
    %v13761 = vsub.s32 3, %v13760
    %v13762 = vrot.slane %v11763, %v13761
    %v13767 = vmul.f32 %v13742, %v13750
    %v13768 = vmul.f32 %v13743, %v13754
    %v13769 = vmul.f32 %v13744, %v13758
    %v13770 = vmul.f32 %v13745, %v13762
    %v13772 = vlaneseq
    %v13773 = vshrl.u32 %v13772, 7
    %v13774 = vsub.s32 0, %v13773
    %v13775 = vrot.slane %v11764, %v13774
    %v13776 = vlaneseq
    %v13777 = vshrl.u32 %v13776, 7
    %v13778 = vsub.s32 1, %v13777
    %v13779 = vrot.slane %v11764, %v13778
    %v13780 = vlaneseq
    %v13781 = vshrl.u32 %v13780, 7
    %v13782 = vsub.s32 2, %v13781
    %v13783 = vrot.slane %v11764, %v13782
    %v13784 = vlaneseq
    %v13785 = vshrl.u32 %v13784, 7
    %v13786 = vsub.s32 3, %v13785
    %v13787 = vrot.slane %v11764, %v13786
    %v13792 = vadd.f32 %v13767, %v13775
    %v13793 = vadd.f32 %v13768, %v13779
    %v13794 = vadd.f32 %v13769, %v13783
    %v13795 = vadd.f32 %v13770, %v13787
    %v13796 = vld [vmem:[#allocation17] sm:$0x3]
    %v13797 = vld [vmem:[#allocation19] sm:$0x3]
    %v13798 = vld [vmem:[#allocation20] sm:$0x3]
    %v13799 = vpack.c.bf16 %v13792, %v13792
    %v13800 = vpack.c.bf16 %v13793, %v13793
    %v13801 = vpack.c.bf16 %v13794, %v13794
    %v13802 = vpack.c.bf16 %v13795, %v13795
    %v13803 = vld [vmem:[#allocation16] sm:$0xff]
    %v13804 = vld [vmem:[#allocation16 + $0x8] sm:$0xff]
    %v13805 = vld [vmem:[#allocation16 + $0x10] sm:$0xff]
    %v13806 = vld [vmem:[#allocation16 + $0x18] sm:$0xff]
    %v13807 = vld [vmem:[#allocation16 + $0x20] sm:$0xff]
    %v13808 = vld [vmem:[#allocation16 + $0x28] sm:$0xff]
    %v13809 = vld [vmem:[#allocation16 + $0x30] sm:$0xff]
    %v13810 = vld [vmem:[#allocation16 + $0x38] sm:$0xff]
    %v13811 = vld [vmem:[#allocation16 + $0x40] sm:$0xff]
    %v13812 = vld [vmem:[#allocation16 + $0x48] sm:$0xff]
    %v13813 = vld [vmem:[#allocation16 + $0x50] sm:$0xff]
    %v13814 = vld [vmem:[#allocation16 + $0x58] sm:$0xff]
    %v13815 = vld [vmem:[#allocation16 + $0x60] sm:$0xff]
    %v13816 = vld [vmem:[#allocation16 + $0x68] sm:$0xff]
    %v13817 = vld [vmem:[#allocation16 + $0x70] sm:$0xff]
    %v13818 = vld [vmem:[#allocation16 + $0x78] sm:$0xff]
    %v13819 = vld [vmem:[#allocation16 + $0x80] sm:$0xff]
    %v13820 = vld [vmem:[#allocation16 + $0x88] sm:$0xff]
    %v13821 = vld [vmem:[#allocation16 + $0x90] sm:$0xff]
    %v13822 = vld [vmem:[#allocation16 + $0x98] sm:$0xff]
    %v13823 = vld [vmem:[#allocation16 + $0xa0] sm:$0xff]
    %v13824 = vld [vmem:[#allocation16 + $0xa8] sm:$0xff]
    %v13825 = vld [vmem:[#allocation16 + $0xb0] sm:$0xff]
    %v13826 = vld [vmem:[#allocation16 + $0xb8] sm:$0xff]
    %v13827 = vld [vmem:[#allocation16 + $0xc0] sm:$0xff]
    %v13828 = vld [vmem:[#allocation16 + $0xc8] sm:$0xff]
    %v13829 = vld [vmem:[#allocation16 + $0xd0] sm:$0xff]
    %v13830 = vld [vmem:[#allocation16 + $0xd8] sm:$0xff]
    %v13831 = vld [vmem:[#allocation16 + $0xe0] sm:$0xff]
    %v13832 = vld [vmem:[#allocation16 + $0xe8] sm:$0xff]
    %v13833 = vld [vmem:[#allocation16 + $0xf0] sm:$0xff]
    %v13834 = vld [vmem:[#allocation16 + $0xf8] sm:$0xff]
    %v13835 = vld [vmem:[#allocation16 + $0x100] sm:$0xff]
    %v13836 = vld [vmem:[#allocation16 + $0x108] sm:$0xff]
    %v13837 = vld [vmem:[#allocation16 + $0x110] sm:$0xff]
    %v13838 = vld [vmem:[#allocation16 + $0x118] sm:$0xff]
    %v13839 = vld [vmem:[#allocation16 + $0x120] sm:$0xff]
    %v13840 = vld [vmem:[#allocation16 + $0x128] sm:$0xff]
    %v13841 = vld [vmem:[#allocation16 + $0x130] sm:$0xff]
    %v13842 = vld [vmem:[#allocation16 + $0x138] sm:$0xff]
    %v13843 = vld [vmem:[#allocation16 + $0x140] sm:$0xff]
    %v13844 = vld [vmem:[#allocation16 + $0x148] sm:$0xff]
    %v13845 = vld [vmem:[#allocation16 + $0x150] sm:$0xff]
    %v13846 = vld [vmem:[#allocation16 + $0x158] sm:$0xff]
    %v13847 = vld [vmem:[#allocation16 + $0x160] sm:$0xff]
    %v13848 = vld [vmem:[#allocation16 + $0x168] sm:$0xff]
    %v13849 = vld [vmem:[#allocation16 + $0x170] sm:$0xff]
    %v13850 = vld [vmem:[#allocation16 + $0x178] sm:$0xff]
    %v13851 = vld [vmem:[#allocation16 + $0x180] sm:$0xff]
    %v13852 = vld [vmem:[#allocation16 + $0x188] sm:$0xff]
    %v13853 = vld [vmem:[#allocation16 + $0x190] sm:$0xff]
    %v13854 = vld [vmem:[#allocation16 + $0x198] sm:$0xff]
    %v13855 = vld [vmem:[#allocation16 + $0x1a0] sm:$0xff]
    %v13856 = vld [vmem:[#allocation16 + $0x1a8] sm:$0xff]
    %v13857 = vld [vmem:[#allocation16 + $0x1b0] sm:$0xff]
    %v13858 = vld [vmem:[#allocation16 + $0x1b8] sm:$0xff]
    %v13859 = vld [vmem:[#allocation16 + $0x1c0] sm:$0xff]
    %v13860 = vld [vmem:[#allocation16 + $0x1c8] sm:$0xff]
    %v13861 = vld [vmem:[#allocation16 + $0x1d0] sm:$0xff]
    %v13862 = vld [vmem:[#allocation16 + $0x1d8] sm:$0xff]
    %v13863 = vld [vmem:[#allocation16 + $0x1e0] sm:$0xff]
    %v13864 = vld [vmem:[#allocation16 + $0x1e8] sm:$0xff]
    %v13865 = vld [vmem:[#allocation16 + $0x1f0] sm:$0xff]
    %v13866 = vld [vmem:[#allocation16 + $0x1f8] sm:$0xff]
    %v13868 = vlaneseq
    %v13869 = vshrl.u32 %v13868, 7
    %v13870 = vsub.s32 0, %v13869
    %v13871 = vrot.slane %v13796, %v13870
    %v13872 = vlaneseq
    %v13873 = vshrl.u32 %v13872, 7
    %v13874 = vsub.s32 1, %v13873
    %v13875 = vrot.slane %v13796, %v13874
    %v13942 = vunpack.c.l.b16 %v13803
    %v13943 = vunpack.c.h.b16 %v13803
    %v13944 = vunpack.c.l.b16 %v13804
    %v13945 = vunpack.c.h.b16 %v13804
    %v13946 = vunpack.c.l.b16 %v13805
    %v13947 = vunpack.c.h.b16 %v13805
    %v13948 = vunpack.c.l.b16 %v13806
    %v13949 = vunpack.c.h.b16 %v13806
    %v13950 = vunpack.c.l.b16 %v13807
    %v13951 = vunpack.c.h.b16 %v13807
    %v13952 = vunpack.c.l.b16 %v13808
    %v13953 = vunpack.c.h.b16 %v13808
    %v13954 = vunpack.c.l.b16 %v13809
    %v13955 = vunpack.c.h.b16 %v13809
    %v13956 = vunpack.c.l.b16 %v13810
    %v13957 = vunpack.c.h.b16 %v13810
    %v13958 = vunpack.c.l.b16 %v13811
    %v13959 = vunpack.c.h.b16 %v13811
    %v13960 = vunpack.c.l.b16 %v13812
    %v13961 = vunpack.c.h.b16 %v13812
    %v13962 = vunpack.c.l.b16 %v13813
    %v13963 = vunpack.c.h.b16 %v13813
    %v13964 = vunpack.c.l.b16 %v13814
    %v13965 = vunpack.c.h.b16 %v13814
    %v13966 = vunpack.c.l.b16 %v13815
    %v13967 = vunpack.c.h.b16 %v13815
    %v13968 = vunpack.c.l.b16 %v13816
    %v13969 = vunpack.c.h.b16 %v13816
    %v13970 = vunpack.c.l.b16 %v13817
    %v13971 = vunpack.c.h.b16 %v13817
    %v13972 = vunpack.c.l.b16 %v13818
    %v13973 = vunpack.c.h.b16 %v13818
    %v13974 = vunpack.c.l.b16 %v13819
    %v13975 = vunpack.c.h.b16 %v13819
    %v13976 = vunpack.c.l.b16 %v13820
    %v13977 = vunpack.c.h.b16 %v13820
    %v13978 = vunpack.c.l.b16 %v13821
    %v13979 = vunpack.c.h.b16 %v13821
    %v13980 = vunpack.c.l.b16 %v13822
    %v13981 = vunpack.c.h.b16 %v13822
    %v13982 = vunpack.c.l.b16 %v13823
    %v13983 = vunpack.c.h.b16 %v13823
    %v13984 = vunpack.c.l.b16 %v13824
    %v13985 = vunpack.c.h.b16 %v13824
    %v13986 = vunpack.c.l.b16 %v13825
    %v13987 = vunpack.c.h.b16 %v13825
    %v13988 = vunpack.c.l.b16 %v13826
    %v13989 = vunpack.c.h.b16 %v13826
    %v13990 = vunpack.c.l.b16 %v13827
    %v13991 = vunpack.c.h.b16 %v13827
    %v13992 = vunpack.c.l.b16 %v13828
    %v13993 = vunpack.c.h.b16 %v13828
    %v13994 = vunpack.c.l.b16 %v13829
    %v13995 = vunpack.c.h.b16 %v13829
    %v13996 = vunpack.c.l.b16 %v13830
    %v13997 = vunpack.c.h.b16 %v13830
    %v13998 = vunpack.c.l.b16 %v13831
    %v13999 = vunpack.c.h.b16 %v13831
    %v14000 = vunpack.c.l.b16 %v13832
    %v14001 = vunpack.c.h.b16 %v13832
    %v14002 = vunpack.c.l.b16 %v13833
    %v14003 = vunpack.c.h.b16 %v13833
    %v14004 = vunpack.c.l.b16 %v13834
    %v14005 = vunpack.c.h.b16 %v13834
    %v14006 = vunpack.c.l.b16 %v13835
    %v14007 = vunpack.c.h.b16 %v13835
    %v14008 = vunpack.c.l.b16 %v13836
    %v14009 = vunpack.c.h.b16 %v13836
    %v14010 = vunpack.c.l.b16 %v13837
    %v14011 = vunpack.c.h.b16 %v13837
    %v14012 = vunpack.c.l.b16 %v13838
    %v14013 = vunpack.c.h.b16 %v13838
    %v14014 = vunpack.c.l.b16 %v13839
    %v14015 = vunpack.c.h.b16 %v13839
    %v14016 = vunpack.c.l.b16 %v13840
    %v14017 = vunpack.c.h.b16 %v13840
    %v14018 = vunpack.c.l.b16 %v13841
    %v14019 = vunpack.c.h.b16 %v13841
    %v14020 = vunpack.c.l.b16 %v13842
    %v14021 = vunpack.c.h.b16 %v13842
    %v14022 = vunpack.c.l.b16 %v13843
    %v14023 = vunpack.c.h.b16 %v13843
    %v14024 = vunpack.c.l.b16 %v13844
    %v14025 = vunpack.c.h.b16 %v13844
    %v14026 = vunpack.c.l.b16 %v13845
    %v14027 = vunpack.c.h.b16 %v13845
    %v14028 = vunpack.c.l.b16 %v13846
    %v14029 = vunpack.c.h.b16 %v13846
    %v14030 = vunpack.c.l.b16 %v13847
    %v14031 = vunpack.c.h.b16 %v13847
    %v14032 = vunpack.c.l.b16 %v13848
    %v14033 = vunpack.c.h.b16 %v13848
    %v14034 = vunpack.c.l.b16 %v13849
    %v14035 = vunpack.c.h.b16 %v13849
    %v14036 = vunpack.c.l.b16 %v13850
    %v14037 = vunpack.c.h.b16 %v13850
    %v14038 = vunpack.c.l.b16 %v13851
    %v14039 = vunpack.c.h.b16 %v13851
    %v14040 = vunpack.c.l.b16 %v13852
    %v14041 = vunpack.c.h.b16 %v13852
    %v14042 = vunpack.c.l.b16 %v13853
    %v14043 = vunpack.c.h.b16 %v13853
    %v14044 = vunpack.c.l.b16 %v13854
    %v14045 = vunpack.c.h.b16 %v13854
    %v14046 = vunpack.c.l.b16 %v13855
    %v14047 = vunpack.c.h.b16 %v13855
    %v14048 = vunpack.c.l.b16 %v13856
    %v14049 = vunpack.c.h.b16 %v13856
    %v14050 = vunpack.c.l.b16 %v13857
    %v14051 = vunpack.c.h.b16 %v13857
    %v14052 = vunpack.c.l.b16 %v13858
    %v14053 = vunpack.c.h.b16 %v13858
    %v14054 = vunpack.c.l.b16 %v13859
    %v14055 = vunpack.c.h.b16 %v13859
    %v14056 = vunpack.c.l.b16 %v13860
    %v14057 = vunpack.c.h.b16 %v13860
    %v14058 = vunpack.c.l.b16 %v13861
    %v14059 = vunpack.c.h.b16 %v13861
    %v14060 = vunpack.c.l.b16 %v13862
    %v14061 = vunpack.c.h.b16 %v13862
    %v14062 = vunpack.c.l.b16 %v13863
    %v14063 = vunpack.c.h.b16 %v13863
    %v14064 = vunpack.c.l.b16 %v13864
    %v14065 = vunpack.c.h.b16 %v13864
    %v14066 = vunpack.c.l.b16 %v13865
    %v14067 = vunpack.c.h.b16 %v13865
    %v14068 = vunpack.c.l.b16 %v13866
    %v14069 = vunpack.c.h.b16 %v13866
    %v14070 = vpack.c.b16 %v13944, %v13942
    %v14071 = vpack.c.b16 %v13945, %v13943
    %v14072 = vpack.c.b16 %v13948, %v13946
    %v14073 = vpack.c.b16 %v13949, %v13947
    %v14074 = vpack.c.b16 %v13952, %v13950
    %v14075 = vpack.c.b16 %v13953, %v13951
    %v14076 = vpack.c.b16 %v13956, %v13954
    %v14077 = vpack.c.b16 %v13957, %v13955
    %v14078 = vpack.c.b16 %v13960, %v13958
    %v14079 = vpack.c.b16 %v13961, %v13959
    %v14080 = vpack.c.b16 %v13964, %v13962
    %v14081 = vpack.c.b16 %v13965, %v13963
    %v14082 = vpack.c.b16 %v13968, %v13966
    %v14083 = vpack.c.b16 %v13969, %v13967
    %v14084 = vpack.c.b16 %v13972, %v13970
    %v14085 = vpack.c.b16 %v13973, %v13971
    %v14086 = vpack.c.b16 %v13976, %v13974
    %v14087 = vpack.c.b16 %v13977, %v13975
    %v14088 = vpack.c.b16 %v13980, %v13978
    %v14089 = vpack.c.b16 %v13981, %v13979
    %v14090 = vpack.c.b16 %v13984, %v13982
    %v14091 = vpack.c.b16 %v13985, %v13983
    %v14092 = vpack.c.b16 %v13988, %v13986
    %v14093 = vpack.c.b16 %v13989, %v13987
    %v14094 = vpack.c.b16 %v13992, %v13990
    %v14095 = vpack.c.b16 %v13993, %v13991
    %v14096 = vpack.c.b16 %v13996, %v13994
    %v14097 = vpack.c.b16 %v13997, %v13995
    %v14098 = vpack.c.b16 %v14000, %v13998
    %v14099 = vpack.c.b16 %v14001, %v13999
    %v14100 = vpack.c.b16 %v14004, %v14002
    %v14101 = vpack.c.b16 %v14005, %v14003
    %v14102 = vpack.c.b16 %v14008, %v14006
    %v14103 = vpack.c.b16 %v14009, %v14007
    %v14104 = vpack.c.b16 %v14012, %v14010
    %v14105 = vpack.c.b16 %v14013, %v14011
    %v14106 = vpack.c.b16 %v14016, %v14014
    %v14107 = vpack.c.b16 %v14017, %v14015
    %v14108 = vpack.c.b16 %v14020, %v14018
    %v14109 = vpack.c.b16 %v14021, %v14019
    %v14110 = vpack.c.b16 %v14024, %v14022
    %v14111 = vpack.c.b16 %v14025, %v14023
    %v14112 = vpack.c.b16 %v14028, %v14026
    %v14113 = vpack.c.b16 %v14029, %v14027
    %v14114 = vpack.c.b16 %v14032, %v14030
    %v14115 = vpack.c.b16 %v14033, %v14031
    %v14116 = vpack.c.b16 %v14036, %v14034
    %v14117 = vpack.c.b16 %v14037, %v14035
    %v14118 = vpack.c.b16 %v14040, %v14038
    %v14119 = vpack.c.b16 %v14041, %v14039
    %v14120 = vpack.c.b16 %v14044, %v14042
    %v14121 = vpack.c.b16 %v14045, %v14043
    %v14122 = vpack.c.b16 %v14048, %v14046
    %v14123 = vpack.c.b16 %v14049, %v14047
    %v14124 = vpack.c.b16 %v14052, %v14050
    %v14125 = vpack.c.b16 %v14053, %v14051
    %v14126 = vpack.c.b16 %v14056, %v14054
    %v14127 = vpack.c.b16 %v14057, %v14055
    %v14128 = vpack.c.b16 %v14060, %v14058
    %v14129 = vpack.c.b16 %v14061, %v14059
    %v14130 = vpack.c.b16 %v14064, %v14062
    %v14131 = vpack.c.b16 %v14065, %v14063
    %v14132 = vpack.c.b16 %v14068, %v14066
    %v14133 = vpack.c.b16 %v14069, %v14067
    %14198 = vmatprep.subr.bf16.mxu0 %v14085
    %14199 = vmatpush1.bf16.msra.mxu0 %v14084
    %14200 = vmatprep.subr.bf16.mxu0 %v14083
    %14201 = vmatpush1.bf16.msra.mxu0 %v14082
    %14202 = vmatprep.subr.bf16.mxu0 %v14081
    %14203 = vmatpush1.bf16.msra.mxu0 %v14080
    %14204 = vmatprep.subr.bf16.mxu0 %v14079
    %14205 = vmatpush1.bf16.msra.mxu0 %v14078
    %14206 = vmatprep.subr.bf16.mxu0 %v14077
    %14207 = vmatpush1.bf16.msra.mxu0 %v14076
    %14208 = vmatprep.subr.bf16.mxu0 %v14075
    %14209 = vmatpush1.bf16.msra.mxu0 %v14074
    %14210 = vmatprep.subr.bf16.mxu0 %v14073
    %14211 = vmatpush1.bf16.msra.mxu0 %v14072
    %14212 = vmatprep.subr.bf16.mxu0 %v14071
    %14213 = vmatpush1.bf16.msra.mxu0 %v14070
    %14214 = vmatprep.subr.bf16.mxu0 %v14101
    %14215 = vmatpush2.bf16.msra.mxu0 %v14100
    %14216 = vmatprep.subr.bf16.mxu0 %v14099
    %14217 = vmatpush2.bf16.msra.mxu0 %v14098
    %14218 = vmatprep.subr.bf16.mxu0 %v14097
    %14219 = vmatpush2.bf16.msra.mxu0 %v14096
    %14220 = vmatprep.subr.bf16.mxu0 %v14095
    %14221 = vmatpush2.bf16.msra.mxu0 %v14094
    %14222 = vmatprep.subr.bf16.mxu0 %v14093
    %14223 = vmatpush2.bf16.msra.mxu0 %v14092
    %14224 = vmatprep.subr.bf16.mxu0 %v14091
    %14225 = vmatpush2.bf16.msra.mxu0 %v14090
    %14226 = vmatprep.subr.bf16.mxu0 %v14089
    %14227 = vmatpush2.bf16.msra.mxu0 %v14088
    %14228 = vmatprep.subr.bf16.mxu0 %v14087
    %14229 = vmatpush2.bf16.msra.mxu0 %v14086
    %14230 = vmatprep.mubr.bf16.mxu0 %v13800
    %14231 = vmatmul.mubr.bf16.gmra.mxu0 %v13799
    %v14232 = vpop.f32.mrf.mxu0
    %v14233 = vadd.f32 %v13871, %v14232
    %v14234 = vpop.f32.mrf.mxu0
    %v14235 = vadd.f32 %v13875, %v14234
    %v14236 = vpop.f32.mrf.mxu0
    %v14237 = vpop.f32.mrf.mxu0
    %14238 = vdwg.mxu0
    %14239 = vmatprep.subr.bf16.mxu0 %v14117
    %14240 = vmatpush1.bf16.msra.mxu0 %v14116
    %14241 = vmatprep.subr.bf16.mxu0 %v14115
    %14242 = vmatpush1.bf16.msra.mxu0 %v14114
    %14243 = vmatprep.subr.bf16.mxu0 %v14113
    %14244 = vmatpush1.bf16.msra.mxu0 %v14112
    %14245 = vmatprep.subr.bf16.mxu0 %v14111
    %14246 = vmatpush1.bf16.msra.mxu0 %v14110
    %14247 = vmatprep.subr.bf16.mxu0 %v14109
    %14248 = vmatpush1.bf16.msra.mxu0 %v14108
    %14249 = vmatprep.subr.bf16.mxu0 %v14107
    %14250 = vmatpush1.bf16.msra.mxu0 %v14106
    %14251 = vmatprep.subr.bf16.mxu0 %v14105
    %14252 = vmatpush1.bf16.msra.mxu0 %v14104
    %14253 = vmatprep.subr.bf16.mxu0 %v14103
    %14254 = vmatpush1.bf16.msra.mxu0 %v14102
    %14255 = vmatprep.subr.bf16.mxu0 %v14133
    %14256 = vmatpush2.bf16.msra.mxu0 %v14132
    %14257 = vmatprep.subr.bf16.mxu0 %v14131
    %14258 = vmatpush2.bf16.msra.mxu0 %v14130
    %14259 = vmatprep.subr.bf16.mxu0 %v14129
    %14260 = vmatpush2.bf16.msra.mxu0 %v14128
    %14261 = vmatprep.subr.bf16.mxu0 %v14127
    %14262 = vmatpush2.bf16.msra.mxu0 %v14126
    %14263 = vmatprep.subr.bf16.mxu0 %v14125
    %14264 = vmatpush2.bf16.msra.mxu0 %v14124
    %14265 = vmatprep.subr.bf16.mxu0 %v14123
    %14266 = vmatpush2.bf16.msra.mxu0 %v14122
    %14267 = vmatprep.subr.bf16.mxu0 %v14121
    %14268 = vmatpush2.bf16.msra.mxu0 %v14120
    %14269 = vmatprep.subr.bf16.mxu0 %v14119
    %14270 = vmatpush2.bf16.msra.mxu0 %v14118
    %14271 = vmatprep.mubr.bf16.mxu0 %v13802
    %14272 = vmatmul.mubr.bf16.gmra.mxu0 %v13801
    %v14273 = vpop.f32.mrf.mxu0
    %v14274 = vadd.f32 %v14233, %v14273
    %v14275 = vpop.f32.mrf.mxu0
    %v14276 = vadd.f32 %v14235, %v14275
    %v14277 = vpop.f32.mrf.mxu0
    %v14278 = vpop.f32.mrf.mxu0
    %14279 = vdwg.mxu0
    %v14280 = vmax.f32 %v14274, 0.0
    %v14281 = vmax.f32 %v14276, 0.0
    %v14282 = vmul.f32 %v14280, %v206
    %v14283 = vmul.f32 %v14281, %v206
    %v14284 = vrot.slane %v14282, 4
    %v14285 = vadd.f32 %v14282, %v14284
    %v14286 = vrot.slane %v14285, 2
    %v14287 = vadd.f32 %v14285, %v14286
    %v14288 = vrot.slane %v14287, 1
    %v14289 = vadd.f32 %v14287, %v14288
    %v14290 = vrot.slane %v14283, 4
    %v14291 = vadd.f32 %v14283, %v14290
    %v14292 = vrot.slane %v14291, 2
    %v14293 = vadd.f32 %v14291, %v14292
    %v14294 = vrot.slane %v14293, 1
    %v14295 = vadd.f32 %v14293, %v14294
    %v14296 = vmul.f32 %v14289, %v11551
    %v14297 = vmul.f32 %v14295, %v11551
    %v14298 = vsub.f32 %v14280, %v14296
    %v14299 = vsub.f32 %v14281, %v14297
    %v14300 = vmul.f32 %v14298, %v206
    %v14301 = vmul.f32 %v14299, %v206
    %v14302 = vmul.f32 %v14300, %v14300
    %v14303 = vmul.f32 %v14301, %v14301
    %v14304 = vrot.slane %v14302, 4
    %v14305 = vadd.f32 %v14302, %v14304
    %v14306 = vrot.slane %v14305, 2
    %v14307 = vadd.f32 %v14305, %v14306
    %v14308 = vrot.slane %v14307, 1
    %v14309 = vadd.f32 %v14307, %v14308
    %v14310 = vrot.slane %v14303, 4
    %v14311 = vadd.f32 %v14303, %v14310
    %v14312 = vrot.slane %v14311, 2
    %v14313 = vadd.f32 %v14311, %v14312
    %v14314 = vrot.slane %v14313, 1
    %v14315 = vadd.f32 %v14313, %v14314
    %v14316 = vmul.f32 %v14309, %v11551
    %v14317 = vmul.f32 %v14315, %v11551
    %v14318 = vadd.f32 %v14316, 1e-05
    %v14319 = vadd.f32 %v14317, 1e-05
    %v14320 = vrsqrt.pop %v14318
    %v14321 = vrsqrt.pop %v14319
    %v14322 = vmul.f32 %v14298, %v14320
    %v14323 = vmul.f32 %v14299, %v14321
    %v14325 = vlaneseq
    %v14326 = vshrl.u32 %v14325, 7
    %v14327 = vsub.s32 0, %v14326
    %v14328 = vrot.slane %v13797, %v14327
    %v14329 = vlaneseq
    %v14330 = vshrl.u32 %v14329, 7
    %v14331 = vsub.s32 1, %v14330
    %v14332 = vrot.slane %v13797, %v14331
    %v14335 = vmul.f32 %v14322, %v14328
    %v14336 = vmul.f32 %v14323, %v14332
    %v14338 = vlaneseq
    %v14339 = vshrl.u32 %v14338, 7
    %v14340 = vsub.s32 0, %v14339
    %v14341 = vrot.slane %v13798, %v14340
    %v14342 = vlaneseq
    %v14343 = vshrl.u32 %v14342, 7
    %v14344 = vsub.s32 1, %v14343
    %v14345 = vrot.slane %v13798, %v14344
    %v14348 = vadd.f32 %v14335, %v14341
    %v14349 = vadd.f32 %v14336, %v14345
    %v14350 = vpack.c.bf16 %v14348, %v14348
    %v14351 = vpack.c.bf16 %v14349, %v14349
    %v14352 = vld [vmem:[%s14] sm:$0xf]
    %v14353 = vld [vmem:[%s14 + $0x4] sm:$0xf]
    %v14354 = vld [vmem:[%s14 + $0x8] sm:$0xf]
    %v14355 = vld [vmem:[%s14 + $0xc] sm:$0xf]
    %v14356 = vld [vmem:[%s14 + $0x10] sm:$0xf]
    %v14357 = vld [vmem:[%s14 + $0x14] sm:$0xf]
    %v14358 = vld [vmem:[%s14 + $0x18] sm:$0xf]
    %v14359 = vld [vmem:[%s14 + $0x1c] sm:$0xf]
    %v14360 = vld [vmem:[%s14 + $0x20] sm:$0xf]
    %v14361 = vld [vmem:[%s14 + $0x24] sm:$0xf]
    %v14362 = vld [vmem:[%s14 + $0x28] sm:$0xf]
    %v14363 = vld [vmem:[%s14 + $0x2c] sm:$0xf]
    %v14364 = vld [vmem:[%s14 + $0x30] sm:$0xf]
    %v14365 = vld [vmem:[%s14 + $0x34] sm:$0xf]
    %v14366 = vld [vmem:[%s14 + $0x38] sm:$0xf]
    %v14367 = vld [vmem:[%s14 + $0x3c] sm:$0xf]
    %v14368 = vld [vmem:[%s14 + $0x40] sm:$0xf]
    %v14369 = vld [vmem:[%s14 + $0x44] sm:$0xf]
    %v14370 = vld [vmem:[%s14 + $0x48] sm:$0xf]
    %v14371 = vld [vmem:[%s14 + $0x4c] sm:$0xf]
    %v14372 = vld [vmem:[%s14 + $0x50] sm:$0xf]
    %v14373 = vld [vmem:[%s14 + $0x54] sm:$0xf]
    %v14374 = vld [vmem:[%s14 + $0x58] sm:$0xf]
    %v14375 = vld [vmem:[%s14 + $0x5c] sm:$0xf]
    %v14376 = vld [vmem:[%s14 + $0x60] sm:$0xf]
    %v14377 = vld [vmem:[%s14 + $0x64] sm:$0xf]
    %v14378 = vld [vmem:[%s14 + $0x68] sm:$0xf]
    %v14379 = vld [vmem:[%s14 + $0x6c] sm:$0xf]
    %v14380 = vld [vmem:[%s14 + $0x70] sm:$0xf]
    %v14381 = vld [vmem:[%s14 + $0x74] sm:$0xf]
    %v14382 = vld [vmem:[%s14 + $0x78] sm:$0xf]
    %v14383 = vld [vmem:[%s14 + $0x7c] sm:$0xf]
    %v14384 = vld [vmem:[%s15] sm:$0x1]
    %v14386 = vlaneseq
    %v14387 = vshrl.u32 %v14386, 7
    %v14388 = vsub.s32 0, %v14387
    %v14389 = vrot.slane %v14384, %v14388
    %v14423 = vunpack.c.l.b16 %v14352
    %v14424 = vunpack.c.l.b16 %v14353
    %v14425 = vunpack.c.l.b16 %v14354
    %v14426 = vunpack.c.l.b16 %v14355
    %v14427 = vunpack.c.l.b16 %v14356
    %v14428 = vunpack.c.l.b16 %v14357
    %v14429 = vunpack.c.l.b16 %v14358
    %v14430 = vunpack.c.l.b16 %v14359
    %v14431 = vunpack.c.l.b16 %v14360
    %v14432 = vunpack.c.l.b16 %v14361
    %v14433 = vunpack.c.l.b16 %v14362
    %v14434 = vunpack.c.l.b16 %v14363
    %v14435 = vunpack.c.l.b16 %v14364
    %v14436 = vunpack.c.l.b16 %v14365
    %v14437 = vunpack.c.l.b16 %v14366
    %v14438 = vunpack.c.l.b16 %v14367
    %v14439 = vunpack.c.l.b16 %v14368
    %v14440 = vunpack.c.l.b16 %v14369
    %v14441 = vunpack.c.l.b16 %v14370
    %v14442 = vunpack.c.l.b16 %v14371
    %v14443 = vunpack.c.l.b16 %v14372
    %v14444 = vunpack.c.l.b16 %v14373
    %v14445 = vunpack.c.l.b16 %v14374
    %v14446 = vunpack.c.l.b16 %v14375
    %v14447 = vunpack.c.l.b16 %v14376
    %v14448 = vunpack.c.l.b16 %v14377
    %v14449 = vunpack.c.l.b16 %v14378
    %v14450 = vunpack.c.l.b16 %v14379
    %v14451 = vunpack.c.l.b16 %v14380
    %v14452 = vunpack.c.l.b16 %v14381
    %v14453 = vunpack.c.l.b16 %v14382
    %v14454 = vunpack.c.l.b16 %v14383
    %v14455 = vpack.c.b16 %v14424, %v14423
    %v14456 = vpack.c.b16 %v14426, %v14425
    %v14457 = vpack.c.b16 %v14428, %v14427
    %v14458 = vpack.c.b16 %v14430, %v14429
    %v14459 = vpack.c.b16 %v14432, %v14431
    %v14460 = vpack.c.b16 %v14434, %v14433
    %v14461 = vpack.c.b16 %v14436, %v14435
    %v14462 = vpack.c.b16 %v14438, %v14437
    %v14463 = vpack.c.b16 %v14440, %v14439
    %v14464 = vpack.c.b16 %v14442, %v14441
    %v14465 = vpack.c.b16 %v14444, %v14443
    %v14466 = vpack.c.b16 %v14446, %v14445
    %v14467 = vpack.c.b16 %v14448, %v14447
    %v14468 = vpack.c.b16 %v14450, %v14449
    %v14469 = vpack.c.b16 %v14452, %v14451
    %v14470 = vpack.c.b16 %v14454, %v14453
    %14487 = vmatprep.subr.bf16.mxu0 0
    %14488 = vmatpush1.bf16.msra.mxu0 %v14462
    %14489 = vmatprep.subr.bf16.mxu0 0
    %14490 = vmatpush1.bf16.msra.mxu0 %v14461
    %14491 = vmatprep.subr.bf16.mxu0 0
    %14492 = vmatpush1.bf16.msra.mxu0 %v14460
    %14493 = vmatprep.subr.bf16.mxu0 0
    %14494 = vmatpush1.bf16.msra.mxu0 %v14459
    %14495 = vmatprep.subr.bf16.mxu0 0
    %14496 = vmatpush1.bf16.msra.mxu0 %v14458
    %14497 = vmatprep.subr.bf16.mxu0 0
    %14498 = vmatpush1.bf16.msra.mxu0 %v14457
    %14499 = vmatprep.subr.bf16.mxu0 0
    %14500 = vmatpush1.bf16.msra.mxu0 %v14456
    %14501 = vmatprep.subr.bf16.mxu0 0
    %14502 = vmatpush1.bf16.msra.mxu0 %v14455
    %14503 = vmatprep.subr.bf16.mxu0 0
    %14504 = vmatpush2.bf16.msra.mxu0 %v14470
    %14505 = vmatprep.subr.bf16.mxu0 0
    %14506 = vmatpush2.bf16.msra.mxu0 %v14469
    %14507 = vmatprep.subr.bf16.mxu0 0
    %14508 = vmatpush2.bf16.msra.mxu0 %v14468
    %14509 = vmatprep.subr.bf16.mxu0 0
    %14510 = vmatpush2.bf16.msra.mxu0 %v14467
    %14511 = vmatprep.subr.bf16.mxu0 0
    %14512 = vmatpush2.bf16.msra.mxu0 %v14466
    %14513 = vmatprep.subr.bf16.mxu0 0
    %14514 = vmatpush2.bf16.msra.mxu0 %v14465
    %14515 = vmatprep.subr.bf16.mxu0 0
    %14516 = vmatpush2.bf16.msra.mxu0 %v14464
    %14517 = vmatprep.subr.bf16.mxu0 0
    %14518 = vmatpush2.bf16.msra.mxu0 %v14463
    %14519 = vmatprep.mubr.bf16.mxu0 %v14351
    %14520 = vmatmul.mubr.bf16.gmra.mxu0 %v14350
    %v14521 = vpop.f32.mrf.mxu0
    %v14522 = vadd.f32 %v14389, %v14521
    %v14523 = vpop.f32.mrf.mxu0
    %v14524 = vpop.f32.mrf.mxu0
    %v14525 = vpop.f32.mrf.mxu0
    %14526 = vdwg.mxu0
    %14527 = vst [vmem:[%s16] sm:$0xff] %v14522
    // Predicated region
    $region114: #{simple_mlp_forward.1} parent=1 // pred_check
      _
    $region115: #{simple_mlp_forward.1} parent=1 // pred_check_branch
      %14529 = sbr.rel (0) target = $region117
    $region116: #{simple_mlp_forward.1} parent=1 // pred_region
      _
    $region117: #{simple_mlp_forward.1} parent=1 // pred_fallthru
      _
    // Predicated region
    $region118: #{simple_mlp_forward.1} parent=1 // pred_check
      _
    $region119: #{simple_mlp_forward.1} parent=1 // pred_check_branch
      %14531 = sbr.rel (0) target = $region121
    $region120: #{simple_mlp_forward.1} parent=1 // pred_region
      _
    $region121: #{simple_mlp_forward.1} parent=1 // pred_fallthru
      _
    %14532 = vsyncpa [#allocation4], 1
    %14533 = vsyncpa [#allocation6], 1
    %14534 = vsyncpa [#allocation9], 1
    %14535 = vsyncpa [#allocation12], 1
    %14536 = vsyncpa [#allocation15], 1
    %14537 = vsyncpa [#allocation18], 1
    %14538 = vsyncpa [#allocation21], 1

</llo_original>
